<compile_context>
chip_gen: v5e
topology: v5e:2x2
jax: 0.10.0
libtpu: 0.0.40
codegen_flags: <defaults>
</compile_context>

<pallas_src>
import functools

import jax
import jax.numpy as jnp
from jax.experimental import pallas as pl
from jax.experimental.pallas import tpu as pltpu


# --------------------------------------------------------------------------
# small static helpers
# --------------------------------------------------------------------------
def _round_up(x, m):
    return ((x + m - 1) // m) * m


def _tile(dim, pref, quantum):
    """Largest tile <= pref that is a multiple of `quantum` and divides `dim`,
    else the full dim (single block; block == full dims is always legal)."""
    if dim <= pref:
        return dim
    t = (pref // quantum) * quantum
    while t >= quantum:
        if dim % t == 0:
            return t
        t -= quantum
    return dim


def _time_block(T, bsz, pref=8):
    """Timesteps per grid step. Falls back to the whole sequence if the flattened
    (ts*bsz) row block would violate the 8-sublane divisibility rule."""
    ts = min(pref, T)
    while T % ts:
        ts -= 1
    if ts != T and (ts * bsz) % 8 != 0:
        ts = T
    return ts


# --------------------------------------------------------------------------
# Pallas kernel: lane-dense tiled fused matmul + bias
#   out = sum_i x_i @ w_i + b      (1 or 2 (x, w) pairs)
# Used for the pregate projection (all timesteps, both directions in one shot)
# and for the fc head.  Weights are bf16; activations cast in-kernel; f32 acc.
# --------------------------------------------------------------------------
def matmul_bias_multi(xs, ws, b):
    """xs[i]: [M, K_i] f32, ws[i]: [K_i, N] bf16, b: [N] f32 -> [M, N] f32."""
    n = len(xs)
    M = xs[0].shape[0]
    N = ws[0].shape[1]
    tm = _tile(M, 256, 8)
    tn = _tile(N, 512, 128)

    def kernel(*refs):
        x_refs = refs[0:n]
        w_refs = refs[n:2 * n]
        b_ref = refs[2 * n]
        o_ref = refs[2 * n + 1]
        out = b_ref[...]                                   # (1, tn) f32
        for i in range(n):
            out = out + jnp.dot(x_refs[i][...].astype(jnp.bfloat16),
                                w_refs[i][...],
                                preferred_element_type=jnp.float32)
        o_ref[...] = out

    in_specs = (
        [pl.BlockSpec((tm, x.shape[1]), lambda i, j: (i, 0)) for x in xs]
        + [pl.BlockSpec((w.shape[0], tn), lambda i, j: (0, j)) for w in ws]
        + [pl.BlockSpec((1, tn), lambda i, j: (0, j))]
    )
    return pl.pallas_call(
        kernel,
        out_shape=jax.ShapeDtypeStruct((M, N), jnp.float32),
        grid=(M // tm, N // tn),
        in_specs=in_specs,
        out_specs=pl.BlockSpec((tm, tn), lambda i, j: (i, j)),
        compiler_params=pltpu.CompilerParams(
            dimension_semantics=("parallel", "parallel")),
    )(*xs, *ws, b.reshape(1, -1))


# --------------------------------------------------------------------------
# Pallas kernel: bidirectional LSTM recurrence for one layer.
#   grid = (T // ts,)  ["arbitrary"]; both directions interleaved per step.
#   pregates already contain x @ W_ih + b_ih + b_hh for both directions.
#   Packed gate order per direction: (i, f, o, g) -> one contiguous sigmoid.
# --------------------------------------------------------------------------
def _bilstm_kernel(pgf_ref, pgr_ref, whh_ref, h0_ref, c0_ref,
                   of_ref, or_ref, cN_ref, h_sc, c_sc, *, ts, bsz, hp):
    tb = pl.program_id(0)

    @pl.when(tb == 0)
    def _():
        h_sc[...] = h0_ref[...]
        c_sc[...] = c0_ref[...]

    # rows 0:bsz = forward carry, rows bsz:2*bsz = reverse carry
    h_f = h_sc[0:bsz, :]
    h_r = h_sc[bsz:2 * bsz, :]
    c_f = c_sc[0:bsz, :]
    c_r = c_sc[bsz:2 * bsz, :]

    def lstm_cell(pre, c):
        sig = jax.nn.sigmoid(pre[:, 0:3 * hp])          # (i, f, o) in one EUP slab
        i_g = sig[:, 0 * hp:1 * hp]
        f_g = sig[:, 1 * hp:2 * hp]
        o_g = sig[:, 2 * hp:3 * hp]
        g_g = jnp.tanh(pre[:, 3 * hp:4 * hp])
        c_new = f_g * c + i_g * g_g
        h_new = o_g * jnp.tanh(c_new)
        return h_new, c_new

    # Two independent recurrence chains advanced together (fwd + rev) -> ~2x ILP
    # on single-TensorCore chips.  All indices are static Python ints.
    for s in range(ts):
        rf = s * bsz                    # forward: local time s
        rr = (ts - 1 - s) * bsz         # reverse: local time ts-1-s
        # W_hh streamed from VMEM each step (no 256 KiB live value -> no spill).
        pre_f = pgf_ref[rf:rf + bsz, :] + jnp.dot(
            h_f.astype(jnp.bfloat16), whh_ref[0:hp, :],
            preferred_element_type=jnp.float32)
        pre_r = pgr_ref[rr:rr + bsz, :] + jnp.dot(
            h_r.astype(jnp.bfloat16), whh_ref[hp:2 * hp, :],
            preferred_element_type=jnp.float32)
        h_f, c_f = lstm_cell(pre_f, c_f)
        h_r, c_r = lstm_cell(pre_r, c_r)
        of_ref[rf:rf + bsz, :] = h_f
        or_ref[rr:rr + bsz, :] = h_r

    # carry to the next time block
    h_sc[0:bsz, :] = h_f
    h_sc[bsz:2 * bsz, :] = h_r
    c_sc[0:bsz, :] = c_f
    c_sc[bsz:2 * bsz, :] = c_r

    # constant-index output block stays VMEM-resident; written every step so it
    # is never flushed uninitialized and its final flush holds the final state.
    cN_ref[0:bsz, :] = c_f
    cN_ref[bsz:2 * bsz, :] = c_r


def bilstm_layer(pregates, w_hh, h0, c0, ts, bsz):
    """pregates: [T*B, 8*HP] f32 (fwd gates cols 0:4HP, rev gates cols 4HP:8HP)
    w_hh: [2*HP, 4*HP] bf16 (rows 0:HP fwd, HP:2HP rev)
    h0, c0: [2*B, HP] f32 (rows 0:B fwd, B:2B rev)
    Returns (out_fwd [T*B, HP], out_rev [T*B, HP], c_N [2*B, HP])."""
    TB, eight_hp = pregates.shape
    HP = eight_hp // 8
    T = TB // bsz
    ntb = T // ts

    grid_spec = pltpu.PrefetchScalarGridSpec(
        num_scalar_prefetch=0,
        grid=(ntb,),
        in_specs=[
            # forward time block, forward gate columns
            pl.BlockSpec((ts * bsz, 4 * HP), lambda tb: (tb, 0)),
            # reverse time block (walked back-to-front), reverse gate columns
            pl.BlockSpec((ts * bsz, 4 * HP), lambda tb: (ntb - 1 - tb, 1)),
            pl.BlockSpec((2 * HP, 4 * HP), lambda tb: (0, 0)),
            pl.BlockSpec((2 * bsz, HP), lambda tb: (0, 0)),
            pl.BlockSpec((2 * bsz, HP), lambda tb: (0, 0)),
        ],
        out_specs=(
            pl.BlockSpec((ts * bsz, HP), lambda tb: (tb, 0)),
            pl.BlockSpec((ts * bsz, HP), lambda tb: (ntb - 1 - tb, 0)),
            pl.BlockSpec((2 * bsz, HP), lambda tb: (0, 0)),
        ),
        scratch_shapes=[pltpu.VMEM((2 * bsz, HP), jnp.float32),
                        pltpu.VMEM((2 * bsz, HP), jnp.float32)],
    )
    return pl.pallas_call(
        functools.partial(_bilstm_kernel, ts=ts, bsz=bsz, hp=HP),
        out_shape=(jax.ShapeDtypeStruct((TB, HP), jnp.float32),
                   jax.ShapeDtypeStruct((TB, HP), jnp.float32),
                   jax.ShapeDtypeStruct((2 * bsz, HP), jnp.float32)),
        grid_spec=grid_spec,
        compiler_params=pltpu.CompilerParams(
            dimension_semantics=("arbitrary",)),
    )(pregates, pregates, w_hh, h0, c0)


# --------------------------------------------------------------------------
# Parameter construction (PyTorch-like init), packed into the padded layout.
#   Packed per-direction gate slots: (i, f, o, g); torch chunk order is (i,f,g,o).
#   w_ih parts: layer 0 -> ( [E, 8*HP], );  layer>0 -> ( [HP,8*HP], [HP,8*HP] )
#   w_hh: [2*HP, 4*HP];  b: [8*HP] (b_ih + b_hh fused);  fc: per-direction halves.
#   All matmul weights stored bf16; biases/state f32.
# --------------------------------------------------------------------------
def init_params(key, vocab_size, embed_size, hidden_size, num_layers=2):
    H = hidden_size
    HP = _round_up(H, 128)
    VP = _round_up(vocab_size, 128)
    slot_to_chunk = (0, 1, 3, 2)        # our (i, f, o, g) <- torch (i, f, g, o)

    keys = iter(jax.random.split(key, 3 + num_layers * 2 * 4))

    emb = jax.random.normal(next(keys), (vocab_size, embed_size), jnp.float32)
    emb = emb.at[0].set(0.0)                       # padding_idx=0

    k_lstm = 1.0 / (hidden_size ** 0.5)
    lstm_params = []
    for layer in range(num_layers):
        in_real = embed_size if layer == 0 else 2 * H
        n_parts = 1 if layer == 0 else 2
        part_rows = embed_size if layer == 0 else HP
        w_ih_parts = [jnp.zeros((part_rows, 8 * HP), jnp.float32)
                      for _ in range(n_parts)]
        w_hh = jnp.zeros((2 * HP, 4 * HP), jnp.float32)
        b = jnp.zeros((8 * HP,), jnp.float32)
        for d in range(2):
            W_ih = jax.random.uniform(next(keys), (4 * H, in_real),
                                      jnp.float32, -k_lstm, k_lstm)
            W_hh = jax.random.uniform(next(keys), (4 * H, H),
                                      jnp.float32, -k_lstm, k_lstm)
            b_ih = jax.random.uniform(next(keys), (4 * H,),
                                      jnp.float32, -k_lstm, k_lstm)
            b_hh = jax.random.uniform(next(keys), (4 * H,),
                                      jnp.float32, -k_lstm, k_lstm)
            for slot in range(4):
                chunk = slot_to_chunk[slot]
                col0 = d * 4 * HP + slot * HP
                Wg = W_ih[chunk * H:(chunk + 1) * H, :]        # [H, in_real]
                if layer == 0:
                    w_ih_parts[0] = w_ih_parts[0].at[:, col0:col0 + H].set(Wg.T)
                else:
                    w_ih_parts[0] = w_ih_parts[0].at[0:H, col0:col0 + H].set(
                        Wg[:, 0:H].T)
                    w_ih_parts[1] = w_ih_parts[1].at[0:H, col0:col0 + H].set(
                        Wg[:, H:2 * H].T)
                w_hh = w_hh.at[d * HP:d * HP + H,
                               slot * HP:slot * HP + H].set(
                    W_hh[chunk * H:(chunk + 1) * H, :].T)
                b = b.at[col0:col0 + H].set(
                    b_ih[chunk * H:(chunk + 1) * H]
                    + b_hh[chunk * H:(chunk + 1) * H])
        lstm_params.append({
            "w_ih_parts": tuple(w.astype(jnp.bfloat16) for w in w_ih_parts),
            "w_hh": w_hh.astype(jnp.bfloat16),
            "b": b,
        })

    fc_in = 2 * H
    k_fc = 1.0 / (fc_in ** 0.5)
    fc_w_real = jax.random.uniform(next(keys), (vocab_size, fc_in),
                                   jnp.float32, -k_fc, k_fc)
    fc_b_real = jax.random.uniform(next(keys), (vocab_size,),
                                   jnp.float32, -k_fc, k_fc)
    fc_w_f = jnp.zeros((HP, VP), jnp.float32).at[0:H, 0:vocab_size].set(
        fc_w_real[:, 0:H].T)
    fc_w_r = jnp.zeros((HP, VP), jnp.float32).at[0:H, 0:vocab_size].set(
        fc_w_real[:, H:2 * H].T)
    fc_b = jnp.zeros((VP,), jnp.float32).at[0:vocab_size].set(fc_b_real)

    return {"embedding": emb,
            "lstm": lstm_params,
            "fc_w_parts": (fc_w_f.astype(jnp.bfloat16),
                           fc_w_r.astype(jnp.bfloat16)),
            "fc_b": fc_b}


# --------------------------------------------------------------------------
# Full forward pass (encoder_outputs=None path).
# --------------------------------------------------------------------------
def awareness_lstm_forward(params, x_ids, hidden):
    """x_ids: [B, T] int32, hidden = (h0, c0) each [num_layers*2, B, H]."""
    h0, c0 = hidden
    B, T = x_ids.shape
    L = len(params["lstm"])
    H = h0.shape[-1]
    HP = params["lstm"][0]["w_hh"].shape[1] // 4
    V = params["embedding"].shape[0]
    ts = _time_block(T, B)

    # Embedding lookup (XLA gather), time-major, flattened to sublane-dense [T*B, E].
    # self.dropout(embeds): identity at eval time.
    embeds = params["embedding"][x_ids.T].reshape(T * B, -1)    # [T*B, E]

    # Initial states padded to HP, per layer packed as [2*B, HP] (fwd rows 0:B).
    h0p = jnp.zeros((L, 2 * B, HP), jnp.float32).at[:, :, :H].set(
        h0.reshape(L, 2 * B, H))
    c0p = jnp.zeros((L, 2 * B, HP), jnp.float32).at[:, :, :H].set(
        c0.reshape(L, 2 * B, H))

    x_parts = (embeds,)
    hN_list, cN_list = [], []
    out_f = out_r = None
    for l in range(L):
        lp = params["lstm"][l]
        # Hoisted input projection: all timesteps, both directions, one fused matmul.
        pre = matmul_bias_multi(x_parts, lp["w_ih_parts"], lp["b"])   # [T*B, 8*HP]
        out_f, out_r, cN = bilstm_layer(pre, lp["w_hh"], h0p[l], c0p[l], ts, B)
        hN_list.append(out_f[(T - 1) * B:T * B, :H])   # fwd: hidden after t=T-1
        hN_list.append(out_r[0:B, :H])                 # rev: hidden after t=0
        cN_list.append(cN[0:B, :H])
        cN_list.append(cN[B:2 * B, :H])
        x_parts = (out_f, out_r)                       # no concatenate pass
        # inter-layer LSTM dropout: identity at eval time.

    # fc head on the last timestep only (out[:, -1, :] in batch-first terms).
    logits = matmul_bias_multi(
        (out_f[(T - 1) * B:T * B, :], out_r[(T - 1) * B:T * B, :]),
        params["fc_w_parts"], params["fc_b"])[:, :V]

    h_n = jnp.stack(hN_list, axis=0)                   # [num_layers*2, B, H]
    c_n = jnp.stack(cN_list, axis=0)
    return logits, (h_n, c_n)


# TODO(synk): the attention (encoder_outputs is not None) branch is not implemented
# because its Linear(4H -> 2H) is applied to 2H-wide lstm outputs in the reference
# code and cannot execute; only the reachable default path is reproduced.


if __name__ == "__main__":
    VOCAB, EMBED, HIDDEN, NUM_LAYERS = 50, 32, 32, 2
    B, T = 2, 8

    key = jax.random.PRNGKey(0)
    k_params, k_x = jax.random.split(key)

    params = init_params(k_params, VOCAB, EMBED, HIDDEN, NUM_LAYERS)
    x_ids = jax.random.randint(k_x, (B, T), 0, VOCAB, dtype=jnp.int32)

    # init_hidden(batch_size): zeros of shape [num_layers * 2, B, H]
    h0 = jnp.zeros((NUM_LAYERS * 2, B, HIDDEN), jnp.float32)
    c0 = jnp.zeros((NUM_LAYERS * 2, B, HIDDEN), jnp.float32)

    fwd = jax.jit(awareness_lstm_forward)
    logits, (h_n, c_n) = fwd(params, x_ids, (h0, c0))
    jax.block_until_ready((logits, h_n, c_n))

    assert logits.shape == (B, VOCAB)
    assert h_n.shape == (NUM_LAYERS * 2, B, HIDDEN)
    assert c_n.shape == (NUM_LAYERS * 2, B, HIDDEN)
    assert bool(jnp.all(jnp.isfinite(logits)))
    print("KERNEL_OK")
</pallas_src>

<mosaic_0001>
module attributes {stable_mosaic.version = 11 : i64} {
  func.func @kernel(%arg0: i32, %arg1: i32, %arg2: memref<16x32xf32, #tpu.memory_space<vmem>>, %arg3: memref<32x512xbf16, #tpu.memory_space<vmem>>, %arg4: memref<1x512xf32, #tpu.memory_space<vmem>>, %arg5: memref<16x512xf32, #tpu.memory_space<vmem>>) attributes {dimension_semantics = [#tpu.dimension_semantics<parallel>, #tpu.dimension_semantics<parallel>], iteration_bounds = array<i64: 1, 2>, scalar_prefetch = 0 : i64, scratch_operands = 0 : i64, tpu.core_type = #tpu.core_type<tc>, window_params = [{transform_indices = @transform_0, window_bounds = array<i64: 16, 32>}, {transform_indices = @transform_1, window_bounds = array<i64: 32, 512>}, {transform_indices = @transform_2, window_bounds = array<i64: 1, 512>}, {transform_indices = @transform_3, window_bounds = array<i64: 16, 512>}]} {
    %c0 = arith.constant 0 : index
    %c0_0 = arith.constant 0 : index
    %0 = vector.load %arg4[%c0, %c0_0] : memref<1x512xf32, #tpu.memory_space<vmem>>, vector<1x512xf32>
    %c0_1 = arith.constant 0 : index
    %c0_2 = arith.constant 0 : index
    %1 = vector.load %arg2[%c0_1, %c0_2] : memref<16x32xf32, #tpu.memory_space<vmem>>, vector<16x32xf32>
    %2 = arith.truncf %1 : vector<16x32xf32> to vector<16x32xbf16>
    %c0_3 = arith.constant 0 : index
    %c0_4 = arith.constant 0 : index
    %3 = vector.load %arg3[%c0_3, %c0_4] : memref<32x512xbf16, #tpu.memory_space<vmem>>, vector<32x512xbf16>
    %cst = arith.constant dense<0.000000e+00> : vector<16x512xf32>
    %4 = tpu.matmul %2, %3, %cst {dimension_numbers = #tpu.dot_dimension_numbers<[1], [0], [0], [1], [0, 0, 1, 1], [], []>} : vector<16x32xbf16>, vector<32x512xbf16>, vector<16x512xf32> -> vector<16x512xf32>
    %5 = vector.broadcast %0 : vector<1x512xf32> to vector<16x512xf32>
    %6 = arith.addf %5, %4 : vector<16x512xf32>
    %c0_5 = arith.constant 0 : index
    %c0_6 = arith.constant 0 : index
    %7 = vector.load %arg5[%c0_5, %c0_6] : memref<16x512xf32, #tpu.memory_space<vmem>>, vector<16x512xf32>
    tpu.vector_store %arg5[%c0_5, %c0_6], %6 {strides = array<i32>} : memref<16x512xf32, #tpu.memory_space<vmem>>, vector<16x512xf32>,
    return
  }
  func.func @transform_0(%arg0: i32, %arg1: i32) -> (i32, i32) {
    %c0_i32 = arith.constant 0 : i32
    %c0_i32_0 = arith.constant 0 : i32
    return %arg0, %c0_i32 : i32, i32
  }
  func.func @transform_1(%arg0: i32, %arg1: i32) -> (i32, i32) {
    %c0_i32 = arith.constant 0 : i32
    %c0_i32_0 = arith.constant 0 : i32
    return %c0_i32, %arg1 : i32, i32
  }
  func.func @transform_2(%arg0: i32, %arg1: i32) -> (i32, i32) {
    %c0_i32 = arith.constant 0 : i32
    %c0_i32_0 = arith.constant 0 : i32
    return %c0_i32, %arg1 : i32, i32
  }
  func.func @transform_3(%arg0: i32, %arg1: i32) -> (i32, i32) {
    %c0_i32 = arith.constant 0 : i32
    return %arg0, %arg1 : i32, i32
  }
}

module attributes {stable_mosaic.version = 11 : i64} {
  func.func @kernel(%arg0: i32, %arg1: i32, %arg2: memref<16x128xf32, #tpu.memory_space<vmem>>, %arg3: memref<16x128xf32, #tpu.memory_space<vmem>>, %arg4: memref<128x512xbf16, #tpu.memory_space<vmem>>, %arg5: memref<128x512xbf16, #tpu.memory_space<vmem>>, %arg6: memref<1x512xf32, #tpu.memory_space<vmem>>, %arg7: memref<16x512xf32, #tpu.memory_space<vmem>>) attributes {dimension_semantics = [#tpu.dimension_semantics<parallel>, #tpu.dimension_semantics<parallel>], iteration_bounds = array<i64: 1, 2>, scalar_prefetch = 0 : i64, scratch_operands = 0 : i64, tpu.core_type = #tpu.core_type<tc>, window_params = [{transform_indices = @transform_0, window_bounds = array<i64: 16, 128>}, {transform_indices = @transform_1, window_bounds = array<i64: 16, 128>}, {transform_indices = @transform_2, window_bounds = array<i64: 128, 512>}, {transform_indices = @transform_3, window_bounds = array<i64: 128, 512>}, {transform_indices = @transform_4, window_bounds = array<i64: 1, 512>}, {transform_indices = @transform_5, window_bounds = array<i64: 16, 512>}]} {
    %c0 = arith.constant 0 : index
    %c0_0 = arith.constant 0 : index
    %0 = vector.load %arg6[%c0, %c0_0] : memref<1x512xf32, #tpu.memory_space<vmem>>, vector<1x512xf32>
    %c0_1 = arith.constant 0 : index
    %c0_2 = arith.constant 0 : index
    %1 = vector.load %arg2[%c0_1, %c0_2] : memref<16x128xf32, #tpu.memory_space<vmem>>, vector<16x128xf32>
    %2 = arith.truncf %1 : vector<16x128xf32> to vector<16x128xbf16>
    %c0_3 = arith.constant 0 : index
    %c0_4 = arith.constant 0 : index
    %3 = vector.load %arg4[%c0_3, %c0_4] : memref<128x512xbf16, #tpu.memory_space<vmem>>, vector<128x512xbf16>
    %cst = arith.constant dense<0.000000e+00> : vector<16x512xf32>
    %4 = tpu.matmul %2, %3, %cst {dimension_numbers = #tpu.dot_dimension_numbers<[1], [0], [0], [1], [0, 0, 1, 1], [], []>} : vector<16x128xbf16>, vector<128x512xbf16>, vector<16x512xf32> -> vector<16x512xf32>
    %5 = vector.broadcast %0 : vector<1x512xf32> to vector<16x512xf32>
    %6 = arith.addf %5, %4 : vector<16x512xf32>
    %c0_5 = arith.constant 0 : index
    %c0_6 = arith.constant 0 : index
    %7 = vector.load %arg3[%c0_5, %c0_6] : memref<16x128xf32, #tpu.memory_space<vmem>>, vector<16x128xf32>
    %8 = arith.truncf %7 : vector<16x128xf32> to vector<16x128xbf16>
    %c0_7 = arith.constant 0 : index
    %c0_8 = arith.constant 0 : index
    %9 = vector.load %arg5[%c0_7, %c0_8] : memref<128x512xbf16, #tpu.memory_space<vmem>>, vector<128x512xbf16>
    %cst_9 = arith.constant dense<0.000000e+00> : vector<16x512xf32>
    %10 = tpu.matmul %8, %9, %cst_9 {dimension_numbers = #tpu.dot_dimension_numbers<[1], [0], [0], [1], [0, 0, 1, 1], [], []>} : vector<16x128xbf16>, vector<128x512xbf16>, vector<16x512xf32> -> vector<16x512xf32>
    %11 = arith.addf %6, %10 : vector<16x512xf32>
    %c0_10 = arith.constant 0 : index
    %c0_11 = arith.constant 0 : index
    %12 = vector.load %arg7[%c0_10, %c0_11] : memref<16x512xf32, #tpu.memory_space<vmem>>, vector<16x512xf32>
    tpu.vector_store %arg7[%c0_10, %c0_11], %11 {strides = array<i32>} : memref<16x512xf32, #tpu.memory_space<vmem>>, vector<16x512xf32>,
    return
  }
  func.func @transform_0(%arg0: i32, %arg1: i32) -> (i32, i32) {
    %c0_i32 = arith.constant 0 : i32
    %c0_i32_0 = arith.constant 0 : i32
    return %arg0, %c0_i32 : i32, i32
  }
  func.func @transform_1(%arg0: i32, %arg1: i32) -> (i32, i32) {
    %c0_i32 = arith.constant 0 : i32
    %c0_i32_0 = arith.constant 0 : i32
    return %arg0, %c0_i32 : i32, i32
  }
  func.func @transform_2(%arg0: i32, %arg1: i32) -> (i32, i32) {
    %c0_i32 = arith.constant 0 : i32
    %c0_i32_0 = arith.constant 0 : i32
    return %c0_i32, %arg1 : i32, i32
  }
  func.func @transform_3(%arg0: i32, %arg1: i32) -> (i32, i32) {
    %c0_i32 = arith.constant 0 : i32
    %c0_i32_0 = arith.constant 0 : i32
    return %c0_i32, %arg1 : i32, i32
  }
  func.func @transform_4(%arg0: i32, %arg1: i32) -> (i32, i32) {
    %c0_i32 = arith.constant 0 : i32
    %c0_i32_0 = arith.constant 0 : i32
    return %c0_i32, %arg1 : i32, i32
  }
  func.func @transform_5(%arg0: i32, %arg1: i32) -> (i32, i32) {
    %c0_i32 = arith.constant 0 : i32
    return %arg0, %arg1 : i32, i32
  }
}

module attributes {stable_mosaic.version = 11 : i64} {
  func.func @_bilstm_kernel(%arg0: i32, %arg1: memref<16x512xf32, #tpu.memory_space<vmem>>, %arg2: memref<16x512xf32, #tpu.memory_space<vmem>>, %arg3: memref<256x512xbf16, #tpu.memory_space<vmem>>, %arg4: memref<4x128xf32, #tpu.memory_space<vmem>>, %arg5: memref<4x128xf32, #tpu.memory_space<vmem>>, %arg6: memref<16x128xf32, #tpu.memory_space<vmem>>, %arg7: memref<16x128xf32, #tpu.memory_space<vmem>>, %arg8: memref<4x128xf32, #tpu.memory_space<vmem>>, %arg9: memref<4x128xf32, #tpu.memory_space<vmem>>, %arg10: memref<4x128xf32, #tpu.memory_space<vmem>>) attributes {dimension_semantics = [#tpu.dimension_semantics<arbitrary>], iteration_bounds = array<i64: 1>, scalar_prefetch = 0 : i64, scratch_operands = 2 : i64, tpu.core_type = #tpu.core_type<tc>, window_params = [{transform_indices = @transform_0, window_bounds = array<i64: 16, 512>}, {transform_indices = @transform_1, window_bounds = array<i64: 16, 512>}, {pipeline_mode = #tpu.pipeline_mode<synchronous>, transform_indices = @transform_2, window_bounds = array<i64: 256, 512>}, {pipeline_mode = #tpu.pipeline_mode<synchronous>, transform_indices = @transform_3, window_bounds = array<i64: 4, 128>}, {pipeline_mode = #tpu.pipeline_mode<synchronous>, transform_indices = @transform_4, window_bounds = array<i64: 4, 128>}, {transform_indices = @transform_5, window_bounds = array<i64: 16, 128>}, {transform_indices = @transform_6, window_bounds = array<i64: 16, 128>}, {pipeline_mode = #tpu.pipeline_mode<synchronous>, transform_indices = @transform_7, window_bounds = array<i64: 4, 128>}]} {
    %c0_i32 = arith.constant 0 : i32
    %0 = arith.cmpi eq, %arg0, %c0_i32 : i32
    %1 = arith.extui %0 : i1 to i32
    %c0_i32_0 = arith.constant 0 : i32
    %2 = arith.cmpi ne, %1, %c0_i32_0 : i32
    scf.if %2 {
      %c0_139 = arith.constant 0 : index
      %c0_140 = arith.constant 0 : index
      %365 = vector.load %arg4[%c0_139, %c0_140] : memref<4x128xf32, #tpu.memory_space<vmem>>, vector<4x128xf32>
      %c0_141 = arith.constant 0 : index
      %c0_142 = arith.constant 0 : index
      %366 = vector.load %arg9[%c0_141, %c0_142] : memref<4x128xf32, #tpu.memory_space<vmem>>, vector<4x128xf32>
      tpu.vector_store %arg9[%c0_141, %c0_142], %365 {strides = array<i32>} : memref<4x128xf32, #tpu.memory_space<vmem>>, vector<4x128xf32>,
      %c0_143 = arith.constant 0 : index
      %c0_144 = arith.constant 0 : index
      %367 = vector.load %arg5[%c0_143, %c0_144] : memref<4x128xf32, #tpu.memory_space<vmem>>, vector<4x128xf32>
      %c0_145 = arith.constant 0 : index
      %c0_146 = arith.constant 0 : index
      %368 = vector.load %arg10[%c0_145, %c0_146] : memref<4x128xf32, #tpu.memory_space<vmem>>, vector<4x128xf32>
      tpu.vector_store %arg10[%c0_145, %c0_146], %367 {strides = array<i32>} : memref<4x128xf32, #tpu.memory_space<vmem>>, vector<4x128xf32>,
    } else {
    }
    %c0 = arith.constant 0 : index
    %c0_1 = arith.constant 0 : index
    %3 = vector.load %arg9[%c0, %c0_1] : memref<4x128xf32, #tpu.memory_space<vmem>>, vector<2x128xf32>
    %c2 = arith.constant 2 : index
    %c0_2 = arith.constant 0 : index
    %4 = vector.load %arg9[%c2, %c0_2] : memref<4x128xf32, #tpu.memory_space<vmem>>, vector<2x128xf32>
    %c0_3 = arith.constant 0 : index
    %c0_4 = arith.constant 0 : index
    %5 = vector.load %arg10[%c0_3, %c0_4] : memref<4x128xf32, #tpu.memory_space<vmem>>, vector<2x128xf32>
    %c2_5 = arith.constant 2 : index
    %c0_6 = arith.constant 0 : index
    %6 = vector.load %arg10[%c2_5, %c0_6] : memref<4x128xf32, #tpu.memory_space<vmem>>, vector<2x128xf32>
    %c0_7 = arith.constant 0 : index
    %c0_8 = arith.constant 0 : index
    %7 = vector.load %arg1[%c0_7, %c0_8] : memref<16x512xf32, #tpu.memory_space<vmem>>, vector<2x512xf32>
    %8 = arith.truncf %3 : vector<2x128xf32> to vector<2x128xbf16>
    %c0_9 = arith.constant 0 : index
    %c0_10 = arith.constant 0 : index
    %9 = vector.load %arg3[%c0_9, %c0_10] : memref<256x512xbf16, #tpu.memory_space<vmem>>, vector<128x512xbf16>
    %cst = arith.constant dense<0.000000e+00> : vector<2x512xf32>
    %10 = tpu.matmul %8, %9, %cst {dimension_numbers = #tpu.dot_dimension_numbers<[1], [0], [0], [1], [0, 0, 1, 1], [], []>} : vector<2x128xbf16>, vector<128x512xbf16>, vector<2x512xf32> -> vector<2x512xf32>
    %11 = arith.addf %7, %10 : vector<2x512xf32>
    %c14 = arith.constant 14 : index
    %c0_11 = arith.constant 0 : index
    %12 = vector.load %arg2[%c14, %c0_11] : memref<16x512xf32, #tpu.memory_space<vmem>>, vector<2x512xf32>
    %13 = arith.truncf %4 : vector<2x128xf32> to vector<2x128xbf16>
    %c128 = arith.constant 128 : index
    %c0_12 = arith.constant 0 : index
    %14 = vector.load %arg3[%c128, %c0_12] : memref<256x512xbf16, #tpu.memory_space<vmem>>, vector<128x512xbf16>
    %cst_13 = arith.constant dense<0.000000e+00> : vector<2x512xf32>
    %15 = tpu.matmul %13, %14, %cst_13 {dimension_numbers = #tpu.dot_dimension_numbers<[1], [0], [0], [1], [0, 0, 1, 1], [], []>} : vector<2x128xbf16>, vector<128x512xbf16>, vector<2x512xf32> -> vector<2x512xf32>
    %16 = arith.addf %12, %15 : vector<2x512xf32>
    %17 = vector.extract_strided_slice %11 {offsets = [0, 0], sizes = [2, 384], strides = [1, 1]} : vector<2x512xf32> to vector<2x384xf32>
    %18 = arith.negf %17 : vector<2x384xf32>
    %19 = math.exp %18 : vector<2x384xf32>
    %cst_14 = arith.constant 1.000000e+00 : f32
    %20 = vector.broadcast %cst_14 : f32 to vector<2x384xf32>
    %21 = arith.addf %20, %19 : vector<2x384xf32>
    %22 = arith.divf %20, %21 : vector<2x384xf32>
    %23 = vector.extract_strided_slice %22 {offsets = [0, 0], sizes = [2, 128], strides = [1, 1]} : vector<2x384xf32> to vector<2x128xf32>
    %24 = vector.extract_strided_slice %22 {offsets = [0, 128], sizes = [2, 128], strides = [1, 1]} : vector<2x384xf32> to vector<2x128xf32>
    %25 = vector.extract_strided_slice %22 {offsets = [0, 256], sizes = [2, 128], strides = [1, 1]} : vector<2x384xf32> to vector<2x128xf32>
    %26 = vector.extract_strided_slice %11 {offsets = [0, 384], sizes = [2, 128], strides = [1, 1]} : vector<2x512xf32> to vector<2x128xf32>
    %27 = math.tanh %26 : vector<2x128xf32>
    %28 = arith.mulf %24, %5 : vector<2x128xf32>
    %29 = arith.mulf %23, %27 : vector<2x128xf32>
    %30 = arith.addf %28, %29 : vector<2x128xf32>
    %31 = math.tanh %30 : vector<2x128xf32>
    %32 = arith.mulf %25, %31 : vector<2x128xf32>
    %33 = vector.extract_strided_slice %16 {offsets = [0, 0], sizes = [2, 384], strides = [1, 1]} : vector<2x512xf32> to vector<2x384xf32>
    %34 = arith.negf %33 : vector<2x384xf32>
    %35 = math.exp %34 : vector<2x384xf32>
    %cst_15 = arith.constant 1.000000e+00 : f32
    %36 = vector.broadcast %cst_15 : f32 to vector<2x384xf32>
    %37 = arith.addf %36, %35 : vector<2x384xf32>
    %38 = arith.divf %36, %37 : vector<2x384xf32>
    %39 = vector.extract_strided_slice %38 {offsets = [0, 0], sizes = [2, 128], strides = [1, 1]} : vector<2x384xf32> to vector<2x128xf32>
    %40 = vector.extract_strided_slice %38 {offsets = [0, 128], sizes = [2, 128], strides = [1, 1]} : vector<2x384xf32> to vector<2x128xf32>
    %41 = vector.extract_strided_slice %38 {offsets = [0, 256], sizes = [2, 128], strides = [1, 1]} : vector<2x384xf32> to vector<2x128xf32>
    %42 = vector.extract_strided_slice %16 {offsets = [0, 384], sizes = [2, 128], strides = [1, 1]} : vector<2x512xf32> to vector<2x128xf32>
    %43 = math.tanh %42 : vector<2x128xf32>
    %44 = arith.mulf %40, %6 : vector<2x128xf32>
    %45 = arith.mulf %39, %43 : vector<2x128xf32>
    %46 = arith.addf %44, %45 : vector<2x128xf32>
    %47 = math.tanh %46 : vector<2x128xf32>
    %48 = arith.mulf %41, %47 : vector<2x128xf32>
    %c0_16 = arith.constant 0 : index
    %c0_17 = arith.constant 0 : index
    %49 = vector.load %arg6[%c0_16, %c0_17] : memref<16x128xf32, #tpu.memory_space<vmem>>, vector<2x128xf32>
    tpu.vector_store %arg6[%c0_16, %c0_17], %32 {strides = array<i32>} : memref<16x128xf32, #tpu.memory_space<vmem>>, vector<2x128xf32>,
    %c14_18 = arith.constant 14 : index
    %c0_19 = arith.constant 0 : index
    %50 = vector.load %arg7[%c14_18, %c0_19] : memref<16x128xf32, #tpu.memory_space<vmem>>, vector<2x128xf32>
    tpu.vector_store %arg7[%c14_18, %c0_19], %48 {strides = array<i32>} : memref<16x128xf32, #tpu.memory_space<vmem>>, vector<2x128xf32>,
    %c2_20 = arith.constant 2 : index
    %c0_21 = arith.constant 0 : index
    %51 = vector.load %arg1[%c2_20, %c0_21] : memref<16x512xf32, #tpu.memory_space<vmem>>, vector<2x512xf32>
    %52 = arith.truncf %32 : vector<2x128xf32> to vector<2x128xbf16>
    %c0_22 = arith.constant 0 : index
    %c0_23 = arith.constant 0 : index
    %53 = vector.load %arg3[%c0_22, %c0_23] : memref<256x512xbf16, #tpu.memory_space<vmem>>, vector<128x512xbf16>
    %cst_24 = arith.constant dense<0.000000e+00> : vector<2x512xf32>
    %54 = tpu.matmul %52, %53, %cst_24 {dimension_numbers = #tpu.dot_dimension_numbers<[1], [0], [0], [1], [0, 0, 1, 1], [], []>} : vector<2x128xbf16>, vector<128x512xbf16>, vector<2x512xf32> -> vector<2x512xf32>
    %55 = arith.addf %51, %54 : vector<2x512xf32>
    %c12 = arith.constant 12 : index
    %c0_25 = arith.constant 0 : index
    %56 = vector.load %arg2[%c12, %c0_25] : memref<16x512xf32, #tpu.memory_space<vmem>>, vector<2x512xf32>
    %57 = arith.truncf %48 : vector<2x128xf32> to vector<2x128xbf16>
    %c128_26 = arith.constant 128 : index
    %c0_27 = arith.constant 0 : index
    %58 = vector.load %arg3[%c128_26, %c0_27] : memref<256x512xbf16, #tpu.memory_space<vmem>>, vector<128x512xbf16>
    %cst_28 = arith.constant dense<0.000000e+00> : vector<2x512xf32>
    %59 = tpu.matmul %57, %58, %cst_28 {dimension_numbers = #tpu.dot_dimension_numbers<[1], [0], [0], [1], [0, 0, 1, 1], [], []>} : vector<2x128xbf16>, vector<128x512xbf16>, vector<2x512xf32> -> vector<2x512xf32>
    %60 = arith.addf %56, %59 : vector<2x512xf32>
    %61 = vector.extract_strided_slice %55 {offsets = [0, 0], sizes = [2, 384], strides = [1, 1]} : vector<2x512xf32> to vector<2x384xf32>
    %62 = arith.negf %61 : vector<2x384xf32>
    %63 = math.exp %62 : vector<2x384xf32>
    %cst_29 = arith.constant 1.000000e+00 : f32
    %64 = vector.broadcast %cst_29 : f32 to vector<2x384xf32>
    %65 = arith.addf %64, %63 : vector<2x384xf32>
    %66 = arith.divf %64, %65 : vector<2x384xf32>
    %67 = vector.extract_strided_slice %66 {offsets = [0, 0], sizes = [2, 128], strides = [1, 1]} : vector<2x384xf32> to vector<2x128xf32>
    %68 = vector.extract_strided_slice %66 {offsets = [0, 128], sizes = [2, 128], strides = [1, 1]} : vector<2x384xf32> to vector<2x128xf32>
    %69 = vector.extract_strided_slice %66 {offsets = [0, 256], sizes = [2, 128], strides = [1, 1]} : vector<2x384xf32> to vector<2x128xf32>
    %70 = vector.extract_strided_slice %55 {offsets = [0, 384], sizes = [2, 128], strides = [1, 1]} : vector<2x512xf32> to vector<2x128xf32>
    %71 = math.tanh %70 : vector<2x128xf32>
    %72 = arith.mulf %68, %30 : vector<2x128xf32>
    %73 = arith.mulf %67, %71 : vector<2x128xf32>
    %74 = arith.addf %72, %73 : vector<2x128xf32>
    %75 = math.tanh %74 : vector<2x128xf32>
    %76 = arith.mulf %69, %75 : vector<2x128xf32>
    %77 = vector.extract_strided_slice %60 {offsets = [0, 0], sizes = [2, 384], strides = [1, 1]} : vector<2x512xf32> to vector<2x384xf32>
    %78 = arith.negf %77 : vector<2x384xf32>
    %79 = math.exp %78 : vector<2x384xf32>
    %cst_30 = arith.constant 1.000000e+00 : f32
    %80 = vector.broadcast %cst_30 : f32 to vector<2x384xf32>
    %81 = arith.addf %80, %79 : vector<2x384xf32>
    %82 = arith.divf %80, %81 : vector<2x384xf32>
    %83 = vector.extract_strided_slice %82 {offsets = [0, 0], sizes = [2, 128], strides = [1, 1]} : vector<2x384xf32> to vector<2x128xf32>
    %84 = vector.extract_strided_slice %82 {offsets = [0, 128], sizes = [2, 128], strides = [1, 1]} : vector<2x384xf32> to vector<2x128xf32>
    %85 = vector.extract_strided_slice %82 {offsets = [0, 256], sizes = [2, 128], strides = [1, 1]} : vector<2x384xf32> to vector<2x128xf32>
    %86 = vector.extract_strided_slice %60 {offsets = [0, 384], sizes = [2, 128], strides = [1, 1]} : vector<2x512xf32> to vector<2x128xf32>
    %87 = math.tanh %86 : vector<2x128xf32>
    %88 = arith.mulf %84, %46 : vector<2x128xf32>
    %89 = arith.mulf %83, %87 : vector<2x128xf32>
    %90 = arith.addf %88, %89 : vector<2x128xf32>
    %91 = math.tanh %90 : vector<2x128xf32>
    %92 = arith.mulf %85, %91 : vector<2x128xf32>
    %c2_31 = arith.constant 2 : index
    %c0_32 = arith.constant 0 : index
    %93 = vector.load %arg6[%c2_31, %c0_32] : memref<16x128xf32, #tpu.memory_space<vmem>>, vector<2x128xf32>
    tpu.vector_store %arg6[%c2_31, %c0_32], %76 {strides = array<i32>} : memref<16x128xf32, #tpu.memory_space<vmem>>, vector<2x128xf32>,
    %c12_33 = arith.constant 12 : index
    %c0_34 = arith.constant 0 : index
    %94 = vector.load %arg7[%c12_33, %c0_34] : memref<16x128xf32, #tpu.memory_space<vmem>>, vector<2x128xf32>
    tpu.vector_store %arg7[%c12_33, %c0_34], %92 {strides = array<i32>} : memref<16x128xf32, #tpu.memory_space<vmem>>, vector<2x128xf32>,
    %c4 = arith.constant 4 : index
    %c0_35 = arith.constant 0 : index
    %95 = vector.load %arg1[%c4, %c0_35] : memref<16x512xf32, #tpu.memory_space<vmem>>, vector<2x512xf32>
    %96 = arith.truncf %76 : vector<2x128xf32> to vector<2x128xbf16>
    %c0_36 = arith.constant 0 : index
    %c0_37 = arith.constant 0 : index
    %97 = vector.load %arg3[%c0_36, %c0_37] : memref<256x512xbf16, #tpu.memory_space<vmem>>, vector<128x512xbf16>
    %cst_38 = arith.constant dense<0.000000e+00> : vector<2x512xf32>
    %98 = tpu.matmul %96, %97, %cst_38 {dimension_numbers = #tpu.dot_dimension_numbers<[1], [0], [0], [1], [0, 0, 1, 1], [], []>} : vector<2x128xbf16>, vector<128x512xbf16>, vector<2x512xf32> -> vector<2x512xf32>
    %99 = arith.addf %95, %98 : vector<2x512xf32>
    %c10 = arith.constant 10 : index
    %c0_39 = arith.constant 0 : index
    %100 = vector.load %arg2[%c10, %c0_39] : memref<16x512xf32, #tpu.memory_space<vmem>>, vector<2x512xf32>
    %101 = arith.truncf %92 : vector<2x128xf32> to vector<2x128xbf16>
    %c128_40 = arith.constant 128 : index
    %c0_41 = arith.constant 0 : index
    %102 = vector.load %arg3[%c128_40, %c0_41] : memref<256x512xbf16, #tpu.memory_space<vmem>>, vector<128x512xbf16>
    %cst_42 = arith.constant dense<0.000000e+00> : vector<2x512xf32>
    %103 = tpu.matmul %101, %102, %cst_42 {dimension_numbers = #tpu.dot_dimension_numbers<[1], [0], [0], [1], [0, 0, 1, 1], [], []>} : vector<2x128xbf16>, vector<128x512xbf16>, vector<2x512xf32> -> vector<2x512xf32>
    %104 = arith.addf %100, %103 : vector<2x512xf32>
    %105 = vector.extract_strided_slice %99 {offsets = [0, 0], sizes = [2, 384], strides = [1, 1]} : vector<2x512xf32> to vector<2x384xf32>
    %106 = arith.negf %105 : vector<2x384xf32>
    %107 = math.exp %106 : vector<2x384xf32>
    %cst_43 = arith.constant 1.000000e+00 : f32
    %108 = vector.broadcast %cst_43 : f32 to vector<2x384xf32>
    %109 = arith.addf %108, %107 : vector<2x384xf32>
    %110 = arith.divf %108, %109 : vector<2x384xf32>
    %111 = vector.extract_strided_slice %110 {offsets = [0, 0], sizes = [2, 128], strides = [1, 1]} : vector<2x384xf32> to vector<2x128xf32>
    %112 = vector.extract_strided_slice %110 {offsets = [0, 128], sizes = [2, 128], strides = [1, 1]} : vector<2x384xf32> to vector<2x128xf32>
    %113 = vector.extract_strided_slice %110 {offsets = [0, 256], sizes = [2, 128], strides = [1, 1]} : vector<2x384xf32> to vector<2x128xf32>
    %114 = vector.extract_strided_slice %99 {offsets = [0, 384], sizes = [2, 128], strides = [1, 1]} : vector<2x512xf32> to vector<2x128xf32>
    %115 = math.tanh %114 : vector<2x128xf32>
    %116 = arith.mulf %112, %74 : vector<2x128xf32>
    %117 = arith.mulf %111, %115 : vector<2x128xf32>
    %118 = arith.addf %116, %117 : vector<2x128xf32>
    %119 = math.tanh %118 : vector<2x128xf32>
    %120 = arith.mulf %113, %119 : vector<2x128xf32>
    %121 = vector.extract_strided_slice %104 {offsets = [0, 0], sizes = [2, 384], strides = [1, 1]} : vector<2x512xf32> to vector<2x384xf32>
    %122 = arith.negf %121 : vector<2x384xf32>
    %123 = math.exp %122 : vector<2x384xf32>
    %cst_44 = arith.constant 1.000000e+00 : f32
    %124 = vector.broadcast %cst_44 : f32 to vector<2x384xf32>
    %125 = arith.addf %124, %123 : vector<2x384xf32>
    %126 = arith.divf %124, %125 : vector<2x384xf32>
    %127 = vector.extract_strided_slice %126 {offsets = [0, 0], sizes = [2, 128], strides = [1, 1]} : vector<2x384xf32> to vector<2x128xf32>
    %128 = vector.extract_strided_slice %126 {offsets = [0, 128], sizes = [2, 128], strides = [1, 1]} : vector<2x384xf32> to vector<2x128xf32>
    %129 = vector.extract_strided_slice %126 {offsets = [0, 256], sizes = [2, 128], strides = [1, 1]} : vector<2x384xf32> to vector<2x128xf32>
    %130 = vector.extract_strided_slice %104 {offsets = [0, 384], sizes = [2, 128], strides = [1, 1]} : vector<2x512xf32> to vector<2x128xf32>
    %131 = math.tanh %130 : vector<2x128xf32>
    %132 = arith.mulf %128, %90 : vector<2x128xf32>
    %133 = arith.mulf %127, %131 : vector<2x128xf32>
    %134 = arith.addf %132, %133 : vector<2x128xf32>
    %135 = math.tanh %134 : vector<2x128xf32>
    %136 = arith.mulf %129, %135 : vector<2x128xf32>
    %c4_45 = arith.constant 4 : index
    %c0_46 = arith.constant 0 : index
    %137 = vector.load %arg6[%c4_45, %c0_46] : memref<16x128xf32, #tpu.memory_space<vmem>>, vector<2x128xf32>
    tpu.vector_store %arg6[%c4_45, %c0_46], %120 {strides = array<i32>} : memref<16x128xf32, #tpu.memory_space<vmem>>, vector<2x128xf32>,
    %c10_47 = arith.constant 10 : index
    %c0_48 = arith.constant 0 : index
    %138 = vector.load %arg7[%c10_47, %c0_48] : memref<16x128xf32, #tpu.memory_space<vmem>>, vector<2x128xf32>
    tpu.vector_store %arg7[%c10_47, %c0_48], %136 {strides = array<i32>} : memref<16x128xf32, #tpu.memory_space<vmem>>, vector<2x128xf32>,
    %c6 = arith.constant 6 : index
    %c0_49 = arith.constant 0 : index
    %139 = vector.load %arg1[%c6, %c0_49] : memref<16x512xf32, #tpu.memory_space<vmem>>, vector<2x512xf32>
    %140 = arith.truncf %120 : vector<2x128xf32> to vector<2x128xbf16>
    %c0_50 = arith.constant 0 : index
    %c0_51 = arith.constant 0 : index
    %141 = vector.load %arg3[%c0_50, %c0_51] : memref<256x512xbf16, #tpu.memory_space<vmem>>, vector<128x512xbf16>
    %cst_52 = arith.constant dense<0.000000e+00> : vector<2x512xf32>
    %142 = tpu.matmul %140, %141, %cst_52 {dimension_numbers = #tpu.dot_dimension_numbers<[1], [0], [0], [1], [0, 0, 1, 1], [], []>} : vector<2x128xbf16>, vector<128x512xbf16>, vector<2x512xf32> -> vector<2x512xf32>
    %143 = arith.addf %139, %142 : vector<2x512xf32>
    %c8 = arith.constant 8 : index
    %c0_53 = arith.constant 0 : index
    %144 = vector.load %arg2[%c8, %c0_53] : memref<16x512xf32, #tpu.memory_space<vmem>>, vector<2x512xf32>
    %145 = arith.truncf %136 : vector<2x128xf32> to vector<2x128xbf16>
    %c128_54 = arith.constant 128 : index
    %c0_55 = arith.constant 0 : index
    %146 = vector.load %arg3[%c128_54, %c0_55] : memref<256x512xbf16, #tpu.memory_space<vmem>>, vector<128x512xbf16>
    %cst_56 = arith.constant dense<0.000000e+00> : vector<2x512xf32>
    %147 = tpu.matmul %145, %146, %cst_56 {dimension_numbers = #tpu.dot_dimension_numbers<[1], [0], [0], [1], [0, 0, 1, 1], [], []>} : vector<2x128xbf16>, vector<128x512xbf16>, vector<2x512xf32> -> vector<2x512xf32>
    %148 = arith.addf %144, %147 : vector<2x512xf32>
    %149 = vector.extract_strided_slice %143 {offsets = [0, 0], sizes = [2, 384], strides = [1, 1]} : vector<2x512xf32> to vector<2x384xf32>
    %150 = arith.negf %149 : vector<2x384xf32>
    %151 = math.exp %150 : vector<2x384xf32>
    %cst_57 = arith.constant 1.000000e+00 : f32
    %152 = vector.broadcast %cst_57 : f32 to vector<2x384xf32>
    %153 = arith.addf %152, %151 : vector<2x384xf32>
    %154 = arith.divf %152, %153 : vector<2x384xf32>
    %155 = vector.extract_strided_slice %154 {offsets = [0, 0], sizes = [2, 128], strides = [1, 1]} : vector<2x384xf32> to vector<2x128xf32>
    %156 = vector.extract_strided_slice %154 {offsets = [0, 128], sizes = [2, 128], strides = [1, 1]} : vector<2x384xf32> to vector<2x128xf32>
    %157 = vector.extract_strided_slice %154 {offsets = [0, 256], sizes = [2, 128], strides = [1, 1]} : vector<2x384xf32> to vector<2x128xf32>
    %158 = vector.extract_strided_slice %143 {offsets = [0, 384], sizes = [2, 128], strides = [1, 1]} : vector<2x512xf32> to vector<2x128xf32>
    %159 = math.tanh %158 : vector<2x128xf32>
    %160 = arith.mulf %156, %118 : vector<2x128xf32>
    %161 = arith.mulf %155, %159 : vector<2x128xf32>
    %162 = arith.addf %160, %161 : vector<2x128xf32>
    %163 = math.tanh %162 : vector<2x128xf32>
    %164 = arith.mulf %157, %163 : vector<2x128xf32>
    %165 = vector.extract_strided_slice %148 {offsets = [0, 0], sizes = [2, 384], strides = [1, 1]} : vector<2x512xf32> to vector<2x384xf32>
    %166 = arith.negf %165 : vector<2x384xf32>
    %167 = math.exp %166 : vector<2x384xf32>
    %cst_58 = arith.constant 1.000000e+00 : f32
    %168 = vector.broadcast %cst_58 : f32 to vector<2x384xf32>
    %169 = arith.addf %168, %167 : vector<2x384xf32>
    %170 = arith.divf %168, %169 : vector<2x384xf32>
    %171 = vector.extract_strided_slice %170 {offsets = [0, 0], sizes = [2, 128], strides = [1, 1]} : vector<2x384xf32> to vector<2x128xf32>
    %172 = vector.extract_strided_slice %170 {offsets = [0, 128], sizes = [2, 128], strides = [1, 1]} : vector<2x384xf32> to vector<2x128xf32>
    %173 = vector.extract_strided_slice %170 {offsets = [0, 256], sizes = [2, 128], strides = [1, 1]} : vector<2x384xf32> to vector<2x128xf32>
    %174 = vector.extract_strided_slice %148 {offsets = [0, 384], sizes = [2, 128], strides = [1, 1]} : vector<2x512xf32> to vector<2x128xf32>
    %175 = math.tanh %174 : vector<2x128xf32>
    %176 = arith.mulf %172, %134 : vector<2x128xf32>
    %177 = arith.mulf %171, %175 : vector<2x128xf32>
    %178 = arith.addf %176, %177 : vector<2x128xf32>
    %179 = math.tanh %178 : vector<2x128xf32>
    %180 = arith.mulf %173, %179 : vector<2x128xf32>
    %c6_59 = arith.constant 6 : index
    %c0_60 = arith.constant 0 : index
    %181 = vector.load %arg6[%c6_59, %c0_60] : memref<16x128xf32, #tpu.memory_space<vmem>>, vector<2x128xf32>
    tpu.vector_store %arg6[%c6_59, %c0_60], %164 {strides = array<i32>} : memref<16x128xf32, #tpu.memory_space<vmem>>, vector<2x128xf32>,
    %c8_61 = arith.constant 8 : index
    %c0_62 = arith.constant 0 : index
    %182 = vector.load %arg7[%c8_61, %c0_62] : memref<16x128xf32, #tpu.memory_space<vmem>>, vector<2x128xf32>
    tpu.vector_store %arg7[%c8_61, %c0_62], %180 {strides = array<i32>} : memref<16x128xf32, #tpu.memory_space<vmem>>, vector<2x128xf32>,
    %c8_63 = arith.constant 8 : index
    %c0_64 = arith.constant 0 : index
    %183 = vector.load %arg1[%c8_63, %c0_64] : memref<16x512xf32, #tpu.memory_space<vmem>>, vector<2x512xf32>
    %184 = arith.truncf %164 : vector<2x128xf32> to vector<2x128xbf16>
    %c0_65 = arith.constant 0 : index
    %c0_66 = arith.constant 0 : index
    %185 = vector.load %arg3[%c0_65, %c0_66] : memref<256x512xbf16, #tpu.memory_space<vmem>>, vector<128x512xbf16>
    %cst_67 = arith.constant dense<0.000000e+00> : vector<2x512xf32>
    %186 = tpu.matmul %184, %185, %cst_67 {dimension_numbers = #tpu.dot_dimension_numbers<[1], [0], [0], [1], [0, 0, 1, 1], [], []>} : vector<2x128xbf16>, vector<128x512xbf16>, vector<2x512xf32> -> vector<2x512xf32>
    %187 = arith.addf %183, %186 : vector<2x512xf32>
    %c6_68 = arith.constant 6 : index
    %c0_69 = arith.constant 0 : index
    %188 = vector.load %arg2[%c6_68, %c0_69] : memref<16x512xf32, #tpu.memory_space<vmem>>, vector<2x512xf32>
    %189 = arith.truncf %180 : vector<2x128xf32> to vector<2x128xbf16>
    %c128_70 = arith.constant 128 : index
    %c0_71 = arith.constant 0 : index
    %190 = vector.load %arg3[%c128_70, %c0_71] : memref<256x512xbf16, #tpu.memory_space<vmem>>, vector<128x512xbf16>
    %cst_72 = arith.constant dense<0.000000e+00> : vector<2x512xf32>
    %191 = tpu.matmul %189, %190, %cst_72 {dimension_numbers = #tpu.dot_dimension_numbers<[1], [0], [0], [1], [0, 0, 1, 1], [], []>} : vector<2x128xbf16>, vector<128x512xbf16>, vector<2x512xf32> -> vector<2x512xf32>
    %192 = arith.addf %188, %191 : vector<2x512xf32>
    %193 = vector.extract_strided_slice %187 {offsets = [0, 0], sizes = [2, 384], strides = [1, 1]} : vector<2x512xf32> to vector<2x384xf32>
    %194 = arith.negf %193 : vector<2x384xf32>
    %195 = math.exp %194 : vector<2x384xf32>
    %cst_73 = arith.constant 1.000000e+00 : f32
    %196 = vector.broadcast %cst_73 : f32 to vector<2x384xf32>
    %197 = arith.addf %196, %195 : vector<2x384xf32>
    %198 = arith.divf %196, %197 : vector<2x384xf32>
    %199 = vector.extract_strided_slice %198 {offsets = [0, 0], sizes = [2, 128], strides = [1, 1]} : vector<2x384xf32> to vector<2x128xf32>
    %200 = vector.extract_strided_slice %198 {offsets = [0, 128], sizes = [2, 128], strides = [1, 1]} : vector<2x384xf32> to vector<2x128xf32>
    %201 = vector.extract_strided_slice %198 {offsets = [0, 256], sizes = [2, 128], strides = [1, 1]} : vector<2x384xf32> to vector<2x128xf32>
    %202 = vector.extract_strided_slice %187 {offsets = [0, 384], sizes = [2, 128], strides = [1, 1]} : vector<2x512xf32> to vector<2x128xf32>
    %203 = math.tanh %202 : vector<2x128xf32>
    %204 = arith.mulf %200, %162 : vector<2x128xf32>
    %205 = arith.mulf %199, %203 : vector<2x128xf32>
    %206 = arith.addf %204, %205 : vector<2x128xf32>
    %207 = math.tanh %206 : vector<2x128xf32>
    %208 = arith.mulf %201, %207 : vector<2x128xf32>
    %209 = vector.extract_strided_slice %192 {offsets = [0, 0], sizes = [2, 384], strides = [1, 1]} : vector<2x512xf32> to vector<2x384xf32>
    %210 = arith.negf %209 : vector<2x384xf32>
    %211 = math.exp %210 : vector<2x384xf32>
    %cst_74 = arith.constant 1.000000e+00 : f32
    %212 = vector.broadcast %cst_74 : f32 to vector<2x384xf32>
    %213 = arith.addf %212, %211 : vector<2x384xf32>
    %214 = arith.divf %212, %213 : vector<2x384xf32>
    %215 = vector.extract_strided_slice %214 {offsets = [0, 0], sizes = [2, 128], strides = [1, 1]} : vector<2x384xf32> to vector<2x128xf32>
    %216 = vector.extract_strided_slice %214 {offsets = [0, 128], sizes = [2, 128], strides = [1, 1]} : vector<2x384xf32> to vector<2x128xf32>
    %217 = vector.extract_strided_slice %214 {offsets = [0, 256], sizes = [2, 128], strides = [1, 1]} : vector<2x384xf32> to vector<2x128xf32>
    %218 = vector.extract_strided_slice %192 {offsets = [0, 384], sizes = [2, 128], strides = [1, 1]} : vector<2x512xf32> to vector<2x128xf32>
    %219 = math.tanh %218 : vector<2x128xf32>
    %220 = arith.mulf %216, %178 : vector<2x128xf32>
    %221 = arith.mulf %215, %219 : vector<2x128xf32>
    %222 = arith.addf %220, %221 : vector<2x128xf32>
    %223 = math.tanh %222 : vector<2x128xf32>
    %224 = arith.mulf %217, %223 : vector<2x128xf32>
    %c8_75 = arith.constant 8 : index
    %c0_76 = arith.constant 0 : index
    %225 = vector.load %arg6[%c8_75, %c0_76] : memref<16x128xf32, #tpu.memory_space<vmem>>, vector<2x128xf32>
    tpu.vector_store %arg6[%c8_75, %c0_76], %208 {strides = array<i32>} : memref<16x128xf32, #tpu.memory_space<vmem>>, vector<2x128xf32>,
    %c6_77 = arith.constant 6 : index
    %c0_78 = arith.constant 0 : index
    %226 = vector.load %arg7[%c6_77, %c0_78] : memref<16x128xf32, #tpu.memory_space<vmem>>, vector<2x128xf32>
    tpu.vector_store %arg7[%c6_77, %c0_78], %224 {strides = array<i32>} : memref<16x128xf32, #tpu.memory_space<vmem>>, vector<2x128xf32>,
    %c10_79 = arith.constant 10 : index
    %c0_80 = arith.constant 0 : index
    %227 = vector.load %arg1[%c10_79, %c0_80] : memref<16x512xf32, #tpu.memory_space<vmem>>, vector<2x512xf32>
    %228 = arith.truncf %208 : vector<2x128xf32> to vector<2x128xbf16>
    %c0_81 = arith.constant 0 : index
    %c0_82 = arith.constant 0 : index
    %229 = vector.load %arg3[%c0_81, %c0_82] : memref<256x512xbf16, #tpu.memory_space<vmem>>, vector<128x512xbf16>
    %cst_83 = arith.constant dense<0.000000e+00> : vector<2x512xf32>
    %230 = tpu.matmul %228, %229, %cst_83 {dimension_numbers = #tpu.dot_dimension_numbers<[1], [0], [0], [1], [0, 0, 1, 1], [], []>} : vector<2x128xbf16>, vector<128x512xbf16>, vector<2x512xf32> -> vector<2x512xf32>
    %231 = arith.addf %227, %230 : vector<2x512xf32>
    %c4_84 = arith.constant 4 : index
    %c0_85 = arith.constant 0 : index
    %232 = vector.load %arg2[%c4_84, %c0_85] : memref<16x512xf32, #tpu.memory_space<vmem>>, vector<2x512xf32>
    %233 = arith.truncf %224 : vector<2x128xf32> to vector<2x128xbf16>
    %c128_86 = arith.constant 128 : index
    %c0_87 = arith.constant 0 : index
    %234 = vector.load %arg3[%c128_86, %c0_87] : memref<256x512xbf16, #tpu.memory_space<vmem>>, vector<128x512xbf16>
    %cst_88 = arith.constant dense<0.000000e+00> : vector<2x512xf32>
    %235 = tpu.matmul %233, %234, %cst_88 {dimension_numbers = #tpu.dot_dimension_numbers<[1], [0], [0], [1], [0, 0, 1, 1], [], []>} : vector<2x128xbf16>, vector<128x512xbf16>, vector<2x512xf32> -> vector<2x512xf32>
    %236 = arith.addf %232, %235 : vector<2x512xf32>
    %237 = vector.extract_strided_slice %231 {offsets = [0, 0], sizes = [2, 384], strides = [1, 1]} : vector<2x512xf32> to vector<2x384xf32>
    %238 = arith.negf %237 : vector<2x384xf32>
    %239 = math.exp %238 : vector<2x384xf32>
    %cst_89 = arith.constant 1.000000e+00 : f32
    %240 = vector.broadcast %cst_89 : f32 to vector<2x384xf32>
    %241 = arith.addf %240, %239 : vector<2x384xf32>
    %242 = arith.divf %240, %241 : vector<2x384xf32>
    %243 = vector.extract_strided_slice %242 {offsets = [0, 0], sizes = [2, 128], strides = [1, 1]} : vector<2x384xf32> to vector<2x128xf32>
    %244 = vector.extract_strided_slice %242 {offsets = [0, 128], sizes = [2, 128], strides = [1, 1]} : vector<2x384xf32> to vector<2x128xf32>
    %245 = vector.extract_strided_slice %242 {offsets = [0, 256], sizes = [2, 128], strides = [1, 1]} : vector<2x384xf32> to vector<2x128xf32>
    %246 = vector.extract_strided_slice %231 {offsets = [0, 384], sizes = [2, 128], strides = [1, 1]} : vector<2x512xf32> to vector<2x128xf32>
    %247 = math.tanh %246 : vector<2x128xf32>
    %248 = arith.mulf %244, %206 : vector<2x128xf32>
    %249 = arith.mulf %243, %247 : vector<2x128xf32>
    %250 = arith.addf %248, %249 : vector<2x128xf32>
    %251 = math.tanh %250 : vector<2x128xf32>
    %252 = arith.mulf %245, %251 : vector<2x128xf32>
    %253 = vector.extract_strided_slice %236 {offsets = [0, 0], sizes = [2, 384], strides = [1, 1]} : vector<2x512xf32> to vector<2x384xf32>
    %254 = arith.negf %253 : vector<2x384xf32>
    %255 = math.exp %254 : vector<2x384xf32>
    %cst_90 = arith.constant 1.000000e+00 : f32
    %256 = vector.broadcast %cst_90 : f32 to vector<2x384xf32>
    %257 = arith.addf %256, %255 : vector<2x384xf32>
    %258 = arith.divf %256, %257 : vector<2x384xf32>
    %259 = vector.extract_strided_slice %258 {offsets = [0, 0], sizes = [2, 128], strides = [1, 1]} : vector<2x384xf32> to vector<2x128xf32>
    %260 = vector.extract_strided_slice %258 {offsets = [0, 128], sizes = [2, 128], strides = [1, 1]} : vector<2x384xf32> to vector<2x128xf32>
    %261 = vector.extract_strided_slice %258 {offsets = [0, 256], sizes = [2, 128], strides = [1, 1]} : vector<2x384xf32> to vector<2x128xf32>
    %262 = vector.extract_strided_slice %236 {offsets = [0, 384], sizes = [2, 128], strides = [1, 1]} : vector<2x512xf32> to vector<2x128xf32>
    %263 = math.tanh %262 : vector<2x128xf32>
    %264 = arith.mulf %260, %222 : vector<2x128xf32>
    %265 = arith.mulf %259, %263 : vector<2x128xf32>
    %266 = arith.addf %264, %265 : vector<2x128xf32>
    %267 = math.tanh %266 : vector<2x128xf32>
    %268 = arith.mulf %261, %267 : vector<2x128xf32>
    %c10_91 = arith.constant 10 : index
    %c0_92 = arith.constant 0 : index
    %269 = vector.load %arg6[%c10_91, %c0_92] : memref<16x128xf32, #tpu.memory_space<vmem>>, vector<2x128xf32>
    tpu.vector_store %arg6[%c10_91, %c0_92], %252 {strides = array<i32>} : memref<16x128xf32, #tpu.memory_space<vmem>>, vector<2x128xf32>,
    %c4_93 = arith.constant 4 : index
    %c0_94 = arith.constant 0 : index
    %270 = vector.load %arg7[%c4_93, %c0_94] : memref<16x128xf32, #tpu.memory_space<vmem>>, vector<2x128xf32>
    tpu.vector_store %arg7[%c4_93, %c0_94], %268 {strides = array<i32>} : memref<16x128xf32, #tpu.memory_space<vmem>>, vector<2x128xf32>,
    %c12_95 = arith.constant 12 : index
    %c0_96 = arith.constant 0 : index
    %271 = vector.load %arg1[%c12_95, %c0_96] : memref<16x512xf32, #tpu.memory_space<vmem>>, vector<2x512xf32>
    %272 = arith.truncf %252 : vector<2x128xf32> to vector<2x128xbf16>
    %c0_97 = arith.constant 0 : index
    %c0_98 = arith.constant 0 : index
    %273 = vector.load %arg3[%c0_97, %c0_98] : memref<256x512xbf16, #tpu.memory_space<vmem>>, vector<128x512xbf16>
    %cst_99 = arith.constant dense<0.000000e+00> : vector<2x512xf32>
    %274 = tpu.matmul %272, %273, %cst_99 {dimension_numbers = #tpu.dot_dimension_numbers<[1], [0], [0], [1], [0, 0, 1, 1], [], []>} : vector<2x128xbf16>, vector<128x512xbf16>, vector<2x512xf32> -> vector<2x512xf32>
    %275 = arith.addf %271, %274 : vector<2x512xf32>
    %c2_100 = arith.constant 2 : index
    %c0_101 = arith.constant 0 : index
    %276 = vector.load %arg2[%c2_100, %c0_101] : memref<16x512xf32, #tpu.memory_space<vmem>>, vector<2x512xf32>
    %277 = arith.truncf %268 : vector<2x128xf32> to vector<2x128xbf16>
    %c128_102 = arith.constant 128 : index
    %c0_103 = arith.constant 0 : index
    %278 = vector.load %arg3[%c128_102, %c0_103] : memref<256x512xbf16, #tpu.memory_space<vmem>>, vector<128x512xbf16>
    %cst_104 = arith.constant dense<0.000000e+00> : vector<2x512xf32>
    %279 = tpu.matmul %277, %278, %cst_104 {dimension_numbers = #tpu.dot_dimension_numbers<[1], [0], [0], [1], [0, 0, 1, 1], [], []>} : vector<2x128xbf16>, vector<128x512xbf16>, vector<2x512xf32> -> vector<2x512xf32>
    %280 = arith.addf %276, %279 : vector<2x512xf32>
    %281 = vector.extract_strided_slice %275 {offsets = [0, 0], sizes = [2, 384], strides = [1, 1]} : vector<2x512xf32> to vector<2x384xf32>
    %282 = arith.negf %281 : vector<2x384xf32>
    %283 = math.exp %282 : vector<2x384xf32>
    %cst_105 = arith.constant 1.000000e+00 : f32
    %284 = vector.broadcast %cst_105 : f32 to vector<2x384xf32>
    %285 = arith.addf %284, %283 : vector<2x384xf32>
    %286 = arith.divf %284, %285 : vector<2x384xf32>
    %287 = vector.extract_strided_slice %286 {offsets = [0, 0], sizes = [2, 128], strides = [1, 1]} : vector<2x384xf32> to vector<2x128xf32>
    %288 = vector.extract_strided_slice %286 {offsets = [0, 128], sizes = [2, 128], strides = [1, 1]} : vector<2x384xf32> to vector<2x128xf32>
    %289 = vector.extract_strided_slice %286 {offsets = [0, 256], sizes = [2, 128], strides = [1, 1]} : vector<2x384xf32> to vector<2x128xf32>
    %290 = vector.extract_strided_slice %275 {offsets = [0, 384], sizes = [2, 128], strides = [1, 1]} : vector<2x512xf32> to vector<2x128xf32>
    %291 = math.tanh %290 : vector<2x128xf32>
    %292 = arith.mulf %288, %250 : vector<2x128xf32>
    %293 = arith.mulf %287, %291 : vector<2x128xf32>
    %294 = arith.addf %292, %293 : vector<2x128xf32>
    %295 = math.tanh %294 : vector<2x128xf32>
    %296 = arith.mulf %289, %295 : vector<2x128xf32>
    %297 = vector.extract_strided_slice %280 {offsets = [0, 0], sizes = [2, 384], strides = [1, 1]} : vector<2x512xf32> to vector<2x384xf32>
    %298 = arith.negf %297 : vector<2x384xf32>
    %299 = math.exp %298 : vector<2x384xf32>
    %cst_106 = arith.constant 1.000000e+00 : f32
    %300 = vector.broadcast %cst_106 : f32 to vector<2x384xf32>
    %301 = arith.addf %300, %299 : vector<2x384xf32>
    %302 = arith.divf %300, %301 : vector<2x384xf32>
    %303 = vector.extract_strided_slice %302 {offsets = [0, 0], sizes = [2, 128], strides = [1, 1]} : vector<2x384xf32> to vector<2x128xf32>
    %304 = vector.extract_strided_slice %302 {offsets = [0, 128], sizes = [2, 128], strides = [1, 1]} : vector<2x384xf32> to vector<2x128xf32>
    %305 = vector.extract_strided_slice %302 {offsets = [0, 256], sizes = [2, 128], strides = [1, 1]} : vector<2x384xf32> to vector<2x128xf32>
    %306 = vector.extract_strided_slice %280 {offsets = [0, 384], sizes = [2, 128], strides = [1, 1]} : vector<2x512xf32> to vector<2x128xf32>
    %307 = math.tanh %306 : vector<2x128xf32>
    %308 = arith.mulf %304, %266 : vector<2x128xf32>
    %309 = arith.mulf %303, %307 : vector<2x128xf32>
    %310 = arith.addf %308, %309 : vector<2x128xf32>
    %311 = math.tanh %310 : vector<2x128xf32>
    %312 = arith.mulf %305, %311 : vector<2x128xf32>
    %c12_107 = arith.constant 12 : index
    %c0_108 = arith.constant 0 : index
    %313 = vector.load %arg6[%c12_107, %c0_108] : memref<16x128xf32, #tpu.memory_space<vmem>>, vector<2x128xf32>
    tpu.vector_store %arg6[%c12_107, %c0_108], %296 {strides = array<i32>} : memref<16x128xf32, #tpu.memory_space<vmem>>, vector<2x128xf32>,
    %c2_109 = arith.constant 2 : index
    %c0_110 = arith.constant 0 : index
    %314 = vector.load %arg7[%c2_109, %c0_110] : memref<16x128xf32, #tpu.memory_space<vmem>>, vector<2x128xf32>
    tpu.vector_store %arg7[%c2_109, %c0_110], %312 {strides = array<i32>} : memref<16x128xf32, #tpu.memory_space<vmem>>, vector<2x128xf32>,
    %c14_111 = arith.constant 14 : index
    %c0_112 = arith.constant 0 : index
    %315 = vector.load %arg1[%c14_111, %c0_112] : memref<16x512xf32, #tpu.memory_space<vmem>>, vector<2x512xf32>
    %316 = arith.truncf %296 : vector<2x128xf32> to vector<2x128xbf16>
    %c0_113 = arith.constant 0 : index
    %c0_114 = arith.constant 0 : index
    %317 = vector.load %arg3[%c0_113, %c0_114] : memref<256x512xbf16, #tpu.memory_space<vmem>>, vector<128x512xbf16>
    %cst_115 = arith.constant dense<0.000000e+00> : vector<2x512xf32>
    %318 = tpu.matmul %316, %317, %cst_115 {dimension_numbers = #tpu.dot_dimension_numbers<[1], [0], [0], [1], [0, 0, 1, 1], [], []>} : vector<2x128xbf16>, vector<128x512xbf16>, vector<2x512xf32> -> vector<2x512xf32>
    %319 = arith.addf %315, %318 : vector<2x512xf32>
    %c0_116 = arith.constant 0 : index
    %c0_117 = arith.constant 0 : index
    %320 = vector.load %arg2[%c0_116, %c0_117] : memref<16x512xf32, #tpu.memory_space<vmem>>, vector<2x512xf32>
    %321 = arith.truncf %312 : vector<2x128xf32> to vector<2x128xbf16>
    %c128_118 = arith.constant 128 : index
    %c0_119 = arith.constant 0 : index
    %322 = vector.load %arg3[%c128_118, %c0_119] : memref<256x512xbf16, #tpu.memory_space<vmem>>, vector<128x512xbf16>
    %cst_120 = arith.constant dense<0.000000e+00> : vector<2x512xf32>
    %323 = tpu.matmul %321, %322, %cst_120 {dimension_numbers = #tpu.dot_dimension_numbers<[1], [0], [0], [1], [0, 0, 1, 1], [], []>} : vector<2x128xbf16>, vector<128x512xbf16>, vector<2x512xf32> -> vector<2x512xf32>
    %324 = arith.addf %320, %323 : vector<2x512xf32>
    %325 = vector.extract_strided_slice %319 {offsets = [0, 0], sizes = [2, 384], strides = [1, 1]} : vector<2x512xf32> to vector<2x384xf32>
    %326 = arith.negf %325 : vector<2x384xf32>
    %327 = math.exp %326 : vector<2x384xf32>
    %cst_121 = arith.constant 1.000000e+00 : f32
    %328 = vector.broadcast %cst_121 : f32 to vector<2x384xf32>
    %329 = arith.addf %328, %327 : vector<2x384xf32>
    %330 = arith.divf %328, %329 : vector<2x384xf32>
    %331 = vector.extract_strided_slice %330 {offsets = [0, 0], sizes = [2, 128], strides = [1, 1]} : vector<2x384xf32> to vector<2x128xf32>
    %332 = vector.extract_strided_slice %330 {offsets = [0, 128], sizes = [2, 128], strides = [1, 1]} : vector<2x384xf32> to vector<2x128xf32>
    %333 = vector.extract_strided_slice %330 {offsets = [0, 256], sizes = [2, 128], strides = [1, 1]} : vector<2x384xf32> to vector<2x128xf32>
    %334 = vector.extract_strided_slice %319 {offsets = [0, 384], sizes = [2, 128], strides = [1, 1]} : vector<2x512xf32> to vector<2x128xf32>
    %335 = math.tanh %334 : vector<2x128xf32>
    %336 = arith.mulf %332, %294 : vector<2x128xf32>
    %337 = arith.mulf %331, %335 : vector<2x128xf32>
    %338 = arith.addf %336, %337 : vector<2x128xf32>
    %339 = math.tanh %338 : vector<2x128xf32>
    %340 = arith.mulf %333, %339 : vector<2x128xf32>
    %341 = vector.extract_strided_slice %324 {offsets = [0, 0], sizes = [2, 384], strides = [1, 1]} : vector<2x512xf32> to vector<2x384xf32>
    %342 = arith.negf %341 : vector<2x384xf32>
    %343 = math.exp %342 : vector<2x384xf32>
    %cst_122 = arith.constant 1.000000e+00 : f32
    %344 = vector.broadcast %cst_122 : f32 to vector<2x384xf32>
    %345 = arith.addf %344, %343 : vector<2x384xf32>
    %346 = arith.divf %344, %345 : vector<2x384xf32>
    %347 = vector.extract_strided_slice %346 {offsets = [0, 0], sizes = [2, 128], strides = [1, 1]} : vector<2x384xf32> to vector<2x128xf32>
    %348 = vector.extract_strided_slice %346 {offsets = [0, 128], sizes = [2, 128], strides = [1, 1]} : vector<2x384xf32> to vector<2x128xf32>
    %349 = vector.extract_strided_slice %346 {offsets = [0, 256], sizes = [2, 128], strides = [1, 1]} : vector<2x384xf32> to vector<2x128xf32>
    %350 = vector.extract_strided_slice %324 {offsets = [0, 384], sizes = [2, 128], strides = [1, 1]} : vector<2x512xf32> to vector<2x128xf32>
    %351 = math.tanh %350 : vector<2x128xf32>
    %352 = arith.mulf %348, %310 : vector<2x128xf32>
    %353 = arith.mulf %347, %351 : vector<2x128xf32>
    %354 = arith.addf %352, %353 : vector<2x128xf32>
    %355 = math.tanh %354 : vector<2x128xf32>
    %356 = arith.mulf %349, %355 : vector<2x128xf32>
    %c14_123 = arith.constant 14 : index
    %c0_124 = arith.constant 0 : index
    %357 = vector.load %arg6[%c14_123, %c0_124] : memref<16x128xf32, #tpu.memory_space<vmem>>, vector<2x128xf32>
    tpu.vector_store %arg6[%c14_123, %c0_124], %340 {strides = array<i32>} : memref<16x128xf32, #tpu.memory_space<vmem>>, vector<2x128xf32>,
    %c0_125 = arith.constant 0 : index
    %c0_126 = arith.constant 0 : index
    %358 = vector.load %arg7[%c0_125, %c0_126] : memref<16x128xf32, #tpu.memory_space<vmem>>, vector<2x128xf32>
    tpu.vector_store %arg7[%c0_125, %c0_126], %356 {strides = array<i32>} : memref<16x128xf32, #tpu.memory_space<vmem>>, vector<2x128xf32>,
    %c0_127 = arith.constant 0 : index
    %c0_128 = arith.constant 0 : index
    %359 = vector.load %arg9[%c0_127, %c0_128] : memref<4x128xf32, #tpu.memory_space<vmem>>, vector<2x128xf32>
    tpu.vector_store %arg9[%c0_127, %c0_128], %340 {strides = array<i32>} : memref<4x128xf32, #tpu.memory_space<vmem>>, vector<2x128xf32>,
    %c2_129 = arith.constant 2 : index
    %c0_130 = arith.constant 0 : index
    %360 = vector.load %arg9[%c2_129, %c0_130] : memref<4x128xf32, #tpu.memory_space<vmem>>, vector<2x128xf32>
    tpu.vector_store %arg9[%c2_129, %c0_130], %356 {strides = array<i32>} : memref<4x128xf32, #tpu.memory_space<vmem>>, vector<2x128xf32>,
    %c0_131 = arith.constant 0 : index
    %c0_132 = arith.constant 0 : index
    %361 = vector.load %arg10[%c0_131, %c0_132] : memref<4x128xf32, #tpu.memory_space<vmem>>, vector<2x128xf32>
    tpu.vector_store %arg10[%c0_131, %c0_132], %338 {strides = array<i32>} : memref<4x128xf32, #tpu.memory_space<vmem>>, vector<2x128xf32>,
    %c2_133 = arith.constant 2 : index
    %c0_134 = arith.constant 0 : index
    %362 = vector.load %arg10[%c2_133, %c0_134] : memref<4x128xf32, #tpu.memory_space<vmem>>, vector<2x128xf32>
    tpu.vector_store %arg10[%c2_133, %c0_134], %354 {strides = array<i32>} : memref<4x128xf32, #tpu.memory_space<vmem>>, vector<2x128xf32>,
    %c0_135 = arith.constant 0 : index
    %c0_136 = arith.constant 0 : index
    %363 = vector.load %arg8[%c0_135, %c0_136] : memref<4x128xf32, #tpu.memory_space<vmem>>, vector<2x128xf32>
    tpu.vector_store %arg8[%c0_135, %c0_136], %338 {strides = array<i32>} : memref<4x128xf32, #tpu.memory_space<vmem>>, vector<2x128xf32>,
    %c2_137 = arith.constant 2 : index
    %c0_138 = arith.constant 0 : index
    %364 = vector.load %arg8[%c2_137, %c0_138] : memref<4x128xf32, #tpu.memory_space<vmem>>, vector<2x128xf32>
    tpu.vector_store %arg8[%c2_137, %c0_138], %354 {strides = array<i32>} : memref<4x128xf32, #tpu.memory_space<vmem>>, vector<2x128xf32>,
    return
  }
  func.func @transform_0(%arg0: i32) -> (i32, i32) {
    %c0_i32 = arith.constant 0 : i32
    %c0_i32_0 = arith.constant 0 : i32
    return %arg0, %c0_i32 : i32, i32
  }
  func.func @transform_1(%arg0: i32) -> (i32, i32) {
    %c0_i32 = arith.constant 0 : i32
    %0 = arith.subi %c0_i32, %arg0 : i32
    %c1_i32 = arith.constant 1 : i32
    %c0_i32_0 = arith.constant 0 : i32
    return %0, %c1_i32 : i32, i32
  }
  func.func @transform_2(%arg0: i32) -> (i32, i32) {
    %c0_i32 = arith.constant 0 : i32
    %c0_i32_0 = arith.constant 0 : i32
    %c0_i32_1 = arith.constant 0 : i32
    return %c0_i32, %c0_i32_0 : i32, i32
  }
  func.func @transform_3(%arg0: i32) -> (i32, i32) {
    %c0_i32 = arith.constant 0 : i32
    %c0_i32_0 = arith.constant 0 : i32
    %c0_i32_1 = arith.constant 0 : i32
    return %c0_i32, %c0_i32_0 : i32, i32
  }
  func.func @transform_4(%arg0: i32) -> (i32, i32) {
    %c0_i32 = arith.constant 0 : i32
    %c0_i32_0 = arith.constant 0 : i32
    %c0_i32_1 = arith.constant 0 : i32
    return %c0_i32, %c0_i32_0 : i32, i32
  }
  func.func @transform_5(%arg0: i32) -> (i32, i32) {
    %c0_i32 = arith.constant 0 : i32
    %c0_i32_0 = arith.constant 0 : i32
    return %arg0, %c0_i32 : i32, i32
  }
  func.func @transform_6(%arg0: i32) -> (i32, i32) {
    %c0_i32 = arith.constant 0 : i32
    %0 = arith.subi %c0_i32, %arg0 : i32
    %c0_i32_0 = arith.constant 0 : i32
    %c0_i32_1 = arith.constant 0 : i32
    return %0, %c0_i32_0 : i32, i32
  }
  func.func @transform_7(%arg0: i32) -> (i32, i32) {
    %c0_i32 = arith.constant 0 : i32
    %c0_i32_0 = arith.constant 0 : i32
    %c0_i32_1 = arith.constant 0 : i32
    return %c0_i32, %c0_i32_0 : i32, i32
  }
}

module attributes {stable_mosaic.version = 11 : i64} {
  func.func @kernel(%arg0: i32, %arg1: i32, %arg2: memref<2x128xf32, #tpu.memory_space<vmem>>, %arg3: memref<2x128xf32, #tpu.memory_space<vmem>>, %arg4: memref<128x128xbf16, #tpu.memory_space<vmem>>, %arg5: memref<128x128xbf16, #tpu.memory_space<vmem>>, %arg6: memref<1x128xf32, #tpu.memory_space<vmem>>, %arg7: memref<2x128xf32, #tpu.memory_space<vmem>>) attributes {dimension_semantics = [#tpu.dimension_semantics<parallel>, #tpu.dimension_semantics<parallel>], iteration_bounds = array<i64: 1, 1>, scalar_prefetch = 0 : i64, scratch_operands = 0 : i64, tpu.core_type = #tpu.core_type<tc>, window_params = [{transform_indices = @transform_0, window_bounds = array<i64: 2, 128>}, {transform_indices = @transform_1, window_bounds = array<i64: 2, 128>}, {transform_indices = @transform_2, window_bounds = array<i64: 128, 128>}, {transform_indices = @transform_3, window_bounds = array<i64: 128, 128>}, {transform_indices = @transform_4, window_bounds = array<i64: 1, 128>}, {transform_indices = @transform_5, window_bounds = array<i64: 2, 128>}]} {
    %c0 = arith.constant 0 : index
    %c0_0 = arith.constant 0 : index
    %0 = vector.load %arg6[%c0, %c0_0] : memref<1x128xf32, #tpu.memory_space<vmem>>, vector<1x128xf32>
    %c0_1 = arith.constant 0 : index
    %c0_2 = arith.constant 0 : index
    %1 = vector.load %arg2[%c0_1, %c0_2] : memref<2x128xf32, #tpu.memory_space<vmem>>, vector<2x128xf32>
    %2 = arith.truncf %1 : vector<2x128xf32> to vector<2x128xbf16>
    %c0_3 = arith.constant 0 : index
    %c0_4 = arith.constant 0 : index
    %3 = vector.load %arg4[%c0_3, %c0_4] : memref<128x128xbf16, #tpu.memory_space<vmem>>, vector<128x128xbf16>
    %cst = arith.constant dense<0.000000e+00> : vector<2x128xf32>
    %4 = tpu.matmul %2, %3, %cst {dimension_numbers = #tpu.dot_dimension_numbers<[1], [0], [0], [1], [0, 0, 1, 1], [], []>} : vector<2x128xbf16>, vector<128x128xbf16>, vector<2x128xf32> -> vector<2x128xf32>
    %5 = vector.broadcast %0 : vector<1x128xf32> to vector<2x128xf32>
    %6 = arith.addf %5, %4 : vector<2x128xf32>
    %c0_5 = arith.constant 0 : index
    %c0_6 = arith.constant 0 : index
    %7 = vector.load %arg3[%c0_5, %c0_6] : memref<2x128xf32, #tpu.memory_space<vmem>>, vector<2x128xf32>
    %8 = arith.truncf %7 : vector<2x128xf32> to vector<2x128xbf16>
    %c0_7 = arith.constant 0 : index
    %c0_8 = arith.constant 0 : index
    %9 = vector.load %arg5[%c0_7, %c0_8] : memref<128x128xbf16, #tpu.memory_space<vmem>>, vector<128x128xbf16>
    %cst_9 = arith.constant dense<0.000000e+00> : vector<2x128xf32>
    %10 = tpu.matmul %8, %9, %cst_9 {dimension_numbers = #tpu.dot_dimension_numbers<[1], [0], [0], [1], [0, 0, 1, 1], [], []>} : vector<2x128xbf16>, vector<128x128xbf16>, vector<2x128xf32> -> vector<2x128xf32>
    %11 = arith.addf %6, %10 : vector<2x128xf32>
    %c0_10 = arith.constant 0 : index
    %c0_11 = arith.constant 0 : index
    %12 = vector.load %arg7[%c0_10, %c0_11] : memref<2x128xf32, #tpu.memory_space<vmem>>, vector<2x128xf32>
    tpu.vector_store %arg7[%c0_10, %c0_11], %11 {strides = array<i32>} : memref<2x128xf32, #tpu.memory_space<vmem>>, vector<2x128xf32>,
    return
  }
  func.func @transform_0(%arg0: i32, %arg1: i32) -> (i32, i32) {
    %c0_i32 = arith.constant 0 : i32
    %c0_i32_0 = arith.constant 0 : i32
    return %arg0, %c0_i32 : i32, i32
  }
  func.func @transform_1(%arg0: i32, %arg1: i32) -> (i32, i32) {
    %c0_i32 = arith.constant 0 : i32
    %c0_i32_0 = arith.constant 0 : i32
    return %arg0, %c0_i32 : i32, i32
  }
  func.func @transform_2(%arg0: i32, %arg1: i32) -> (i32, i32) {
    %c0_i32 = arith.constant 0 : i32
    %c0_i32_0 = arith.constant 0 : i32
    return %c0_i32, %arg1 : i32, i32
  }
  func.func @transform_3(%arg0: i32, %arg1: i32) -> (i32, i32) {
    %c0_i32 = arith.constant 0 : i32
    %c0_i32_0 = arith.constant 0 : i32
    return %c0_i32, %arg1 : i32, i32
  }
  func.func @transform_4(%arg0: i32, %arg1: i32) -> (i32, i32) {
    %c0_i32 = arith.constant 0 : i32
    %c0_i32_0 = arith.constant 0 : i32
    return %c0_i32, %arg1 : i32, i32
  }
  func.func @transform_5(%arg0: i32, %arg1: i32) -> (i32, i32) {
    %c0_i32 = arith.constant 0 : i32
    return %arg0, %arg1 : i32, i32
  }
}

</mosaic_0001>

<llo_original>
// kernel: awareness_lstm_forward.5
$region0: #{awareness_lstm_forward.5}
  #allocation0 [shape = 'u32[]', space=smem, size = 0x4, offset = 0x4, fixed_abs, tag = 'smem constant byte address 0x4 - core index']
  #allocation1 [shape = 'u32[72,128]{1,0:T(1,128)}', space=vmem, size = 0x9000, scoped, tag = 'internal scratch']
  %s0 = inlined_call_operand.vmem [shape: f32[16,32], index: 0, kind: input, shape index: {}]
  %s1 = inlined_call_operand.vmem [shape: bf16[32,1024], index: 1, kind: input, shape index: {}]
  %s2 = inlined_call_operand.vmem [shape: f32[1,1024], index: 2, kind: input, shape index: {}]
  %s3 = inlined_call_operand.vmem [shape: f32[16,1024], index: 3, kind: output, shape index: {}]
  %s4 = sld [smem:[#allocation0]]
  $region87: #{awareness_lstm_forward.5} parent=0
    _
  %s6 = ssub.s32 1, %s4
  %s7 = scalar_select 0, %s6, %s4
  $region1: #{awareness_lstm_forward.5} parent=0
    #allocation2 [shape = 'u8[65536]{0}', space=vmem, size = 0x10000, scoped, tag = 'input window, operand 1']
    #allocation3 [shape = 'u8[65536]{0}', space=vmem, size = 0x10000, scoped, tag = 'output window, operand 0']
    loop: start=0, step=1, limit=4
    $region2: #{awareness_lstm_forward.5} parent=1 // loop_pre_header
      _
    $region3: #{awareness_lstm_forward.5} parent=1 // loop_header
      %s9 = sphi 0, %s13
      %p10 = scmp.ge.s32.totalorder %s9, 4
      %s16 = sphi 0, %s28
      %s17 = sphi 0, %s24
      %s18 = sphi 0, %s16
      %s19 = sphi 0, %s17
      %s20 = sphi 0, %s18
      %s21 = sphi 0, %s19
      %s31 = sphi 0, %s33
      %s34 = sphi 0, %s31
      %s35 = sphi 0, %s34
      %s51 = sphi 0, %s35
      %s57 = sphi 0, %s59
      %s60 = sphi 0, %s57
      %s61 = sphi 0, %s60
      %s77 = sphi 0, %s61
      %s83 = sphi 0, %s85
      %s86 = sphi 0, %s83
      %s87 = sphi 0, %s86
      %s103 = sphi 0, %s87
      %s111 = sphi 0, %s113
      %s114 = sphi 0, %s111
      %s115 = sphi 0, %s114
      %s131 = sphi 0, %s115
    $region4: #{awareness_lstm_forward.5} parent=1 // loop_header_branch
      %12 = sbr.rel (%p10) target = $region8
    $region5: #{awareness_lstm_forward.5} parent=1 // loop_body
      %s14 = ssub.s32 %s9, 1
      %s15 = ssub.s32 %s9, 2
      %s22 = sadd.s32 1, %s17
      %p23 = scmp.ge.s32.totalorder %s22, 2
      %s24 = scalar_select %p23, 0, %s22
      %s25 = sadd.s32 1, %s16
      %s26 = scalar_select %p23, %s25, %s16
      %p27 = scmp.ge.s32.totalorder %s26, 1
      %s28 = scalar_select %p27, 0, %s26
      %s29 = ssub.s32 %s16, %s28
      %p30 = scmp.eq.s32.totalorder %s29, 0
      %s32 = sadd.s32 %s31, 1
      %s33 = scalar_select %p30, %s31, %s32
      %p36 = pneg %p30
      %p37 = scmp.eq.s32.totalorder %s9, 1
      %p38 = por %p36, %p37
      %p39 = scmp.ne.s32.totalorder %s31, %s34
      %p40 = scmp.eq.s32.totalorder %s9, 0
      %p41 = por %p39, %p40
      %p42 = scmp.ne.s32.totalorder %s31, %s34
      %p43 = scmp.eq.s32.totalorder %s14, 1
      %p44 = por %p42, %p43
      %p45 = scmp.ne.s32.totalorder %s34, %s35
      %p46 = scmp.eq.s32.totalorder %s14, 0
      %p47 = por %p45, %p46
      %p48 = scmp.ne.s32.totalorder %s34, %s35
      %p49 = scmp.eq.s32.totalorder %s15, 1
      %p50 = por %p48, %p49
      %p52 = scmp.ne.s32.totalorder %s35, %s51
      %p53 = scmp.eq.s32.totalorder %s15, 0
      %p54 = por %p52, %p53
      %s55 = ssub.s32 %s17, %s24
      %p56 = scmp.eq.s32.totalorder %s55, 0
      %s58 = sadd.s32 %s57, 1
      %s59 = scalar_select %p56, %s57, %s58
      %p62 = pneg %p56
      %p63 = scmp.eq.s32.totalorder %s9, 1
      %p64 = por %p62, %p63
      %p65 = scmp.ne.s32.totalorder %s57, %s60
      %p66 = scmp.eq.s32.totalorder %s9, 0
      %p67 = por %p65, %p66
      %p68 = scmp.ne.s32.totalorder %s57, %s60
      %p69 = scmp.eq.s32.totalorder %s14, 1
      %p70 = por %p68, %p69
      %p71 = scmp.ne.s32.totalorder %s60, %s61
      %p72 = scmp.eq.s32.totalorder %s14, 0
      %p73 = por %p71, %p72
      %p74 = scmp.ne.s32.totalorder %s60, %s61
      %p75 = scmp.eq.s32.totalorder %s15, 1
      %p76 = por %p74, %p75
      %p78 = scmp.ne.s32.totalorder %s61, %s77
      %p79 = scmp.eq.s32.totalorder %s15, 0
      %p80 = por %p78, %p79
      %s81 = ssub.s32 %s17, %s24
      %p82 = scmp.eq.s32.totalorder %s81, 0
      %s84 = sadd.s32 %s83, 1
      %s85 = scalar_select %p82, %s83, %s84
      %p88 = pneg %p82
      %p89 = scmp.eq.s32.totalorder %s9, 1
      %p90 = por %p88, %p89
      %p91 = scmp.ne.s32.totalorder %s83, %s86
      %p92 = scmp.eq.s32.totalorder %s9, 0
      %p93 = por %p91, %p92
      %p94 = scmp.ne.s32.totalorder %s83, %s86
      %p95 = scmp.eq.s32.totalorder %s14, 1
      %p96 = por %p94, %p95
      %p97 = scmp.ne.s32.totalorder %s86, %s87
      %p98 = scmp.eq.s32.totalorder %s14, 0
      %p99 = por %p97, %p98
      %p100 = scmp.ne.s32.totalorder %s86, %s87
      %p101 = scmp.eq.s32.totalorder %s15, 1
      %p102 = por %p100, %p101
      %p104 = scmp.ne.s32.totalorder %s87, %s103
      %p105 = scmp.eq.s32.totalorder %s15, 0
      %p106 = por %p104, %p105
      %s107 = ssub.s32 %s16, %s28
      %s108 = ssub.s32 %s17, %s24
      %s109 = sor.u32 %s107, %s108
      %p110 = scmp.eq.s32.totalorder %s109, 0
      %s112 = sadd.s32 %s111, 1
      %s113 = scalar_select %p110, %s111, %s112
      %p116 = pneg %p110
      %p117 = scmp.eq.s32.totalorder %s9, 1
      %p118 = por %p116, %p117
      %p119 = scmp.ne.s32.totalorder %s111, %s114
      %p120 = scmp.eq.s32.totalorder %s9, 0
      %p121 = por %p119, %p120
      %p122 = scmp.ne.s32.totalorder %s111, %s114
      %p123 = scmp.eq.s32.totalorder %s14, 1
      %p124 = por %p122, %p123
      %p125 = scmp.ne.s32.totalorder %s114, %s115
      %p126 = scmp.eq.s32.totalorder %s14, 0
      %p127 = por %p125, %p126
      %p128 = scmp.ne.s32.totalorder %s114, %s115
      %p129 = scmp.eq.s32.totalorder %s15, 1
      %p130 = por %p128, %p129
      %p132 = scmp.ne.s32.totalorder %s115, %s131
      %p133 = scmp.eq.s32.totalorder %s15, 0
      %p134 = por %p132, %p133
      %p135 = scmp.le.s32.totalorder 1, %s9
      %p136 = scmp.lt.s32.totalorder %s9, 3
      %p137 = pnand %p135, %p136
      %p138 = pneg %p137
      // Predicated region
      $region9: #{awareness_lstm_forward.5} parent=5 // pred_check
        _
      $region10: #{awareness_lstm_forward.5} parent=5 // pred_check_branch
        %140 = sbr.rel (%p137) target = $region12
      $region11: #{awareness_lstm_forward.5} parent=5 // pred_region
        %s141 = ssub.s32 %s9, 1
        // Predicated region
        $region13: #{awareness_lstm_forward.5} parent=11 // pred_check
          %p142 = pneg %p47
        $region14: #{awareness_lstm_forward.5} parent=11 // pred_check_branch
          %144 = sbr.rel (%p142) target = $region16
        $region15: #{awareness_lstm_forward.5} parent=11 // pred_region
          %s145 = smul.u32 2, %s18
          %p146 = scmp.lt.s32.totalorder %s145, 1
          %s147 = scalar_select %p146, %s145, 1
          %s148 = smul.addr %s147, 8
          %s149 = scalar_lea.vmem %s0, %s148
          %s150 = smul.u32 2, %s18
        $region16: #{awareness_lstm_forward.5} parent=11 // pred_fallthru
          _
      $region12: #{awareness_lstm_forward.5} parent=5 // pred_fallthru
        _
      %p151 = scmp.lt.s32.totalorder %s9, 2
      // Predicated region
      $region17: #{awareness_lstm_forward.5} parent=5 // pred_check
        %p152 = pneg %p151
      $region18: #{awareness_lstm_forward.5} parent=5 // pred_check_branch
        %154 = sbr.rel (%p152) target = $region20
      $region19: #{awareness_lstm_forward.5} parent=5 // pred_region
        // Predicated region
        $region21: #{awareness_lstm_forward.5} parent=19 // pred_check
          %p155 = pneg %p67
        $region22: #{awareness_lstm_forward.5} parent=19 // pred_check_branch
          %157 = sbr.rel (%p155) target = $region24
        $region23: #{awareness_lstm_forward.5} parent=19 // pred_region
          %s158 = sand.u32 %s57, 1
          %s159 = sand.u32 %s57, 1
          %s160 = smul.addr %s159, 64
          %s161 = scalar_lea.vmem [#allocation2], %s160
          %s162 = smul.u32 4, %s17
          %s163 = smul.addr %s162, 4
          %s164 = scalar_lea.vmem %s1, %s163
          // Predicated region
          $region25: #{awareness_lstm_forward.5} parent=23 // pred_check
            _
          $region26: #{awareness_lstm_forward.5} parent=23 // pred_check_branch
            %166 = sbr.rel (0) target = $region28
          $region27: #{awareness_lstm_forward.5} parent=23 // pred_region
            // Predicated region
            $region29: #{awareness_lstm_forward.5} parent=27 // pred_check
              _
            $region30: #{awareness_lstm_forward.5} parent=27 // pred_check_branch
              %168 = sbr.rel (0) target = $region32
            $region31: #{awareness_lstm_forward.5} parent=27 // pred_region
              loop: start=0, step=1, limit=1
              $region33: #{awareness_lstm_forward.5} parent=31 // loop_pre_header
                _
              $region34: #{awareness_lstm_forward.5} parent=31 // loop_header
                %s170 = sphi 0, %s174
                %p171 = scmp.ge.s32.totalorder %s170, 1
                %s175 = sphi %s164, %s164
                %s176 = sphi %s161, %s161
              $region35: #{awareness_lstm_forward.5} parent=31 // loop_header_branch
                %173 = sbr.rel (%p171) target = $region39
              $region36: #{awareness_lstm_forward.5} parent=31 // loop_body
                %v177 = vld [vmem:[%s175] sm:$0xff]
                %178 = vst [vmem:[%s176] sm:$0xff] %v177
                %v179 = vld [vmem:[%s175 + $0x8] sm:$0xff]
                %180 = vst [vmem:[%s176 + $0x8] sm:$0xff] %v179
                %v181 = vld [vmem:[%s175 + $0x20] sm:$0xff]
                %182 = vst [vmem:[%s176 + $0x10] sm:$0xff] %v181
                %v183 = vld [vmem:[%s175 + $0x28] sm:$0xff]
                %184 = vst [vmem:[%s176 + $0x18] sm:$0xff] %v183
                %v185 = vld [vmem:[%s175 + $0x40] sm:$0xff]
                %186 = vst [vmem:[%s176 + $0x20] sm:$0xff] %v185
                %v187 = vld [vmem:[%s175 + $0x48] sm:$0xff]
                %188 = vst [vmem:[%s176 + $0x28] sm:$0xff] %v187
                %v189 = vld [vmem:[%s175 + $0x60] sm:$0xff]
                %190 = vst [vmem:[%s176 + $0x30] sm:$0xff] %v189
                %v191 = vld [vmem:[%s175 + $0x68] sm:$0xff]
                %192 = vst [vmem:[%s176 + $0x38] sm:$0xff] %v191
              $region37: #{awareness_lstm_forward.5} parent=31 // loop_footer
                %s174 = sadd.s32 1, %s170
              $region38: #{awareness_lstm_forward.5} parent=31 // loop_footer_branch
                %169 = sbr.rel target = $region34
              $region39: #{awareness_lstm_forward.5} parent=31 // loop_exit
                _
            $region32: #{awareness_lstm_forward.5} parent=27 // pred_fallthru
              _
            // Predicated region
            $region40: #{awareness_lstm_forward.5} parent=27 // pred_check
              _
            $region41: #{awareness_lstm_forward.5} parent=27 // pred_check_branch
              %194 = sbr.rel target = $region43
            $region42: #{awareness_lstm_forward.5} parent=27 // pred_region
              _
            $region43: #{awareness_lstm_forward.5} parent=27 // pred_fallthru
              _
          $region28: #{awareness_lstm_forward.5} parent=23 // pred_fallthru
            _
          %195 = vnop
        $region24: #{awareness_lstm_forward.5} parent=19 // pred_fallthru
          _
        // Predicated region
        $region44: #{awareness_lstm_forward.5} parent=19 // pred_check
          %p196 = pneg %p93
        $region45: #{awareness_lstm_forward.5} parent=19 // pred_check_branch
          %198 = sbr.rel (%p196) target = $region47
        $region46: #{awareness_lstm_forward.5} parent=19 // pred_region
          %s199 = smul.u32 4, %s17
          %p200 = scmp.lt.s32.totalorder %s199, 7
          %s201 = scalar_select %p200, %s199, 7
          %s202 = scalar_lea.vmem %s2, %s201
          %s203 = smul.u32 4, %s17
        $region47: #{awareness_lstm_forward.5} parent=19 // pred_fallthru
          _
      $region20: #{awareness_lstm_forward.5} parent=5 // pred_fallthru
        _
      %p204 = scmp.le.s32.totalorder 1, %s9
      %p205 = scmp.lt.s32.totalorder %s9, 3
      %p206 = pnand %p204, %p205
      %p207 = pneg %p206
      // Predicated region
      $region48: #{awareness_lstm_forward.5} parent=5 // pred_check
        _
      $region49: #{awareness_lstm_forward.5} parent=5 // pred_check_branch
        %209 = sbr.rel (%p206) target = $region51
      $region50: #{awareness_lstm_forward.5} parent=5 // pred_region
        %s210 = ssub.s32 %s9, 1
        %s211 = sand.u32 %s60, 1
        %s212 = sand.u32 %s60, 1
        %s213 = smul.addr %s212, 64
        %s214 = scalar_lea.vmem [#allocation2], %s213
        // Predicated region
        $region52: #{awareness_lstm_forward.5} parent=50 // pred_check
          %p215 = pneg %p73
        $region53: #{awareness_lstm_forward.5} parent=50 // pred_check_branch
          %217 = sbr.rel (%p215) target = $region55
        $region54: #{awareness_lstm_forward.5} parent=50 // pred_region
          _
        $region55: #{awareness_lstm_forward.5} parent=50 // pred_fallthru
          _
        %s218 = smul.u32 2, %s18
        %p219 = scmp.lt.s32.totalorder %s218, 1
        %s220 = scalar_select %p219, %s218, 1
        %s221 = smul.addr %s220, 8
        %s222 = scalar_lea.vmem %s0, %s221
        %p223 = pneg %p47
        %p224 = pneg %p44
        %s225 = sand.u32 %s60, 1
        %s226 = sand.u32 %s60, 1
        %s227 = smul.addr %s226, 64
        %s228 = scalar_lea.vmem [#allocation2], %s227
        %p229 = pneg %p73
        %p230 = pneg %p70
        %s231 = smul.u32 4, %s19
        %p232 = scmp.lt.s32.totalorder %s231, 7
        %s233 = scalar_select %p232, %s231, 7
        %s234 = scalar_lea.vmem %s2, %s233
        %p235 = pneg %p99
        %p236 = pneg %p96
        %p237 = pneg %p127
        %p238 = pneg %p124
        %s239 = sand.u32 %s114, 1
        %s240 = sand.u32 %s114, 1
        %s241 = smul.addr %s240, 64
        %s242 = scalar_lea.vmem [#allocation3], %s241
        %s243 = smul.u32 2, %s18
        %p244 = scmp.lt.s32.totalorder %s243, 1
        %s245 = scalar_select %p244, %s243, 1
        %s246 = smul.addr %s245, 8
        %s247 = scalar_lea.vmem %s0, %s246
        %s248 = smul.u32 2, %s18
        %s249 = smul.u32 4, %s19
        %s250 = smul.u32 4, %s19
        %p251 = scmp.lt.s32.totalorder %s250, 7
        %s252 = scalar_select %p251, %s250, 7
        %s253 = scalar_lea.vmem %s2, %s252
        %s254 = smul.u32 4, %s19
        %s255 = smul.u32 2, %s18
        %s256 = smul.u32 4, %s19
        %v258 = vld [vmem:[%s253] sm:$0xf]
        %v259 = vld [vmem:[%s247] sm:$0xff]
        %v260 = vld [vmem:[%s247 + $0x8] sm:$0xff]
        %v261 = vpack.c.bf16 %v260, %v259
        %v262 = vld [vmem:[%s214] sm:$0xff]
        %v263 = vld [vmem:[%s214 + $0x8] sm:$0xff]
        %v264 = vld [vmem:[%s214 + $0x10] sm:$0xff]
        %v265 = vld [vmem:[%s214 + $0x18] sm:$0xff]
        %v266 = vld [vmem:[%s214 + $0x20] sm:$0xff]
        %v267 = vld [vmem:[%s214 + $0x28] sm:$0xff]
        %v268 = vld [vmem:[%s214 + $0x30] sm:$0xff]
        %v269 = vld [vmem:[%s214 + $0x38] sm:$0xff]
        %v278 = vunpack.c.l.b16 %v262
        %v279 = vunpack.c.h.b16 %v262
        %v280 = vunpack.c.l.b16 %v263
        %v281 = vunpack.c.h.b16 %v263
        %v282 = vunpack.c.l.b16 %v264
        %v283 = vunpack.c.h.b16 %v264
        %v284 = vunpack.c.l.b16 %v265
        %v285 = vunpack.c.h.b16 %v265
        %v286 = vunpack.c.l.b16 %v266
        %v287 = vunpack.c.h.b16 %v266
        %v288 = vunpack.c.l.b16 %v267
        %v289 = vunpack.c.h.b16 %v267
        %v290 = vunpack.c.l.b16 %v268
        %v291 = vunpack.c.h.b16 %v268
        %v292 = vunpack.c.l.b16 %v269
        %v293 = vunpack.c.h.b16 %v269
        %v294 = vpack.c.b16 %v282, %v278
        %v295 = vpack.c.b16 %v283, %v279
        %v296 = vpack.c.b16 %v284, %v280
        %v297 = vpack.c.b16 %v285, %v281
        %v298 = vpack.c.b16 %v290, %v286
        %v299 = vpack.c.b16 %v291, %v287
        %v300 = vpack.c.b16 %v292, %v288
        %v301 = vpack.c.b16 %v293, %v289
        %vm310 = vcmask 261120
        %v312 = vsel %vm310, %v261, 0
        %314 = vmatpush.bf16.msra.mxu0 0
        %315 = vmatpush.bf16.msra.mxu0 0
        %316 = vmatpush.bf16.msra.mxu0 0
        %317 = vmatpush.bf16.msra.mxu0 0
        %318 = vmatpush.bf16.msra.mxu0 0
        %319 = vmatpush.bf16.msra.mxu0 0
        %320 = vmatpush.bf16.msra.mxu0 %v298
        %321 = vmatpush.bf16.msra.mxu0 %v294
        %322 = vmatmul.bf16.gmra.mxu0 %v312
        %v323 = vpop.f32.mrf.mxu0
        %v324 = vadd.f32 0.0, %v323
        %v325 = vpop.f32.mrf.mxu0
        %v326 = vadd.f32 0.0, %v325
        %327 = vdwg.mxu0
        %328 = vmatpush.bf16.msra.mxu0 0
        %329 = vmatpush.bf16.msra.mxu0 0
        %330 = vmatpush.bf16.msra.mxu0 0
        %331 = vmatpush.bf16.msra.mxu0 0
        %332 = vmatpush.bf16.msra.mxu0 0
        %333 = vmatpush.bf16.msra.mxu0 0
        %334 = vmatpush.bf16.msra.mxu0 %v299
        %335 = vmatpush.bf16.msra.mxu0 %v295
        %336 = vmatmul.bf16.gmra.mxu0 %v312
        %v337 = vpop.f32.mrf.mxu0
        %v338 = vadd.f32 0.0, %v337
        %v339 = vpop.f32.mrf.mxu0
        %v340 = vadd.f32 0.0, %v339
        %341 = vdwg.mxu0
        %342 = vmatpush.bf16.msra.mxu0 0
        %343 = vmatpush.bf16.msra.mxu0 0
        %344 = vmatpush.bf16.msra.mxu0 0
        %345 = vmatpush.bf16.msra.mxu0 0
        %346 = vmatpush.bf16.msra.mxu0 0
        %347 = vmatpush.bf16.msra.mxu0 0
        %348 = vmatpush.bf16.msra.mxu0 %v300
        %349 = vmatpush.bf16.msra.mxu0 %v296
        %350 = vmatmul.bf16.gmra.mxu0 %v312
        %v351 = vpop.f32.mrf.mxu0
        %v352 = vadd.f32 0.0, %v351
        %v353 = vpop.f32.mrf.mxu0
        %v354 = vadd.f32 0.0, %v353
        %355 = vdwg.mxu0
        %356 = vmatpush.bf16.msra.mxu0 0
        %357 = vmatpush.bf16.msra.mxu0 0
        %358 = vmatpush.bf16.msra.mxu0 0
        %359 = vmatpush.bf16.msra.mxu0 0
        %360 = vmatpush.bf16.msra.mxu0 0
        %361 = vmatpush.bf16.msra.mxu0 0
        %362 = vmatpush.bf16.msra.mxu0 %v301
        %363 = vmatpush.bf16.msra.mxu0 %v297
        %364 = vmatmul.bf16.gmra.mxu0 %v312
        %v365 = vpop.f32.mrf.mxu0
        %v366 = vadd.f32 0.0, %v365
        %v367 = vpop.f32.mrf.mxu0
        %v368 = vadd.f32 0.0, %v367
        %369 = vdwg.mxu0
        %v371 = vperm.slane %v258, 0
        %v372 = vperm.slane %v258, 1
        %v373 = vperm.slane %v258, 2
        %v374 = vperm.slane %v258, 3
        %v379 = vadd.f32 %v371, %v324
        %v380 = vadd.f32 %v372, %v338
        %v381 = vadd.f32 %v373, %v352
        %v382 = vadd.f32 %v374, %v366
        %v383 = vadd.f32 %v371, %v326
        %v384 = vadd.f32 %v372, %v340
        %v385 = vadd.f32 %v373, %v354
        %v386 = vadd.f32 %v374, %v368
        %387 = vst [vmem:[%s242] sm:$0xff] %v379
        %388 = vst [vmem:[%s242 + $0x8] sm:$0xff] %v380
        %389 = vst [vmem:[%s242 + $0x10] sm:$0xff] %v381
        %390 = vst [vmem:[%s242 + $0x18] sm:$0xff] %v382
        %391 = vst [vmem:[%s242 + $0x20] sm:$0xff] %v383
        %392 = vst [vmem:[%s242 + $0x28] sm:$0xff] %v384
        %393 = vst [vmem:[%s242 + $0x30] sm:$0xff] %v385
        %394 = vst [vmem:[%s242 + $0x38] sm:$0xff] %v386
        %s395 = sand.u32 %s114, 1
        %s396 = sand.u32 %s114, 1
        %s397 = smul.addr %s396, 64
        %s398 = scalar_lea.vmem [#allocation3], %s397
        // Predicated region
        $region56: #{awareness_lstm_forward.5} parent=50 // pred_check
          %p399 = pneg %p124
        $region57: #{awareness_lstm_forward.5} parent=50 // pred_check_branch
          %401 = sbr.rel (%p399) target = $region59
        $region58: #{awareness_lstm_forward.5} parent=50 // pred_region
          %s402 = smul.u32 2, %s18
          %s403 = smul.u32 4, %s19
          %s404 = smul.addr %s402, 8
          %s405 = sadd.s32 %s403, %s404
          %s406 = smul.addr %s405, 8
          %s407 = scalar_lea.vmem %s3, %s406
          // Predicated region
          $region60: #{awareness_lstm_forward.5} parent=58 // pred_check
            _
          $region61: #{awareness_lstm_forward.5} parent=58 // pred_check_branch
            %409 = sbr.rel (0) target = $region63
          $region62: #{awareness_lstm_forward.5} parent=58 // pred_region
            // Predicated region
            $region64: #{awareness_lstm_forward.5} parent=62 // pred_check
              _
            $region65: #{awareness_lstm_forward.5} parent=62 // pred_check_branch
              %411 = sbr.rel (0) target = $region67
            $region66: #{awareness_lstm_forward.5} parent=62 // pred_region
              loop: start=0, step=1, limit=1
              $region68: #{awareness_lstm_forward.5} parent=66 // loop_pre_header
                _
              $region69: #{awareness_lstm_forward.5} parent=66 // loop_header
                %s413 = sphi 0, %s417
                %p414 = scmp.ge.s32.totalorder %s413, 1
                %s418 = sphi %s398, %s398
                %s419 = sphi %s407, %s407
              $region70: #{awareness_lstm_forward.5} parent=66 // loop_header_branch
                %416 = sbr.rel (%p414) target = $region74
              $region71: #{awareness_lstm_forward.5} parent=66 // loop_body
                %v420 = vld [vmem:[%s418] sm:$0xff]
                %421 = vst [vmem:[%s419] sm:$0xff] %v420
                %v422 = vld [vmem:[%s418 + $0x8] sm:$0xff]
                %423 = vst [vmem:[%s419 + $0x8] sm:$0xff] %v422
                %v424 = vld [vmem:[%s418 + $0x10] sm:$0xff]
                %425 = vst [vmem:[%s419 + $0x10] sm:$0xff] %v424
                %v426 = vld [vmem:[%s418 + $0x18] sm:$0xff]
                %427 = vst [vmem:[%s419 + $0x18] sm:$0xff] %v426
                %v428 = vld [vmem:[%s418 + $0x20] sm:$0xff]
                %429 = vst [vmem:[%s419 + $0x40] sm:$0xff] %v428
                %v430 = vld [vmem:[%s418 + $0x28] sm:$0xff]
                %431 = vst [vmem:[%s419 + $0x48] sm:$0xff] %v430
                %v432 = vld [vmem:[%s418 + $0x30] sm:$0xff]
                %433 = vst [vmem:[%s419 + $0x50] sm:$0xff] %v432
                %v434 = vld [vmem:[%s418 + $0x38] sm:$0xff]
                %435 = vst [vmem:[%s419 + $0x58] sm:$0xff] %v434
              $region72: #{awareness_lstm_forward.5} parent=66 // loop_footer
                %s417 = sadd.s32 1, %s413
              $region73: #{awareness_lstm_forward.5} parent=66 // loop_footer_branch
                %412 = sbr.rel target = $region69
              $region74: #{awareness_lstm_forward.5} parent=66 // loop_exit
                _
            $region67: #{awareness_lstm_forward.5} parent=62 // pred_fallthru
              _
            // Predicated region
            $region75: #{awareness_lstm_forward.5} parent=62 // pred_check
              _
            $region76: #{awareness_lstm_forward.5} parent=62 // pred_check_branch
              %437 = sbr.rel target = $region78
            $region77: #{awareness_lstm_forward.5} parent=62 // pred_region
              _
            $region78: #{awareness_lstm_forward.5} parent=62 // pred_fallthru
              _
          $region63: #{awareness_lstm_forward.5} parent=58 // pred_fallthru
            _
          %438 = vnop
        $region59: #{awareness_lstm_forward.5} parent=50 // pred_fallthru
          _
      $region51: #{awareness_lstm_forward.5} parent=5 // pred_fallthru
        _
      %p439 = scmp.le.s32.totalorder 2, %s9
      // Predicated region
      $region79: #{awareness_lstm_forward.5} parent=5 // pred_check
        %p440 = pneg %p439
      $region80: #{awareness_lstm_forward.5} parent=5 // pred_check_branch
        %442 = sbr.rel (%p440) target = $region82
      $region81: #{awareness_lstm_forward.5} parent=5 // pred_region
        %s443 = ssub.s32 %s9, 2
        // Predicated region
        $region83: #{awareness_lstm_forward.5} parent=81 // pred_check
          %p444 = pneg %p130
        $region84: #{awareness_lstm_forward.5} parent=81 // pred_check_branch
          %446 = sbr.rel (%p444) target = $region86
        $region85: #{awareness_lstm_forward.5} parent=81 // pred_region
          %s447 = sand.u32 %s115, 1
          %s448 = sand.u32 %s115, 1
          %s449 = smul.addr %s448, 64
          %s450 = scalar_lea.vmem [#allocation3], %s449
        $region86: #{awareness_lstm_forward.5} parent=81 // pred_fallthru
          _
      $region82: #{awareness_lstm_forward.5} parent=5 // pred_fallthru
        _
    $region6: #{awareness_lstm_forward.5} parent=1 // loop_footer
      %s13 = sadd.s32 1, %s9
    $region7: #{awareness_lstm_forward.5} parent=1 // loop_footer_branch
      %8 = sbr.rel target = $region3
    $region8: #{awareness_lstm_forward.5} parent=1 // loop_exit
      _

// kernel: awareness_lstm_forward.9
$region0: #{awareness_lstm_forward.9}
  #allocation0 [shape = 'u32[]', space=smem, size = 0x4, offset = 0x4, fixed_abs, tag = 'smem constant byte address 0x4 - core index']
  #allocation1 [shape = 'u32[72,128]{1,0:T(1,128)}', space=vmem, size = 0x9000, scoped, tag = 'internal scratch']
  %s0 = inlined_call_operand.vmem [shape: f32[2,128], index: 0, kind: input, shape index: {}]
  %s1 = inlined_call_operand.vmem [shape: f32[2,128], index: 1, kind: input, shape index: {}]
  %s2 = inlined_call_operand.vmem [shape: bf16[128,128], index: 2, kind: input, shape index: {}]
  %s3 = inlined_call_operand.vmem [shape: bf16[128,128], index: 3, kind: input, shape index: {}]
  %s4 = inlined_call_operand.vmem [shape: f32[1,128], index: 4, kind: input, shape index: {}]
  %s5 = inlined_call_operand.hbm [shape: f32[2,128], index: 5, kind: output, shape index: {}]
  %s6 = sld [smem:[#allocation0]]
  $region30: #{awareness_lstm_forward.9} parent=0
    _
  %s8 = ssub.s32 1, %s6
  %s9 = scalar_select 0, %s8, %s6
  $region1: #{awareness_lstm_forward.9} parent=0
    #allocation2 [shape = 'u8[1024]{0}', space=vmem, size = 0x400, scoped, tag = 'output window, operand 0, single buffered']
    #allocation3 [shape = 's32[1]{0}', space=sflag, size = 0x4, scoped, tag = 'scoped memory for awareness_lstm_forward.9']
    %10 = vsyncpa [#allocation3], 0
    // Predicated region
    $region2: #{awareness_lstm_forward.9} parent=1 // pred_check
      _
    $region3: #{awareness_lstm_forward.9} parent=1 // pred_check_branch
      %12 = sbr.rel (0) target = $region5
    $region4: #{awareness_lstm_forward.9} parent=1 // pred_region
      _
    $region5: #{awareness_lstm_forward.9} parent=1 // pred_fallthru
      _
    // Predicated region
    $region6: #{awareness_lstm_forward.9} parent=1 // pred_check
      _
    $region7: #{awareness_lstm_forward.9} parent=1 // pred_check_branch
      %14 = sbr.rel (0) target = $region9
    $region8: #{awareness_lstm_forward.9} parent=1 // pred_region
      _
    $region9: #{awareness_lstm_forward.9} parent=1 // pred_fallthru
      _
    // Predicated region
    $region10: #{awareness_lstm_forward.9} parent=1 // pred_check
      _
    $region11: #{awareness_lstm_forward.9} parent=1 // pred_check_branch
      %16 = sbr.rel (0) target = $region13
    $region12: #{awareness_lstm_forward.9} parent=1 // pred_region
      _
    $region13: #{awareness_lstm_forward.9} parent=1 // pred_fallthru
      _
    // Predicated region
    $region14: #{awareness_lstm_forward.9} parent=1 // pred_check
      _
    $region15: #{awareness_lstm_forward.9} parent=1 // pred_check_branch
      %18 = sbr.rel (0) target = $region17
    $region16: #{awareness_lstm_forward.9} parent=1 // pred_region
      _
    $region17: #{awareness_lstm_forward.9} parent=1 // pred_fallthru
      _
    // Predicated region
    $region18: #{awareness_lstm_forward.9} parent=1 // pred_check
      _
    $region19: #{awareness_lstm_forward.9} parent=1 // pred_check_branch
      %20 = sbr.rel (0) target = $region21
    $region20: #{awareness_lstm_forward.9} parent=1 // pred_region
      _
    $region21: #{awareness_lstm_forward.9} parent=1 // pred_fallthru
      _
    %v21 = vld [vmem:[%s4] sm:$0x1]
    %v22 = vld [vmem:[%s0] sm:$0x3]
    %v23 = vpack.c.bf16 %v22, %v22
    %v24 = vld [vmem:[%s2] sm:$0xf]
    %v25 = vld [vmem:[%s2 + $0x4] sm:$0xf]
    %v26 = vld [vmem:[%s2 + $0x8] sm:$0xf]
    %v27 = vld [vmem:[%s2 + $0xc] sm:$0xf]
    %v28 = vld [vmem:[%s2 + $0x10] sm:$0xf]
    %v29 = vld [vmem:[%s2 + $0x14] sm:$0xf]
    %v30 = vld [vmem:[%s2 + $0x18] sm:$0xf]
    %v31 = vld [vmem:[%s2 + $0x1c] sm:$0xf]
    %v32 = vld [vmem:[%s2 + $0x20] sm:$0xf]
    %v33 = vld [vmem:[%s2 + $0x24] sm:$0xf]
    %v34 = vld [vmem:[%s2 + $0x28] sm:$0xf]
    %v35 = vld [vmem:[%s2 + $0x2c] sm:$0xf]
    %v36 = vld [vmem:[%s2 + $0x30] sm:$0xf]
    %v37 = vld [vmem:[%s2 + $0x34] sm:$0xf]
    %v38 = vld [vmem:[%s2 + $0x38] sm:$0xf]
    %v39 = vld [vmem:[%s2 + $0x3c] sm:$0xf]
    %v56 = vunpack.c.l.b16 %v24
    %v57 = vunpack.c.l.b16 %v25
    %v58 = vunpack.c.l.b16 %v26
    %v59 = vunpack.c.l.b16 %v27
    %v60 = vunpack.c.l.b16 %v28
    %v61 = vunpack.c.l.b16 %v29
    %v62 = vunpack.c.l.b16 %v30
    %v63 = vunpack.c.l.b16 %v31
    %v64 = vunpack.c.l.b16 %v32
    %v65 = vunpack.c.l.b16 %v33
    %v66 = vunpack.c.l.b16 %v34
    %v67 = vunpack.c.l.b16 %v35
    %v68 = vunpack.c.l.b16 %v36
    %v69 = vunpack.c.l.b16 %v37
    %v70 = vunpack.c.l.b16 %v38
    %v71 = vunpack.c.l.b16 %v39
    %v72 = vpack.c.b16 %v57, %v56
    %v73 = vpack.c.b16 %v59, %v58
    %v74 = vpack.c.b16 %v61, %v60
    %v75 = vpack.c.b16 %v63, %v62
    %v76 = vpack.c.b16 %v65, %v64
    %v77 = vpack.c.b16 %v67, %v66
    %v78 = vpack.c.b16 %v69, %v68
    %v79 = vpack.c.b16 %v71, %v70
    %88 = vmatpush.bf16.msra.mxu0 %v79
    %89 = vmatpush.bf16.msra.mxu0 %v78
    %90 = vmatpush.bf16.msra.mxu0 %v77
    %91 = vmatpush.bf16.msra.mxu0 %v76
    %92 = vmatpush.bf16.msra.mxu0 %v75
    %93 = vmatpush.bf16.msra.mxu0 %v74
    %94 = vmatpush.bf16.msra.mxu0 %v73
    %95 = vmatpush.bf16.msra.mxu0 %v72
    %96 = vmatmul.bf16.gmra.mxu0 %v23
    %v97 = vpop.f32.mrf.mxu0
    %v98 = vadd.f32 0.0, %v97
    %v99 = vpop.f32.mrf.mxu0
    %100 = vdwg.mxu0
    %v102 = vperm.slane %v21, 0
    %v104 = vadd.f32 %v102, %v98
    %v105 = vld [vmem:[%s1] sm:$0x3]
    %v106 = vpack.c.bf16 %v105, %v105
    %v107 = vld [vmem:[%s3] sm:$0xf]
    %v108 = vld [vmem:[%s3 + $0x4] sm:$0xf]
    %v109 = vld [vmem:[%s3 + $0x8] sm:$0xf]
    %v110 = vld [vmem:[%s3 + $0xc] sm:$0xf]
    %v111 = vld [vmem:[%s3 + $0x10] sm:$0xf]
    %v112 = vld [vmem:[%s3 + $0x14] sm:$0xf]
    %v113 = vld [vmem:[%s3 + $0x18] sm:$0xf]
    %v114 = vld [vmem:[%s3 + $0x1c] sm:$0xf]
    %v115 = vld [vmem:[%s3 + $0x20] sm:$0xf]
    %v116 = vld [vmem:[%s3 + $0x24] sm:$0xf]
    %v117 = vld [vmem:[%s3 + $0x28] sm:$0xf]
    %v118 = vld [vmem:[%s3 + $0x2c] sm:$0xf]
    %v119 = vld [vmem:[%s3 + $0x30] sm:$0xf]
    %v120 = vld [vmem:[%s3 + $0x34] sm:$0xf]
    %v121 = vld [vmem:[%s3 + $0x38] sm:$0xf]
    %v122 = vld [vmem:[%s3 + $0x3c] sm:$0xf]
    %v139 = vunpack.c.l.b16 %v107
    %v140 = vunpack.c.l.b16 %v108
    %v141 = vunpack.c.l.b16 %v109
    %v142 = vunpack.c.l.b16 %v110
    %v143 = vunpack.c.l.b16 %v111
    %v144 = vunpack.c.l.b16 %v112
    %v145 = vunpack.c.l.b16 %v113
    %v146 = vunpack.c.l.b16 %v114
    %v147 = vunpack.c.l.b16 %v115
    %v148 = vunpack.c.l.b16 %v116
    %v149 = vunpack.c.l.b16 %v117
    %v150 = vunpack.c.l.b16 %v118
    %v151 = vunpack.c.l.b16 %v119
    %v152 = vunpack.c.l.b16 %v120
    %v153 = vunpack.c.l.b16 %v121
    %v154 = vunpack.c.l.b16 %v122
    %v155 = vpack.c.b16 %v140, %v139
    %v156 = vpack.c.b16 %v142, %v141
    %v157 = vpack.c.b16 %v144, %v143
    %v158 = vpack.c.b16 %v146, %v145
    %v159 = vpack.c.b16 %v148, %v147
    %v160 = vpack.c.b16 %v150, %v149
    %v161 = vpack.c.b16 %v152, %v151
    %v162 = vpack.c.b16 %v154, %v153
    %171 = vmatpush.bf16.msra.mxu0 %v162
    %172 = vmatpush.bf16.msra.mxu0 %v161
    %173 = vmatpush.bf16.msra.mxu0 %v160
    %174 = vmatpush.bf16.msra.mxu0 %v159
    %175 = vmatpush.bf16.msra.mxu0 %v158
    %176 = vmatpush.bf16.msra.mxu0 %v157
    %177 = vmatpush.bf16.msra.mxu0 %v156
    %178 = vmatpush.bf16.msra.mxu0 %v155
    %179 = vmatmul.bf16.gmra.mxu0 %v106
    %v180 = vpop.f32.mrf.mxu0
    %v181 = vadd.f32 0.0, %v180
    %v182 = vpop.f32.mrf.mxu0
    %183 = vdwg.mxu0
    %v184 = vadd.f32 %v104, %v181
    %185 = vst [vmem:[#allocation2] sm:$0x3] %v184
    // Predicated region
    $region22: #{awareness_lstm_forward.9} parent=1 // pred_check
      _
    $region23: #{awareness_lstm_forward.9} parent=1 // pred_check_branch
      %187 = sbr.rel (0) target = $region25
    $region24: #{awareness_lstm_forward.9} parent=1 // pred_region
      %189 = vsyncadd [#allocation3], 0
      %s191 = sshll.u32 [#allocation2], 4
      %s192 = int_to_ptr.vmem [resolvable:$true] %s191
      %s193 = sshll.u32 %s5, 4
      %s194 = int_to_ptr.hbm [resolvable:$true] %s193
      %196 = dma.vmem_to_hbm [thread:$0]  %s192, 32, %s194, [#allocation3]
    $region25: #{awareness_lstm_forward.9} parent=1 // pred_fallthru
      _
    // Predicated region
    $region26: #{awareness_lstm_forward.9} parent=1 // pred_check
      _
    $region27: #{awareness_lstm_forward.9} parent=1 // pred_check_branch
      %198 = sbr.rel (0) target = $region29
    $region28: #{awareness_lstm_forward.9} parent=1 // pred_region
      %200 = dma.done [#allocation3], 32
    $region29: #{awareness_lstm_forward.9} parent=1 // pred_fallthru
      _
    %201 = vsyncpa [#allocation3], 1

// kernel: awareness_lstm_forward.7
$region0: #{awareness_lstm_forward.7}
  #allocation0 [shape = 'u32[]', space=smem, size = 0x4, offset = 0x4, fixed_abs, tag = 'smem constant byte address 0x4 - core index']
  #allocation1 [shape = 'u32[72,128]{1,0:T(1,128)}', space=vmem, size = 0x9000, scoped, tag = 'internal scratch']
  %s0 = inlined_call_operand.vmem [shape: f32[16,128], index: 0, kind: input, shape index: {}]
  %s1 = inlined_call_operand.vmem [shape: f32[16,128], index: 1, kind: input, shape index: {}]
  %s2 = inlined_call_operand.hbm [shape: bf16[128,1024], index: 2, kind: input, shape index: {}]
  %s3 = inlined_call_operand.hbm [shape: bf16[128,1024], index: 3, kind: input, shape index: {}]
  %s4 = inlined_call_operand.vmem [shape: f32[1,1024], index: 4, kind: input, shape index: {}]
  %s5 = inlined_call_operand.vmem [shape: f32[16,1024], index: 5, kind: output, shape index: {}]
  %s6 = sld [smem:[#allocation0]]
  $region80: #{awareness_lstm_forward.7} parent=0
    _
  %s8 = ssub.s32 1, %s6
  %s9 = scalar_select 0, %s8, %s6
  $region1: #{awareness_lstm_forward.7} parent=0
    #allocation2 [shape = 'u8[262144]{0}', space=vmem, size = 0x40000, scoped, tag = 'input window, operand 2']
    #allocation3 [shape = 's32[2]{0}', space=sflag, size = 0x8, scoped, tag = 'scoped memory for awareness_lstm_forward.7']
    #allocation4 [shape = 'u8[262144]{0}', space=vmem, size = 0x40000, scoped, tag = 'input window, operand 3']
    #allocation5 [shape = 's32[2]{0}', space=sflag, size = 0x8, scoped, tag = 'scoped memory for awareness_lstm_forward.7']
    #allocation6 [shape = 'u8[65536]{0}', space=vmem, size = 0x10000, scoped, tag = 'output window, operand 0']
    %10 = vsyncpa [#allocation3], 0
    %s11 = scalar_lea.sflag [#allocation3], 1
    %12 = vsyncpa %s11, 0
    %13 = vsyncpa [#allocation5], 0
    %s14 = scalar_lea.sflag [#allocation5], 1
    %15 = vsyncpa %s14, 0
    loop: start=0, step=1, limit=4
    $region2: #{awareness_lstm_forward.7} parent=1 // loop_pre_header
      _
    $region3: #{awareness_lstm_forward.7} parent=1 // loop_header
      %s17 = sphi 0, %s21
      %p18 = scmp.ge.s32.totalorder %s17, 4
      %s24 = sphi 0, %s36
      %s25 = sphi 0, %s32
      %s26 = sphi 0, %s24
      %s27 = sphi 0, %s25
      %s28 = sphi 0, %s26
      %s29 = sphi 0, %s27
      %s39 = sphi 0, %s41
      %s42 = sphi 0, %s39
      %s43 = sphi 0, %s42
      %s59 = sphi 0, %s43
      %s65 = sphi 0, %s67
      %s68 = sphi 0, %s65
      %s69 = sphi 0, %s68
      %s85 = sphi 0, %s69
      %s91 = sphi 0, %s93
      %s94 = sphi 0, %s91
      %s95 = sphi 0, %s94
      %s111 = sphi 0, %s95
      %s117 = sphi 0, %s119
      %s120 = sphi 0, %s117
      %s121 = sphi 0, %s120
      %s137 = sphi 0, %s121
      %s143 = sphi 0, %s145
      %s146 = sphi 0, %s143
      %s147 = sphi 0, %s146
      %s163 = sphi 0, %s147
      %s171 = sphi 0, %s173
      %s174 = sphi 0, %s171
      %s175 = sphi 0, %s174
      %s191 = sphi 0, %s175
    $region4: #{awareness_lstm_forward.7} parent=1 // loop_header_branch
      %20 = sbr.rel (%p18) target = $region8
    $region5: #{awareness_lstm_forward.7} parent=1 // loop_body
      %s22 = ssub.s32 %s17, 1
      %s23 = ssub.s32 %s17, 2
      %s30 = sadd.s32 1, %s25
      %p31 = scmp.ge.s32.totalorder %s30, 2
      %s32 = scalar_select %p31, 0, %s30
      %s33 = sadd.s32 1, %s24
      %s34 = scalar_select %p31, %s33, %s24
      %p35 = scmp.ge.s32.totalorder %s34, 1
      %s36 = scalar_select %p35, 0, %s34
      %s37 = ssub.s32 %s24, %s36
      %p38 = scmp.eq.s32.totalorder %s37, 0
      %s40 = sadd.s32 %s39, 1
      %s41 = scalar_select %p38, %s39, %s40
      %p44 = pneg %p38
      %p45 = scmp.eq.s32.totalorder %s17, 1
      %p46 = por %p44, %p45
      %p47 = scmp.ne.s32.totalorder %s39, %s42
      %p48 = scmp.eq.s32.totalorder %s17, 0
      %p49 = por %p47, %p48
      %p50 = scmp.ne.s32.totalorder %s39, %s42
      %p51 = scmp.eq.s32.totalorder %s22, 1
      %p52 = por %p50, %p51
      %p53 = scmp.ne.s32.totalorder %s42, %s43
      %p54 = scmp.eq.s32.totalorder %s22, 0
      %p55 = por %p53, %p54
      %p56 = scmp.ne.s32.totalorder %s42, %s43
      %p57 = scmp.eq.s32.totalorder %s23, 1
      %p58 = por %p56, %p57
      %p60 = scmp.ne.s32.totalorder %s43, %s59
      %p61 = scmp.eq.s32.totalorder %s23, 0
      %p62 = por %p60, %p61
      %s63 = ssub.s32 %s24, %s36
      %p64 = scmp.eq.s32.totalorder %s63, 0
      %s66 = sadd.s32 %s65, 1
      %s67 = scalar_select %p64, %s65, %s66
      %p70 = pneg %p64
      %p71 = scmp.eq.s32.totalorder %s17, 1
      %p72 = por %p70, %p71
      %p73 = scmp.ne.s32.totalorder %s65, %s68
      %p74 = scmp.eq.s32.totalorder %s17, 0
      %p75 = por %p73, %p74
      %p76 = scmp.ne.s32.totalorder %s65, %s68
      %p77 = scmp.eq.s32.totalorder %s22, 1
      %p78 = por %p76, %p77
      %p79 = scmp.ne.s32.totalorder %s68, %s69
      %p80 = scmp.eq.s32.totalorder %s22, 0
      %p81 = por %p79, %p80
      %p82 = scmp.ne.s32.totalorder %s68, %s69
      %p83 = scmp.eq.s32.totalorder %s23, 1
      %p84 = por %p82, %p83
      %p86 = scmp.ne.s32.totalorder %s69, %s85
      %p87 = scmp.eq.s32.totalorder %s23, 0
      %p88 = por %p86, %p87
      %s89 = ssub.s32 %s25, %s32
      %p90 = scmp.eq.s32.totalorder %s89, 0
      %s92 = sadd.s32 %s91, 1
      %s93 = scalar_select %p90, %s91, %s92
      %p96 = pneg %p90
      %p97 = scmp.eq.s32.totalorder %s17, 1
      %p98 = por %p96, %p97
      %p99 = scmp.ne.s32.totalorder %s91, %s94
      %p100 = scmp.eq.s32.totalorder %s17, 0
      %p101 = por %p99, %p100
      %p102 = scmp.ne.s32.totalorder %s91, %s94
      %p103 = scmp.eq.s32.totalorder %s22, 1
      %p104 = por %p102, %p103
      %p105 = scmp.ne.s32.totalorder %s94, %s95
      %p106 = scmp.eq.s32.totalorder %s22, 0
      %p107 = por %p105, %p106
      %p108 = scmp.ne.s32.totalorder %s94, %s95
      %p109 = scmp.eq.s32.totalorder %s23, 1
      %p110 = por %p108, %p109
      %p112 = scmp.ne.s32.totalorder %s95, %s111
      %p113 = scmp.eq.s32.totalorder %s23, 0
      %p114 = por %p112, %p113
      %s115 = ssub.s32 %s25, %s32
      %p116 = scmp.eq.s32.totalorder %s115, 0
      %s118 = sadd.s32 %s117, 1
      %s119 = scalar_select %p116, %s117, %s118
      %p122 = pneg %p116
      %p123 = scmp.eq.s32.totalorder %s17, 1
      %p124 = por %p122, %p123
      %p125 = scmp.ne.s32.totalorder %s117, %s120
      %p126 = scmp.eq.s32.totalorder %s17, 0
      %p127 = por %p125, %p126
      %p128 = scmp.ne.s32.totalorder %s117, %s120
      %p129 = scmp.eq.s32.totalorder %s22, 1
      %p130 = por %p128, %p129
      %p131 = scmp.ne.s32.totalorder %s120, %s121
      %p132 = scmp.eq.s32.totalorder %s22, 0
      %p133 = por %p131, %p132
      %p134 = scmp.ne.s32.totalorder %s120, %s121
      %p135 = scmp.eq.s32.totalorder %s23, 1
      %p136 = por %p134, %p135
      %p138 = scmp.ne.s32.totalorder %s121, %s137
      %p139 = scmp.eq.s32.totalorder %s23, 0
      %p140 = por %p138, %p139
      %s141 = ssub.s32 %s25, %s32
      %p142 = scmp.eq.s32.totalorder %s141, 0
      %s144 = sadd.s32 %s143, 1
      %s145 = scalar_select %p142, %s143, %s144
      %p148 = pneg %p142
      %p149 = scmp.eq.s32.totalorder %s17, 1
      %p150 = por %p148, %p149
      %p151 = scmp.ne.s32.totalorder %s143, %s146
      %p152 = scmp.eq.s32.totalorder %s17, 0
      %p153 = por %p151, %p152
      %p154 = scmp.ne.s32.totalorder %s143, %s146
      %p155 = scmp.eq.s32.totalorder %s22, 1
      %p156 = por %p154, %p155
      %p157 = scmp.ne.s32.totalorder %s146, %s147
      %p158 = scmp.eq.s32.totalorder %s22, 0
      %p159 = por %p157, %p158
      %p160 = scmp.ne.s32.totalorder %s146, %s147
      %p161 = scmp.eq.s32.totalorder %s23, 1
      %p162 = por %p160, %p161
      %p164 = scmp.ne.s32.totalorder %s147, %s163
      %p165 = scmp.eq.s32.totalorder %s23, 0
      %p166 = por %p164, %p165
      %s167 = ssub.s32 %s24, %s36
      %s168 = ssub.s32 %s25, %s32
      %s169 = sor.u32 %s167, %s168
      %p170 = scmp.eq.s32.totalorder %s169, 0
      %s172 = sadd.s32 %s171, 1
      %s173 = scalar_select %p170, %s171, %s172
      %p176 = pneg %p170
      %p177 = scmp.eq.s32.totalorder %s17, 1
      %p178 = por %p176, %p177
      %p179 = scmp.ne.s32.totalorder %s171, %s174
      %p180 = scmp.eq.s32.totalorder %s17, 0
      %p181 = por %p179, %p180
      %p182 = scmp.ne.s32.totalorder %s171, %s174
      %p183 = scmp.eq.s32.totalorder %s22, 1
      %p184 = por %p182, %p183
      %p185 = scmp.ne.s32.totalorder %s174, %s175
      %p186 = scmp.eq.s32.totalorder %s22, 0
      %p187 = por %p185, %p186
      %p188 = scmp.ne.s32.totalorder %s174, %s175
      %p189 = scmp.eq.s32.totalorder %s23, 1
      %p190 = por %p188, %p189
      %p192 = scmp.ne.s32.totalorder %s175, %s191
      %p193 = scmp.eq.s32.totalorder %s23, 0
      %p194 = por %p192, %p193
      %p195 = scmp.le.s32.totalorder 1, %s17
      %p196 = scmp.lt.s32.totalorder %s17, 3
      %p197 = pnand %p195, %p196
      %p198 = pneg %p197
      // Predicated region
      $region9: #{awareness_lstm_forward.7} parent=5 // pred_check
        _
      $region10: #{awareness_lstm_forward.7} parent=5 // pred_check_branch
        %200 = sbr.rel (%p197) target = $region12
      $region11: #{awareness_lstm_forward.7} parent=5 // pred_region
        %s201 = ssub.s32 %s17, 1
        // Predicated region
        $region13: #{awareness_lstm_forward.7} parent=11 // pred_check
          %p202 = pneg %p55
        $region14: #{awareness_lstm_forward.7} parent=11 // pred_check_branch
          %204 = sbr.rel (%p202) target = $region16
        $region15: #{awareness_lstm_forward.7} parent=11 // pred_region
          %s205 = smul.u32 2, %s26
          %p206 = scmp.lt.s32.totalorder %s205, 1
          %s207 = scalar_select %p206, %s205, 1
          %s208 = smul.addr %s207, 8
          %s209 = scalar_lea.vmem %s0, %s208
          %s210 = smul.u32 2, %s26
        $region16: #{awareness_lstm_forward.7} parent=11 // pred_fallthru
          _
        // Predicated region
        $region17: #{awareness_lstm_forward.7} parent=11 // pred_check
          %p211 = pneg %p81
        $region18: #{awareness_lstm_forward.7} parent=11 // pred_check_branch
          %213 = sbr.rel (%p211) target = $region20
        $region19: #{awareness_lstm_forward.7} parent=11 // pred_region
          %s214 = smul.u32 2, %s26
          %p215 = scmp.lt.s32.totalorder %s214, 1
          %s216 = scalar_select %p215, %s214, 1
          %s217 = smul.addr %s216, 8
          %s218 = scalar_lea.vmem %s1, %s217
          %s219 = smul.u32 2, %s26
        $region20: #{awareness_lstm_forward.7} parent=11 // pred_fallthru
          _
      $region12: #{awareness_lstm_forward.7} parent=5 // pred_fallthru
        _
      %p220 = scmp.lt.s32.totalorder %s17, 2
      // Predicated region
      $region21: #{awareness_lstm_forward.7} parent=5 // pred_check
        %p221 = pneg %p220
      $region22: #{awareness_lstm_forward.7} parent=5 // pred_check_branch
        %223 = sbr.rel (%p221) target = $region24
      $region23: #{awareness_lstm_forward.7} parent=5 // pred_region
        // Predicated region
        $region25: #{awareness_lstm_forward.7} parent=23 // pred_check
          %p224 = pneg %p101
        $region26: #{awareness_lstm_forward.7} parent=23 // pred_check_branch
          %226 = sbr.rel (%p224) target = $region28
        $region27: #{awareness_lstm_forward.7} parent=23 // pred_region
          %s227 = sand.u32 %s91, 1
          %s228 = scalar_lea.sflag [#allocation3], %s227
          %s229 = sand.u32 %s91, 1
          %s230 = smul.addr %s229, 256
          %s231 = scalar_lea.vmem [#allocation2], %s230
          %s232 = smul.u32 4, %s25
          %234 = vsyncadd %s228, 0
          %s235 = smul.addr %s232, 4
          %s236 = scalar_lea.hbm %s2, %s235
          %s237 = sshll.u32 %s236, 4
          %s238 = int_to_ptr.hbm [resolvable:$true] %s237
          %s239 = sshll.u32 %s231, 4
          %s240 = int_to_ptr.vmem [resolvable:$true] %s239
          %245 = dma.hbm_to_vmem [thread:$0]  %s238, 4096, %s240, %s228, 512, 256, 16
        $region28: #{awareness_lstm_forward.7} parent=23 // pred_fallthru
          _
        // Predicated region
        $region29: #{awareness_lstm_forward.7} parent=23 // pred_check
          %p246 = pneg %p127
        $region30: #{awareness_lstm_forward.7} parent=23 // pred_check_branch
          %248 = sbr.rel (%p246) target = $region32
        $region31: #{awareness_lstm_forward.7} parent=23 // pred_region
          %s249 = sand.u32 %s117, 1
          %s250 = scalar_lea.sflag [#allocation5], %s249
          %s251 = sand.u32 %s117, 1
          %s252 = smul.addr %s251, 256
          %s253 = scalar_lea.vmem [#allocation4], %s252
          %s254 = smul.u32 4, %s25
          %256 = vsyncadd %s250, 0
          %s257 = smul.addr %s254, 4
          %s258 = scalar_lea.hbm %s3, %s257
          %s259 = sshll.u32 %s258, 4
          %s260 = int_to_ptr.hbm [resolvable:$true] %s259
          %s261 = sshll.u32 %s253, 4
          %s262 = int_to_ptr.vmem [resolvable:$true] %s261
          %267 = dma.hbm_to_vmem [thread:$0]  %s260, 4096, %s262, %s250, 512, 256, 16
        $region32: #{awareness_lstm_forward.7} parent=23 // pred_fallthru
          _
        // Predicated region
        $region33: #{awareness_lstm_forward.7} parent=23 // pred_check
          %p268 = pneg %p153
        $region34: #{awareness_lstm_forward.7} parent=23 // pred_check_branch
          %270 = sbr.rel (%p268) target = $region36
        $region35: #{awareness_lstm_forward.7} parent=23 // pred_region
          %s271 = smul.u32 4, %s25
          %p272 = scmp.lt.s32.totalorder %s271, 7
          %s273 = scalar_select %p272, %s271, 7
          %s274 = scalar_lea.vmem %s4, %s273
          %s275 = smul.u32 4, %s25
        $region36: #{awareness_lstm_forward.7} parent=23 // pred_fallthru
          _
      $region24: #{awareness_lstm_forward.7} parent=5 // pred_fallthru
        _
      %p276 = scmp.le.s32.totalorder 1, %s17
      %p277 = scmp.lt.s32.totalorder %s17, 3
      %p278 = pnand %p276, %p277
      %p279 = pneg %p278
      // Predicated region
      $region37: #{awareness_lstm_forward.7} parent=5 // pred_check
        _
      $region38: #{awareness_lstm_forward.7} parent=5 // pred_check_branch
        %281 = sbr.rel (%p278) target = $region40
      $region39: #{awareness_lstm_forward.7} parent=5 // pred_region
        %s282 = ssub.s32 %s17, 1
        %s283 = sand.u32 %s94, 1
        %s284 = scalar_lea.sflag [#allocation3], %s283
        %s285 = sand.u32 %s94, 1
        %s286 = smul.addr %s285, 256
        %s287 = scalar_lea.vmem [#allocation2], %s286
        // Predicated region
        $region41: #{awareness_lstm_forward.7} parent=39 // pred_check
          %p288 = pneg %p107
        $region42: #{awareness_lstm_forward.7} parent=39 // pred_check_branch
          %290 = sbr.rel (%p288) target = $region44
        $region43: #{awareness_lstm_forward.7} parent=39 // pred_region
          %292 = dma.done %s284, 4096
        $region44: #{awareness_lstm_forward.7} parent=39 // pred_fallthru
          _
        %s293 = sand.u32 %s120, 1
        %s294 = scalar_lea.sflag [#allocation5], %s293
        %s295 = sand.u32 %s120, 1
        %s296 = smul.addr %s295, 256
        %s297 = scalar_lea.vmem [#allocation4], %s296
        // Predicated region
        $region45: #{awareness_lstm_forward.7} parent=39 // pred_check
          %p298 = pneg %p133
        $region46: #{awareness_lstm_forward.7} parent=39 // pred_check_branch
          %300 = sbr.rel (%p298) target = $region48
        $region47: #{awareness_lstm_forward.7} parent=39 // pred_region
          %302 = dma.done %s294, 4096
        $region48: #{awareness_lstm_forward.7} parent=39 // pred_fallthru
          _
        %s303 = smul.u32 2, %s26
        %p304 = scmp.lt.s32.totalorder %s303, 1
        %s305 = scalar_select %p304, %s303, 1
        %s306 = smul.addr %s305, 8
        %s307 = scalar_lea.vmem %s0, %s306
        %p308 = pneg %p55
        %p309 = pneg %p52
        %s310 = smul.u32 2, %s26
        %p311 = scmp.lt.s32.totalorder %s310, 1
        %s312 = scalar_select %p311, %s310, 1
        %s313 = smul.addr %s312, 8
        %s314 = scalar_lea.vmem %s1, %s313
        %p315 = pneg %p81
        %p316 = pneg %p78
        %s317 = sand.u32 %s94, 1
        %s318 = scalar_lea.sflag [#allocation3], %s317
        %s319 = sand.u32 %s94, 1
        %s320 = smul.addr %s319, 256
        %s321 = scalar_lea.vmem [#allocation2], %s320
        %p322 = pneg %p107
        %p323 = pneg %p104
        %s324 = sand.u32 %s120, 1
        %s325 = scalar_lea.sflag [#allocation5], %s324
        %s326 = sand.u32 %s120, 1
        %s327 = smul.addr %s326, 256
        %s328 = scalar_lea.vmem [#allocation4], %s327
        %p329 = pneg %p133
        %p330 = pneg %p130
        %s331 = smul.u32 4, %s27
        %p332 = scmp.lt.s32.totalorder %s331, 7
        %s333 = scalar_select %p332, %s331, 7
        %s334 = scalar_lea.vmem %s4, %s333
        %p335 = pneg %p159
        %p336 = pneg %p156
        %p337 = pneg %p187
        %p338 = pneg %p184
        %s339 = sand.u32 %s174, 1
        %s340 = sand.u32 %s174, 1
        %s341 = smul.addr %s340, 64
        %s342 = scalar_lea.vmem [#allocation6], %s341
        %s343 = smul.u32 2, %s26
        %p344 = scmp.lt.s32.totalorder %s343, 1
        %s345 = scalar_select %p344, %s343, 1
        %s346 = smul.addr %s345, 8
        %s347 = scalar_lea.vmem %s0, %s346
        %s348 = smul.u32 2, %s26
        %s349 = smul.u32 2, %s26
        %p350 = scmp.lt.s32.totalorder %s349, 1
        %s351 = scalar_select %p350, %s349, 1
        %s352 = smul.addr %s351, 8
        %s353 = scalar_lea.vmem %s1, %s352
        %s354 = smul.u32 2, %s26
        %s355 = smul.u32 4, %s27
        %s356 = smul.u32 4, %s27
        %s357 = smul.u32 4, %s27
        %p358 = scmp.lt.s32.totalorder %s357, 7
        %s359 = scalar_select %p358, %s357, 7
        %s360 = scalar_lea.vmem %s4, %s359
        %s361 = smul.u32 4, %s27
        %s362 = smul.u32 2, %s26
        %s363 = smul.u32 4, %s27
        %v364 = vld [vmem:[%s360] sm:$0xf]
        %v365 = vld [vmem:[%s347] sm:$0xff]
        %v366 = vld [vmem:[%s347 + $0x8] sm:$0xff]
        %v367 = vpack.c.bf16 %v366, %v365
        %v368 = vld [vmem:[%s287] sm:$0xff]
        %v369 = vld [vmem:[%s287 + $0x8] sm:$0xff]
        %v370 = vld [vmem:[%s287 + $0x10] sm:$0xff]
        %v371 = vld [vmem:[%s287 + $0x18] sm:$0xff]
        %v372 = vld [vmem:[%s287 + $0x20] sm:$0xff]
        %v373 = vld [vmem:[%s287 + $0x28] sm:$0xff]
        %v374 = vld [vmem:[%s287 + $0x30] sm:$0xff]
        %v375 = vld [vmem:[%s287 + $0x38] sm:$0xff]
        %v376 = vld [vmem:[%s287 + $0x40] sm:$0xff]
        %v377 = vld [vmem:[%s287 + $0x48] sm:$0xff]
        %v378 = vld [vmem:[%s287 + $0x50] sm:$0xff]
        %v379 = vld [vmem:[%s287 + $0x58] sm:$0xff]
        %v380 = vld [vmem:[%s287 + $0x60] sm:$0xff]
        %v381 = vld [vmem:[%s287 + $0x68] sm:$0xff]
        %v382 = vld [vmem:[%s287 + $0x70] sm:$0xff]
        %v383 = vld [vmem:[%s287 + $0x78] sm:$0xff]
        %v384 = vld [vmem:[%s287 + $0x80] sm:$0xff]
        %v385 = vld [vmem:[%s287 + $0x88] sm:$0xff]
        %v386 = vld [vmem:[%s287 + $0x90] sm:$0xff]
        %v387 = vld [vmem:[%s287 + $0x98] sm:$0xff]
        %v388 = vld [vmem:[%s287 + $0xa0] sm:$0xff]
        %v389 = vld [vmem:[%s287 + $0xa8] sm:$0xff]
        %v390 = vld [vmem:[%s287 + $0xb0] sm:$0xff]
        %v391 = vld [vmem:[%s287 + $0xb8] sm:$0xff]
        %v392 = vld [vmem:[%s287 + $0xc0] sm:$0xff]
        %v393 = vld [vmem:[%s287 + $0xc8] sm:$0xff]
        %v394 = vld [vmem:[%s287 + $0xd0] sm:$0xff]
        %v395 = vld [vmem:[%s287 + $0xd8] sm:$0xff]
        %v396 = vld [vmem:[%s287 + $0xe0] sm:$0xff]
        %v397 = vld [vmem:[%s287 + $0xe8] sm:$0xff]
        %v398 = vld [vmem:[%s287 + $0xf0] sm:$0xff]
        %v399 = vld [vmem:[%s287 + $0xf8] sm:$0xff]
        %v432 = vunpack.c.l.b16 %v368
        %v433 = vunpack.c.h.b16 %v368
        %v434 = vunpack.c.l.b16 %v369
        %v435 = vunpack.c.h.b16 %v369
        %v436 = vunpack.c.l.b16 %v370
        %v437 = vunpack.c.h.b16 %v370
        %v438 = vunpack.c.l.b16 %v371
        %v439 = vunpack.c.h.b16 %v371
        %v440 = vunpack.c.l.b16 %v372
        %v441 = vunpack.c.h.b16 %v372
        %v442 = vunpack.c.l.b16 %v373
        %v443 = vunpack.c.h.b16 %v373
        %v444 = vunpack.c.l.b16 %v374
        %v445 = vunpack.c.h.b16 %v374
        %v446 = vunpack.c.l.b16 %v375
        %v447 = vunpack.c.h.b16 %v375
        %v448 = vunpack.c.l.b16 %v376
        %v449 = vunpack.c.h.b16 %v376
        %v450 = vunpack.c.l.b16 %v377
        %v451 = vunpack.c.h.b16 %v377
        %v452 = vunpack.c.l.b16 %v378
        %v453 = vunpack.c.h.b16 %v378
        %v454 = vunpack.c.l.b16 %v379
        %v455 = vunpack.c.h.b16 %v379
        %v456 = vunpack.c.l.b16 %v380
        %v457 = vunpack.c.h.b16 %v380
        %v458 = vunpack.c.l.b16 %v381
        %v459 = vunpack.c.h.b16 %v381
        %v460 = vunpack.c.l.b16 %v382
        %v461 = vunpack.c.h.b16 %v382
        %v462 = vunpack.c.l.b16 %v383
        %v463 = vunpack.c.h.b16 %v383
        %v464 = vunpack.c.l.b16 %v384
        %v465 = vunpack.c.h.b16 %v384
        %v466 = vunpack.c.l.b16 %v385
        %v467 = vunpack.c.h.b16 %v385
        %v468 = vunpack.c.l.b16 %v386
        %v469 = vunpack.c.h.b16 %v386
        %v470 = vunpack.c.l.b16 %v387
        %v471 = vunpack.c.h.b16 %v387
        %v472 = vunpack.c.l.b16 %v388
        %v473 = vunpack.c.h.b16 %v388
        %v474 = vunpack.c.l.b16 %v389
        %v475 = vunpack.c.h.b16 %v389
        %v476 = vunpack.c.l.b16 %v390
        %v477 = vunpack.c.h.b16 %v390
        %v478 = vunpack.c.l.b16 %v391
        %v479 = vunpack.c.h.b16 %v391
        %v480 = vunpack.c.l.b16 %v392
        %v481 = vunpack.c.h.b16 %v392
        %v482 = vunpack.c.l.b16 %v393
        %v483 = vunpack.c.h.b16 %v393
        %v484 = vunpack.c.l.b16 %v394
        %v485 = vunpack.c.h.b16 %v394
        %v486 = vunpack.c.l.b16 %v395
        %v487 = vunpack.c.h.b16 %v395
        %v488 = vunpack.c.l.b16 %v396
        %v489 = vunpack.c.h.b16 %v396
        %v490 = vunpack.c.l.b16 %v397
        %v491 = vunpack.c.h.b16 %v397
        %v492 = vunpack.c.l.b16 %v398
        %v493 = vunpack.c.h.b16 %v398
        %v494 = vunpack.c.l.b16 %v399
        %v495 = vunpack.c.h.b16 %v399
        %v496 = vpack.c.b16 %v436, %v432
        %v497 = vpack.c.b16 %v437, %v433
        %v498 = vpack.c.b16 %v438, %v434
        %v499 = vpack.c.b16 %v439, %v435
        %v500 = vpack.c.b16 %v444, %v440
        %v501 = vpack.c.b16 %v445, %v441
        %v502 = vpack.c.b16 %v446, %v442
        %v503 = vpack.c.b16 %v447, %v443
        %v504 = vpack.c.b16 %v452, %v448
        %v505 = vpack.c.b16 %v453, %v449
        %v506 = vpack.c.b16 %v454, %v450
        %v507 = vpack.c.b16 %v455, %v451
        %v508 = vpack.c.b16 %v460, %v456
        %v509 = vpack.c.b16 %v461, %v457
        %v510 = vpack.c.b16 %v462, %v458
        %v511 = vpack.c.b16 %v463, %v459
        %v512 = vpack.c.b16 %v468, %v464
        %v513 = vpack.c.b16 %v469, %v465
        %v514 = vpack.c.b16 %v470, %v466
        %v515 = vpack.c.b16 %v471, %v467
        %v516 = vpack.c.b16 %v476, %v472
        %v517 = vpack.c.b16 %v477, %v473
        %v518 = vpack.c.b16 %v478, %v474
        %v519 = vpack.c.b16 %v479, %v475
        %v520 = vpack.c.b16 %v484, %v480
        %v521 = vpack.c.b16 %v485, %v481
        %v522 = vpack.c.b16 %v486, %v482
        %v523 = vpack.c.b16 %v487, %v483
        %v524 = vpack.c.b16 %v492, %v488
        %v525 = vpack.c.b16 %v493, %v489
        %v526 = vpack.c.b16 %v494, %v490
        %v527 = vpack.c.b16 %v495, %v491
        %560 = vmatpush.bf16.msra.mxu0 %v524
        %561 = vmatpush.bf16.msra.mxu0 %v520
        %562 = vmatpush.bf16.msra.mxu0 %v516
        %563 = vmatpush.bf16.msra.mxu0 %v512
        %564 = vmatpush.bf16.msra.mxu0 %v508
        %565 = vmatpush.bf16.msra.mxu0 %v504
        %566 = vmatpush.bf16.msra.mxu0 %v500
        %567 = vmatpush.bf16.msra.mxu0 %v496
        %568 = vmatmul.bf16.gmra.mxu0 %v367
        %v569 = vpop.f32.mrf.mxu0
        %v570 = vadd.f32 0.0, %v569
        %v571 = vpop.f32.mrf.mxu0
        %v572 = vadd.f32 0.0, %v571
        %573 = vdwg.mxu0
        %574 = vmatpush.bf16.msra.mxu0 %v525
        %575 = vmatpush.bf16.msra.mxu0 %v521
        %576 = vmatpush.bf16.msra.mxu0 %v517
        %577 = vmatpush.bf16.msra.mxu0 %v513
        %578 = vmatpush.bf16.msra.mxu0 %v509
        %579 = vmatpush.bf16.msra.mxu0 %v505
        %580 = vmatpush.bf16.msra.mxu0 %v501
        %581 = vmatpush.bf16.msra.mxu0 %v497
        %582 = vmatmul.bf16.gmra.mxu0 %v367
        %v583 = vpop.f32.mrf.mxu0
        %v584 = vadd.f32 0.0, %v583
        %v585 = vpop.f32.mrf.mxu0
        %v586 = vadd.f32 0.0, %v585
        %587 = vdwg.mxu0
        %588 = vmatpush.bf16.msra.mxu0 %v526
        %589 = vmatpush.bf16.msra.mxu0 %v522
        %590 = vmatpush.bf16.msra.mxu0 %v518
        %591 = vmatpush.bf16.msra.mxu0 %v514
        %592 = vmatpush.bf16.msra.mxu0 %v510
        %593 = vmatpush.bf16.msra.mxu0 %v506
        %594 = vmatpush.bf16.msra.mxu0 %v502
        %595 = vmatpush.bf16.msra.mxu0 %v498
        %596 = vmatmul.bf16.gmra.mxu0 %v367
        %v597 = vpop.f32.mrf.mxu0
        %v598 = vadd.f32 0.0, %v597
        %v599 = vpop.f32.mrf.mxu0
        %v600 = vadd.f32 0.0, %v599
        %601 = vdwg.mxu0
        %602 = vmatpush.bf16.msra.mxu0 %v527
        %603 = vmatpush.bf16.msra.mxu0 %v523
        %604 = vmatpush.bf16.msra.mxu0 %v519
        %605 = vmatpush.bf16.msra.mxu0 %v515
        %606 = vmatpush.bf16.msra.mxu0 %v511
        %607 = vmatpush.bf16.msra.mxu0 %v507
        %608 = vmatpush.bf16.msra.mxu0 %v503
        %609 = vmatpush.bf16.msra.mxu0 %v499
        %610 = vmatmul.bf16.gmra.mxu0 %v367
        %v611 = vpop.f32.mrf.mxu0
        %v612 = vadd.f32 0.0, %v611
        %v613 = vpop.f32.mrf.mxu0
        %v614 = vadd.f32 0.0, %v613
        %615 = vdwg.mxu0
        %v617 = vperm.slane %v364, 0
        %v618 = vperm.slane %v364, 1
        %v619 = vperm.slane %v364, 2
        %v620 = vperm.slane %v364, 3
        %v625 = vadd.f32 %v617, %v570
        %v626 = vadd.f32 %v618, %v584
        %v627 = vadd.f32 %v619, %v598
        %v628 = vadd.f32 %v620, %v612
        %v629 = vadd.f32 %v617, %v572
        %v630 = vadd.f32 %v618, %v586
        %v631 = vadd.f32 %v619, %v600
        %v632 = vadd.f32 %v620, %v614
        %v633 = vld [vmem:[%s353] sm:$0xff]
        %v634 = vld [vmem:[%s353 + $0x8] sm:$0xff]
        %v635 = vpack.c.bf16 %v634, %v633
        %v636 = vld [vmem:[%s297] sm:$0xff]
        %v637 = vld [vmem:[%s297 + $0x8] sm:$0xff]
        %v638 = vld [vmem:[%s297 + $0x10] sm:$0xff]
        %v639 = vld [vmem:[%s297 + $0x18] sm:$0xff]
        %v640 = vld [vmem:[%s297 + $0x20] sm:$0xff]
        %v641 = vld [vmem:[%s297 + $0x28] sm:$0xff]
        %v642 = vld [vmem:[%s297 + $0x30] sm:$0xff]
        %v643 = vld [vmem:[%s297 + $0x38] sm:$0xff]
        %v644 = vld [vmem:[%s297 + $0x40] sm:$0xff]
        %v645 = vld [vmem:[%s297 + $0x48] sm:$0xff]
        %v646 = vld [vmem:[%s297 + $0x50] sm:$0xff]
        %v647 = vld [vmem:[%s297 + $0x58] sm:$0xff]
        %v648 = vld [vmem:[%s297 + $0x60] sm:$0xff]
        %v649 = vld [vmem:[%s297 + $0x68] sm:$0xff]
        %v650 = vld [vmem:[%s297 + $0x70] sm:$0xff]
        %v651 = vld [vmem:[%s297 + $0x78] sm:$0xff]
        %v652 = vld [vmem:[%s297 + $0x80] sm:$0xff]
        %v653 = vld [vmem:[%s297 + $0x88] sm:$0xff]
        %v654 = vld [vmem:[%s297 + $0x90] sm:$0xff]
        %v655 = vld [vmem:[%s297 + $0x98] sm:$0xff]
        %v656 = vld [vmem:[%s297 + $0xa0] sm:$0xff]
        %v657 = vld [vmem:[%s297 + $0xa8] sm:$0xff]
        %v658 = vld [vmem:[%s297 + $0xb0] sm:$0xff]
        %v659 = vld [vmem:[%s297 + $0xb8] sm:$0xff]
        %v660 = vld [vmem:[%s297 + $0xc0] sm:$0xff]
        %v661 = vld [vmem:[%s297 + $0xc8] sm:$0xff]
        %v662 = vld [vmem:[%s297 + $0xd0] sm:$0xff]
        %v663 = vld [vmem:[%s297 + $0xd8] sm:$0xff]
        %v664 = vld [vmem:[%s297 + $0xe0] sm:$0xff]
        %v665 = vld [vmem:[%s297 + $0xe8] sm:$0xff]
        %v666 = vld [vmem:[%s297 + $0xf0] sm:$0xff]
        %v667 = vld [vmem:[%s297 + $0xf8] sm:$0xff]
        %v700 = vunpack.c.l.b16 %v636
        %v701 = vunpack.c.h.b16 %v636
        %v702 = vunpack.c.l.b16 %v637
        %v703 = vunpack.c.h.b16 %v637
        %v704 = vunpack.c.l.b16 %v638
        %v705 = vunpack.c.h.b16 %v638
        %v706 = vunpack.c.l.b16 %v639
        %v707 = vunpack.c.h.b16 %v639
        %v708 = vunpack.c.l.b16 %v640
        %v709 = vunpack.c.h.b16 %v640
        %v710 = vunpack.c.l.b16 %v641
        %v711 = vunpack.c.h.b16 %v641
        %v712 = vunpack.c.l.b16 %v642
        %v713 = vunpack.c.h.b16 %v642
        %v714 = vunpack.c.l.b16 %v643
        %v715 = vunpack.c.h.b16 %v643
        %v716 = vunpack.c.l.b16 %v644
        %v717 = vunpack.c.h.b16 %v644
        %v718 = vunpack.c.l.b16 %v645
        %v719 = vunpack.c.h.b16 %v645
        %v720 = vunpack.c.l.b16 %v646
        %v721 = vunpack.c.h.b16 %v646
        %v722 = vunpack.c.l.b16 %v647
        %v723 = vunpack.c.h.b16 %v647
        %v724 = vunpack.c.l.b16 %v648
        %v725 = vunpack.c.h.b16 %v648
        %v726 = vunpack.c.l.b16 %v649
        %v727 = vunpack.c.h.b16 %v649
        %v728 = vunpack.c.l.b16 %v650
        %v729 = vunpack.c.h.b16 %v650
        %v730 = vunpack.c.l.b16 %v651
        %v731 = vunpack.c.h.b16 %v651
        %v732 = vunpack.c.l.b16 %v652
        %v733 = vunpack.c.h.b16 %v652
        %v734 = vunpack.c.l.b16 %v653
        %v735 = vunpack.c.h.b16 %v653
        %v736 = vunpack.c.l.b16 %v654
        %v737 = vunpack.c.h.b16 %v654
        %v738 = vunpack.c.l.b16 %v655
        %v739 = vunpack.c.h.b16 %v655
        %v740 = vunpack.c.l.b16 %v656
        %v741 = vunpack.c.h.b16 %v656
        %v742 = vunpack.c.l.b16 %v657
        %v743 = vunpack.c.h.b16 %v657
        %v744 = vunpack.c.l.b16 %v658
        %v745 = vunpack.c.h.b16 %v658
        %v746 = vunpack.c.l.b16 %v659
        %v747 = vunpack.c.h.b16 %v659
        %v748 = vunpack.c.l.b16 %v660
        %v749 = vunpack.c.h.b16 %v660
        %v750 = vunpack.c.l.b16 %v661
        %v751 = vunpack.c.h.b16 %v661
        %v752 = vunpack.c.l.b16 %v662
        %v753 = vunpack.c.h.b16 %v662
        %v754 = vunpack.c.l.b16 %v663
        %v755 = vunpack.c.h.b16 %v663
        %v756 = vunpack.c.l.b16 %v664
        %v757 = vunpack.c.h.b16 %v664
        %v758 = vunpack.c.l.b16 %v665
        %v759 = vunpack.c.h.b16 %v665
        %v760 = vunpack.c.l.b16 %v666
        %v761 = vunpack.c.h.b16 %v666
        %v762 = vunpack.c.l.b16 %v667
        %v763 = vunpack.c.h.b16 %v667
        %v764 = vpack.c.b16 %v704, %v700
        %v765 = vpack.c.b16 %v705, %v701
        %v766 = vpack.c.b16 %v706, %v702
        %v767 = vpack.c.b16 %v707, %v703
        %v768 = vpack.c.b16 %v712, %v708
        %v769 = vpack.c.b16 %v713, %v709
        %v770 = vpack.c.b16 %v714, %v710
        %v771 = vpack.c.b16 %v715, %v711
        %v772 = vpack.c.b16 %v720, %v716
        %v773 = vpack.c.b16 %v721, %v717
        %v774 = vpack.c.b16 %v722, %v718
        %v775 = vpack.c.b16 %v723, %v719
        %v776 = vpack.c.b16 %v728, %v724
        %v777 = vpack.c.b16 %v729, %v725
        %v778 = vpack.c.b16 %v730, %v726
        %v779 = vpack.c.b16 %v731, %v727
        %v780 = vpack.c.b16 %v736, %v732
        %v781 = vpack.c.b16 %v737, %v733
        %v782 = vpack.c.b16 %v738, %v734
        %v783 = vpack.c.b16 %v739, %v735
        %v784 = vpack.c.b16 %v744, %v740
        %v785 = vpack.c.b16 %v745, %v741
        %v786 = vpack.c.b16 %v746, %v742
        %v787 = vpack.c.b16 %v747, %v743
        %v788 = vpack.c.b16 %v752, %v748
        %v789 = vpack.c.b16 %v753, %v749
        %v790 = vpack.c.b16 %v754, %v750
        %v791 = vpack.c.b16 %v755, %v751
        %v792 = vpack.c.b16 %v760, %v756
        %v793 = vpack.c.b16 %v761, %v757
        %v794 = vpack.c.b16 %v762, %v758
        %v795 = vpack.c.b16 %v763, %v759
        %828 = vmatpush.bf16.msra.mxu0 %v792
        %829 = vmatpush.bf16.msra.mxu0 %v788
        %830 = vmatpush.bf16.msra.mxu0 %v784
        %831 = vmatpush.bf16.msra.mxu0 %v780
        %832 = vmatpush.bf16.msra.mxu0 %v776
        %833 = vmatpush.bf16.msra.mxu0 %v772
        %834 = vmatpush.bf16.msra.mxu0 %v768
        %835 = vmatpush.bf16.msra.mxu0 %v764
        %836 = vmatmul.bf16.gmra.mxu0 %v635
        %v837 = vpop.f32.mrf.mxu0
        %v838 = vadd.f32 0.0, %v837
        %v839 = vpop.f32.mrf.mxu0
        %v840 = vadd.f32 0.0, %v839
        %841 = vdwg.mxu0
        %842 = vmatpush.bf16.msra.mxu0 %v793
        %843 = vmatpush.bf16.msra.mxu0 %v789
        %844 = vmatpush.bf16.msra.mxu0 %v785
        %845 = vmatpush.bf16.msra.mxu0 %v781
        %846 = vmatpush.bf16.msra.mxu0 %v777
        %847 = vmatpush.bf16.msra.mxu0 %v773
        %848 = vmatpush.bf16.msra.mxu0 %v769
        %849 = vmatpush.bf16.msra.mxu0 %v765
        %850 = vmatmul.bf16.gmra.mxu0 %v635
        %v851 = vpop.f32.mrf.mxu0
        %v852 = vadd.f32 0.0, %v851
        %v853 = vpop.f32.mrf.mxu0
        %v854 = vadd.f32 0.0, %v853
        %855 = vdwg.mxu0
        %856 = vmatpush.bf16.msra.mxu0 %v794
        %857 = vmatpush.bf16.msra.mxu0 %v790
        %858 = vmatpush.bf16.msra.mxu0 %v786
        %859 = vmatpush.bf16.msra.mxu0 %v782
        %860 = vmatpush.bf16.msra.mxu0 %v778
        %861 = vmatpush.bf16.msra.mxu0 %v774
        %862 = vmatpush.bf16.msra.mxu0 %v770
        %863 = vmatpush.bf16.msra.mxu0 %v766
        %864 = vmatmul.bf16.gmra.mxu0 %v635
        %v865 = vpop.f32.mrf.mxu0
        %v866 = vadd.f32 0.0, %v865
        %v867 = vpop.f32.mrf.mxu0
        %v868 = vadd.f32 0.0, %v867
        %869 = vdwg.mxu0
        %870 = vmatpush.bf16.msra.mxu0 %v795
        %871 = vmatpush.bf16.msra.mxu0 %v791
        %872 = vmatpush.bf16.msra.mxu0 %v787
        %873 = vmatpush.bf16.msra.mxu0 %v783
        %874 = vmatpush.bf16.msra.mxu0 %v779
        %875 = vmatpush.bf16.msra.mxu0 %v775
        %876 = vmatpush.bf16.msra.mxu0 %v771
        %877 = vmatpush.bf16.msra.mxu0 %v767
        %878 = vmatmul.bf16.gmra.mxu0 %v635
        %v879 = vpop.f32.mrf.mxu0
        %v880 = vadd.f32 0.0, %v879
        %v881 = vpop.f32.mrf.mxu0
        %v882 = vadd.f32 0.0, %v881
        %883 = vdwg.mxu0
        %v884 = vadd.f32 %v625, %v838
        %v885 = vadd.f32 %v626, %v852
        %v886 = vadd.f32 %v627, %v866
        %v887 = vadd.f32 %v628, %v880
        %v888 = vadd.f32 %v629, %v840
        %v889 = vadd.f32 %v630, %v854
        %v890 = vadd.f32 %v631, %v868
        %v891 = vadd.f32 %v632, %v882
        %892 = vst [vmem:[%s342] sm:$0xff] %v884
        %893 = vst [vmem:[%s342 + $0x8] sm:$0xff] %v885
        %894 = vst [vmem:[%s342 + $0x10] sm:$0xff] %v886
        %895 = vst [vmem:[%s342 + $0x18] sm:$0xff] %v887
        %896 = vst [vmem:[%s342 + $0x20] sm:$0xff] %v888
        %897 = vst [vmem:[%s342 + $0x28] sm:$0xff] %v889
        %898 = vst [vmem:[%s342 + $0x30] sm:$0xff] %v890
        %899 = vst [vmem:[%s342 + $0x38] sm:$0xff] %v891
        %s900 = sand.u32 %s174, 1
        %s901 = sand.u32 %s174, 1
        %s902 = smul.addr %s901, 64
        %s903 = scalar_lea.vmem [#allocation6], %s902
        // Predicated region
        $region49: #{awareness_lstm_forward.7} parent=39 // pred_check
          %p904 = pneg %p184
        $region50: #{awareness_lstm_forward.7} parent=39 // pred_check_branch
          %906 = sbr.rel (%p904) target = $region52
        $region51: #{awareness_lstm_forward.7} parent=39 // pred_region
          %s907 = smul.u32 2, %s26
          %s908 = smul.u32 4, %s27
          %s909 = smul.addr %s907, 8
          %s910 = sadd.s32 %s908, %s909
          %s911 = smul.addr %s910, 8
          %s912 = scalar_lea.vmem %s5, %s911
          // Predicated region
          $region53: #{awareness_lstm_forward.7} parent=51 // pred_check
            _
          $region54: #{awareness_lstm_forward.7} parent=51 // pred_check_branch
            %914 = sbr.rel (0) target = $region56
          $region55: #{awareness_lstm_forward.7} parent=51 // pred_region
            // Predicated region
            $region57: #{awareness_lstm_forward.7} parent=55 // pred_check
              _
            $region58: #{awareness_lstm_forward.7} parent=55 // pred_check_branch
              %916 = sbr.rel (0) target = $region60
            $region59: #{awareness_lstm_forward.7} parent=55 // pred_region
              loop: start=0, step=1, limit=1
              $region61: #{awareness_lstm_forward.7} parent=59 // loop_pre_header
                _
              $region62: #{awareness_lstm_forward.7} parent=59 // loop_header
                %s918 = sphi 0, %s922
                %p919 = scmp.ge.s32.totalorder %s918, 1
                %s923 = sphi %s903, %s903
                %s924 = sphi %s912, %s912
              $region63: #{awareness_lstm_forward.7} parent=59 // loop_header_branch
                %921 = sbr.rel (%p919) target = $region67
              $region64: #{awareness_lstm_forward.7} parent=59 // loop_body
                %v925 = vld [vmem:[%s923] sm:$0xff]
                %926 = vst [vmem:[%s924] sm:$0xff] %v925
                %v927 = vld [vmem:[%s923 + $0x8] sm:$0xff]
                %928 = vst [vmem:[%s924 + $0x8] sm:$0xff] %v927
                %v929 = vld [vmem:[%s923 + $0x10] sm:$0xff]
                %930 = vst [vmem:[%s924 + $0x10] sm:$0xff] %v929
                %v931 = vld [vmem:[%s923 + $0x18] sm:$0xff]
                %932 = vst [vmem:[%s924 + $0x18] sm:$0xff] %v931
                %v933 = vld [vmem:[%s923 + $0x20] sm:$0xff]
                %934 = vst [vmem:[%s924 + $0x40] sm:$0xff] %v933
                %v935 = vld [vmem:[%s923 + $0x28] sm:$0xff]
                %936 = vst [vmem:[%s924 + $0x48] sm:$0xff] %v935
                %v937 = vld [vmem:[%s923 + $0x30] sm:$0xff]
                %938 = vst [vmem:[%s924 + $0x50] sm:$0xff] %v937
                %v939 = vld [vmem:[%s923 + $0x38] sm:$0xff]
                %940 = vst [vmem:[%s924 + $0x58] sm:$0xff] %v939
              $region65: #{awareness_lstm_forward.7} parent=59 // loop_footer
                %s922 = sadd.s32 1, %s918
              $region66: #{awareness_lstm_forward.7} parent=59 // loop_footer_branch
                %917 = sbr.rel target = $region62
              $region67: #{awareness_lstm_forward.7} parent=59 // loop_exit
                _
            $region60: #{awareness_lstm_forward.7} parent=55 // pred_fallthru
              _
            // Predicated region
            $region68: #{awareness_lstm_forward.7} parent=55 // pred_check
              _
            $region69: #{awareness_lstm_forward.7} parent=55 // pred_check_branch
              %942 = sbr.rel target = $region71
            $region70: #{awareness_lstm_forward.7} parent=55 // pred_region
              _
            $region71: #{awareness_lstm_forward.7} parent=55 // pred_fallthru
              _
          $region56: #{awareness_lstm_forward.7} parent=51 // pred_fallthru
            _
          %943 = vnop
        $region52: #{awareness_lstm_forward.7} parent=39 // pred_fallthru
          _
      $region40: #{awareness_lstm_forward.7} parent=5 // pred_fallthru
        _
      %p944 = scmp.le.s32.totalorder 2, %s17
      // Predicated region
      $region72: #{awareness_lstm_forward.7} parent=5 // pred_check
        %p945 = pneg %p944
      $region73: #{awareness_lstm_forward.7} parent=5 // pred_check_branch
        %947 = sbr.rel (%p945) target = $region75
      $region74: #{awareness_lstm_forward.7} parent=5 // pred_region
        %s948 = ssub.s32 %s17, 2
        // Predicated region
        $region76: #{awareness_lstm_forward.7} parent=74 // pred_check
          %p949 = pneg %p190
        $region77: #{awareness_lstm_forward.7} parent=74 // pred_check_branch
          %951 = sbr.rel (%p949) target = $region79
        $region78: #{awareness_lstm_forward.7} parent=74 // pred_region
          %s952 = sand.u32 %s175, 1
          %s953 = sand.u32 %s175, 1
          %s954 = smul.addr %s953, 64
          %s955 = scalar_lea.vmem [#allocation6], %s954
        $region79: #{awareness_lstm_forward.7} parent=74 // pred_fallthru
          _
      $region75: #{awareness_lstm_forward.7} parent=5 // pred_fallthru
        _
    $region6: #{awareness_lstm_forward.7} parent=1 // loop_footer
      %s21 = sadd.s32 1, %s17
    $region7: #{awareness_lstm_forward.7} parent=1 // loop_footer_branch
      %16 = sbr.rel target = $region3
    $region8: #{awareness_lstm_forward.7} parent=1 // loop_exit
      _
    %956 = vsyncpa [#allocation3], 1
    %s957 = scalar_lea.sflag [#allocation3], 1
    %958 = vsyncpa %s957, 1
    %959 = vsyncpa [#allocation5], 1
    %s960 = scalar_lea.sflag [#allocation5], 1
    %961 = vsyncpa %s960, 1

// kernel: awareness_lstm_forward.6
$region0: #{awareness_lstm_forward.6}
  #allocation0 [shape = 'u32[]', space=smem, size = 0x4, offset = 0x4, fixed_abs, tag = 'smem constant byte address 0x4 - core index']
  #allocation1 [shape = 'u32[72,128]{1,0:T(1,128)}', space=vmem, size = 0x9000, scoped, tag = 'internal scratch']
  #allocation2 [shape = 'f32[4,128]{1,0:T(4,128)}', space=vmem, size = 0x800, scoped, tag = 'scratch operand']
  #allocation3 [shape = 'f32[4,128]{1,0:T(4,128)}', space=vmem, size = 0x800, scoped, tag = 'scratch operand']
  %s0 = inlined_call_operand.vmem [shape: f32[16,1024], index: 0, kind: input, shape index: {}, may-alias: {0,1}]
  %s1 = inlined_call_operand.vmem [shape: f32[16,1024], index: 1, kind: input, shape index: {}, may-alias: {0,1}]
  %s2 = inlined_call_operand.hbm [shape: bf16[256,512], index: 2, kind: input, shape index: {}]
  %s3 = inlined_call_operand.vmem [shape: f32[4,128], index: 3, kind: input, shape index: {}]
  %s4 = inlined_call_operand.vmem [shape: f32[4,128], index: 4, kind: input, shape index: {}]
  %s5 = inlined_call_operand.vmem [shape: f32[16,128], index: 5, kind: output, shape index: {0}]
  %s6 = inlined_call_operand.vmem [shape: f32[16,128], index: 6, kind: output, shape index: {1}]
  %s7 = inlined_call_operand.vmem [shape: f32[4,128], index: 7, kind: output, shape index: {2}]
  %8 = xla_tuple %s5, %s6, %s7
  %s9 = sld [smem:[#allocation0]]
  $region100: #{awareness_lstm_forward.6} parent=0
    _
  %s11 = ssub.s32 1, %s9
  %s12 = scalar_select 0, %s11, %s9
  $region1: #{awareness_lstm_forward.6} parent=0
    #allocation4 [shape = 'u8[32768]{0}', space=vmem, size = 0x8000, scoped, tag = 'input window, operand 0, single buffered']
    #allocation5 [shape = 'u8[32768]{0}', space=vmem, size = 0x8000, scoped, tag = 'input window, operand 1, single buffered']
    #allocation6 [shape = 'u8[262144]{0}', space=vmem, size = 0x40000, scoped, tag = 'input window, operand 2, single buffered']
    #allocation7 [shape = 's32[1]{0}', space=sflag, size = 0x4, scoped, tag = 'scoped memory for awareness_lstm_forward.6']
    %13 = vsyncpa [#allocation7], 0
    // Predicated region
    $region2: #{awareness_lstm_forward.6} parent=1 // pred_check
      _
    $region3: #{awareness_lstm_forward.6} parent=1 // pred_check_branch
      %15 = sbr.rel (0) target = $region5
    $region4: #{awareness_lstm_forward.6} parent=1 // pred_region
      // Predicated region
      $region6: #{awareness_lstm_forward.6} parent=4 // pred_check
        _
      $region7: #{awareness_lstm_forward.6} parent=4 // pred_check_branch
        %17 = sbr.rel (0) target = $region9
      $region8: #{awareness_lstm_forward.6} parent=4 // pred_region
        // Predicated region
        $region10: #{awareness_lstm_forward.6} parent=8 // pred_check
          _
        $region11: #{awareness_lstm_forward.6} parent=8 // pred_check_branch
          %19 = sbr.rel (0) target = $region13
        $region12: #{awareness_lstm_forward.6} parent=8 // pred_region
          loop: start=0, step=1, limit=1
          $region14: #{awareness_lstm_forward.6} parent=12 // loop_pre_header
            _
          $region15: #{awareness_lstm_forward.6} parent=12 // loop_header
            %s21 = sphi 0, %s25
            %p22 = scmp.ge.s32.totalorder %s21, 1
            %s26 = sphi %s0, %s0
            %s27 = sphi [#allocation4], [#allocation4]
          $region16: #{awareness_lstm_forward.6} parent=12 // loop_header_branch
            %24 = sbr.rel (%p22) target = $region20
          $region17: #{awareness_lstm_forward.6} parent=12 // loop_body
            %v28 = vld [vmem:[%s26] sm:$0xff]
            %29 = vst [vmem:[%s27] sm:$0xff] %v28
            %v30 = vld [vmem:[%s26 + $0x8] sm:$0xff]
            %31 = vst [vmem:[%s27 + $0x8] sm:$0xff] %v30
            %v32 = vld [vmem:[%s26 + $0x10] sm:$0xff]
            %33 = vst [vmem:[%s27 + $0x10] sm:$0xff] %v32
            %v34 = vld [vmem:[%s26 + $0x18] sm:$0xff]
            %35 = vst [vmem:[%s27 + $0x18] sm:$0xff] %v34
            %v36 = vld [vmem:[%s26 + $0x40] sm:$0xff]
            %37 = vst [vmem:[%s27 + $0x20] sm:$0xff] %v36
            %v38 = vld [vmem:[%s26 + $0x48] sm:$0xff]
            %39 = vst [vmem:[%s27 + $0x28] sm:$0xff] %v38
            %v40 = vld [vmem:[%s26 + $0x50] sm:$0xff]
            %41 = vst [vmem:[%s27 + $0x30] sm:$0xff] %v40
            %v42 = vld [vmem:[%s26 + $0x58] sm:$0xff]
            %43 = vst [vmem:[%s27 + $0x38] sm:$0xff] %v42
          $region18: #{awareness_lstm_forward.6} parent=12 // loop_footer
            %s25 = sadd.s32 1, %s21
          $region19: #{awareness_lstm_forward.6} parent=12 // loop_footer_branch
            %20 = sbr.rel target = $region15
          $region20: #{awareness_lstm_forward.6} parent=12 // loop_exit
            _
        $region13: #{awareness_lstm_forward.6} parent=8 // pred_fallthru
          _
        // Predicated region
        $region21: #{awareness_lstm_forward.6} parent=8 // pred_check
          _
        $region22: #{awareness_lstm_forward.6} parent=8 // pred_check_branch
          %45 = sbr.rel target = $region24
        $region23: #{awareness_lstm_forward.6} parent=8 // pred_region
          _
        $region24: #{awareness_lstm_forward.6} parent=8 // pred_fallthru
          _
      $region9: #{awareness_lstm_forward.6} parent=4 // pred_fallthru
        _
      %46 = vnop
    $region5: #{awareness_lstm_forward.6} parent=1 // pred_fallthru
      _
    // Predicated region
    $region25: #{awareness_lstm_forward.6} parent=1 // pred_check
      _
    $region26: #{awareness_lstm_forward.6} parent=1 // pred_check_branch
      %48 = sbr.rel (0) target = $region28
    $region27: #{awareness_lstm_forward.6} parent=1 // pred_region
      %s49 = ssub.s32 0, 0
      %s50 = smul.u32 2, %s49
      %s51 = smul.addr %s50, 8
      %s52 = sadd.s32 4, %s51
      %s53 = smul.addr %s52, 8
      %s54 = scalar_lea.vmem %s1, %s53
      // Predicated region
      $region29: #{awareness_lstm_forward.6} parent=27 // pred_check
        _
      $region30: #{awareness_lstm_forward.6} parent=27 // pred_check_branch
        %56 = sbr.rel (0) target = $region32
      $region31: #{awareness_lstm_forward.6} parent=27 // pred_region
        // Predicated region
        $region33: #{awareness_lstm_forward.6} parent=31 // pred_check
          _
        $region34: #{awareness_lstm_forward.6} parent=31 // pred_check_branch
          %58 = sbr.rel (0) target = $region36
        $region35: #{awareness_lstm_forward.6} parent=31 // pred_region
          loop: start=0, step=1, limit=1
          $region37: #{awareness_lstm_forward.6} parent=35 // loop_pre_header
            _
          $region38: #{awareness_lstm_forward.6} parent=35 // loop_header
            %s60 = sphi 0, %s64
            %p61 = scmp.ge.s32.totalorder %s60, 1
            %s65 = sphi %s54, %s54
            %s66 = sphi [#allocation5], [#allocation5]
          $region39: #{awareness_lstm_forward.6} parent=35 // loop_header_branch
            %63 = sbr.rel (%p61) target = $region43
          $region40: #{awareness_lstm_forward.6} parent=35 // loop_body
            %v67 = vld [vmem:[%s65] sm:$0xff]
            %68 = vst [vmem:[%s66] sm:$0xff] %v67
            %v69 = vld [vmem:[%s65 + $0x8] sm:$0xff]
            %70 = vst [vmem:[%s66 + $0x8] sm:$0xff] %v69
            %v71 = vld [vmem:[%s65 + $0x10] sm:$0xff]
            %72 = vst [vmem:[%s66 + $0x10] sm:$0xff] %v71
            %v73 = vld [vmem:[%s65 + $0x18] sm:$0xff]
            %74 = vst [vmem:[%s66 + $0x18] sm:$0xff] %v73
            %v75 = vld [vmem:[%s65 + $0x40] sm:$0xff]
            %76 = vst [vmem:[%s66 + $0x20] sm:$0xff] %v75
            %v77 = vld [vmem:[%s65 + $0x48] sm:$0xff]
            %78 = vst [vmem:[%s66 + $0x28] sm:$0xff] %v77
            %v79 = vld [vmem:[%s65 + $0x50] sm:$0xff]
            %80 = vst [vmem:[%s66 + $0x30] sm:$0xff] %v79
            %v81 = vld [vmem:[%s65 + $0x58] sm:$0xff]
            %82 = vst [vmem:[%s66 + $0x38] sm:$0xff] %v81
          $region41: #{awareness_lstm_forward.6} parent=35 // loop_footer
            %s64 = sadd.s32 1, %s60
          $region42: #{awareness_lstm_forward.6} parent=35 // loop_footer_branch
            %59 = sbr.rel target = $region38
          $region43: #{awareness_lstm_forward.6} parent=35 // loop_exit
            _
        $region36: #{awareness_lstm_forward.6} parent=31 // pred_fallthru
          _
        // Predicated region
        $region44: #{awareness_lstm_forward.6} parent=31 // pred_check
          _
        $region45: #{awareness_lstm_forward.6} parent=31 // pred_check_branch
          %84 = sbr.rel target = $region47
        $region46: #{awareness_lstm_forward.6} parent=31 // pred_region
          _
        $region47: #{awareness_lstm_forward.6} parent=31 // pred_fallthru
          _
      $region32: #{awareness_lstm_forward.6} parent=27 // pred_fallthru
        _
      %85 = vnop
    $region28: #{awareness_lstm_forward.6} parent=1 // pred_fallthru
      _
    // Predicated region
    $region48: #{awareness_lstm_forward.6} parent=1 // pred_check
      _
    $region49: #{awareness_lstm_forward.6} parent=1 // pred_check_branch
      %87 = sbr.rel (0) target = $region51
    $region50: #{awareness_lstm_forward.6} parent=1 // pred_region
      %89 = vsyncadd [#allocation7], 0
      %s90 = sshll.u32 %s2, 4
      %s91 = int_to_ptr.hbm [resolvable:$true] %s90
      %s92 = sshll.u32 [#allocation6], 4
      %s93 = int_to_ptr.vmem [resolvable:$true] %s92
      %98 = dma.hbm_to_vmem [thread:$0]  %s91, 8192, %s93, [#allocation7], 256, 256, 16
    $region51: #{awareness_lstm_forward.6} parent=1 // pred_fallthru
      _
    // Predicated region
    $region52: #{awareness_lstm_forward.6} parent=1 // pred_check
      _
    $region53: #{awareness_lstm_forward.6} parent=1 // pred_check_branch
      %100 = sbr.rel (0) target = $region55
    $region54: #{awareness_lstm_forward.6} parent=1 // pred_region
      _
    $region55: #{awareness_lstm_forward.6} parent=1 // pred_fallthru
      _
    // Predicated region
    $region56: #{awareness_lstm_forward.6} parent=1 // pred_check
      _
    $region57: #{awareness_lstm_forward.6} parent=1 // pred_check_branch
      %102 = sbr.rel (0) target = $region59
    $region58: #{awareness_lstm_forward.6} parent=1 // pred_region
      _
    $region59: #{awareness_lstm_forward.6} parent=1 // pred_fallthru
      _
    // Predicated region
    $region60: #{awareness_lstm_forward.6} parent=1 // pred_check
      _
    $region61: #{awareness_lstm_forward.6} parent=1 // pred_check_branch
      %104 = sbr.rel (0) target = $region63
    $region62: #{awareness_lstm_forward.6} parent=1 // pred_region
      _
    $region63: #{awareness_lstm_forward.6} parent=1 // pred_fallthru
      _
    // Predicated region
    $region64: #{awareness_lstm_forward.6} parent=1 // pred_check
      _
    $region65: #{awareness_lstm_forward.6} parent=1 // pred_check_branch
      %106 = sbr.rel (0) target = $region67
    $region66: #{awareness_lstm_forward.6} parent=1 // pred_region
      _
    $region67: #{awareness_lstm_forward.6} parent=1 // pred_fallthru
      _
    // Predicated region
    $region68: #{awareness_lstm_forward.6} parent=1 // pred_check
      _
    $region69: #{awareness_lstm_forward.6} parent=1 // pred_check_branch
      %108 = sbr.rel (0) target = $region71
    $region70: #{awareness_lstm_forward.6} parent=1 // pred_region
      %110 = dma.done [#allocation7], 8192
    $region71: #{awareness_lstm_forward.6} parent=1 // pred_fallthru
      _
    %s111 = ssub.s32 0, 0
    %s112 = smul.u32 2, %s111
    %p113 = scmp.lt.s32.totalorder %s112, 1
    %s114 = scalar_select %p113, %s112, 1
    %s115 = smul.addr %s114, 8
    %s116 = scalar_lea.vmem %s6, %s115
    %s117 = ssub.s32 0, 0
    %s118 = smul.u32 2, %s117
    %s119 = ssub.s32 0, 0
    %s120 = smul.u32 2, %s119
    %p121 = scmp.lt.s32.totalorder %s120, 1
    %s122 = scalar_select %p121, %s120, 1
    %s123 = smul.addr %s122, 8
    %s124 = scalar_lea.vmem %s6, %s123
    %s125 = ssub.s32 0, 0
    %s126 = smul.u32 2, %s125
    %p127 = scmp.eq.s32.totalorder 0, 0
    // Predicated region
    $region72: #{awareness_lstm_forward.6} parent=1 // pred_check
      %p128 = pneg %p127
    $region73: #{awareness_lstm_forward.6} parent=1 // pred_check_branch
      %130 = sbr.rel (%p128) target = $region75
    $region74: #{awareness_lstm_forward.6} parent=1 // pred_region
      %v131 = vld [vmem:[%s3] sm:$0xf]
      %132 = vst [vmem:[#allocation2] sm:$0xf] %v131
      %v133 = vld [vmem:[%s4] sm:$0xf]
      %134 = vst [vmem:[#allocation3] sm:$0xf] %v133
    $region75: #{awareness_lstm_forward.6} parent=1 // pred_fallthru
      _
    %v135 = vld [vmem:[#allocation2] sm:$0x3]
    %v136 = vld [vmem:[#allocation2 + $0x2] sm:$0x3]
    %v137 = vld [vmem:[#allocation3] sm:$0x3]
    %v138 = vld [vmem:[#allocation3 + $0x2] sm:$0x3]
    %v139 = vld [vmem:[#allocation4] sm:$0x3]
    %v140 = vld [vmem:[#allocation4 + $0x8] sm:$0x3]
    %v141 = vld [vmem:[#allocation4 + $0x10] sm:$0x3]
    %v142 = vld [vmem:[#allocation4 + $0x18] sm:$0x3]
    %v143 = vpack.c.bf16 %v135, %v135
    %v144 = vld [vmem:[#allocation6] sm:$0xff]
    %v145 = vld [vmem:[#allocation6 + $0x8] sm:$0xff]
    %v146 = vld [vmem:[#allocation6 + $0x10] sm:$0xff]
    %v147 = vld [vmem:[#allocation6 + $0x18] sm:$0xff]
    %v148 = vld [vmem:[#allocation6 + $0x20] sm:$0xff]
    %v149 = vld [vmem:[#allocation6 + $0x28] sm:$0xff]
    %v150 = vld [vmem:[#allocation6 + $0x30] sm:$0xff]
    %v151 = vld [vmem:[#allocation6 + $0x38] sm:$0xff]
    %v152 = vld [vmem:[#allocation6 + $0x40] sm:$0xff]
    %v153 = vld [vmem:[#allocation6 + $0x48] sm:$0xff]
    %v154 = vld [vmem:[#allocation6 + $0x50] sm:$0xff]
    %v155 = vld [vmem:[#allocation6 + $0x58] sm:$0xff]
    %v156 = vld [vmem:[#allocation6 + $0x60] sm:$0xff]
    %v157 = vld [vmem:[#allocation6 + $0x68] sm:$0xff]
    %v158 = vld [vmem:[#allocation6 + $0x70] sm:$0xff]
    %v159 = vld [vmem:[#allocation6 + $0x78] sm:$0xff]
    %v160 = vld [vmem:[#allocation6 + $0x80] sm:$0xff]
    %v161 = vld [vmem:[#allocation6 + $0x88] sm:$0xff]
    %v162 = vld [vmem:[#allocation6 + $0x90] sm:$0xff]
    %v163 = vld [vmem:[#allocation6 + $0x98] sm:$0xff]
    %v164 = vld [vmem:[#allocation6 + $0xa0] sm:$0xff]
    %v165 = vld [vmem:[#allocation6 + $0xa8] sm:$0xff]
    %v166 = vld [vmem:[#allocation6 + $0xb0] sm:$0xff]
    %v167 = vld [vmem:[#allocation6 + $0xb8] sm:$0xff]
    %v168 = vld [vmem:[#allocation6 + $0xc0] sm:$0xff]
    %v169 = vld [vmem:[#allocation6 + $0xc8] sm:$0xff]
    %v170 = vld [vmem:[#allocation6 + $0xd0] sm:$0xff]
    %v171 = vld [vmem:[#allocation6 + $0xd8] sm:$0xff]
    %v172 = vld [vmem:[#allocation6 + $0xe0] sm:$0xff]
    %v173 = vld [vmem:[#allocation6 + $0xe8] sm:$0xff]
    %v174 = vld [vmem:[#allocation6 + $0xf0] sm:$0xff]
    %v175 = vld [vmem:[#allocation6 + $0xf8] sm:$0xff]
    %v208 = vunpack.c.l.b16 %v144
    %v209 = vunpack.c.h.b16 %v144
    %v210 = vunpack.c.l.b16 %v145
    %v211 = vunpack.c.h.b16 %v145
    %v212 = vunpack.c.l.b16 %v146
    %v213 = vunpack.c.h.b16 %v146
    %v214 = vunpack.c.l.b16 %v147
    %v215 = vunpack.c.h.b16 %v147
    %v216 = vunpack.c.l.b16 %v148
    %v217 = vunpack.c.h.b16 %v148
    %v218 = vunpack.c.l.b16 %v149
    %v219 = vunpack.c.h.b16 %v149
    %v220 = vunpack.c.l.b16 %v150
    %v221 = vunpack.c.h.b16 %v150
    %v222 = vunpack.c.l.b16 %v151
    %v223 = vunpack.c.h.b16 %v151
    %v224 = vunpack.c.l.b16 %v152
    %v225 = vunpack.c.h.b16 %v152
    %v226 = vunpack.c.l.b16 %v153
    %v227 = vunpack.c.h.b16 %v153
    %v228 = vunpack.c.l.b16 %v154
    %v229 = vunpack.c.h.b16 %v154
    %v230 = vunpack.c.l.b16 %v155
    %v231 = vunpack.c.h.b16 %v155
    %v232 = vunpack.c.l.b16 %v156
    %v233 = vunpack.c.h.b16 %v156
    %v234 = vunpack.c.l.b16 %v157
    %v235 = vunpack.c.h.b16 %v157
    %v236 = vunpack.c.l.b16 %v158
    %v237 = vunpack.c.h.b16 %v158
    %v238 = vunpack.c.l.b16 %v159
    %v239 = vunpack.c.h.b16 %v159
    %v240 = vunpack.c.l.b16 %v160
    %v241 = vunpack.c.h.b16 %v160
    %v242 = vunpack.c.l.b16 %v161
    %v243 = vunpack.c.h.b16 %v161
    %v244 = vunpack.c.l.b16 %v162
    %v245 = vunpack.c.h.b16 %v162
    %v246 = vunpack.c.l.b16 %v163
    %v247 = vunpack.c.h.b16 %v163
    %v248 = vunpack.c.l.b16 %v164
    %v249 = vunpack.c.h.b16 %v164
    %v250 = vunpack.c.l.b16 %v165
    %v251 = vunpack.c.h.b16 %v165
    %v252 = vunpack.c.l.b16 %v166
    %v253 = vunpack.c.h.b16 %v166
    %v254 = vunpack.c.l.b16 %v167
    %v255 = vunpack.c.h.b16 %v167
    %v256 = vunpack.c.l.b16 %v168
    %v257 = vunpack.c.h.b16 %v168
    %v258 = vunpack.c.l.b16 %v169
    %v259 = vunpack.c.h.b16 %v169
    %v260 = vunpack.c.l.b16 %v170
    %v261 = vunpack.c.h.b16 %v170
    %v262 = vunpack.c.l.b16 %v171
    %v263 = vunpack.c.h.b16 %v171
    %v264 = vunpack.c.l.b16 %v172
    %v265 = vunpack.c.h.b16 %v172
    %v266 = vunpack.c.l.b16 %v173
    %v267 = vunpack.c.h.b16 %v173
    %v268 = vunpack.c.l.b16 %v174
    %v269 = vunpack.c.h.b16 %v174
    %v270 = vunpack.c.l.b16 %v175
    %v271 = vunpack.c.h.b16 %v175
    %v272 = vpack.c.b16 %v212, %v208
    %v273 = vpack.c.b16 %v213, %v209
    %v274 = vpack.c.b16 %v214, %v210
    %v275 = vpack.c.b16 %v215, %v211
    %v276 = vpack.c.b16 %v220, %v216
    %v277 = vpack.c.b16 %v221, %v217
    %v278 = vpack.c.b16 %v222, %v218
    %v279 = vpack.c.b16 %v223, %v219
    %v280 = vpack.c.b16 %v228, %v224
    %v281 = vpack.c.b16 %v229, %v225
    %v282 = vpack.c.b16 %v230, %v226
    %v283 = vpack.c.b16 %v231, %v227
    %v284 = vpack.c.b16 %v236, %v232
    %v285 = vpack.c.b16 %v237, %v233
    %v286 = vpack.c.b16 %v238, %v234
    %v287 = vpack.c.b16 %v239, %v235
    %v288 = vpack.c.b16 %v244, %v240
    %v289 = vpack.c.b16 %v245, %v241
    %v290 = vpack.c.b16 %v246, %v242
    %v291 = vpack.c.b16 %v247, %v243
    %v292 = vpack.c.b16 %v252, %v248
    %v293 = vpack.c.b16 %v253, %v249
    %v294 = vpack.c.b16 %v254, %v250
    %v295 = vpack.c.b16 %v255, %v251
    %v296 = vpack.c.b16 %v260, %v256
    %v297 = vpack.c.b16 %v261, %v257
    %v298 = vpack.c.b16 %v262, %v258
    %v299 = vpack.c.b16 %v263, %v259
    %v300 = vpack.c.b16 %v268, %v264
    %v301 = vpack.c.b16 %v269, %v265
    %v302 = vpack.c.b16 %v270, %v266
    %v303 = vpack.c.b16 %v271, %v267
    %336 = vmatpush.bf16.msra.mxu0 %v300
    %337 = vmatpush.bf16.msra.mxu0 %v296
    %338 = vmatpush.bf16.msra.mxu0 %v292
    %339 = vmatpush.bf16.msra.mxu0 %v288
    %340 = vmatpush.bf16.msra.mxu0 %v284
    %341 = vmatpush.bf16.msra.mxu0 %v280
    %342 = vmatpush.bf16.msra.mxu0 %v276
    %343 = vmatpush.bf16.msra.mxu0 %v272
    %344 = vmatmul.bf16.gmra.mxu0 %v143
    %v345 = vpop.f32.mrf.mxu0
    %v346 = vadd.f32 0.0, %v345
    %v347 = vpop.f32.mrf.mxu0
    %348 = vdwg.mxu0
    %349 = vmatpush.bf16.msra.mxu0 %v301
    %350 = vmatpush.bf16.msra.mxu0 %v297
    %351 = vmatpush.bf16.msra.mxu0 %v293
    %352 = vmatpush.bf16.msra.mxu0 %v289
    %353 = vmatpush.bf16.msra.mxu0 %v285
    %354 = vmatpush.bf16.msra.mxu0 %v281
    %355 = vmatpush.bf16.msra.mxu0 %v277
    %356 = vmatpush.bf16.msra.mxu0 %v273
    %357 = vmatmul.bf16.gmra.mxu0 %v143
    %v358 = vpop.f32.mrf.mxu0
    %v359 = vadd.f32 0.0, %v358
    %v360 = vpop.f32.mrf.mxu0
    %361 = vdwg.mxu0
    %362 = vmatpush.bf16.msra.mxu0 %v302
    %363 = vmatpush.bf16.msra.mxu0 %v298
    %364 = vmatpush.bf16.msra.mxu0 %v294
    %365 = vmatpush.bf16.msra.mxu0 %v290
    %366 = vmatpush.bf16.msra.mxu0 %v286
    %367 = vmatpush.bf16.msra.mxu0 %v282
    %368 = vmatpush.bf16.msra.mxu0 %v278
    %369 = vmatpush.bf16.msra.mxu0 %v274
    %370 = vmatmul.bf16.gmra.mxu0 %v143
    %v371 = vpop.f32.mrf.mxu0
    %v372 = vadd.f32 0.0, %v371
    %v373 = vpop.f32.mrf.mxu0
    %374 = vdwg.mxu0
    %375 = vmatpush.bf16.msra.mxu0 %v303
    %376 = vmatpush.bf16.msra.mxu0 %v299
    %377 = vmatpush.bf16.msra.mxu0 %v295
    %378 = vmatpush.bf16.msra.mxu0 %v291
    %379 = vmatpush.bf16.msra.mxu0 %v287
    %380 = vmatpush.bf16.msra.mxu0 %v283
    %381 = vmatpush.bf16.msra.mxu0 %v279
    %382 = vmatpush.bf16.msra.mxu0 %v275
    %383 = vmatmul.bf16.gmra.mxu0 %v143
    %v384 = vpop.f32.mrf.mxu0
    %v385 = vadd.f32 0.0, %v384
    %v386 = vpop.f32.mrf.mxu0
    %387 = vdwg.mxu0
    %v388 = vadd.f32 %v139, %v346
    %v389 = vadd.f32 %v140, %v359
    %v390 = vadd.f32 %v141, %v372
    %v391 = vadd.f32 %v142, %v385
    %v392 = vld [vmem:[#allocation5 + $0x20] sm:$0xc0]
    %v393 = vld [vmem:[#allocation5 + $0x28] sm:$0xc0]
    %v394 = vld [vmem:[#allocation5 + $0x30] sm:$0xc0]
    %v395 = vld [vmem:[#allocation5 + $0x38] sm:$0xc0]
    %v396 = vpack.c.bf16 %v136, %v136
    %v397 = vld [vmem:[#allocation6 + $0x100] sm:$0xff]
    %v398 = vld [vmem:[#allocation6 + $0x108] sm:$0xff]
    %v399 = vld [vmem:[#allocation6 + $0x110] sm:$0xff]
    %v400 = vld [vmem:[#allocation6 + $0x118] sm:$0xff]
    %v401 = vld [vmem:[#allocation6 + $0x120] sm:$0xff]
    %v402 = vld [vmem:[#allocation6 + $0x128] sm:$0xff]
    %v403 = vld [vmem:[#allocation6 + $0x130] sm:$0xff]
    %v404 = vld [vmem:[#allocation6 + $0x138] sm:$0xff]
    %v405 = vld [vmem:[#allocation6 + $0x140] sm:$0xff]
    %v406 = vld [vmem:[#allocation6 + $0x148] sm:$0xff]
    %v407 = vld [vmem:[#allocation6 + $0x150] sm:$0xff]
    %v408 = vld [vmem:[#allocation6 + $0x158] sm:$0xff]
    %v409 = vld [vmem:[#allocation6 + $0x160] sm:$0xff]
    %v410 = vld [vmem:[#allocation6 + $0x168] sm:$0xff]
    %v411 = vld [vmem:[#allocation6 + $0x170] sm:$0xff]
    %v412 = vld [vmem:[#allocation6 + $0x178] sm:$0xff]
    %v413 = vld [vmem:[#allocation6 + $0x180] sm:$0xff]
    %v414 = vld [vmem:[#allocation6 + $0x188] sm:$0xff]
    %v415 = vld [vmem:[#allocation6 + $0x190] sm:$0xff]
    %v416 = vld [vmem:[#allocation6 + $0x198] sm:$0xff]
    %v417 = vld [vmem:[#allocation6 + $0x1a0] sm:$0xff]
    %v418 = vld [vmem:[#allocation6 + $0x1a8] sm:$0xff]
    %v419 = vld [vmem:[#allocation6 + $0x1b0] sm:$0xff]
    %v420 = vld [vmem:[#allocation6 + $0x1b8] sm:$0xff]
    %v421 = vld [vmem:[#allocation6 + $0x1c0] sm:$0xff]
    %v422 = vld [vmem:[#allocation6 + $0x1c8] sm:$0xff]
    %v423 = vld [vmem:[#allocation6 + $0x1d0] sm:$0xff]
    %v424 = vld [vmem:[#allocation6 + $0x1d8] sm:$0xff]
    %v425 = vld [vmem:[#allocation6 + $0x1e0] sm:$0xff]
    %v426 = vld [vmem:[#allocation6 + $0x1e8] sm:$0xff]
    %v427 = vld [vmem:[#allocation6 + $0x1f0] sm:$0xff]
    %v428 = vld [vmem:[#allocation6 + $0x1f8] sm:$0xff]
    %v461 = vunpack.c.l.b16 %v397
    %v462 = vunpack.c.h.b16 %v397
    %v463 = vunpack.c.l.b16 %v398
    %v464 = vunpack.c.h.b16 %v398
    %v465 = vunpack.c.l.b16 %v399
    %v466 = vunpack.c.h.b16 %v399
    %v467 = vunpack.c.l.b16 %v400
    %v468 = vunpack.c.h.b16 %v400
    %v469 = vunpack.c.l.b16 %v401
    %v470 = vunpack.c.h.b16 %v401
    %v471 = vunpack.c.l.b16 %v402
    %v472 = vunpack.c.h.b16 %v402
    %v473 = vunpack.c.l.b16 %v403
    %v474 = vunpack.c.h.b16 %v403
    %v475 = vunpack.c.l.b16 %v404
    %v476 = vunpack.c.h.b16 %v404
    %v477 = vunpack.c.l.b16 %v405
    %v478 = vunpack.c.h.b16 %v405
    %v479 = vunpack.c.l.b16 %v406
    %v480 = vunpack.c.h.b16 %v406
    %v481 = vunpack.c.l.b16 %v407
    %v482 = vunpack.c.h.b16 %v407
    %v483 = vunpack.c.l.b16 %v408
    %v484 = vunpack.c.h.b16 %v408
    %v485 = vunpack.c.l.b16 %v409
    %v486 = vunpack.c.h.b16 %v409
    %v487 = vunpack.c.l.b16 %v410
    %v488 = vunpack.c.h.b16 %v410
    %v489 = vunpack.c.l.b16 %v411
    %v490 = vunpack.c.h.b16 %v411
    %v491 = vunpack.c.l.b16 %v412
    %v492 = vunpack.c.h.b16 %v412
    %v493 = vunpack.c.l.b16 %v413
    %v494 = vunpack.c.h.b16 %v413
    %v495 = vunpack.c.l.b16 %v414
    %v496 = vunpack.c.h.b16 %v414
    %v497 = vunpack.c.l.b16 %v415
    %v498 = vunpack.c.h.b16 %v415
    %v499 = vunpack.c.l.b16 %v416
    %v500 = vunpack.c.h.b16 %v416
    %v501 = vunpack.c.l.b16 %v417
    %v502 = vunpack.c.h.b16 %v417
    %v503 = vunpack.c.l.b16 %v418
    %v504 = vunpack.c.h.b16 %v418
    %v505 = vunpack.c.l.b16 %v419
    %v506 = vunpack.c.h.b16 %v419
    %v507 = vunpack.c.l.b16 %v420
    %v508 = vunpack.c.h.b16 %v420
    %v509 = vunpack.c.l.b16 %v421
    %v510 = vunpack.c.h.b16 %v421
    %v511 = vunpack.c.l.b16 %v422
    %v512 = vunpack.c.h.b16 %v422
    %v513 = vunpack.c.l.b16 %v423
    %v514 = vunpack.c.h.b16 %v423
    %v515 = vunpack.c.l.b16 %v424
    %v516 = vunpack.c.h.b16 %v424
    %v517 = vunpack.c.l.b16 %v425
    %v518 = vunpack.c.h.b16 %v425
    %v519 = vunpack.c.l.b16 %v426
    %v520 = vunpack.c.h.b16 %v426
    %v521 = vunpack.c.l.b16 %v427
    %v522 = vunpack.c.h.b16 %v427
    %v523 = vunpack.c.l.b16 %v428
    %v524 = vunpack.c.h.b16 %v428
    %v525 = vpack.c.b16 %v465, %v461
    %v526 = vpack.c.b16 %v466, %v462
    %v527 = vpack.c.b16 %v467, %v463
    %v528 = vpack.c.b16 %v468, %v464
    %v529 = vpack.c.b16 %v473, %v469
    %v530 = vpack.c.b16 %v474, %v470
    %v531 = vpack.c.b16 %v475, %v471
    %v532 = vpack.c.b16 %v476, %v472
    %v533 = vpack.c.b16 %v481, %v477
    %v534 = vpack.c.b16 %v482, %v478
    %v535 = vpack.c.b16 %v483, %v479
    %v536 = vpack.c.b16 %v484, %v480
    %v537 = vpack.c.b16 %v489, %v485
    %v538 = vpack.c.b16 %v490, %v486
    %v539 = vpack.c.b16 %v491, %v487
    %v540 = vpack.c.b16 %v492, %v488
    %v541 = vpack.c.b16 %v497, %v493
    %v542 = vpack.c.b16 %v498, %v494
    %v543 = vpack.c.b16 %v499, %v495
    %v544 = vpack.c.b16 %v500, %v496
    %v545 = vpack.c.b16 %v505, %v501
    %v546 = vpack.c.b16 %v506, %v502
    %v547 = vpack.c.b16 %v507, %v503
    %v548 = vpack.c.b16 %v508, %v504
    %v549 = vpack.c.b16 %v513, %v509
    %v550 = vpack.c.b16 %v514, %v510
    %v551 = vpack.c.b16 %v515, %v511
    %v552 = vpack.c.b16 %v516, %v512
    %v553 = vpack.c.b16 %v521, %v517
    %v554 = vpack.c.b16 %v522, %v518
    %v555 = vpack.c.b16 %v523, %v519
    %v556 = vpack.c.b16 %v524, %v520
    %589 = vmatpush.bf16.msra.mxu0 %v553
    %590 = vmatpush.bf16.msra.mxu0 %v549
    %591 = vmatpush.bf16.msra.mxu0 %v545
    %592 = vmatpush.bf16.msra.mxu0 %v541
    %593 = vmatpush.bf16.msra.mxu0 %v537
    %594 = vmatpush.bf16.msra.mxu0 %v533
    %595 = vmatpush.bf16.msra.mxu0 %v529
    %596 = vmatpush.bf16.msra.mxu0 %v525
    %597 = vmatmul.bf16.gmra.mxu0 %v396
    %v598 = vpop.f32.mrf.mxu0
    %v599 = vadd.f32 0.0, %v598
    %v600 = vpop.f32.mrf.mxu0
    %601 = vdwg.mxu0
    %602 = vmatpush.bf16.msra.mxu0 %v554
    %603 = vmatpush.bf16.msra.mxu0 %v550
    %604 = vmatpush.bf16.msra.mxu0 %v546
    %605 = vmatpush.bf16.msra.mxu0 %v542
    %606 = vmatpush.bf16.msra.mxu0 %v538
    %607 = vmatpush.bf16.msra.mxu0 %v534
    %608 = vmatpush.bf16.msra.mxu0 %v530
    %609 = vmatpush.bf16.msra.mxu0 %v526
    %610 = vmatmul.bf16.gmra.mxu0 %v396
    %v611 = vpop.f32.mrf.mxu0
    %v612 = vadd.f32 0.0, %v611
    %v613 = vpop.f32.mrf.mxu0
    %614 = vdwg.mxu0
    %615 = vmatpush.bf16.msra.mxu0 %v555
    %616 = vmatpush.bf16.msra.mxu0 %v551
    %617 = vmatpush.bf16.msra.mxu0 %v547
    %618 = vmatpush.bf16.msra.mxu0 %v543
    %619 = vmatpush.bf16.msra.mxu0 %v539
    %620 = vmatpush.bf16.msra.mxu0 %v535
    %621 = vmatpush.bf16.msra.mxu0 %v531
    %622 = vmatpush.bf16.msra.mxu0 %v527
    %623 = vmatmul.bf16.gmra.mxu0 %v396
    %v624 = vpop.f32.mrf.mxu0
    %v625 = vadd.f32 0.0, %v624
    %v626 = vpop.f32.mrf.mxu0
    %627 = vdwg.mxu0
    %628 = vmatpush.bf16.msra.mxu0 %v556
    %629 = vmatpush.bf16.msra.mxu0 %v552
    %630 = vmatpush.bf16.msra.mxu0 %v548
    %631 = vmatpush.bf16.msra.mxu0 %v544
    %632 = vmatpush.bf16.msra.mxu0 %v540
    %633 = vmatpush.bf16.msra.mxu0 %v536
    %634 = vmatpush.bf16.msra.mxu0 %v532
    %635 = vmatpush.bf16.msra.mxu0 %v528
    %636 = vmatmul.bf16.gmra.mxu0 %v396
    %v637 = vpop.f32.mrf.mxu0
    %v638 = vadd.f32 0.0, %v637
    %v639 = vpop.f32.mrf.mxu0
    %640 = vdwg.mxu0
    %v645 = vrot.slane %v599, 2
    %v646 = vrot.slane %v612, 2
    %v647 = vrot.slane %v625, 2
    %v648 = vrot.slane %v638, 2
    %v653 = vadd.f32 %v392, %v645
    %v654 = vadd.f32 %v393, %v646
    %v655 = vadd.f32 %v394, %v647
    %v656 = vadd.f32 %v395, %v648
    %v657 = vxor.u32 %v388, 2147483648
    %v658 = vxor.u32 %v389, 2147483648
    %v659 = vxor.u32 %v390, 2147483648
    %v660 = vmul.f32 %v657, 1.442695
    %v661 = vpow.pop %v660
    %v662 = vmul.f32 %v658, 1.442695
    %v663 = vpow.pop %v662
    %v664 = vmul.f32 %v659, 1.442695
    %v665 = vpow.pop %v664
    %v666 = vadd.f32 %v661, 1.0
    %v667 = vadd.f32 %v663, 1.0
    %v668 = vadd.f32 %v665, 1.0
    %v669 = vrcp.pop %v666
    %v670 = vmul.f32 %v666, %v669
    %v671 = vsub.f32 1.0, %v670
    %v672 = vmul.f32 %v669, %v671
    %v673 = vadd.f32 %v669, %v672
    %vm674 = vweird.f32 %v666
    %vm675 = vweird.f32 %v669
    %vm676 = vmor %vm674, %vm675
    %v677 = vsel %vm676, %v669, %v673
    %v678 = vand.u32 2147483647, %v666
    %vm679 = vcmp.eq.f32.partialorder %v678, 8.507059e+37
    %v680 = vand.u32 %v666, 2147483648
    %v681 = vor.u32 1.1754944e-38, %v680
    %v682 = vsel %vm679, %v681, %v677
    %v683 = vmul.f32 1.0, %v682
    %v684 = vrcp.pop %v667
    %v685 = vmul.f32 %v667, %v684
    %v686 = vsub.f32 1.0, %v685
    %v687 = vmul.f32 %v684, %v686
    %v688 = vadd.f32 %v684, %v687
    %vm689 = vweird.f32 %v667
    %vm690 = vweird.f32 %v684
    %vm691 = vmor %vm689, %vm690
    %v692 = vsel %vm691, %v684, %v688
    %v693 = vand.u32 2147483647, %v667
    %vm694 = vcmp.eq.f32.partialorder %v693, 8.507059e+37
    %v695 = vand.u32 %v667, 2147483648
    %v696 = vor.u32 1.1754944e-38, %v695
    %v697 = vsel %vm694, %v696, %v692
    %v698 = vmul.f32 1.0, %v697
    %v699 = vrcp.pop %v668
    %v700 = vmul.f32 %v668, %v699
    %v701 = vsub.f32 1.0, %v700
    %v702 = vmul.f32 %v699, %v701
    %v703 = vadd.f32 %v699, %v702
    %vm704 = vweird.f32 %v668
    %vm705 = vweird.f32 %v699
    %vm706 = vmor %vm704, %vm705
    %v707 = vsel %vm706, %v699, %v703
    %v708 = vand.u32 2147483647, %v668
    %vm709 = vcmp.eq.f32.partialorder %v708, 8.507059e+37
    %v710 = vand.u32 %v668, 2147483648
    %v711 = vor.u32 1.1754944e-38, %v710
    %v712 = vsel %vm709, %v711, %v707
    %v713 = vmul.f32 1.0, %v712
    %v714 = vtanh.pop %v391
    %v715 = vmul.f32 %v698, %v137
    %v716 = vmul.f32 %v683, %v714
    %v717 = vadd.f32 %v715, %v716
    %v718 = vtanh.pop %v717
    %v719 = vmul.f32 %v713, %v718
    %v720 = vxor.u32 %v653, 2147483648
    %v721 = vxor.u32 %v654, 2147483648
    %v722 = vxor.u32 %v655, 2147483648
    %v723 = vmul.f32 %v720, 1.442695
    %v724 = vpow.pop %v723
    %v725 = vmul.f32 %v721, 1.442695
    %v726 = vpow.pop %v725
    %v727 = vmul.f32 %v722, 1.442695
    %v728 = vpow.pop %v727
    %v729 = vadd.f32 %v724, 1.0
    %v730 = vadd.f32 %v726, 1.0
    %v731 = vadd.f32 %v728, 1.0
    %v732 = vrcp.pop %v729
    %v733 = vmul.f32 %v729, %v732
    %v734 = vsub.f32 1.0, %v733
    %v735 = vmul.f32 %v732, %v734
    %v736 = vadd.f32 %v732, %v735
    %vm737 = vweird.f32 %v729
    %vm738 = vweird.f32 %v732
    %vm739 = vmor %vm737, %vm738
    %v740 = vsel %vm739, %v732, %v736
    %v741 = vand.u32 2147483647, %v729
    %vm742 = vcmp.eq.f32.partialorder %v741, 8.507059e+37
    %v743 = vand.u32 %v729, 2147483648
    %v744 = vor.u32 1.1754944e-38, %v743
    %v745 = vsel %vm742, %v744, %v740
    %v746 = vmul.f32 1.0, %v745
    %v747 = vrcp.pop %v730
    %v748 = vmul.f32 %v730, %v747
    %v749 = vsub.f32 1.0, %v748
    %v750 = vmul.f32 %v747, %v749
    %v751 = vadd.f32 %v747, %v750
    %vm752 = vweird.f32 %v730
    %vm753 = vweird.f32 %v747
    %vm754 = vmor %vm752, %vm753
    %v755 = vsel %vm754, %v747, %v751
    %v756 = vand.u32 2147483647, %v730
    %vm757 = vcmp.eq.f32.partialorder %v756, 8.507059e+37
    %v758 = vand.u32 %v730, 2147483648
    %v759 = vor.u32 1.1754944e-38, %v758
    %v760 = vsel %vm757, %v759, %v755
    %v761 = vmul.f32 1.0, %v760
    %v762 = vrcp.pop %v731
    %v763 = vmul.f32 %v731, %v762
    %v764 = vsub.f32 1.0, %v763
    %v765 = vmul.f32 %v762, %v764
    %v766 = vadd.f32 %v762, %v765
    %vm767 = vweird.f32 %v731
    %vm768 = vweird.f32 %v762
    %vm769 = vmor %vm767, %vm768
    %v770 = vsel %vm769, %v762, %v766
    %v771 = vand.u32 2147483647, %v731
    %vm772 = vcmp.eq.f32.partialorder %v771, 8.507059e+37
    %v773 = vand.u32 %v731, 2147483648
    %v774 = vor.u32 1.1754944e-38, %v773
    %v775 = vsel %vm772, %v774, %v770
    %v776 = vmul.f32 1.0, %v775
    %v777 = vtanh.pop %v656
    %v779 = vrot.slane %v138, 2
    %v781 = vmul.f32 %v761, %v779
    %v782 = vmul.f32 %v746, %v777
    %v783 = vadd.f32 %v781, %v782
    %v784 = vtanh.pop %v783
    %v785 = vmul.f32 %v776, %v784
    %786 = vst [vmem:[%s5] sm:$0x3] %v719
    %787 = vst [vmem:[%s124 + $0x8] sm:$0xc0] %v785
    %v788 = vld [vmem:[#allocation4] sm:$0xc]
    %v789 = vld [vmem:[#allocation4 + $0x8] sm:$0xc]
    %v790 = vld [vmem:[#allocation4 + $0x10] sm:$0xc]
    %v791 = vld [vmem:[#allocation4 + $0x18] sm:$0xc]
    %v792 = vpack.c.bf16 %v719, %v719
    %v793 = vld [vmem:[#allocation6] sm:$0xff]
    %v794 = vld [vmem:[#allocation6 + $0x8] sm:$0xff]
    %v795 = vld [vmem:[#allocation6 + $0x10] sm:$0xff]
    %v796 = vld [vmem:[#allocation6 + $0x18] sm:$0xff]
    %v797 = vld [vmem:[#allocation6 + $0x20] sm:$0xff]
    %v798 = vld [vmem:[#allocation6 + $0x28] sm:$0xff]
    %v799 = vld [vmem:[#allocation6 + $0x30] sm:$0xff]
    %v800 = vld [vmem:[#allocation6 + $0x38] sm:$0xff]
    %v801 = vld [vmem:[#allocation6 + $0x40] sm:$0xff]
    %v802 = vld [vmem:[#allocation6 + $0x48] sm:$0xff]
    %v803 = vld [vmem:[#allocation6 + $0x50] sm:$0xff]
    %v804 = vld [vmem:[#allocation6 + $0x58] sm:$0xff]
    %v805 = vld [vmem:[#allocation6 + $0x60] sm:$0xff]
    %v806 = vld [vmem:[#allocation6 + $0x68] sm:$0xff]
    %v807 = vld [vmem:[#allocation6 + $0x70] sm:$0xff]
    %v808 = vld [vmem:[#allocation6 + $0x78] sm:$0xff]
    %v809 = vld [vmem:[#allocation6 + $0x80] sm:$0xff]
    %v810 = vld [vmem:[#allocation6 + $0x88] sm:$0xff]
    %v811 = vld [vmem:[#allocation6 + $0x90] sm:$0xff]
    %v812 = vld [vmem:[#allocation6 + $0x98] sm:$0xff]
    %v813 = vld [vmem:[#allocation6 + $0xa0] sm:$0xff]
    %v814 = vld [vmem:[#allocation6 + $0xa8] sm:$0xff]
    %v815 = vld [vmem:[#allocation6 + $0xb0] sm:$0xff]
    %v816 = vld [vmem:[#allocation6 + $0xb8] sm:$0xff]
    %v817 = vld [vmem:[#allocation6 + $0xc0] sm:$0xff]
    %v818 = vld [vmem:[#allocation6 + $0xc8] sm:$0xff]
    %v819 = vld [vmem:[#allocation6 + $0xd0] sm:$0xff]
    %v820 = vld [vmem:[#allocation6 + $0xd8] sm:$0xff]
    %v821 = vld [vmem:[#allocation6 + $0xe0] sm:$0xff]
    %v822 = vld [vmem:[#allocation6 + $0xe8] sm:$0xff]
    %v823 = vld [vmem:[#allocation6 + $0xf0] sm:$0xff]
    %v824 = vld [vmem:[#allocation6 + $0xf8] sm:$0xff]
    %v857 = vunpack.c.l.b16 %v793
    %v858 = vunpack.c.h.b16 %v793
    %v859 = vunpack.c.l.b16 %v794
    %v860 = vunpack.c.h.b16 %v794
    %v861 = vunpack.c.l.b16 %v795
    %v862 = vunpack.c.h.b16 %v795
    %v863 = vunpack.c.l.b16 %v796
    %v864 = vunpack.c.h.b16 %v796
    %v865 = vunpack.c.l.b16 %v797
    %v866 = vunpack.c.h.b16 %v797
    %v867 = vunpack.c.l.b16 %v798
    %v868 = vunpack.c.h.b16 %v798
    %v869 = vunpack.c.l.b16 %v799
    %v870 = vunpack.c.h.b16 %v799
    %v871 = vunpack.c.l.b16 %v800
    %v872 = vunpack.c.h.b16 %v800
    %v873 = vunpack.c.l.b16 %v801
    %v874 = vunpack.c.h.b16 %v801
    %v875 = vunpack.c.l.b16 %v802
    %v876 = vunpack.c.h.b16 %v802
    %v877 = vunpack.c.l.b16 %v803
    %v878 = vunpack.c.h.b16 %v803
    %v879 = vunpack.c.l.b16 %v804
    %v880 = vunpack.c.h.b16 %v804
    %v881 = vunpack.c.l.b16 %v805
    %v882 = vunpack.c.h.b16 %v805
    %v883 = vunpack.c.l.b16 %v806
    %v884 = vunpack.c.h.b16 %v806
    %v885 = vunpack.c.l.b16 %v807
    %v886 = vunpack.c.h.b16 %v807
    %v887 = vunpack.c.l.b16 %v808
    %v888 = vunpack.c.h.b16 %v808
    %v889 = vunpack.c.l.b16 %v809
    %v890 = vunpack.c.h.b16 %v809
    %v891 = vunpack.c.l.b16 %v810
    %v892 = vunpack.c.h.b16 %v810
    %v893 = vunpack.c.l.b16 %v811
    %v894 = vunpack.c.h.b16 %v811
    %v895 = vunpack.c.l.b16 %v812
    %v896 = vunpack.c.h.b16 %v812
    %v897 = vunpack.c.l.b16 %v813
    %v898 = vunpack.c.h.b16 %v813
    %v899 = vunpack.c.l.b16 %v814
    %v900 = vunpack.c.h.b16 %v814
    %v901 = vunpack.c.l.b16 %v815
    %v902 = vunpack.c.h.b16 %v815
    %v903 = vunpack.c.l.b16 %v816
    %v904 = vunpack.c.h.b16 %v816
    %v905 = vunpack.c.l.b16 %v817
    %v906 = vunpack.c.h.b16 %v817
    %v907 = vunpack.c.l.b16 %v818
    %v908 = vunpack.c.h.b16 %v818
    %v909 = vunpack.c.l.b16 %v819
    %v910 = vunpack.c.h.b16 %v819
    %v911 = vunpack.c.l.b16 %v820
    %v912 = vunpack.c.h.b16 %v820
    %v913 = vunpack.c.l.b16 %v821
    %v914 = vunpack.c.h.b16 %v821
    %v915 = vunpack.c.l.b16 %v822
    %v916 = vunpack.c.h.b16 %v822
    %v917 = vunpack.c.l.b16 %v823
    %v918 = vunpack.c.h.b16 %v823
    %v919 = vunpack.c.l.b16 %v824
    %v920 = vunpack.c.h.b16 %v824
    %v921 = vpack.c.b16 %v861, %v857
    %v922 = vpack.c.b16 %v862, %v858
    %v923 = vpack.c.b16 %v863, %v859
    %v924 = vpack.c.b16 %v864, %v860
    %v925 = vpack.c.b16 %v869, %v865
    %v926 = vpack.c.b16 %v870, %v866
    %v927 = vpack.c.b16 %v871, %v867
    %v928 = vpack.c.b16 %v872, %v868
    %v929 = vpack.c.b16 %v877, %v873
    %v930 = vpack.c.b16 %v878, %v874
    %v931 = vpack.c.b16 %v879, %v875
    %v932 = vpack.c.b16 %v880, %v876
    %v933 = vpack.c.b16 %v885, %v881
    %v934 = vpack.c.b16 %v886, %v882
    %v935 = vpack.c.b16 %v887, %v883
    %v936 = vpack.c.b16 %v888, %v884
    %v937 = vpack.c.b16 %v893, %v889
    %v938 = vpack.c.b16 %v894, %v890
    %v939 = vpack.c.b16 %v895, %v891
    %v940 = vpack.c.b16 %v896, %v892
    %v941 = vpack.c.b16 %v901, %v897
    %v942 = vpack.c.b16 %v902, %v898
    %v943 = vpack.c.b16 %v903, %v899
    %v944 = vpack.c.b16 %v904, %v900
    %v945 = vpack.c.b16 %v909, %v905
    %v946 = vpack.c.b16 %v910, %v906
    %v947 = vpack.c.b16 %v911, %v907
    %v948 = vpack.c.b16 %v912, %v908
    %v949 = vpack.c.b16 %v917, %v913
    %v950 = vpack.c.b16 %v918, %v914
    %v951 = vpack.c.b16 %v919, %v915
    %v952 = vpack.c.b16 %v920, %v916
    %985 = vmatpush.bf16.msra.mxu0 %v949
    %986 = vmatpush.bf16.msra.mxu0 %v945
    %987 = vmatpush.bf16.msra.mxu0 %v941
    %988 = vmatpush.bf16.msra.mxu0 %v937
    %989 = vmatpush.bf16.msra.mxu0 %v933
    %990 = vmatpush.bf16.msra.mxu0 %v929
    %991 = vmatpush.bf16.msra.mxu0 %v925
    %992 = vmatpush.bf16.msra.mxu0 %v921
    %993 = vmatmul.bf16.gmra.mxu0 %v792
    %v994 = vpop.f32.mrf.mxu0
    %v995 = vadd.f32 0.0, %v994
    %v996 = vpop.f32.mrf.mxu0
    %997 = vdwg.mxu0
    %998 = vmatpush.bf16.msra.mxu0 %v950
    %999 = vmatpush.bf16.msra.mxu0 %v946
    %1000 = vmatpush.bf16.msra.mxu0 %v942
    %1001 = vmatpush.bf16.msra.mxu0 %v938
    %1002 = vmatpush.bf16.msra.mxu0 %v934
    %1003 = vmatpush.bf16.msra.mxu0 %v930
    %1004 = vmatpush.bf16.msra.mxu0 %v926
    %1005 = vmatpush.bf16.msra.mxu0 %v922
    %1006 = vmatmul.bf16.gmra.mxu0 %v792
    %v1007 = vpop.f32.mrf.mxu0
    %v1008 = vadd.f32 0.0, %v1007
    %v1009 = vpop.f32.mrf.mxu0
    %1010 = vdwg.mxu0
    %1011 = vmatpush.bf16.msra.mxu0 %v951
    %1012 = vmatpush.bf16.msra.mxu0 %v947
    %1013 = vmatpush.bf16.msra.mxu0 %v943
    %1014 = vmatpush.bf16.msra.mxu0 %v939
    %1015 = vmatpush.bf16.msra.mxu0 %v935
    %1016 = vmatpush.bf16.msra.mxu0 %v931
    %1017 = vmatpush.bf16.msra.mxu0 %v927
    %1018 = vmatpush.bf16.msra.mxu0 %v923
    %1019 = vmatmul.bf16.gmra.mxu0 %v792
    %v1020 = vpop.f32.mrf.mxu0
    %v1021 = vadd.f32 0.0, %v1020
    %v1022 = vpop.f32.mrf.mxu0
    %1023 = vdwg.mxu0
    %1024 = vmatpush.bf16.msra.mxu0 %v952
    %1025 = vmatpush.bf16.msra.mxu0 %v948
    %1026 = vmatpush.bf16.msra.mxu0 %v944
    %1027 = vmatpush.bf16.msra.mxu0 %v940
    %1028 = vmatpush.bf16.msra.mxu0 %v936
    %1029 = vmatpush.bf16.msra.mxu0 %v932
    %1030 = vmatpush.bf16.msra.mxu0 %v928
    %1031 = vmatpush.bf16.msra.mxu0 %v924
    %1032 = vmatmul.bf16.gmra.mxu0 %v792
    %v1033 = vpop.f32.mrf.mxu0
    %v1034 = vadd.f32 0.0, %v1033
    %v1035 = vpop.f32.mrf.mxu0
    %1036 = vdwg.mxu0
    %v1041 = vrot.slane %v995, 6
    %v1042 = vrot.slane %v1008, 6
    %v1043 = vrot.slane %v1021, 6
    %v1044 = vrot.slane %v1034, 6
    %v1049 = vadd.f32 %v788, %v1041
    %v1050 = vadd.f32 %v789, %v1042
    %v1051 = vadd.f32 %v790, %v1043
    %v1052 = vadd.f32 %v791, %v1044
    %v1053 = vld [vmem:[#allocation5 + $0x20] sm:$0x30]
    %v1054 = vld [vmem:[#allocation5 + $0x28] sm:$0x30]
    %v1055 = vld [vmem:[#allocation5 + $0x30] sm:$0x30]
    %v1056 = vld [vmem:[#allocation5 + $0x38] sm:$0x30]
    %v1057 = vpack.c.bf16 %v785, %v785
    %v1058 = vld [vmem:[#allocation6 + $0x100] sm:$0xff]
    %v1059 = vld [vmem:[#allocation6 + $0x108] sm:$0xff]
    %v1060 = vld [vmem:[#allocation6 + $0x110] sm:$0xff]
    %v1061 = vld [vmem:[#allocation6 + $0x118] sm:$0xff]
    %v1062 = vld [vmem:[#allocation6 + $0x120] sm:$0xff]
    %v1063 = vld [vmem:[#allocation6 + $0x128] sm:$0xff]
    %v1064 = vld [vmem:[#allocation6 + $0x130] sm:$0xff]
    %v1065 = vld [vmem:[#allocation6 + $0x138] sm:$0xff]
    %v1066 = vld [vmem:[#allocation6 + $0x140] sm:$0xff]
    %v1067 = vld [vmem:[#allocation6 + $0x148] sm:$0xff]
    %v1068 = vld [vmem:[#allocation6 + $0x150] sm:$0xff]
    %v1069 = vld [vmem:[#allocation6 + $0x158] sm:$0xff]
    %v1070 = vld [vmem:[#allocation6 + $0x160] sm:$0xff]
    %v1071 = vld [vmem:[#allocation6 + $0x168] sm:$0xff]
    %v1072 = vld [vmem:[#allocation6 + $0x170] sm:$0xff]
    %v1073 = vld [vmem:[#allocation6 + $0x178] sm:$0xff]
    %v1074 = vld [vmem:[#allocation6 + $0x180] sm:$0xff]
    %v1075 = vld [vmem:[#allocation6 + $0x188] sm:$0xff]
    %v1076 = vld [vmem:[#allocation6 + $0x190] sm:$0xff]
    %v1077 = vld [vmem:[#allocation6 + $0x198] sm:$0xff]
    %v1078 = vld [vmem:[#allocation6 + $0x1a0] sm:$0xff]
    %v1079 = vld [vmem:[#allocation6 + $0x1a8] sm:$0xff]
    %v1080 = vld [vmem:[#allocation6 + $0x1b0] sm:$0xff]
    %v1081 = vld [vmem:[#allocation6 + $0x1b8] sm:$0xff]
    %v1082 = vld [vmem:[#allocation6 + $0x1c0] sm:$0xff]
    %v1083 = vld [vmem:[#allocation6 + $0x1c8] sm:$0xff]
    %v1084 = vld [vmem:[#allocation6 + $0x1d0] sm:$0xff]
    %v1085 = vld [vmem:[#allocation6 + $0x1d8] sm:$0xff]
    %v1086 = vld [vmem:[#allocation6 + $0x1e0] sm:$0xff]
    %v1087 = vld [vmem:[#allocation6 + $0x1e8] sm:$0xff]
    %v1088 = vld [vmem:[#allocation6 + $0x1f0] sm:$0xff]
    %v1089 = vld [vmem:[#allocation6 + $0x1f8] sm:$0xff]
    %v1091 = vrot.slane %v1057, 3
    %v1125 = vunpack.c.l.b16 %v1058
    %v1126 = vunpack.c.h.b16 %v1058
    %v1127 = vunpack.c.l.b16 %v1059
    %v1128 = vunpack.c.h.b16 %v1059
    %v1129 = vunpack.c.l.b16 %v1060
    %v1130 = vunpack.c.h.b16 %v1060
    %v1131 = vunpack.c.l.b16 %v1061
    %v1132 = vunpack.c.h.b16 %v1061
    %v1133 = vunpack.c.l.b16 %v1062
    %v1134 = vunpack.c.h.b16 %v1062
    %v1135 = vunpack.c.l.b16 %v1063
    %v1136 = vunpack.c.h.b16 %v1063
    %v1137 = vunpack.c.l.b16 %v1064
    %v1138 = vunpack.c.h.b16 %v1064
    %v1139 = vunpack.c.l.b16 %v1065
    %v1140 = vunpack.c.h.b16 %v1065
    %v1141 = vunpack.c.l.b16 %v1066
    %v1142 = vunpack.c.h.b16 %v1066
    %v1143 = vunpack.c.l.b16 %v1067
    %v1144 = vunpack.c.h.b16 %v1067
    %v1145 = vunpack.c.l.b16 %v1068
    %v1146 = vunpack.c.h.b16 %v1068
    %v1147 = vunpack.c.l.b16 %v1069
    %v1148 = vunpack.c.h.b16 %v1069
    %v1149 = vunpack.c.l.b16 %v1070
    %v1150 = vunpack.c.h.b16 %v1070
    %v1151 = vunpack.c.l.b16 %v1071
    %v1152 = vunpack.c.h.b16 %v1071
    %v1153 = vunpack.c.l.b16 %v1072
    %v1154 = vunpack.c.h.b16 %v1072
    %v1155 = vunpack.c.l.b16 %v1073
    %v1156 = vunpack.c.h.b16 %v1073
    %v1157 = vunpack.c.l.b16 %v1074
    %v1158 = vunpack.c.h.b16 %v1074
    %v1159 = vunpack.c.l.b16 %v1075
    %v1160 = vunpack.c.h.b16 %v1075
    %v1161 = vunpack.c.l.b16 %v1076
    %v1162 = vunpack.c.h.b16 %v1076
    %v1163 = vunpack.c.l.b16 %v1077
    %v1164 = vunpack.c.h.b16 %v1077
    %v1165 = vunpack.c.l.b16 %v1078
    %v1166 = vunpack.c.h.b16 %v1078
    %v1167 = vunpack.c.l.b16 %v1079
    %v1168 = vunpack.c.h.b16 %v1079
    %v1169 = vunpack.c.l.b16 %v1080
    %v1170 = vunpack.c.h.b16 %v1080
    %v1171 = vunpack.c.l.b16 %v1081
    %v1172 = vunpack.c.h.b16 %v1081
    %v1173 = vunpack.c.l.b16 %v1082
    %v1174 = vunpack.c.h.b16 %v1082
    %v1175 = vunpack.c.l.b16 %v1083
    %v1176 = vunpack.c.h.b16 %v1083
    %v1177 = vunpack.c.l.b16 %v1084
    %v1178 = vunpack.c.h.b16 %v1084
    %v1179 = vunpack.c.l.b16 %v1085
    %v1180 = vunpack.c.h.b16 %v1085
    %v1181 = vunpack.c.l.b16 %v1086
    %v1182 = vunpack.c.h.b16 %v1086
    %v1183 = vunpack.c.l.b16 %v1087
    %v1184 = vunpack.c.h.b16 %v1087
    %v1185 = vunpack.c.l.b16 %v1088
    %v1186 = vunpack.c.h.b16 %v1088
    %v1187 = vunpack.c.l.b16 %v1089
    %v1188 = vunpack.c.h.b16 %v1089
    %v1189 = vpack.c.b16 %v1129, %v1125
    %v1190 = vpack.c.b16 %v1130, %v1126
    %v1191 = vpack.c.b16 %v1131, %v1127
    %v1192 = vpack.c.b16 %v1132, %v1128
    %v1193 = vpack.c.b16 %v1137, %v1133
    %v1194 = vpack.c.b16 %v1138, %v1134
    %v1195 = vpack.c.b16 %v1139, %v1135
    %v1196 = vpack.c.b16 %v1140, %v1136
    %v1197 = vpack.c.b16 %v1145, %v1141
    %v1198 = vpack.c.b16 %v1146, %v1142
    %v1199 = vpack.c.b16 %v1147, %v1143
    %v1200 = vpack.c.b16 %v1148, %v1144
    %v1201 = vpack.c.b16 %v1153, %v1149
    %v1202 = vpack.c.b16 %v1154, %v1150
    %v1203 = vpack.c.b16 %v1155, %v1151
    %v1204 = vpack.c.b16 %v1156, %v1152
    %v1205 = vpack.c.b16 %v1161, %v1157
    %v1206 = vpack.c.b16 %v1162, %v1158
    %v1207 = vpack.c.b16 %v1163, %v1159
    %v1208 = vpack.c.b16 %v1164, %v1160
    %v1209 = vpack.c.b16 %v1169, %v1165
    %v1210 = vpack.c.b16 %v1170, %v1166
    %v1211 = vpack.c.b16 %v1171, %v1167
    %v1212 = vpack.c.b16 %v1172, %v1168
    %v1213 = vpack.c.b16 %v1177, %v1173
    %v1214 = vpack.c.b16 %v1178, %v1174
    %v1215 = vpack.c.b16 %v1179, %v1175
    %v1216 = vpack.c.b16 %v1180, %v1176
    %v1217 = vpack.c.b16 %v1185, %v1181
    %v1218 = vpack.c.b16 %v1186, %v1182
    %v1219 = vpack.c.b16 %v1187, %v1183
    %v1220 = vpack.c.b16 %v1188, %v1184
    %1253 = vmatpush.bf16.msra.mxu0 %v1217
    %1254 = vmatpush.bf16.msra.mxu0 %v1213
    %1255 = vmatpush.bf16.msra.mxu0 %v1209
    %1256 = vmatpush.bf16.msra.mxu0 %v1205
    %1257 = vmatpush.bf16.msra.mxu0 %v1201
    %1258 = vmatpush.bf16.msra.mxu0 %v1197
    %1259 = vmatpush.bf16.msra.mxu0 %v1193
    %1260 = vmatpush.bf16.msra.mxu0 %v1189
    %1261 = vmatmul.bf16.gmra.mxu0 %v1091
    %v1262 = vpop.f32.mrf.mxu0
    %v1263 = vadd.f32 0.0, %v1262
    %v1264 = vpop.f32.mrf.mxu0
    %1265 = vdwg.mxu0
    %1266 = vmatpush.bf16.msra.mxu0 %v1218
    %1267 = vmatpush.bf16.msra.mxu0 %v1214
    %1268 = vmatpush.bf16.msra.mxu0 %v1210
    %1269 = vmatpush.bf16.msra.mxu0 %v1206
    %1270 = vmatpush.bf16.msra.mxu0 %v1202
    %1271 = vmatpush.bf16.msra.mxu0 %v1198
    %1272 = vmatpush.bf16.msra.mxu0 %v1194
    %1273 = vmatpush.bf16.msra.mxu0 %v1190
    %1274 = vmatmul.bf16.gmra.mxu0 %v1091
    %v1275 = vpop.f32.mrf.mxu0
    %v1276 = vadd.f32 0.0, %v1275
    %v1277 = vpop.f32.mrf.mxu0
    %1278 = vdwg.mxu0
    %1279 = vmatpush.bf16.msra.mxu0 %v1219
    %1280 = vmatpush.bf16.msra.mxu0 %v1215
    %1281 = vmatpush.bf16.msra.mxu0 %v1211
    %1282 = vmatpush.bf16.msra.mxu0 %v1207
    %1283 = vmatpush.bf16.msra.mxu0 %v1203
    %1284 = vmatpush.bf16.msra.mxu0 %v1199
    %1285 = vmatpush.bf16.msra.mxu0 %v1195
    %1286 = vmatpush.bf16.msra.mxu0 %v1191
    %1287 = vmatmul.bf16.gmra.mxu0 %v1091
    %v1288 = vpop.f32.mrf.mxu0
    %v1289 = vadd.f32 0.0, %v1288
    %v1290 = vpop.f32.mrf.mxu0
    %1291 = vdwg.mxu0
    %1292 = vmatpush.bf16.msra.mxu0 %v1220
    %1293 = vmatpush.bf16.msra.mxu0 %v1216
    %1294 = vmatpush.bf16.msra.mxu0 %v1212
    %1295 = vmatpush.bf16.msra.mxu0 %v1208
    %1296 = vmatpush.bf16.msra.mxu0 %v1204
    %1297 = vmatpush.bf16.msra.mxu0 %v1200
    %1298 = vmatpush.bf16.msra.mxu0 %v1196
    %1299 = vmatpush.bf16.msra.mxu0 %v1192
    %1300 = vmatmul.bf16.gmra.mxu0 %v1091
    %v1301 = vpop.f32.mrf.mxu0
    %v1302 = vadd.f32 0.0, %v1301
    %v1303 = vpop.f32.mrf.mxu0
    %1304 = vdwg.mxu0
    %v1309 = vrot.slane %v1263, 4
    %v1310 = vrot.slane %v1276, 4
    %v1311 = vrot.slane %v1289, 4
    %v1312 = vrot.slane %v1302, 4
    %v1317 = vadd.f32 %v1053, %v1309
    %v1318 = vadd.f32 %v1054, %v1310
    %v1319 = vadd.f32 %v1055, %v1311
    %v1320 = vadd.f32 %v1056, %v1312
    %v1321 = vxor.u32 %v1049, 2147483648
    %v1322 = vxor.u32 %v1050, 2147483648
    %v1323 = vxor.u32 %v1051, 2147483648
    %v1324 = vmul.f32 %v1321, 1.442695
    %v1325 = vpow.pop %v1324
    %v1326 = vmul.f32 %v1322, 1.442695
    %v1327 = vpow.pop %v1326
    %v1328 = vmul.f32 %v1323, 1.442695
    %v1329 = vpow.pop %v1328
    %v1330 = vadd.f32 %v1325, 1.0
    %v1331 = vadd.f32 %v1327, 1.0
    %v1332 = vadd.f32 %v1329, 1.0
    %v1333 = vrcp.pop %v1330
    %v1334 = vmul.f32 %v1330, %v1333
    %v1335 = vsub.f32 1.0, %v1334
    %v1336 = vmul.f32 %v1333, %v1335
    %v1337 = vadd.f32 %v1333, %v1336
    %vm1338 = vweird.f32 %v1330
    %vm1339 = vweird.f32 %v1333
    %vm1340 = vmor %vm1338, %vm1339
    %v1341 = vsel %vm1340, %v1333, %v1337
    %v1342 = vand.u32 2147483647, %v1330
    %vm1343 = vcmp.eq.f32.partialorder %v1342, 8.507059e+37
    %v1344 = vand.u32 %v1330, 2147483648
    %v1345 = vor.u32 1.1754944e-38, %v1344
    %v1346 = vsel %vm1343, %v1345, %v1341
    %v1347 = vmul.f32 1.0, %v1346
    %v1348 = vrcp.pop %v1331
    %v1349 = vmul.f32 %v1331, %v1348
    %v1350 = vsub.f32 1.0, %v1349
    %v1351 = vmul.f32 %v1348, %v1350
    %v1352 = vadd.f32 %v1348, %v1351
    %vm1353 = vweird.f32 %v1331
    %vm1354 = vweird.f32 %v1348
    %vm1355 = vmor %vm1353, %vm1354
    %v1356 = vsel %vm1355, %v1348, %v1352
    %v1357 = vand.u32 2147483647, %v1331
    %vm1358 = vcmp.eq.f32.partialorder %v1357, 8.507059e+37
    %v1359 = vand.u32 %v1331, 2147483648
    %v1360 = vor.u32 1.1754944e-38, %v1359
    %v1361 = vsel %vm1358, %v1360, %v1356
    %v1362 = vmul.f32 1.0, %v1361
    %v1363 = vrcp.pop %v1332
    %v1364 = vmul.f32 %v1332, %v1363
    %v1365 = vsub.f32 1.0, %v1364
    %v1366 = vmul.f32 %v1363, %v1365
    %v1367 = vadd.f32 %v1363, %v1366
    %vm1368 = vweird.f32 %v1332
    %vm1369 = vweird.f32 %v1363
    %vm1370 = vmor %vm1368, %vm1369
    %v1371 = vsel %vm1370, %v1363, %v1367
    %v1372 = vand.u32 2147483647, %v1332
    %vm1373 = vcmp.eq.f32.partialorder %v1372, 8.507059e+37
    %v1374 = vand.u32 %v1332, 2147483648
    %v1375 = vor.u32 1.1754944e-38, %v1374
    %v1376 = vsel %vm1373, %v1375, %v1371
    %v1377 = vmul.f32 1.0, %v1376
    %v1378 = vtanh.pop %v1052
    %v1380 = vrot.slane %v717, 6
    %v1382 = vmul.f32 %v1362, %v1380
    %v1383 = vmul.f32 %v1347, %v1378
    %v1384 = vadd.f32 %v1382, %v1383
    %v1385 = vtanh.pop %v1384
    %v1386 = vmul.f32 %v1377, %v1385
    %v1387 = vxor.u32 %v1317, 2147483648
    %v1388 = vxor.u32 %v1318, 2147483648
    %v1389 = vxor.u32 %v1319, 2147483648
    %v1390 = vmul.f32 %v1387, 1.442695
    %v1391 = vpow.pop %v1390
    %v1392 = vmul.f32 %v1388, 1.442695
    %v1393 = vpow.pop %v1392
    %v1394 = vmul.f32 %v1389, 1.442695
    %v1395 = vpow.pop %v1394
    %v1396 = vadd.f32 %v1391, 1.0
    %v1397 = vadd.f32 %v1393, 1.0
    %v1398 = vadd.f32 %v1395, 1.0
    %v1399 = vrcp.pop %v1396
    %v1400 = vmul.f32 %v1396, %v1399
    %v1401 = vsub.f32 1.0, %v1400
    %v1402 = vmul.f32 %v1399, %v1401
    %v1403 = vadd.f32 %v1399, %v1402
    %vm1404 = vweird.f32 %v1396
    %vm1405 = vweird.f32 %v1399
    %vm1406 = vmor %vm1404, %vm1405
    %v1407 = vsel %vm1406, %v1399, %v1403
    %v1408 = vand.u32 2147483647, %v1396
    %vm1409 = vcmp.eq.f32.partialorder %v1408, 8.507059e+37
    %v1410 = vand.u32 %v1396, 2147483648
    %v1411 = vor.u32 1.1754944e-38, %v1410
    %v1412 = vsel %vm1409, %v1411, %v1407
    %v1413 = vmul.f32 1.0, %v1412
    %v1414 = vrcp.pop %v1397
    %v1415 = vmul.f32 %v1397, %v1414
    %v1416 = vsub.f32 1.0, %v1415
    %v1417 = vmul.f32 %v1414, %v1416
    %v1418 = vadd.f32 %v1414, %v1417
    %vm1419 = vweird.f32 %v1397
    %vm1420 = vweird.f32 %v1414
    %vm1421 = vmor %vm1419, %vm1420
    %v1422 = vsel %vm1421, %v1414, %v1418
    %v1423 = vand.u32 2147483647, %v1397
    %vm1424 = vcmp.eq.f32.partialorder %v1423, 8.507059e+37
    %v1425 = vand.u32 %v1397, 2147483648
    %v1426 = vor.u32 1.1754944e-38, %v1425
    %v1427 = vsel %vm1424, %v1426, %v1422
    %v1428 = vmul.f32 1.0, %v1427
    %v1429 = vrcp.pop %v1398
    %v1430 = vmul.f32 %v1398, %v1429
    %v1431 = vsub.f32 1.0, %v1430
    %v1432 = vmul.f32 %v1429, %v1431
    %v1433 = vadd.f32 %v1429, %v1432
    %vm1434 = vweird.f32 %v1398
    %vm1435 = vweird.f32 %v1429
    %vm1436 = vmor %vm1434, %vm1435
    %v1437 = vsel %vm1436, %v1429, %v1433
    %v1438 = vand.u32 2147483647, %v1398
    %vm1439 = vcmp.eq.f32.partialorder %v1438, 8.507059e+37
    %v1440 = vand.u32 %v1398, 2147483648
    %v1441 = vor.u32 1.1754944e-38, %v1440
    %v1442 = vsel %vm1439, %v1441, %v1437
    %v1443 = vmul.f32 1.0, %v1442
    %v1444 = vtanh.pop %v1320
    %v1446 = vrot.slane %v783, 2
    %v1448 = vmul.f32 %v1428, %v1446
    %v1449 = vmul.f32 %v1413, %v1444
    %v1450 = vadd.f32 %v1448, %v1449
    %v1451 = vtanh.pop %v1450
    %v1452 = vmul.f32 %v1443, %v1451
    %1453 = vst [vmem:[%s5] sm:$0xc] %v1386
    %1454 = vst [vmem:[%s124 + $0x8] sm:$0x30] %v1452
    %v1455 = vld [vmem:[#allocation4] sm:$0x30]
    %v1456 = vld [vmem:[#allocation4 + $0x8] sm:$0x30]
    %v1457 = vld [vmem:[#allocation4 + $0x10] sm:$0x30]
    %v1458 = vld [vmem:[#allocation4 + $0x18] sm:$0x30]
    %v1459 = vpack.c.bf16 %v1386, %v1386
    %v1460 = vld [vmem:[#allocation6] sm:$0xff]
    %v1461 = vld [vmem:[#allocation6 + $0x8] sm:$0xff]
    %v1462 = vld [vmem:[#allocation6 + $0x10] sm:$0xff]
    %v1463 = vld [vmem:[#allocation6 + $0x18] sm:$0xff]
    %v1464 = vld [vmem:[#allocation6 + $0x20] sm:$0xff]
    %v1465 = vld [vmem:[#allocation6 + $0x28] sm:$0xff]
    %v1466 = vld [vmem:[#allocation6 + $0x30] sm:$0xff]
    %v1467 = vld [vmem:[#allocation6 + $0x38] sm:$0xff]
    %v1468 = vld [vmem:[#allocation6 + $0x40] sm:$0xff]
    %v1469 = vld [vmem:[#allocation6 + $0x48] sm:$0xff]
    %v1470 = vld [vmem:[#allocation6 + $0x50] sm:$0xff]
    %v1471 = vld [vmem:[#allocation6 + $0x58] sm:$0xff]
    %v1472 = vld [vmem:[#allocation6 + $0x60] sm:$0xff]
    %v1473 = vld [vmem:[#allocation6 + $0x68] sm:$0xff]
    %v1474 = vld [vmem:[#allocation6 + $0x70] sm:$0xff]
    %v1475 = vld [vmem:[#allocation6 + $0x78] sm:$0xff]
    %v1476 = vld [vmem:[#allocation6 + $0x80] sm:$0xff]
    %v1477 = vld [vmem:[#allocation6 + $0x88] sm:$0xff]
    %v1478 = vld [vmem:[#allocation6 + $0x90] sm:$0xff]
    %v1479 = vld [vmem:[#allocation6 + $0x98] sm:$0xff]
    %v1480 = vld [vmem:[#allocation6 + $0xa0] sm:$0xff]
    %v1481 = vld [vmem:[#allocation6 + $0xa8] sm:$0xff]
    %v1482 = vld [vmem:[#allocation6 + $0xb0] sm:$0xff]
    %v1483 = vld [vmem:[#allocation6 + $0xb8] sm:$0xff]
    %v1484 = vld [vmem:[#allocation6 + $0xc0] sm:$0xff]
    %v1485 = vld [vmem:[#allocation6 + $0xc8] sm:$0xff]
    %v1486 = vld [vmem:[#allocation6 + $0xd0] sm:$0xff]
    %v1487 = vld [vmem:[#allocation6 + $0xd8] sm:$0xff]
    %v1488 = vld [vmem:[#allocation6 + $0xe0] sm:$0xff]
    %v1489 = vld [vmem:[#allocation6 + $0xe8] sm:$0xff]
    %v1490 = vld [vmem:[#allocation6 + $0xf0] sm:$0xff]
    %v1491 = vld [vmem:[#allocation6 + $0xf8] sm:$0xff]
    %v1493 = vrot.slane %v1459, 1
    %v1527 = vunpack.c.l.b16 %v1460
    %v1528 = vunpack.c.h.b16 %v1460
    %v1529 = vunpack.c.l.b16 %v1461
    %v1530 = vunpack.c.h.b16 %v1461
    %v1531 = vunpack.c.l.b16 %v1462
    %v1532 = vunpack.c.h.b16 %v1462
    %v1533 = vunpack.c.l.b16 %v1463
    %v1534 = vunpack.c.h.b16 %v1463
    %v1535 = vunpack.c.l.b16 %v1464
    %v1536 = vunpack.c.h.b16 %v1464
    %v1537 = vunpack.c.l.b16 %v1465
    %v1538 = vunpack.c.h.b16 %v1465
    %v1539 = vunpack.c.l.b16 %v1466
    %v1540 = vunpack.c.h.b16 %v1466
    %v1541 = vunpack.c.l.b16 %v1467
    %v1542 = vunpack.c.h.b16 %v1467
    %v1543 = vunpack.c.l.b16 %v1468
    %v1544 = vunpack.c.h.b16 %v1468
    %v1545 = vunpack.c.l.b16 %v1469
    %v1546 = vunpack.c.h.b16 %v1469
    %v1547 = vunpack.c.l.b16 %v1470
    %v1548 = vunpack.c.h.b16 %v1470
    %v1549 = vunpack.c.l.b16 %v1471
    %v1550 = vunpack.c.h.b16 %v1471
    %v1551 = vunpack.c.l.b16 %v1472
    %v1552 = vunpack.c.h.b16 %v1472
    %v1553 = vunpack.c.l.b16 %v1473
    %v1554 = vunpack.c.h.b16 %v1473
    %v1555 = vunpack.c.l.b16 %v1474
    %v1556 = vunpack.c.h.b16 %v1474
    %v1557 = vunpack.c.l.b16 %v1475
    %v1558 = vunpack.c.h.b16 %v1475
    %v1559 = vunpack.c.l.b16 %v1476
    %v1560 = vunpack.c.h.b16 %v1476
    %v1561 = vunpack.c.l.b16 %v1477
    %v1562 = vunpack.c.h.b16 %v1477
    %v1563 = vunpack.c.l.b16 %v1478
    %v1564 = vunpack.c.h.b16 %v1478
    %v1565 = vunpack.c.l.b16 %v1479
    %v1566 = vunpack.c.h.b16 %v1479
    %v1567 = vunpack.c.l.b16 %v1480
    %v1568 = vunpack.c.h.b16 %v1480
    %v1569 = vunpack.c.l.b16 %v1481
    %v1570 = vunpack.c.h.b16 %v1481
    %v1571 = vunpack.c.l.b16 %v1482
    %v1572 = vunpack.c.h.b16 %v1482
    %v1573 = vunpack.c.l.b16 %v1483
    %v1574 = vunpack.c.h.b16 %v1483
    %v1575 = vunpack.c.l.b16 %v1484
    %v1576 = vunpack.c.h.b16 %v1484
    %v1577 = vunpack.c.l.b16 %v1485
    %v1578 = vunpack.c.h.b16 %v1485
    %v1579 = vunpack.c.l.b16 %v1486
    %v1580 = vunpack.c.h.b16 %v1486
    %v1581 = vunpack.c.l.b16 %v1487
    %v1582 = vunpack.c.h.b16 %v1487
    %v1583 = vunpack.c.l.b16 %v1488
    %v1584 = vunpack.c.h.b16 %v1488
    %v1585 = vunpack.c.l.b16 %v1489
    %v1586 = vunpack.c.h.b16 %v1489
    %v1587 = vunpack.c.l.b16 %v1490
    %v1588 = vunpack.c.h.b16 %v1490
    %v1589 = vunpack.c.l.b16 %v1491
    %v1590 = vunpack.c.h.b16 %v1491
    %v1591 = vpack.c.b16 %v1531, %v1527
    %v1592 = vpack.c.b16 %v1532, %v1528
    %v1593 = vpack.c.b16 %v1533, %v1529
    %v1594 = vpack.c.b16 %v1534, %v1530
    %v1595 = vpack.c.b16 %v1539, %v1535
    %v1596 = vpack.c.b16 %v1540, %v1536
    %v1597 = vpack.c.b16 %v1541, %v1537
    %v1598 = vpack.c.b16 %v1542, %v1538
    %v1599 = vpack.c.b16 %v1547, %v1543
    %v1600 = vpack.c.b16 %v1548, %v1544
    %v1601 = vpack.c.b16 %v1549, %v1545
    %v1602 = vpack.c.b16 %v1550, %v1546
    %v1603 = vpack.c.b16 %v1555, %v1551
    %v1604 = vpack.c.b16 %v1556, %v1552
    %v1605 = vpack.c.b16 %v1557, %v1553
    %v1606 = vpack.c.b16 %v1558, %v1554
    %v1607 = vpack.c.b16 %v1563, %v1559
    %v1608 = vpack.c.b16 %v1564, %v1560
    %v1609 = vpack.c.b16 %v1565, %v1561
    %v1610 = vpack.c.b16 %v1566, %v1562
    %v1611 = vpack.c.b16 %v1571, %v1567
    %v1612 = vpack.c.b16 %v1572, %v1568
    %v1613 = vpack.c.b16 %v1573, %v1569
    %v1614 = vpack.c.b16 %v1574, %v1570
    %v1615 = vpack.c.b16 %v1579, %v1575
    %v1616 = vpack.c.b16 %v1580, %v1576
    %v1617 = vpack.c.b16 %v1581, %v1577
    %v1618 = vpack.c.b16 %v1582, %v1578
    %v1619 = vpack.c.b16 %v1587, %v1583
    %v1620 = vpack.c.b16 %v1588, %v1584
    %v1621 = vpack.c.b16 %v1589, %v1585
    %v1622 = vpack.c.b16 %v1590, %v1586
    %1655 = vmatpush.bf16.msra.mxu0 %v1619
    %1656 = vmatpush.bf16.msra.mxu0 %v1615
    %1657 = vmatpush.bf16.msra.mxu0 %v1611
    %1658 = vmatpush.bf16.msra.mxu0 %v1607
    %1659 = vmatpush.bf16.msra.mxu0 %v1603
    %1660 = vmatpush.bf16.msra.mxu0 %v1599
    %1661 = vmatpush.bf16.msra.mxu0 %v1595
    %1662 = vmatpush.bf16.msra.mxu0 %v1591
    %1663 = vmatmul.bf16.gmra.mxu0 %v1493
    %v1664 = vpop.f32.mrf.mxu0
    %v1665 = vadd.f32 0.0, %v1664
    %v1666 = vpop.f32.mrf.mxu0
    %1667 = vdwg.mxu0
    %1668 = vmatpush.bf16.msra.mxu0 %v1620
    %1669 = vmatpush.bf16.msra.mxu0 %v1616
    %1670 = vmatpush.bf16.msra.mxu0 %v1612
    %1671 = vmatpush.bf16.msra.mxu0 %v1608
    %1672 = vmatpush.bf16.msra.mxu0 %v1604
    %1673 = vmatpush.bf16.msra.mxu0 %v1600
    %1674 = vmatpush.bf16.msra.mxu0 %v1596
    %1675 = vmatpush.bf16.msra.mxu0 %v1592
    %1676 = vmatmul.bf16.gmra.mxu0 %v1493
    %v1677 = vpop.f32.mrf.mxu0
    %v1678 = vadd.f32 0.0, %v1677
    %v1679 = vpop.f32.mrf.mxu0
    %1680 = vdwg.mxu0
    %1681 = vmatpush.bf16.msra.mxu0 %v1621
    %1682 = vmatpush.bf16.msra.mxu0 %v1617
    %1683 = vmatpush.bf16.msra.mxu0 %v1613
    %1684 = vmatpush.bf16.msra.mxu0 %v1609
    %1685 = vmatpush.bf16.msra.mxu0 %v1605
    %1686 = vmatpush.bf16.msra.mxu0 %v1601
    %1687 = vmatpush.bf16.msra.mxu0 %v1597
    %1688 = vmatpush.bf16.msra.mxu0 %v1593
    %1689 = vmatmul.bf16.gmra.mxu0 %v1493
    %v1690 = vpop.f32.mrf.mxu0
    %v1691 = vadd.f32 0.0, %v1690
    %v1692 = vpop.f32.mrf.mxu0
    %1693 = vdwg.mxu0
    %1694 = vmatpush.bf16.msra.mxu0 %v1622
    %1695 = vmatpush.bf16.msra.mxu0 %v1618
    %1696 = vmatpush.bf16.msra.mxu0 %v1614
    %1697 = vmatpush.bf16.msra.mxu0 %v1610
    %1698 = vmatpush.bf16.msra.mxu0 %v1606
    %1699 = vmatpush.bf16.msra.mxu0 %v1602
    %1700 = vmatpush.bf16.msra.mxu0 %v1598
    %1701 = vmatpush.bf16.msra.mxu0 %v1594
    %1702 = vmatmul.bf16.gmra.mxu0 %v1493
    %v1703 = vpop.f32.mrf.mxu0
    %v1704 = vadd.f32 0.0, %v1703
    %v1705 = vpop.f32.mrf.mxu0
    %1706 = vdwg.mxu0
    %v1711 = vrot.slane %v1665, 4
    %v1712 = vrot.slane %v1678, 4
    %v1713 = vrot.slane %v1691, 4
    %v1714 = vrot.slane %v1704, 4
    %v1719 = vadd.f32 %v1455, %v1711
    %v1720 = vadd.f32 %v1456, %v1712
    %v1721 = vadd.f32 %v1457, %v1713
    %v1722 = vadd.f32 %v1458, %v1714
    %v1723 = vld [vmem:[#allocation5 + $0x20] sm:$0xc]
    %v1724 = vld [vmem:[#allocation5 + $0x28] sm:$0xc]
    %v1725 = vld [vmem:[#allocation5 + $0x30] sm:$0xc]
    %v1726 = vld [vmem:[#allocation5 + $0x38] sm:$0xc]
    %v1727 = vpack.c.bf16 %v1452, %v1452
    %v1728 = vld [vmem:[#allocation6 + $0x100] sm:$0xff]
    %v1729 = vld [vmem:[#allocation6 + $0x108] sm:$0xff]
    %v1730 = vld [vmem:[#allocation6 + $0x110] sm:$0xff]
    %v1731 = vld [vmem:[#allocation6 + $0x118] sm:$0xff]
    %v1732 = vld [vmem:[#allocation6 + $0x120] sm:$0xff]
    %v1733 = vld [vmem:[#allocation6 + $0x128] sm:$0xff]
    %v1734 = vld [vmem:[#allocation6 + $0x130] sm:$0xff]
    %v1735 = vld [vmem:[#allocation6 + $0x138] sm:$0xff]
    %v1736 = vld [vmem:[#allocation6 + $0x140] sm:$0xff]
    %v1737 = vld [vmem:[#allocation6 + $0x148] sm:$0xff]
    %v1738 = vld [vmem:[#allocation6 + $0x150] sm:$0xff]
    %v1739 = vld [vmem:[#allocation6 + $0x158] sm:$0xff]
    %v1740 = vld [vmem:[#allocation6 + $0x160] sm:$0xff]
    %v1741 = vld [vmem:[#allocation6 + $0x168] sm:$0xff]
    %v1742 = vld [vmem:[#allocation6 + $0x170] sm:$0xff]
    %v1743 = vld [vmem:[#allocation6 + $0x178] sm:$0xff]
    %v1744 = vld [vmem:[#allocation6 + $0x180] sm:$0xff]
    %v1745 = vld [vmem:[#allocation6 + $0x188] sm:$0xff]
    %v1746 = vld [vmem:[#allocation6 + $0x190] sm:$0xff]
    %v1747 = vld [vmem:[#allocation6 + $0x198] sm:$0xff]
    %v1748 = vld [vmem:[#allocation6 + $0x1a0] sm:$0xff]
    %v1749 = vld [vmem:[#allocation6 + $0x1a8] sm:$0xff]
    %v1750 = vld [vmem:[#allocation6 + $0x1b0] sm:$0xff]
    %v1751 = vld [vmem:[#allocation6 + $0x1b8] sm:$0xff]
    %v1752 = vld [vmem:[#allocation6 + $0x1c0] sm:$0xff]
    %v1753 = vld [vmem:[#allocation6 + $0x1c8] sm:$0xff]
    %v1754 = vld [vmem:[#allocation6 + $0x1d0] sm:$0xff]
    %v1755 = vld [vmem:[#allocation6 + $0x1d8] sm:$0xff]
    %v1756 = vld [vmem:[#allocation6 + $0x1e0] sm:$0xff]
    %v1757 = vld [vmem:[#allocation6 + $0x1e8] sm:$0xff]
    %v1758 = vld [vmem:[#allocation6 + $0x1f0] sm:$0xff]
    %v1759 = vld [vmem:[#allocation6 + $0x1f8] sm:$0xff]
    %v1761 = vrot.slane %v1727, 2
    %v1795 = vunpack.c.l.b16 %v1728
    %v1796 = vunpack.c.h.b16 %v1728
    %v1797 = vunpack.c.l.b16 %v1729
    %v1798 = vunpack.c.h.b16 %v1729
    %v1799 = vunpack.c.l.b16 %v1730
    %v1800 = vunpack.c.h.b16 %v1730
    %v1801 = vunpack.c.l.b16 %v1731
    %v1802 = vunpack.c.h.b16 %v1731
    %v1803 = vunpack.c.l.b16 %v1732
    %v1804 = vunpack.c.h.b16 %v1732
    %v1805 = vunpack.c.l.b16 %v1733
    %v1806 = vunpack.c.h.b16 %v1733
    %v1807 = vunpack.c.l.b16 %v1734
    %v1808 = vunpack.c.h.b16 %v1734
    %v1809 = vunpack.c.l.b16 %v1735
    %v1810 = vunpack.c.h.b16 %v1735
    %v1811 = vunpack.c.l.b16 %v1736
    %v1812 = vunpack.c.h.b16 %v1736
    %v1813 = vunpack.c.l.b16 %v1737
    %v1814 = vunpack.c.h.b16 %v1737
    %v1815 = vunpack.c.l.b16 %v1738
    %v1816 = vunpack.c.h.b16 %v1738
    %v1817 = vunpack.c.l.b16 %v1739
    %v1818 = vunpack.c.h.b16 %v1739
    %v1819 = vunpack.c.l.b16 %v1740
    %v1820 = vunpack.c.h.b16 %v1740
    %v1821 = vunpack.c.l.b16 %v1741
    %v1822 = vunpack.c.h.b16 %v1741
    %v1823 = vunpack.c.l.b16 %v1742
    %v1824 = vunpack.c.h.b16 %v1742
    %v1825 = vunpack.c.l.b16 %v1743
    %v1826 = vunpack.c.h.b16 %v1743
    %v1827 = vunpack.c.l.b16 %v1744
    %v1828 = vunpack.c.h.b16 %v1744
    %v1829 = vunpack.c.l.b16 %v1745
    %v1830 = vunpack.c.h.b16 %v1745
    %v1831 = vunpack.c.l.b16 %v1746
    %v1832 = vunpack.c.h.b16 %v1746
    %v1833 = vunpack.c.l.b16 %v1747
    %v1834 = vunpack.c.h.b16 %v1747
    %v1835 = vunpack.c.l.b16 %v1748
    %v1836 = vunpack.c.h.b16 %v1748
    %v1837 = vunpack.c.l.b16 %v1749
    %v1838 = vunpack.c.h.b16 %v1749
    %v1839 = vunpack.c.l.b16 %v1750
    %v1840 = vunpack.c.h.b16 %v1750
    %v1841 = vunpack.c.l.b16 %v1751
    %v1842 = vunpack.c.h.b16 %v1751
    %v1843 = vunpack.c.l.b16 %v1752
    %v1844 = vunpack.c.h.b16 %v1752
    %v1845 = vunpack.c.l.b16 %v1753
    %v1846 = vunpack.c.h.b16 %v1753
    %v1847 = vunpack.c.l.b16 %v1754
    %v1848 = vunpack.c.h.b16 %v1754
    %v1849 = vunpack.c.l.b16 %v1755
    %v1850 = vunpack.c.h.b16 %v1755
    %v1851 = vunpack.c.l.b16 %v1756
    %v1852 = vunpack.c.h.b16 %v1756
    %v1853 = vunpack.c.l.b16 %v1757
    %v1854 = vunpack.c.h.b16 %v1757
    %v1855 = vunpack.c.l.b16 %v1758
    %v1856 = vunpack.c.h.b16 %v1758
    %v1857 = vunpack.c.l.b16 %v1759
    %v1858 = vunpack.c.h.b16 %v1759
    %v1859 = vpack.c.b16 %v1799, %v1795
    %v1860 = vpack.c.b16 %v1800, %v1796
    %v1861 = vpack.c.b16 %v1801, %v1797
    %v1862 = vpack.c.b16 %v1802, %v1798
    %v1863 = vpack.c.b16 %v1807, %v1803
    %v1864 = vpack.c.b16 %v1808, %v1804
    %v1865 = vpack.c.b16 %v1809, %v1805
    %v1866 = vpack.c.b16 %v1810, %v1806
    %v1867 = vpack.c.b16 %v1815, %v1811
    %v1868 = vpack.c.b16 %v1816, %v1812
    %v1869 = vpack.c.b16 %v1817, %v1813
    %v1870 = vpack.c.b16 %v1818, %v1814
    %v1871 = vpack.c.b16 %v1823, %v1819
    %v1872 = vpack.c.b16 %v1824, %v1820
    %v1873 = vpack.c.b16 %v1825, %v1821
    %v1874 = vpack.c.b16 %v1826, %v1822
    %v1875 = vpack.c.b16 %v1831, %v1827
    %v1876 = vpack.c.b16 %v1832, %v1828
    %v1877 = vpack.c.b16 %v1833, %v1829
    %v1878 = vpack.c.b16 %v1834, %v1830
    %v1879 = vpack.c.b16 %v1839, %v1835
    %v1880 = vpack.c.b16 %v1840, %v1836
    %v1881 = vpack.c.b16 %v1841, %v1837
    %v1882 = vpack.c.b16 %v1842, %v1838
    %v1883 = vpack.c.b16 %v1847, %v1843
    %v1884 = vpack.c.b16 %v1848, %v1844
    %v1885 = vpack.c.b16 %v1849, %v1845
    %v1886 = vpack.c.b16 %v1850, %v1846
    %v1887 = vpack.c.b16 %v1855, %v1851
    %v1888 = vpack.c.b16 %v1856, %v1852
    %v1889 = vpack.c.b16 %v1857, %v1853
    %v1890 = vpack.c.b16 %v1858, %v1854
    %1923 = vmatpush.bf16.msra.mxu0 %v1887
    %1924 = vmatpush.bf16.msra.mxu0 %v1883
    %1925 = vmatpush.bf16.msra.mxu0 %v1879
    %1926 = vmatpush.bf16.msra.mxu0 %v1875
    %1927 = vmatpush.bf16.msra.mxu0 %v1871
    %1928 = vmatpush.bf16.msra.mxu0 %v1867
    %1929 = vmatpush.bf16.msra.mxu0 %v1863
    %1930 = vmatpush.bf16.msra.mxu0 %v1859
    %1931 = vmatmul.bf16.gmra.mxu0 %v1761
    %v1932 = vpop.f32.mrf.mxu0
    %v1933 = vadd.f32 0.0, %v1932
    %v1934 = vpop.f32.mrf.mxu0
    %1935 = vdwg.mxu0
    %1936 = vmatpush.bf16.msra.mxu0 %v1888
    %1937 = vmatpush.bf16.msra.mxu0 %v1884
    %1938 = vmatpush.bf16.msra.mxu0 %v1880
    %1939 = vmatpush.bf16.msra.mxu0 %v1876
    %1940 = vmatpush.bf16.msra.mxu0 %v1872
    %1941 = vmatpush.bf16.msra.mxu0 %v1868
    %1942 = vmatpush.bf16.msra.mxu0 %v1864
    %1943 = vmatpush.bf16.msra.mxu0 %v1860
    %1944 = vmatmul.bf16.gmra.mxu0 %v1761
    %v1945 = vpop.f32.mrf.mxu0
    %v1946 = vadd.f32 0.0, %v1945
    %v1947 = vpop.f32.mrf.mxu0
    %1948 = vdwg.mxu0
    %1949 = vmatpush.bf16.msra.mxu0 %v1889
    %1950 = vmatpush.bf16.msra.mxu0 %v1885
    %1951 = vmatpush.bf16.msra.mxu0 %v1881
    %1952 = vmatpush.bf16.msra.mxu0 %v1877
    %1953 = vmatpush.bf16.msra.mxu0 %v1873
    %1954 = vmatpush.bf16.msra.mxu0 %v1869
    %1955 = vmatpush.bf16.msra.mxu0 %v1865
    %1956 = vmatpush.bf16.msra.mxu0 %v1861
    %1957 = vmatmul.bf16.gmra.mxu0 %v1761
    %v1958 = vpop.f32.mrf.mxu0
    %v1959 = vadd.f32 0.0, %v1958
    %v1960 = vpop.f32.mrf.mxu0
    %1961 = vdwg.mxu0
    %1962 = vmatpush.bf16.msra.mxu0 %v1890
    %1963 = vmatpush.bf16.msra.mxu0 %v1886
    %1964 = vmatpush.bf16.msra.mxu0 %v1882
    %1965 = vmatpush.bf16.msra.mxu0 %v1878
    %1966 = vmatpush.bf16.msra.mxu0 %v1874
    %1967 = vmatpush.bf16.msra.mxu0 %v1870
    %1968 = vmatpush.bf16.msra.mxu0 %v1866
    %1969 = vmatpush.bf16.msra.mxu0 %v1862
    %1970 = vmatmul.bf16.gmra.mxu0 %v1761
    %v1971 = vpop.f32.mrf.mxu0
    %v1972 = vadd.f32 0.0, %v1971
    %v1973 = vpop.f32.mrf.mxu0
    %1974 = vdwg.mxu0
    %v1979 = vrot.slane %v1933, 6
    %v1980 = vrot.slane %v1946, 6
    %v1981 = vrot.slane %v1959, 6
    %v1982 = vrot.slane %v1972, 6
    %v1987 = vadd.f32 %v1723, %v1979
    %v1988 = vadd.f32 %v1724, %v1980
    %v1989 = vadd.f32 %v1725, %v1981
    %v1990 = vadd.f32 %v1726, %v1982
    %v1991 = vxor.u32 %v1719, 2147483648
    %v1992 = vxor.u32 %v1720, 2147483648
    %v1993 = vxor.u32 %v1721, 2147483648
    %v1994 = vmul.f32 %v1991, 1.442695
    %v1995 = vpow.pop %v1994
    %v1996 = vmul.f32 %v1992, 1.442695
    %v1997 = vpow.pop %v1996
    %v1998 = vmul.f32 %v1993, 1.442695
    %v1999 = vpow.pop %v1998
    %v2000 = vadd.f32 %v1995, 1.0
    %v2001 = vadd.f32 %v1997, 1.0
    %v2002 = vadd.f32 %v1999, 1.0
    %v2003 = vrcp.pop %v2000
    %v2004 = vmul.f32 %v2000, %v2003
    %v2005 = vsub.f32 1.0, %v2004
    %v2006 = vmul.f32 %v2003, %v2005
    %v2007 = vadd.f32 %v2003, %v2006
    %vm2008 = vweird.f32 %v2000
    %vm2009 = vweird.f32 %v2003
    %vm2010 = vmor %vm2008, %vm2009
    %v2011 = vsel %vm2010, %v2003, %v2007
    %v2012 = vand.u32 2147483647, %v2000
    %vm2013 = vcmp.eq.f32.partialorder %v2012, 8.507059e+37
    %v2014 = vand.u32 %v2000, 2147483648
    %v2015 = vor.u32 1.1754944e-38, %v2014
    %v2016 = vsel %vm2013, %v2015, %v2011
    %v2017 = vmul.f32 1.0, %v2016
    %v2018 = vrcp.pop %v2001
    %v2019 = vmul.f32 %v2001, %v2018
    %v2020 = vsub.f32 1.0, %v2019
    %v2021 = vmul.f32 %v2018, %v2020
    %v2022 = vadd.f32 %v2018, %v2021
    %vm2023 = vweird.f32 %v2001
    %vm2024 = vweird.f32 %v2018
    %vm2025 = vmor %vm2023, %vm2024
    %v2026 = vsel %vm2025, %v2018, %v2022
    %v2027 = vand.u32 2147483647, %v2001
    %vm2028 = vcmp.eq.f32.partialorder %v2027, 8.507059e+37
    %v2029 = vand.u32 %v2001, 2147483648
    %v2030 = vor.u32 1.1754944e-38, %v2029
    %v2031 = vsel %vm2028, %v2030, %v2026
    %v2032 = vmul.f32 1.0, %v2031
    %v2033 = vrcp.pop %v2002
    %v2034 = vmul.f32 %v2002, %v2033
    %v2035 = vsub.f32 1.0, %v2034
    %v2036 = vmul.f32 %v2033, %v2035
    %v2037 = vadd.f32 %v2033, %v2036
    %vm2038 = vweird.f32 %v2002
    %vm2039 = vweird.f32 %v2033
    %vm2040 = vmor %vm2038, %vm2039
    %v2041 = vsel %vm2040, %v2033, %v2037
    %v2042 = vand.u32 2147483647, %v2002
    %vm2043 = vcmp.eq.f32.partialorder %v2042, 8.507059e+37
    %v2044 = vand.u32 %v2002, 2147483648
    %v2045 = vor.u32 1.1754944e-38, %v2044
    %v2046 = vsel %vm2043, %v2045, %v2041
    %v2047 = vmul.f32 1.0, %v2046
    %v2048 = vtanh.pop %v1722
    %v2050 = vrot.slane %v1384, 6
    %v2052 = vmul.f32 %v2032, %v2050
    %v2053 = vmul.f32 %v2017, %v2048
    %v2054 = vadd.f32 %v2052, %v2053
    %v2055 = vtanh.pop %v2054
    %v2056 = vmul.f32 %v2047, %v2055
    %v2057 = vxor.u32 %v1987, 2147483648
    %v2058 = vxor.u32 %v1988, 2147483648
    %v2059 = vxor.u32 %v1989, 2147483648
    %v2060 = vmul.f32 %v2057, 1.442695
    %v2061 = vpow.pop %v2060
    %v2062 = vmul.f32 %v2058, 1.442695
    %v2063 = vpow.pop %v2062
    %v2064 = vmul.f32 %v2059, 1.442695
    %v2065 = vpow.pop %v2064
    %v2066 = vadd.f32 %v2061, 1.0
    %v2067 = vadd.f32 %v2063, 1.0
    %v2068 = vadd.f32 %v2065, 1.0
    %v2069 = vrcp.pop %v2066
    %v2070 = vmul.f32 %v2066, %v2069
    %v2071 = vsub.f32 1.0, %v2070
    %v2072 = vmul.f32 %v2069, %v2071
    %v2073 = vadd.f32 %v2069, %v2072
    %vm2074 = vweird.f32 %v2066
    %vm2075 = vweird.f32 %v2069
    %vm2076 = vmor %vm2074, %vm2075
    %v2077 = vsel %vm2076, %v2069, %v2073
    %v2078 = vand.u32 2147483647, %v2066
    %vm2079 = vcmp.eq.f32.partialorder %v2078, 8.507059e+37
    %v2080 = vand.u32 %v2066, 2147483648
    %v2081 = vor.u32 1.1754944e-38, %v2080
    %v2082 = vsel %vm2079, %v2081, %v2077
    %v2083 = vmul.f32 1.0, %v2082
    %v2084 = vrcp.pop %v2067
    %v2085 = vmul.f32 %v2067, %v2084
    %v2086 = vsub.f32 1.0, %v2085
    %v2087 = vmul.f32 %v2084, %v2086
    %v2088 = vadd.f32 %v2084, %v2087
    %vm2089 = vweird.f32 %v2067
    %vm2090 = vweird.f32 %v2084
    %vm2091 = vmor %vm2089, %vm2090
    %v2092 = vsel %vm2091, %v2084, %v2088
    %v2093 = vand.u32 2147483647, %v2067
    %vm2094 = vcmp.eq.f32.partialorder %v2093, 8.507059e+37
    %v2095 = vand.u32 %v2067, 2147483648
    %v2096 = vor.u32 1.1754944e-38, %v2095
    %v2097 = vsel %vm2094, %v2096, %v2092
    %v2098 = vmul.f32 1.0, %v2097
    %v2099 = vrcp.pop %v2068
    %v2100 = vmul.f32 %v2068, %v2099
    %v2101 = vsub.f32 1.0, %v2100
    %v2102 = vmul.f32 %v2099, %v2101
    %v2103 = vadd.f32 %v2099, %v2102
    %vm2104 = vweird.f32 %v2068
    %vm2105 = vweird.f32 %v2099
    %vm2106 = vmor %vm2104, %vm2105
    %v2107 = vsel %vm2106, %v2099, %v2103
    %v2108 = vand.u32 2147483647, %v2068
    %vm2109 = vcmp.eq.f32.partialorder %v2108, 8.507059e+37
    %v2110 = vand.u32 %v2068, 2147483648
    %v2111 = vor.u32 1.1754944e-38, %v2110
    %v2112 = vsel %vm2109, %v2111, %v2107
    %v2113 = vmul.f32 1.0, %v2112
    %v2114 = vtanh.pop %v1990
    %v2116 = vrot.slane %v1450, 2
    %v2118 = vmul.f32 %v2098, %v2116
    %v2119 = vmul.f32 %v2083, %v2114
    %v2120 = vadd.f32 %v2118, %v2119
    %v2121 = vtanh.pop %v2120
    %v2122 = vmul.f32 %v2113, %v2121
    %2123 = vst [vmem:[%s5] sm:$0x30] %v2056
    %2124 = vst [vmem:[%s124 + $0x8] sm:$0xc] %v2122
    %v2125 = vld [vmem:[#allocation4] sm:$0xc0]
    %v2126 = vld [vmem:[#allocation4 + $0x8] sm:$0xc0]
    %v2127 = vld [vmem:[#allocation4 + $0x10] sm:$0xc0]
    %v2128 = vld [vmem:[#allocation4 + $0x18] sm:$0xc0]
    %v2129 = vpack.c.bf16 %v2056, %v2056
    %v2130 = vld [vmem:[#allocation6] sm:$0xff]
    %v2131 = vld [vmem:[#allocation6 + $0x8] sm:$0xff]
    %v2132 = vld [vmem:[#allocation6 + $0x10] sm:$0xff]
    %v2133 = vld [vmem:[#allocation6 + $0x18] sm:$0xff]
    %v2134 = vld [vmem:[#allocation6 + $0x20] sm:$0xff]
    %v2135 = vld [vmem:[#allocation6 + $0x28] sm:$0xff]
    %v2136 = vld [vmem:[#allocation6 + $0x30] sm:$0xff]
    %v2137 = vld [vmem:[#allocation6 + $0x38] sm:$0xff]
    %v2138 = vld [vmem:[#allocation6 + $0x40] sm:$0xff]
    %v2139 = vld [vmem:[#allocation6 + $0x48] sm:$0xff]
    %v2140 = vld [vmem:[#allocation6 + $0x50] sm:$0xff]
    %v2141 = vld [vmem:[#allocation6 + $0x58] sm:$0xff]
    %v2142 = vld [vmem:[#allocation6 + $0x60] sm:$0xff]
    %v2143 = vld [vmem:[#allocation6 + $0x68] sm:$0xff]
    %v2144 = vld [vmem:[#allocation6 + $0x70] sm:$0xff]
    %v2145 = vld [vmem:[#allocation6 + $0x78] sm:$0xff]
    %v2146 = vld [vmem:[#allocation6 + $0x80] sm:$0xff]
    %v2147 = vld [vmem:[#allocation6 + $0x88] sm:$0xff]
    %v2148 = vld [vmem:[#allocation6 + $0x90] sm:$0xff]
    %v2149 = vld [vmem:[#allocation6 + $0x98] sm:$0xff]
    %v2150 = vld [vmem:[#allocation6 + $0xa0] sm:$0xff]
    %v2151 = vld [vmem:[#allocation6 + $0xa8] sm:$0xff]
    %v2152 = vld [vmem:[#allocation6 + $0xb0] sm:$0xff]
    %v2153 = vld [vmem:[#allocation6 + $0xb8] sm:$0xff]
    %v2154 = vld [vmem:[#allocation6 + $0xc0] sm:$0xff]
    %v2155 = vld [vmem:[#allocation6 + $0xc8] sm:$0xff]
    %v2156 = vld [vmem:[#allocation6 + $0xd0] sm:$0xff]
    %v2157 = vld [vmem:[#allocation6 + $0xd8] sm:$0xff]
    %v2158 = vld [vmem:[#allocation6 + $0xe0] sm:$0xff]
    %v2159 = vld [vmem:[#allocation6 + $0xe8] sm:$0xff]
    %v2160 = vld [vmem:[#allocation6 + $0xf0] sm:$0xff]
    %v2161 = vld [vmem:[#allocation6 + $0xf8] sm:$0xff]
    %v2163 = vrot.slane %v2129, 2
    %v2197 = vunpack.c.l.b16 %v2130
    %v2198 = vunpack.c.h.b16 %v2130
    %v2199 = vunpack.c.l.b16 %v2131
    %v2200 = vunpack.c.h.b16 %v2131
    %v2201 = vunpack.c.l.b16 %v2132
    %v2202 = vunpack.c.h.b16 %v2132
    %v2203 = vunpack.c.l.b16 %v2133
    %v2204 = vunpack.c.h.b16 %v2133
    %v2205 = vunpack.c.l.b16 %v2134
    %v2206 = vunpack.c.h.b16 %v2134
    %v2207 = vunpack.c.l.b16 %v2135
    %v2208 = vunpack.c.h.b16 %v2135
    %v2209 = vunpack.c.l.b16 %v2136
    %v2210 = vunpack.c.h.b16 %v2136
    %v2211 = vunpack.c.l.b16 %v2137
    %v2212 = vunpack.c.h.b16 %v2137
    %v2213 = vunpack.c.l.b16 %v2138
    %v2214 = vunpack.c.h.b16 %v2138
    %v2215 = vunpack.c.l.b16 %v2139
    %v2216 = vunpack.c.h.b16 %v2139
    %v2217 = vunpack.c.l.b16 %v2140
    %v2218 = vunpack.c.h.b16 %v2140
    %v2219 = vunpack.c.l.b16 %v2141
    %v2220 = vunpack.c.h.b16 %v2141
    %v2221 = vunpack.c.l.b16 %v2142
    %v2222 = vunpack.c.h.b16 %v2142
    %v2223 = vunpack.c.l.b16 %v2143
    %v2224 = vunpack.c.h.b16 %v2143
    %v2225 = vunpack.c.l.b16 %v2144
    %v2226 = vunpack.c.h.b16 %v2144
    %v2227 = vunpack.c.l.b16 %v2145
    %v2228 = vunpack.c.h.b16 %v2145
    %v2229 = vunpack.c.l.b16 %v2146
    %v2230 = vunpack.c.h.b16 %v2146
    %v2231 = vunpack.c.l.b16 %v2147
    %v2232 = vunpack.c.h.b16 %v2147
    %v2233 = vunpack.c.l.b16 %v2148
    %v2234 = vunpack.c.h.b16 %v2148
    %v2235 = vunpack.c.l.b16 %v2149
    %v2236 = vunpack.c.h.b16 %v2149
    %v2237 = vunpack.c.l.b16 %v2150
    %v2238 = vunpack.c.h.b16 %v2150
    %v2239 = vunpack.c.l.b16 %v2151
    %v2240 = vunpack.c.h.b16 %v2151
    %v2241 = vunpack.c.l.b16 %v2152
    %v2242 = vunpack.c.h.b16 %v2152
    %v2243 = vunpack.c.l.b16 %v2153
    %v2244 = vunpack.c.h.b16 %v2153
    %v2245 = vunpack.c.l.b16 %v2154
    %v2246 = vunpack.c.h.b16 %v2154
    %v2247 = vunpack.c.l.b16 %v2155
    %v2248 = vunpack.c.h.b16 %v2155
    %v2249 = vunpack.c.l.b16 %v2156
    %v2250 = vunpack.c.h.b16 %v2156
    %v2251 = vunpack.c.l.b16 %v2157
    %v2252 = vunpack.c.h.b16 %v2157
    %v2253 = vunpack.c.l.b16 %v2158
    %v2254 = vunpack.c.h.b16 %v2158
    %v2255 = vunpack.c.l.b16 %v2159
    %v2256 = vunpack.c.h.b16 %v2159
    %v2257 = vunpack.c.l.b16 %v2160
    %v2258 = vunpack.c.h.b16 %v2160
    %v2259 = vunpack.c.l.b16 %v2161
    %v2260 = vunpack.c.h.b16 %v2161
    %v2261 = vpack.c.b16 %v2201, %v2197
    %v2262 = vpack.c.b16 %v2202, %v2198
    %v2263 = vpack.c.b16 %v2203, %v2199
    %v2264 = vpack.c.b16 %v2204, %v2200
    %v2265 = vpack.c.b16 %v2209, %v2205
    %v2266 = vpack.c.b16 %v2210, %v2206
    %v2267 = vpack.c.b16 %v2211, %v2207
    %v2268 = vpack.c.b16 %v2212, %v2208
    %v2269 = vpack.c.b16 %v2217, %v2213
    %v2270 = vpack.c.b16 %v2218, %v2214
    %v2271 = vpack.c.b16 %v2219, %v2215
    %v2272 = vpack.c.b16 %v2220, %v2216
    %v2273 = vpack.c.b16 %v2225, %v2221
    %v2274 = vpack.c.b16 %v2226, %v2222
    %v2275 = vpack.c.b16 %v2227, %v2223
    %v2276 = vpack.c.b16 %v2228, %v2224
    %v2277 = vpack.c.b16 %v2233, %v2229
    %v2278 = vpack.c.b16 %v2234, %v2230
    %v2279 = vpack.c.b16 %v2235, %v2231
    %v2280 = vpack.c.b16 %v2236, %v2232
    %v2281 = vpack.c.b16 %v2241, %v2237
    %v2282 = vpack.c.b16 %v2242, %v2238
    %v2283 = vpack.c.b16 %v2243, %v2239
    %v2284 = vpack.c.b16 %v2244, %v2240
    %v2285 = vpack.c.b16 %v2249, %v2245
    %v2286 = vpack.c.b16 %v2250, %v2246
    %v2287 = vpack.c.b16 %v2251, %v2247
    %v2288 = vpack.c.b16 %v2252, %v2248
    %v2289 = vpack.c.b16 %v2257, %v2253
    %v2290 = vpack.c.b16 %v2258, %v2254
    %v2291 = vpack.c.b16 %v2259, %v2255
    %v2292 = vpack.c.b16 %v2260, %v2256
    %2325 = vmatpush.bf16.msra.mxu0 %v2289
    %2326 = vmatpush.bf16.msra.mxu0 %v2285
    %2327 = vmatpush.bf16.msra.mxu0 %v2281
    %2328 = vmatpush.bf16.msra.mxu0 %v2277
    %2329 = vmatpush.bf16.msra.mxu0 %v2273
    %2330 = vmatpush.bf16.msra.mxu0 %v2269
    %2331 = vmatpush.bf16.msra.mxu0 %v2265
    %2332 = vmatpush.bf16.msra.mxu0 %v2261
    %2333 = vmatmul.bf16.gmra.mxu0 %v2163
    %v2334 = vpop.f32.mrf.mxu0
    %v2335 = vadd.f32 0.0, %v2334
    %v2336 = vpop.f32.mrf.mxu0
    %2337 = vdwg.mxu0
    %2338 = vmatpush.bf16.msra.mxu0 %v2290
    %2339 = vmatpush.bf16.msra.mxu0 %v2286
    %2340 = vmatpush.bf16.msra.mxu0 %v2282
    %2341 = vmatpush.bf16.msra.mxu0 %v2278
    %2342 = vmatpush.bf16.msra.mxu0 %v2274
    %2343 = vmatpush.bf16.msra.mxu0 %v2270
    %2344 = vmatpush.bf16.msra.mxu0 %v2266
    %2345 = vmatpush.bf16.msra.mxu0 %v2262
    %2346 = vmatmul.bf16.gmra.mxu0 %v2163
    %v2347 = vpop.f32.mrf.mxu0
    %v2348 = vadd.f32 0.0, %v2347
    %v2349 = vpop.f32.mrf.mxu0
    %2350 = vdwg.mxu0
    %2351 = vmatpush.bf16.msra.mxu0 %v2291
    %2352 = vmatpush.bf16.msra.mxu0 %v2287
    %2353 = vmatpush.bf16.msra.mxu0 %v2283
    %2354 = vmatpush.bf16.msra.mxu0 %v2279
    %2355 = vmatpush.bf16.msra.mxu0 %v2275
    %2356 = vmatpush.bf16.msra.mxu0 %v2271
    %2357 = vmatpush.bf16.msra.mxu0 %v2267
    %2358 = vmatpush.bf16.msra.mxu0 %v2263
    %2359 = vmatmul.bf16.gmra.mxu0 %v2163
    %v2360 = vpop.f32.mrf.mxu0
    %v2361 = vadd.f32 0.0, %v2360
    %v2362 = vpop.f32.mrf.mxu0
    %2363 = vdwg.mxu0
    %2364 = vmatpush.bf16.msra.mxu0 %v2292
    %2365 = vmatpush.bf16.msra.mxu0 %v2288
    %2366 = vmatpush.bf16.msra.mxu0 %v2284
    %2367 = vmatpush.bf16.msra.mxu0 %v2280
    %2368 = vmatpush.bf16.msra.mxu0 %v2276
    %2369 = vmatpush.bf16.msra.mxu0 %v2272
    %2370 = vmatpush.bf16.msra.mxu0 %v2268
    %2371 = vmatpush.bf16.msra.mxu0 %v2264
    %2372 = vmatmul.bf16.gmra.mxu0 %v2163
    %v2373 = vpop.f32.mrf.mxu0
    %v2374 = vadd.f32 0.0, %v2373
    %v2375 = vpop.f32.mrf.mxu0
    %2376 = vdwg.mxu0
    %v2381 = vrot.slane %v2335, 2
    %v2382 = vrot.slane %v2348, 2
    %v2383 = vrot.slane %v2361, 2
    %v2384 = vrot.slane %v2374, 2
    %v2389 = vadd.f32 %v2125, %v2381
    %v2390 = vadd.f32 %v2126, %v2382
    %v2391 = vadd.f32 %v2127, %v2383
    %v2392 = vadd.f32 %v2128, %v2384
    %v2393 = vld [vmem:[#allocation5 + $0x20] sm:$0x3]
    %v2394 = vld [vmem:[#allocation5 + $0x28] sm:$0x3]
    %v2395 = vld [vmem:[#allocation5 + $0x30] sm:$0x3]
    %v2396 = vld [vmem:[#allocation5 + $0x38] sm:$0x3]
    %v2397 = vpack.c.bf16 %v2122, %v2122
    %v2398 = vld [vmem:[#allocation6 + $0x100] sm:$0xff]
    %v2399 = vld [vmem:[#allocation6 + $0x108] sm:$0xff]
    %v2400 = vld [vmem:[#allocation6 + $0x110] sm:$0xff]
    %v2401 = vld [vmem:[#allocation6 + $0x118] sm:$0xff]
    %v2402 = vld [vmem:[#allocation6 + $0x120] sm:$0xff]
    %v2403 = vld [vmem:[#allocation6 + $0x128] sm:$0xff]
    %v2404 = vld [vmem:[#allocation6 + $0x130] sm:$0xff]
    %v2405 = vld [vmem:[#allocation6 + $0x138] sm:$0xff]
    %v2406 = vld [vmem:[#allocation6 + $0x140] sm:$0xff]
    %v2407 = vld [vmem:[#allocation6 + $0x148] sm:$0xff]
    %v2408 = vld [vmem:[#allocation6 + $0x150] sm:$0xff]
    %v2409 = vld [vmem:[#allocation6 + $0x158] sm:$0xff]
    %v2410 = vld [vmem:[#allocation6 + $0x160] sm:$0xff]
    %v2411 = vld [vmem:[#allocation6 + $0x168] sm:$0xff]
    %v2412 = vld [vmem:[#allocation6 + $0x170] sm:$0xff]
    %v2413 = vld [vmem:[#allocation6 + $0x178] sm:$0xff]
    %v2414 = vld [vmem:[#allocation6 + $0x180] sm:$0xff]
    %v2415 = vld [vmem:[#allocation6 + $0x188] sm:$0xff]
    %v2416 = vld [vmem:[#allocation6 + $0x190] sm:$0xff]
    %v2417 = vld [vmem:[#allocation6 + $0x198] sm:$0xff]
    %v2418 = vld [vmem:[#allocation6 + $0x1a0] sm:$0xff]
    %v2419 = vld [vmem:[#allocation6 + $0x1a8] sm:$0xff]
    %v2420 = vld [vmem:[#allocation6 + $0x1b0] sm:$0xff]
    %v2421 = vld [vmem:[#allocation6 + $0x1b8] sm:$0xff]
    %v2422 = vld [vmem:[#allocation6 + $0x1c0] sm:$0xff]
    %v2423 = vld [vmem:[#allocation6 + $0x1c8] sm:$0xff]
    %v2424 = vld [vmem:[#allocation6 + $0x1d0] sm:$0xff]
    %v2425 = vld [vmem:[#allocation6 + $0x1d8] sm:$0xff]
    %v2426 = vld [vmem:[#allocation6 + $0x1e0] sm:$0xff]
    %v2427 = vld [vmem:[#allocation6 + $0x1e8] sm:$0xff]
    %v2428 = vld [vmem:[#allocation6 + $0x1f0] sm:$0xff]
    %v2429 = vld [vmem:[#allocation6 + $0x1f8] sm:$0xff]
    %v2431 = vrot.slane %v2397, 1
    %v2465 = vunpack.c.l.b16 %v2398
    %v2466 = vunpack.c.h.b16 %v2398
    %v2467 = vunpack.c.l.b16 %v2399
    %v2468 = vunpack.c.h.b16 %v2399
    %v2469 = vunpack.c.l.b16 %v2400
    %v2470 = vunpack.c.h.b16 %v2400
    %v2471 = vunpack.c.l.b16 %v2401
    %v2472 = vunpack.c.h.b16 %v2401
    %v2473 = vunpack.c.l.b16 %v2402
    %v2474 = vunpack.c.h.b16 %v2402
    %v2475 = vunpack.c.l.b16 %v2403
    %v2476 = vunpack.c.h.b16 %v2403
    %v2477 = vunpack.c.l.b16 %v2404
    %v2478 = vunpack.c.h.b16 %v2404
    %v2479 = vunpack.c.l.b16 %v2405
    %v2480 = vunpack.c.h.b16 %v2405
    %v2481 = vunpack.c.l.b16 %v2406
    %v2482 = vunpack.c.h.b16 %v2406
    %v2483 = vunpack.c.l.b16 %v2407
    %v2484 = vunpack.c.h.b16 %v2407
    %v2485 = vunpack.c.l.b16 %v2408
    %v2486 = vunpack.c.h.b16 %v2408
    %v2487 = vunpack.c.l.b16 %v2409
    %v2488 = vunpack.c.h.b16 %v2409
    %v2489 = vunpack.c.l.b16 %v2410
    %v2490 = vunpack.c.h.b16 %v2410
    %v2491 = vunpack.c.l.b16 %v2411
    %v2492 = vunpack.c.h.b16 %v2411
    %v2493 = vunpack.c.l.b16 %v2412
    %v2494 = vunpack.c.h.b16 %v2412
    %v2495 = vunpack.c.l.b16 %v2413
    %v2496 = vunpack.c.h.b16 %v2413
    %v2497 = vunpack.c.l.b16 %v2414
    %v2498 = vunpack.c.h.b16 %v2414
    %v2499 = vunpack.c.l.b16 %v2415
    %v2500 = vunpack.c.h.b16 %v2415
    %v2501 = vunpack.c.l.b16 %v2416
    %v2502 = vunpack.c.h.b16 %v2416
    %v2503 = vunpack.c.l.b16 %v2417
    %v2504 = vunpack.c.h.b16 %v2417
    %v2505 = vunpack.c.l.b16 %v2418
    %v2506 = vunpack.c.h.b16 %v2418
    %v2507 = vunpack.c.l.b16 %v2419
    %v2508 = vunpack.c.h.b16 %v2419
    %v2509 = vunpack.c.l.b16 %v2420
    %v2510 = vunpack.c.h.b16 %v2420
    %v2511 = vunpack.c.l.b16 %v2421
    %v2512 = vunpack.c.h.b16 %v2421
    %v2513 = vunpack.c.l.b16 %v2422
    %v2514 = vunpack.c.h.b16 %v2422
    %v2515 = vunpack.c.l.b16 %v2423
    %v2516 = vunpack.c.h.b16 %v2423
    %v2517 = vunpack.c.l.b16 %v2424
    %v2518 = vunpack.c.h.b16 %v2424
    %v2519 = vunpack.c.l.b16 %v2425
    %v2520 = vunpack.c.h.b16 %v2425
    %v2521 = vunpack.c.l.b16 %v2426
    %v2522 = vunpack.c.h.b16 %v2426
    %v2523 = vunpack.c.l.b16 %v2427
    %v2524 = vunpack.c.h.b16 %v2427
    %v2525 = vunpack.c.l.b16 %v2428
    %v2526 = vunpack.c.h.b16 %v2428
    %v2527 = vunpack.c.l.b16 %v2429
    %v2528 = vunpack.c.h.b16 %v2429
    %v2529 = vpack.c.b16 %v2469, %v2465
    %v2530 = vpack.c.b16 %v2470, %v2466
    %v2531 = vpack.c.b16 %v2471, %v2467
    %v2532 = vpack.c.b16 %v2472, %v2468
    %v2533 = vpack.c.b16 %v2477, %v2473
    %v2534 = vpack.c.b16 %v2478, %v2474
    %v2535 = vpack.c.b16 %v2479, %v2475
    %v2536 = vpack.c.b16 %v2480, %v2476
    %v2537 = vpack.c.b16 %v2485, %v2481
    %v2538 = vpack.c.b16 %v2486, %v2482
    %v2539 = vpack.c.b16 %v2487, %v2483
    %v2540 = vpack.c.b16 %v2488, %v2484
    %v2541 = vpack.c.b16 %v2493, %v2489
    %v2542 = vpack.c.b16 %v2494, %v2490
    %v2543 = vpack.c.b16 %v2495, %v2491
    %v2544 = vpack.c.b16 %v2496, %v2492
    %v2545 = vpack.c.b16 %v2501, %v2497
    %v2546 = vpack.c.b16 %v2502, %v2498
    %v2547 = vpack.c.b16 %v2503, %v2499
    %v2548 = vpack.c.b16 %v2504, %v2500
    %v2549 = vpack.c.b16 %v2509, %v2505
    %v2550 = vpack.c.b16 %v2510, %v2506
    %v2551 = vpack.c.b16 %v2511, %v2507
    %v2552 = vpack.c.b16 %v2512, %v2508
    %v2553 = vpack.c.b16 %v2517, %v2513
    %v2554 = vpack.c.b16 %v2518, %v2514
    %v2555 = vpack.c.b16 %v2519, %v2515
    %v2556 = vpack.c.b16 %v2520, %v2516
    %v2557 = vpack.c.b16 %v2525, %v2521
    %v2558 = vpack.c.b16 %v2526, %v2522
    %v2559 = vpack.c.b16 %v2527, %v2523
    %v2560 = vpack.c.b16 %v2528, %v2524
    %2593 = vmatpush.bf16.msra.mxu0 %v2557
    %2594 = vmatpush.bf16.msra.mxu0 %v2553
    %2595 = vmatpush.bf16.msra.mxu0 %v2549
    %2596 = vmatpush.bf16.msra.mxu0 %v2545
    %2597 = vmatpush.bf16.msra.mxu0 %v2541
    %2598 = vmatpush.bf16.msra.mxu0 %v2537
    %2599 = vmatpush.bf16.msra.mxu0 %v2533
    %2600 = vmatpush.bf16.msra.mxu0 %v2529
    %2601 = vmatmul.bf16.gmra.mxu0 %v2431
    %v2602 = vpop.f32.mrf.mxu0
    %v2603 = vadd.f32 0.0, %v2602
    %v2604 = vpop.f32.mrf.mxu0
    %2605 = vdwg.mxu0
    %2606 = vmatpush.bf16.msra.mxu0 %v2558
    %2607 = vmatpush.bf16.msra.mxu0 %v2554
    %2608 = vmatpush.bf16.msra.mxu0 %v2550
    %2609 = vmatpush.bf16.msra.mxu0 %v2546
    %2610 = vmatpush.bf16.msra.mxu0 %v2542
    %2611 = vmatpush.bf16.msra.mxu0 %v2538
    %2612 = vmatpush.bf16.msra.mxu0 %v2534
    %2613 = vmatpush.bf16.msra.mxu0 %v2530
    %2614 = vmatmul.bf16.gmra.mxu0 %v2431
    %v2615 = vpop.f32.mrf.mxu0
    %v2616 = vadd.f32 0.0, %v2615
    %v2617 = vpop.f32.mrf.mxu0
    %2618 = vdwg.mxu0
    %2619 = vmatpush.bf16.msra.mxu0 %v2559
    %2620 = vmatpush.bf16.msra.mxu0 %v2555
    %2621 = vmatpush.bf16.msra.mxu0 %v2551
    %2622 = vmatpush.bf16.msra.mxu0 %v2547
    %2623 = vmatpush.bf16.msra.mxu0 %v2543
    %2624 = vmatpush.bf16.msra.mxu0 %v2539
    %2625 = vmatpush.bf16.msra.mxu0 %v2535
    %2626 = vmatpush.bf16.msra.mxu0 %v2531
    %2627 = vmatmul.bf16.gmra.mxu0 %v2431
    %v2628 = vpop.f32.mrf.mxu0
    %v2629 = vadd.f32 0.0, %v2628
    %v2630 = vpop.f32.mrf.mxu0
    %2631 = vdwg.mxu0
    %2632 = vmatpush.bf16.msra.mxu0 %v2560
    %2633 = vmatpush.bf16.msra.mxu0 %v2556
    %2634 = vmatpush.bf16.msra.mxu0 %v2552
    %2635 = vmatpush.bf16.msra.mxu0 %v2548
    %2636 = vmatpush.bf16.msra.mxu0 %v2544
    %2637 = vmatpush.bf16.msra.mxu0 %v2540
    %2638 = vmatpush.bf16.msra.mxu0 %v2536
    %2639 = vmatpush.bf16.msra.mxu0 %v2532
    %2640 = vmatmul.bf16.gmra.mxu0 %v2431
    %v2641 = vpop.f32.mrf.mxu0
    %v2642 = vadd.f32 0.0, %v2641
    %v2643 = vpop.f32.mrf.mxu0
    %2644 = vdwg.mxu0
    %v2645 = vadd.f32 %v2393, %v2603
    %v2646 = vadd.f32 %v2394, %v2616
    %v2647 = vadd.f32 %v2395, %v2629
    %v2648 = vadd.f32 %v2396, %v2642
    %v2649 = vxor.u32 %v2389, 2147483648
    %v2650 = vxor.u32 %v2390, 2147483648
    %v2651 = vxor.u32 %v2391, 2147483648
    %v2652 = vmul.f32 %v2649, 1.442695
    %v2653 = vpow.pop %v2652
    %v2654 = vmul.f32 %v2650, 1.442695
    %v2655 = vpow.pop %v2654
    %v2656 = vmul.f32 %v2651, 1.442695
    %v2657 = vpow.pop %v2656
    %v2658 = vadd.f32 %v2653, 1.0
    %v2659 = vadd.f32 %v2655, 1.0
    %v2660 = vadd.f32 %v2657, 1.0
    %v2661 = vrcp.pop %v2658
    %v2662 = vmul.f32 %v2658, %v2661
    %v2663 = vsub.f32 1.0, %v2662
    %v2664 = vmul.f32 %v2661, %v2663
    %v2665 = vadd.f32 %v2661, %v2664
    %vm2666 = vweird.f32 %v2658
    %vm2667 = vweird.f32 %v2661
    %vm2668 = vmor %vm2666, %vm2667
    %v2669 = vsel %vm2668, %v2661, %v2665
    %v2670 = vand.u32 2147483647, %v2658
    %vm2671 = vcmp.eq.f32.partialorder %v2670, 8.507059e+37
    %v2672 = vand.u32 %v2658, 2147483648
    %v2673 = vor.u32 1.1754944e-38, %v2672
    %v2674 = vsel %vm2671, %v2673, %v2669
    %v2675 = vmul.f32 1.0, %v2674
    %v2676 = vrcp.pop %v2659
    %v2677 = vmul.f32 %v2659, %v2676
    %v2678 = vsub.f32 1.0, %v2677
    %v2679 = vmul.f32 %v2676, %v2678
    %v2680 = vadd.f32 %v2676, %v2679
    %vm2681 = vweird.f32 %v2659
    %vm2682 = vweird.f32 %v2676
    %vm2683 = vmor %vm2681, %vm2682
    %v2684 = vsel %vm2683, %v2676, %v2680
    %v2685 = vand.u32 2147483647, %v2659
    %vm2686 = vcmp.eq.f32.partialorder %v2685, 8.507059e+37
    %v2687 = vand.u32 %v2659, 2147483648
    %v2688 = vor.u32 1.1754944e-38, %v2687
    %v2689 = vsel %vm2686, %v2688, %v2684
    %v2690 = vmul.f32 1.0, %v2689
    %v2691 = vrcp.pop %v2660
    %v2692 = vmul.f32 %v2660, %v2691
    %v2693 = vsub.f32 1.0, %v2692
    %v2694 = vmul.f32 %v2691, %v2693
    %v2695 = vadd.f32 %v2691, %v2694
    %vm2696 = vweird.f32 %v2660
    %vm2697 = vweird.f32 %v2691
    %vm2698 = vmor %vm2696, %vm2697
    %v2699 = vsel %vm2698, %v2691, %v2695
    %v2700 = vand.u32 2147483647, %v2660
    %vm2701 = vcmp.eq.f32.partialorder %v2700, 8.507059e+37
    %v2702 = vand.u32 %v2660, 2147483648
    %v2703 = vor.u32 1.1754944e-38, %v2702
    %v2704 = vsel %vm2701, %v2703, %v2699
    %v2705 = vmul.f32 1.0, %v2704
    %v2706 = vtanh.pop %v2392
    %v2708 = vrot.slane %v2054, 6
    %v2710 = vmul.f32 %v2690, %v2708
    %v2711 = vmul.f32 %v2675, %v2706
    %v2712 = vadd.f32 %v2710, %v2711
    %v2713 = vtanh.pop %v2712
    %v2714 = vmul.f32 %v2705, %v2713
    %v2715 = vxor.u32 %v2645, 2147483648
    %v2716 = vxor.u32 %v2646, 2147483648
    %v2717 = vxor.u32 %v2647, 2147483648
    %v2718 = vmul.f32 %v2715, 1.442695
    %v2719 = vpow.pop %v2718
    %v2720 = vmul.f32 %v2716, 1.442695
    %v2721 = vpow.pop %v2720
    %v2722 = vmul.f32 %v2717, 1.442695
    %v2723 = vpow.pop %v2722
    %v2724 = vadd.f32 %v2719, 1.0
    %v2725 = vadd.f32 %v2721, 1.0
    %v2726 = vadd.f32 %v2723, 1.0
    %v2727 = vrcp.pop %v2724
    %v2728 = vmul.f32 %v2724, %v2727
    %v2729 = vsub.f32 1.0, %v2728
    %v2730 = vmul.f32 %v2727, %v2729
    %v2731 = vadd.f32 %v2727, %v2730
    %vm2732 = vweird.f32 %v2724
    %vm2733 = vweird.f32 %v2727
    %vm2734 = vmor %vm2732, %vm2733
    %v2735 = vsel %vm2734, %v2727, %v2731
    %v2736 = vand.u32 2147483647, %v2724
    %vm2737 = vcmp.eq.f32.partialorder %v2736, 8.507059e+37
    %v2738 = vand.u32 %v2724, 2147483648
    %v2739 = vor.u32 1.1754944e-38, %v2738
    %v2740 = vsel %vm2737, %v2739, %v2735
    %v2741 = vmul.f32 1.0, %v2740
    %v2742 = vrcp.pop %v2725
    %v2743 = vmul.f32 %v2725, %v2742
    %v2744 = vsub.f32 1.0, %v2743
    %v2745 = vmul.f32 %v2742, %v2744
    %v2746 = vadd.f32 %v2742, %v2745
    %vm2747 = vweird.f32 %v2725
    %vm2748 = vweird.f32 %v2742
    %vm2749 = vmor %vm2747, %vm2748
    %v2750 = vsel %vm2749, %v2742, %v2746
    %v2751 = vand.u32 2147483647, %v2725
    %vm2752 = vcmp.eq.f32.partialorder %v2751, 8.507059e+37
    %v2753 = vand.u32 %v2725, 2147483648
    %v2754 = vor.u32 1.1754944e-38, %v2753
    %v2755 = vsel %vm2752, %v2754, %v2750
    %v2756 = vmul.f32 1.0, %v2755
    %v2757 = vrcp.pop %v2726
    %v2758 = vmul.f32 %v2726, %v2757
    %v2759 = vsub.f32 1.0, %v2758
    %v2760 = vmul.f32 %v2757, %v2759
    %v2761 = vadd.f32 %v2757, %v2760
    %vm2762 = vweird.f32 %v2726
    %vm2763 = vweird.f32 %v2757
    %vm2764 = vmor %vm2762, %vm2763
    %v2765 = vsel %vm2764, %v2757, %v2761
    %v2766 = vand.u32 2147483647, %v2726
    %vm2767 = vcmp.eq.f32.partialorder %v2766, 8.507059e+37
    %v2768 = vand.u32 %v2726, 2147483648
    %v2769 = vor.u32 1.1754944e-38, %v2768
    %v2770 = vsel %vm2767, %v2769, %v2765
    %v2771 = vmul.f32 1.0, %v2770
    %v2772 = vtanh.pop %v2648
    %v2774 = vrot.slane %v2120, 2
    %v2776 = vmul.f32 %v2756, %v2774
    %v2777 = vmul.f32 %v2741, %v2772
    %v2778 = vadd.f32 %v2776, %v2777
    %v2779 = vtanh.pop %v2778
    %v2780 = vmul.f32 %v2771, %v2779
    %2781 = vst [vmem:[%s5] sm:$0xc0] %v2714
    %2782 = vst [vmem:[%s124 + $0x8] sm:$0x3] %v2780
    %v2783 = vld [vmem:[#allocation4 + $0x20] sm:$0x3]
    %v2784 = vld [vmem:[#allocation4 + $0x28] sm:$0x3]
    %v2785 = vld [vmem:[#allocation4 + $0x30] sm:$0x3]
    %v2786 = vld [vmem:[#allocation4 + $0x38] sm:$0x3]
    %v2787 = vpack.c.bf16 %v2714, %v2714
    %v2788 = vld [vmem:[#allocation6] sm:$0xff]
    %v2789 = vld [vmem:[#allocation6 + $0x8] sm:$0xff]
    %v2790 = vld [vmem:[#allocation6 + $0x10] sm:$0xff]
    %v2791 = vld [vmem:[#allocation6 + $0x18] sm:$0xff]
    %v2792 = vld [vmem:[#allocation6 + $0x20] sm:$0xff]
    %v2793 = vld [vmem:[#allocation6 + $0x28] sm:$0xff]
    %v2794 = vld [vmem:[#allocation6 + $0x30] sm:$0xff]
    %v2795 = vld [vmem:[#allocation6 + $0x38] sm:$0xff]
    %v2796 = vld [vmem:[#allocation6 + $0x40] sm:$0xff]
    %v2797 = vld [vmem:[#allocation6 + $0x48] sm:$0xff]
    %v2798 = vld [vmem:[#allocation6 + $0x50] sm:$0xff]
    %v2799 = vld [vmem:[#allocation6 + $0x58] sm:$0xff]
    %v2800 = vld [vmem:[#allocation6 + $0x60] sm:$0xff]
    %v2801 = vld [vmem:[#allocation6 + $0x68] sm:$0xff]
    %v2802 = vld [vmem:[#allocation6 + $0x70] sm:$0xff]
    %v2803 = vld [vmem:[#allocation6 + $0x78] sm:$0xff]
    %v2804 = vld [vmem:[#allocation6 + $0x80] sm:$0xff]
    %v2805 = vld [vmem:[#allocation6 + $0x88] sm:$0xff]
    %v2806 = vld [vmem:[#allocation6 + $0x90] sm:$0xff]
    %v2807 = vld [vmem:[#allocation6 + $0x98] sm:$0xff]
    %v2808 = vld [vmem:[#allocation6 + $0xa0] sm:$0xff]
    %v2809 = vld [vmem:[#allocation6 + $0xa8] sm:$0xff]
    %v2810 = vld [vmem:[#allocation6 + $0xb0] sm:$0xff]
    %v2811 = vld [vmem:[#allocation6 + $0xb8] sm:$0xff]
    %v2812 = vld [vmem:[#allocation6 + $0xc0] sm:$0xff]
    %v2813 = vld [vmem:[#allocation6 + $0xc8] sm:$0xff]
    %v2814 = vld [vmem:[#allocation6 + $0xd0] sm:$0xff]
    %v2815 = vld [vmem:[#allocation6 + $0xd8] sm:$0xff]
    %v2816 = vld [vmem:[#allocation6 + $0xe0] sm:$0xff]
    %v2817 = vld [vmem:[#allocation6 + $0xe8] sm:$0xff]
    %v2818 = vld [vmem:[#allocation6 + $0xf0] sm:$0xff]
    %v2819 = vld [vmem:[#allocation6 + $0xf8] sm:$0xff]
    %v2821 = vrot.slane %v2787, 3
    %v2855 = vunpack.c.l.b16 %v2788
    %v2856 = vunpack.c.h.b16 %v2788
    %v2857 = vunpack.c.l.b16 %v2789
    %v2858 = vunpack.c.h.b16 %v2789
    %v2859 = vunpack.c.l.b16 %v2790
    %v2860 = vunpack.c.h.b16 %v2790
    %v2861 = vunpack.c.l.b16 %v2791
    %v2862 = vunpack.c.h.b16 %v2791
    %v2863 = vunpack.c.l.b16 %v2792
    %v2864 = vunpack.c.h.b16 %v2792
    %v2865 = vunpack.c.l.b16 %v2793
    %v2866 = vunpack.c.h.b16 %v2793
    %v2867 = vunpack.c.l.b16 %v2794
    %v2868 = vunpack.c.h.b16 %v2794
    %v2869 = vunpack.c.l.b16 %v2795
    %v2870 = vunpack.c.h.b16 %v2795
    %v2871 = vunpack.c.l.b16 %v2796
    %v2872 = vunpack.c.h.b16 %v2796
    %v2873 = vunpack.c.l.b16 %v2797
    %v2874 = vunpack.c.h.b16 %v2797
    %v2875 = vunpack.c.l.b16 %v2798
    %v2876 = vunpack.c.h.b16 %v2798
    %v2877 = vunpack.c.l.b16 %v2799
    %v2878 = vunpack.c.h.b16 %v2799
    %v2879 = vunpack.c.l.b16 %v2800
    %v2880 = vunpack.c.h.b16 %v2800
    %v2881 = vunpack.c.l.b16 %v2801
    %v2882 = vunpack.c.h.b16 %v2801
    %v2883 = vunpack.c.l.b16 %v2802
    %v2884 = vunpack.c.h.b16 %v2802
    %v2885 = vunpack.c.l.b16 %v2803
    %v2886 = vunpack.c.h.b16 %v2803
    %v2887 = vunpack.c.l.b16 %v2804
    %v2888 = vunpack.c.h.b16 %v2804
    %v2889 = vunpack.c.l.b16 %v2805
    %v2890 = vunpack.c.h.b16 %v2805
    %v2891 = vunpack.c.l.b16 %v2806
    %v2892 = vunpack.c.h.b16 %v2806
    %v2893 = vunpack.c.l.b16 %v2807
    %v2894 = vunpack.c.h.b16 %v2807
    %v2895 = vunpack.c.l.b16 %v2808
    %v2896 = vunpack.c.h.b16 %v2808
    %v2897 = vunpack.c.l.b16 %v2809
    %v2898 = vunpack.c.h.b16 %v2809
    %v2899 = vunpack.c.l.b16 %v2810
    %v2900 = vunpack.c.h.b16 %v2810
    %v2901 = vunpack.c.l.b16 %v2811
    %v2902 = vunpack.c.h.b16 %v2811
    %v2903 = vunpack.c.l.b16 %v2812
    %v2904 = vunpack.c.h.b16 %v2812
    %v2905 = vunpack.c.l.b16 %v2813
    %v2906 = vunpack.c.h.b16 %v2813
    %v2907 = vunpack.c.l.b16 %v2814
    %v2908 = vunpack.c.h.b16 %v2814
    %v2909 = vunpack.c.l.b16 %v2815
    %v2910 = vunpack.c.h.b16 %v2815
    %v2911 = vunpack.c.l.b16 %v2816
    %v2912 = vunpack.c.h.b16 %v2816
    %v2913 = vunpack.c.l.b16 %v2817
    %v2914 = vunpack.c.h.b16 %v2817
    %v2915 = vunpack.c.l.b16 %v2818
    %v2916 = vunpack.c.h.b16 %v2818
    %v2917 = vunpack.c.l.b16 %v2819
    %v2918 = vunpack.c.h.b16 %v2819
    %v2919 = vpack.c.b16 %v2859, %v2855
    %v2920 = vpack.c.b16 %v2860, %v2856
    %v2921 = vpack.c.b16 %v2861, %v2857
    %v2922 = vpack.c.b16 %v2862, %v2858
    %v2923 = vpack.c.b16 %v2867, %v2863
    %v2924 = vpack.c.b16 %v2868, %v2864
    %v2925 = vpack.c.b16 %v2869, %v2865
    %v2926 = vpack.c.b16 %v2870, %v2866
    %v2927 = vpack.c.b16 %v2875, %v2871
    %v2928 = vpack.c.b16 %v2876, %v2872
    %v2929 = vpack.c.b16 %v2877, %v2873
    %v2930 = vpack.c.b16 %v2878, %v2874
    %v2931 = vpack.c.b16 %v2883, %v2879
    %v2932 = vpack.c.b16 %v2884, %v2880
    %v2933 = vpack.c.b16 %v2885, %v2881
    %v2934 = vpack.c.b16 %v2886, %v2882
    %v2935 = vpack.c.b16 %v2891, %v2887
    %v2936 = vpack.c.b16 %v2892, %v2888
    %v2937 = vpack.c.b16 %v2893, %v2889
    %v2938 = vpack.c.b16 %v2894, %v2890
    %v2939 = vpack.c.b16 %v2899, %v2895
    %v2940 = vpack.c.b16 %v2900, %v2896
    %v2941 = vpack.c.b16 %v2901, %v2897
    %v2942 = vpack.c.b16 %v2902, %v2898
    %v2943 = vpack.c.b16 %v2907, %v2903
    %v2944 = vpack.c.b16 %v2908, %v2904
    %v2945 = vpack.c.b16 %v2909, %v2905
    %v2946 = vpack.c.b16 %v2910, %v2906
    %v2947 = vpack.c.b16 %v2915, %v2911
    %v2948 = vpack.c.b16 %v2916, %v2912
    %v2949 = vpack.c.b16 %v2917, %v2913
    %v2950 = vpack.c.b16 %v2918, %v2914
    %2983 = vmatpush.bf16.msra.mxu0 %v2947
    %2984 = vmatpush.bf16.msra.mxu0 %v2943
    %2985 = vmatpush.bf16.msra.mxu0 %v2939
    %2986 = vmatpush.bf16.msra.mxu0 %v2935
    %2987 = vmatpush.bf16.msra.mxu0 %v2931
    %2988 = vmatpush.bf16.msra.mxu0 %v2927
    %2989 = vmatpush.bf16.msra.mxu0 %v2923
    %2990 = vmatpush.bf16.msra.mxu0 %v2919
    %2991 = vmatmul.bf16.gmra.mxu0 %v2821
    %v2992 = vpop.f32.mrf.mxu0
    %v2993 = vadd.f32 0.0, %v2992
    %v2994 = vpop.f32.mrf.mxu0
    %2995 = vdwg.mxu0
    %2996 = vmatpush.bf16.msra.mxu0 %v2948
    %2997 = vmatpush.bf16.msra.mxu0 %v2944
    %2998 = vmatpush.bf16.msra.mxu0 %v2940
    %2999 = vmatpush.bf16.msra.mxu0 %v2936
    %3000 = vmatpush.bf16.msra.mxu0 %v2932
    %3001 = vmatpush.bf16.msra.mxu0 %v2928
    %3002 = vmatpush.bf16.msra.mxu0 %v2924
    %3003 = vmatpush.bf16.msra.mxu0 %v2920
    %3004 = vmatmul.bf16.gmra.mxu0 %v2821
    %v3005 = vpop.f32.mrf.mxu0
    %v3006 = vadd.f32 0.0, %v3005
    %v3007 = vpop.f32.mrf.mxu0
    %3008 = vdwg.mxu0
    %3009 = vmatpush.bf16.msra.mxu0 %v2949
    %3010 = vmatpush.bf16.msra.mxu0 %v2945
    %3011 = vmatpush.bf16.msra.mxu0 %v2941
    %3012 = vmatpush.bf16.msra.mxu0 %v2937
    %3013 = vmatpush.bf16.msra.mxu0 %v2933
    %3014 = vmatpush.bf16.msra.mxu0 %v2929
    %3015 = vmatpush.bf16.msra.mxu0 %v2925
    %3016 = vmatpush.bf16.msra.mxu0 %v2921
    %3017 = vmatmul.bf16.gmra.mxu0 %v2821
    %v3018 = vpop.f32.mrf.mxu0
    %v3019 = vadd.f32 0.0, %v3018
    %v3020 = vpop.f32.mrf.mxu0
    %3021 = vdwg.mxu0
    %3022 = vmatpush.bf16.msra.mxu0 %v2950
    %3023 = vmatpush.bf16.msra.mxu0 %v2946
    %3024 = vmatpush.bf16.msra.mxu0 %v2942
    %3025 = vmatpush.bf16.msra.mxu0 %v2938
    %3026 = vmatpush.bf16.msra.mxu0 %v2934
    %3027 = vmatpush.bf16.msra.mxu0 %v2930
    %3028 = vmatpush.bf16.msra.mxu0 %v2926
    %3029 = vmatpush.bf16.msra.mxu0 %v2922
    %3030 = vmatmul.bf16.gmra.mxu0 %v2821
    %v3031 = vpop.f32.mrf.mxu0
    %v3032 = vadd.f32 0.0, %v3031
    %v3033 = vpop.f32.mrf.mxu0
    %3034 = vdwg.mxu0
    %v3035 = vadd.f32 %v2783, %v2993
    %v3036 = vadd.f32 %v2784, %v3006
    %v3037 = vadd.f32 %v2785, %v3019
    %v3038 = vadd.f32 %v2786, %v3032
    %v3039 = vld [vmem:[#allocation5] sm:$0xc0]
    %v3040 = vld [vmem:[#allocation5 + $0x8] sm:$0xc0]
    %v3041 = vld [vmem:[#allocation5 + $0x10] sm:$0xc0]
    %v3042 = vld [vmem:[#allocation5 + $0x18] sm:$0xc0]
    %v3043 = vpack.c.bf16 %v2780, %v2780
    %v3044 = vld [vmem:[#allocation6 + $0x100] sm:$0xff]
    %v3045 = vld [vmem:[#allocation6 + $0x108] sm:$0xff]
    %v3046 = vld [vmem:[#allocation6 + $0x110] sm:$0xff]
    %v3047 = vld [vmem:[#allocation6 + $0x118] sm:$0xff]
    %v3048 = vld [vmem:[#allocation6 + $0x120] sm:$0xff]
    %v3049 = vld [vmem:[#allocation6 + $0x128] sm:$0xff]
    %v3050 = vld [vmem:[#allocation6 + $0x130] sm:$0xff]
    %v3051 = vld [vmem:[#allocation6 + $0x138] sm:$0xff]
    %v3052 = vld [vmem:[#allocation6 + $0x140] sm:$0xff]
    %v3053 = vld [vmem:[#allocation6 + $0x148] sm:$0xff]
    %v3054 = vld [vmem:[#allocation6 + $0x150] sm:$0xff]
    %v3055 = vld [vmem:[#allocation6 + $0x158] sm:$0xff]
    %v3056 = vld [vmem:[#allocation6 + $0x160] sm:$0xff]
    %v3057 = vld [vmem:[#allocation6 + $0x168] sm:$0xff]
    %v3058 = vld [vmem:[#allocation6 + $0x170] sm:$0xff]
    %v3059 = vld [vmem:[#allocation6 + $0x178] sm:$0xff]
    %v3060 = vld [vmem:[#allocation6 + $0x180] sm:$0xff]
    %v3061 = vld [vmem:[#allocation6 + $0x188] sm:$0xff]
    %v3062 = vld [vmem:[#allocation6 + $0x190] sm:$0xff]
    %v3063 = vld [vmem:[#allocation6 + $0x198] sm:$0xff]
    %v3064 = vld [vmem:[#allocation6 + $0x1a0] sm:$0xff]
    %v3065 = vld [vmem:[#allocation6 + $0x1a8] sm:$0xff]
    %v3066 = vld [vmem:[#allocation6 + $0x1b0] sm:$0xff]
    %v3067 = vld [vmem:[#allocation6 + $0x1b8] sm:$0xff]
    %v3068 = vld [vmem:[#allocation6 + $0x1c0] sm:$0xff]
    %v3069 = vld [vmem:[#allocation6 + $0x1c8] sm:$0xff]
    %v3070 = vld [vmem:[#allocation6 + $0x1d0] sm:$0xff]
    %v3071 = vld [vmem:[#allocation6 + $0x1d8] sm:$0xff]
    %v3072 = vld [vmem:[#allocation6 + $0x1e0] sm:$0xff]
    %v3073 = vld [vmem:[#allocation6 + $0x1e8] sm:$0xff]
    %v3074 = vld [vmem:[#allocation6 + $0x1f0] sm:$0xff]
    %v3075 = vld [vmem:[#allocation6 + $0x1f8] sm:$0xff]
    %v3108 = vunpack.c.l.b16 %v3044
    %v3109 = vunpack.c.h.b16 %v3044
    %v3110 = vunpack.c.l.b16 %v3045
    %v3111 = vunpack.c.h.b16 %v3045
    %v3112 = vunpack.c.l.b16 %v3046
    %v3113 = vunpack.c.h.b16 %v3046
    %v3114 = vunpack.c.l.b16 %v3047
    %v3115 = vunpack.c.h.b16 %v3047
    %v3116 = vunpack.c.l.b16 %v3048
    %v3117 = vunpack.c.h.b16 %v3048
    %v3118 = vunpack.c.l.b16 %v3049
    %v3119 = vunpack.c.h.b16 %v3049
    %v3120 = vunpack.c.l.b16 %v3050
    %v3121 = vunpack.c.h.b16 %v3050
    %v3122 = vunpack.c.l.b16 %v3051
    %v3123 = vunpack.c.h.b16 %v3051
    %v3124 = vunpack.c.l.b16 %v3052
    %v3125 = vunpack.c.h.b16 %v3052
    %v3126 = vunpack.c.l.b16 %v3053
    %v3127 = vunpack.c.h.b16 %v3053
    %v3128 = vunpack.c.l.b16 %v3054
    %v3129 = vunpack.c.h.b16 %v3054
    %v3130 = vunpack.c.l.b16 %v3055
    %v3131 = vunpack.c.h.b16 %v3055
    %v3132 = vunpack.c.l.b16 %v3056
    %v3133 = vunpack.c.h.b16 %v3056
    %v3134 = vunpack.c.l.b16 %v3057
    %v3135 = vunpack.c.h.b16 %v3057
    %v3136 = vunpack.c.l.b16 %v3058
    %v3137 = vunpack.c.h.b16 %v3058
    %v3138 = vunpack.c.l.b16 %v3059
    %v3139 = vunpack.c.h.b16 %v3059
    %v3140 = vunpack.c.l.b16 %v3060
    %v3141 = vunpack.c.h.b16 %v3060
    %v3142 = vunpack.c.l.b16 %v3061
    %v3143 = vunpack.c.h.b16 %v3061
    %v3144 = vunpack.c.l.b16 %v3062
    %v3145 = vunpack.c.h.b16 %v3062
    %v3146 = vunpack.c.l.b16 %v3063
    %v3147 = vunpack.c.h.b16 %v3063
    %v3148 = vunpack.c.l.b16 %v3064
    %v3149 = vunpack.c.h.b16 %v3064
    %v3150 = vunpack.c.l.b16 %v3065
    %v3151 = vunpack.c.h.b16 %v3065
    %v3152 = vunpack.c.l.b16 %v3066
    %v3153 = vunpack.c.h.b16 %v3066
    %v3154 = vunpack.c.l.b16 %v3067
    %v3155 = vunpack.c.h.b16 %v3067
    %v3156 = vunpack.c.l.b16 %v3068
    %v3157 = vunpack.c.h.b16 %v3068
    %v3158 = vunpack.c.l.b16 %v3069
    %v3159 = vunpack.c.h.b16 %v3069
    %v3160 = vunpack.c.l.b16 %v3070
    %v3161 = vunpack.c.h.b16 %v3070
    %v3162 = vunpack.c.l.b16 %v3071
    %v3163 = vunpack.c.h.b16 %v3071
    %v3164 = vunpack.c.l.b16 %v3072
    %v3165 = vunpack.c.h.b16 %v3072
    %v3166 = vunpack.c.l.b16 %v3073
    %v3167 = vunpack.c.h.b16 %v3073
    %v3168 = vunpack.c.l.b16 %v3074
    %v3169 = vunpack.c.h.b16 %v3074
    %v3170 = vunpack.c.l.b16 %v3075
    %v3171 = vunpack.c.h.b16 %v3075
    %v3172 = vpack.c.b16 %v3112, %v3108
    %v3173 = vpack.c.b16 %v3113, %v3109
    %v3174 = vpack.c.b16 %v3114, %v3110
    %v3175 = vpack.c.b16 %v3115, %v3111
    %v3176 = vpack.c.b16 %v3120, %v3116
    %v3177 = vpack.c.b16 %v3121, %v3117
    %v3178 = vpack.c.b16 %v3122, %v3118
    %v3179 = vpack.c.b16 %v3123, %v3119
    %v3180 = vpack.c.b16 %v3128, %v3124
    %v3181 = vpack.c.b16 %v3129, %v3125
    %v3182 = vpack.c.b16 %v3130, %v3126
    %v3183 = vpack.c.b16 %v3131, %v3127
    %v3184 = vpack.c.b16 %v3136, %v3132
    %v3185 = vpack.c.b16 %v3137, %v3133
    %v3186 = vpack.c.b16 %v3138, %v3134
    %v3187 = vpack.c.b16 %v3139, %v3135
    %v3188 = vpack.c.b16 %v3144, %v3140
    %v3189 = vpack.c.b16 %v3145, %v3141
    %v3190 = vpack.c.b16 %v3146, %v3142
    %v3191 = vpack.c.b16 %v3147, %v3143
    %v3192 = vpack.c.b16 %v3152, %v3148
    %v3193 = vpack.c.b16 %v3153, %v3149
    %v3194 = vpack.c.b16 %v3154, %v3150
    %v3195 = vpack.c.b16 %v3155, %v3151
    %v3196 = vpack.c.b16 %v3160, %v3156
    %v3197 = vpack.c.b16 %v3161, %v3157
    %v3198 = vpack.c.b16 %v3162, %v3158
    %v3199 = vpack.c.b16 %v3163, %v3159
    %v3200 = vpack.c.b16 %v3168, %v3164
    %v3201 = vpack.c.b16 %v3169, %v3165
    %v3202 = vpack.c.b16 %v3170, %v3166
    %v3203 = vpack.c.b16 %v3171, %v3167
    %3236 = vmatpush.bf16.msra.mxu0 %v3200
    %3237 = vmatpush.bf16.msra.mxu0 %v3196
    %3238 = vmatpush.bf16.msra.mxu0 %v3192
    %3239 = vmatpush.bf16.msra.mxu0 %v3188
    %3240 = vmatpush.bf16.msra.mxu0 %v3184
    %3241 = vmatpush.bf16.msra.mxu0 %v3180
    %3242 = vmatpush.bf16.msra.mxu0 %v3176
    %3243 = vmatpush.bf16.msra.mxu0 %v3172
    %3244 = vmatmul.bf16.gmra.mxu0 %v3043
    %v3245 = vpop.f32.mrf.mxu0
    %v3246 = vadd.f32 0.0, %v3245
    %v3247 = vpop.f32.mrf.mxu0
    %3248 = vdwg.mxu0
    %3249 = vmatpush.bf16.msra.mxu0 %v3201
    %3250 = vmatpush.bf16.msra.mxu0 %v3197
    %3251 = vmatpush.bf16.msra.mxu0 %v3193
    %3252 = vmatpush.bf16.msra.mxu0 %v3189
    %3253 = vmatpush.bf16.msra.mxu0 %v3185
    %3254 = vmatpush.bf16.msra.mxu0 %v3181
    %3255 = vmatpush.bf16.msra.mxu0 %v3177
    %3256 = vmatpush.bf16.msra.mxu0 %v3173
    %3257 = vmatmul.bf16.gmra.mxu0 %v3043
    %v3258 = vpop.f32.mrf.mxu0
    %v3259 = vadd.f32 0.0, %v3258
    %v3260 = vpop.f32.mrf.mxu0
    %3261 = vdwg.mxu0
    %3262 = vmatpush.bf16.msra.mxu0 %v3202
    %3263 = vmatpush.bf16.msra.mxu0 %v3198
    %3264 = vmatpush.bf16.msra.mxu0 %v3194
    %3265 = vmatpush.bf16.msra.mxu0 %v3190
    %3266 = vmatpush.bf16.msra.mxu0 %v3186
    %3267 = vmatpush.bf16.msra.mxu0 %v3182
    %3268 = vmatpush.bf16.msra.mxu0 %v3178
    %3269 = vmatpush.bf16.msra.mxu0 %v3174
    %3270 = vmatmul.bf16.gmra.mxu0 %v3043
    %v3271 = vpop.f32.mrf.mxu0
    %v3272 = vadd.f32 0.0, %v3271
    %v3273 = vpop.f32.mrf.mxu0
    %3274 = vdwg.mxu0
    %3275 = vmatpush.bf16.msra.mxu0 %v3203
    %3276 = vmatpush.bf16.msra.mxu0 %v3199
    %3277 = vmatpush.bf16.msra.mxu0 %v3195
    %3278 = vmatpush.bf16.msra.mxu0 %v3191
    %3279 = vmatpush.bf16.msra.mxu0 %v3187
    %3280 = vmatpush.bf16.msra.mxu0 %v3183
    %3281 = vmatpush.bf16.msra.mxu0 %v3179
    %3282 = vmatpush.bf16.msra.mxu0 %v3175
    %3283 = vmatmul.bf16.gmra.mxu0 %v3043
    %v3284 = vpop.f32.mrf.mxu0
    %v3285 = vadd.f32 0.0, %v3284
    %v3286 = vpop.f32.mrf.mxu0
    %3287 = vdwg.mxu0
    %v3292 = vrot.slane %v3246, 2
    %v3293 = vrot.slane %v3259, 2
    %v3294 = vrot.slane %v3272, 2
    %v3295 = vrot.slane %v3285, 2
    %v3300 = vadd.f32 %v3039, %v3292
    %v3301 = vadd.f32 %v3040, %v3293
    %v3302 = vadd.f32 %v3041, %v3294
    %v3303 = vadd.f32 %v3042, %v3295
    %v3304 = vxor.u32 %v3035, 2147483648
    %v3305 = vxor.u32 %v3036, 2147483648
    %v3306 = vxor.u32 %v3037, 2147483648
    %v3307 = vmul.f32 %v3304, 1.442695
    %v3308 = vpow.pop %v3307
    %v3309 = vmul.f32 %v3305, 1.442695
    %v3310 = vpow.pop %v3309
    %v3311 = vmul.f32 %v3306, 1.442695
    %v3312 = vpow.pop %v3311
    %v3313 = vadd.f32 %v3308, 1.0
    %v3314 = vadd.f32 %v3310, 1.0
    %v3315 = vadd.f32 %v3312, 1.0
    %v3316 = vrcp.pop %v3313
    %v3317 = vmul.f32 %v3313, %v3316
    %v3318 = vsub.f32 1.0, %v3317
    %v3319 = vmul.f32 %v3316, %v3318
    %v3320 = vadd.f32 %v3316, %v3319
    %vm3321 = vweird.f32 %v3313
    %vm3322 = vweird.f32 %v3316
    %vm3323 = vmor %vm3321, %vm3322
    %v3324 = vsel %vm3323, %v3316, %v3320
    %v3325 = vand.u32 2147483647, %v3313
    %vm3326 = vcmp.eq.f32.partialorder %v3325, 8.507059e+37
    %v3327 = vand.u32 %v3313, 2147483648
    %v3328 = vor.u32 1.1754944e-38, %v3327
    %v3329 = vsel %vm3326, %v3328, %v3324
    %v3330 = vmul.f32 1.0, %v3329
    %v3331 = vrcp.pop %v3314
    %v3332 = vmul.f32 %v3314, %v3331
    %v3333 = vsub.f32 1.0, %v3332
    %v3334 = vmul.f32 %v3331, %v3333
    %v3335 = vadd.f32 %v3331, %v3334
    %vm3336 = vweird.f32 %v3314
    %vm3337 = vweird.f32 %v3331
    %vm3338 = vmor %vm3336, %vm3337
    %v3339 = vsel %vm3338, %v3331, %v3335
    %v3340 = vand.u32 2147483647, %v3314
    %vm3341 = vcmp.eq.f32.partialorder %v3340, 8.507059e+37
    %v3342 = vand.u32 %v3314, 2147483648
    %v3343 = vor.u32 1.1754944e-38, %v3342
    %v3344 = vsel %vm3341, %v3343, %v3339
    %v3345 = vmul.f32 1.0, %v3344
    %v3346 = vrcp.pop %v3315
    %v3347 = vmul.f32 %v3315, %v3346
    %v3348 = vsub.f32 1.0, %v3347
    %v3349 = vmul.f32 %v3346, %v3348
    %v3350 = vadd.f32 %v3346, %v3349
    %vm3351 = vweird.f32 %v3315
    %vm3352 = vweird.f32 %v3346
    %vm3353 = vmor %vm3351, %vm3352
    %v3354 = vsel %vm3353, %v3346, %v3350
    %v3355 = vand.u32 2147483647, %v3315
    %vm3356 = vcmp.eq.f32.partialorder %v3355, 8.507059e+37
    %v3357 = vand.u32 %v3315, 2147483648
    %v3358 = vor.u32 1.1754944e-38, %v3357
    %v3359 = vsel %vm3356, %v3358, %v3354
    %v3360 = vmul.f32 1.0, %v3359
    %v3361 = vtanh.pop %v3038
    %v3363 = vrot.slane %v2712, 6
    %v3365 = vmul.f32 %v3345, %v3363
    %v3366 = vmul.f32 %v3330, %v3361
    %v3367 = vadd.f32 %v3365, %v3366
    %v3368 = vtanh.pop %v3367
    %v3369 = vmul.f32 %v3360, %v3368
    %v3370 = vxor.u32 %v3300, 2147483648
    %v3371 = vxor.u32 %v3301, 2147483648
    %v3372 = vxor.u32 %v3302, 2147483648
    %v3373 = vmul.f32 %v3370, 1.442695
    %v3374 = vpow.pop %v3373
    %v3375 = vmul.f32 %v3371, 1.442695
    %v3376 = vpow.pop %v3375
    %v3377 = vmul.f32 %v3372, 1.442695
    %v3378 = vpow.pop %v3377
    %v3379 = vadd.f32 %v3374, 1.0
    %v3380 = vadd.f32 %v3376, 1.0
    %v3381 = vadd.f32 %v3378, 1.0
    %v3382 = vrcp.pop %v3379
    %v3383 = vmul.f32 %v3379, %v3382
    %v3384 = vsub.f32 1.0, %v3383
    %v3385 = vmul.f32 %v3382, %v3384
    %v3386 = vadd.f32 %v3382, %v3385
    %vm3387 = vweird.f32 %v3379
    %vm3388 = vweird.f32 %v3382
    %vm3389 = vmor %vm3387, %vm3388
    %v3390 = vsel %vm3389, %v3382, %v3386
    %v3391 = vand.u32 2147483647, %v3379
    %vm3392 = vcmp.eq.f32.partialorder %v3391, 8.507059e+37
    %v3393 = vand.u32 %v3379, 2147483648
    %v3394 = vor.u32 1.1754944e-38, %v3393
    %v3395 = vsel %vm3392, %v3394, %v3390
    %v3396 = vmul.f32 1.0, %v3395
    %v3397 = vrcp.pop %v3380
    %v3398 = vmul.f32 %v3380, %v3397
    %v3399 = vsub.f32 1.0, %v3398
    %v3400 = vmul.f32 %v3397, %v3399
    %v3401 = vadd.f32 %v3397, %v3400
    %vm3402 = vweird.f32 %v3380
    %vm3403 = vweird.f32 %v3397
    %vm3404 = vmor %vm3402, %vm3403
    %v3405 = vsel %vm3404, %v3397, %v3401
    %v3406 = vand.u32 2147483647, %v3380
    %vm3407 = vcmp.eq.f32.partialorder %v3406, 8.507059e+37
    %v3408 = vand.u32 %v3380, 2147483648
    %v3409 = vor.u32 1.1754944e-38, %v3408
    %v3410 = vsel %vm3407, %v3409, %v3405
    %v3411 = vmul.f32 1.0, %v3410
    %v3412 = vrcp.pop %v3381
    %v3413 = vmul.f32 %v3381, %v3412
    %v3414 = vsub.f32 1.0, %v3413
    %v3415 = vmul.f32 %v3412, %v3414
    %v3416 = vadd.f32 %v3412, %v3415
    %vm3417 = vweird.f32 %v3381
    %vm3418 = vweird.f32 %v3412
    %vm3419 = vmor %vm3417, %vm3418
    %v3420 = vsel %vm3419, %v3412, %v3416
    %v3421 = vand.u32 2147483647, %v3381
    %vm3422 = vcmp.eq.f32.partialorder %v3421, 8.507059e+37
    %v3423 = vand.u32 %v3381, 2147483648
    %v3424 = vor.u32 1.1754944e-38, %v3423
    %v3425 = vsel %vm3422, %v3424, %v3420
    %v3426 = vmul.f32 1.0, %v3425
    %v3427 = vtanh.pop %v3303
    %v3429 = vrot.slane %v2778, 2
    %v3431 = vmul.f32 %v3411, %v3429
    %v3432 = vmul.f32 %v3396, %v3427
    %v3433 = vadd.f32 %v3431, %v3432
    %v3434 = vtanh.pop %v3433
    %v3435 = vmul.f32 %v3426, %v3434
    %3436 = vst [vmem:[%s5 + $0x8] sm:$0x3] %v3369
    %3437 = vst [vmem:[%s124] sm:$0xc0] %v3435
    %v3438 = vld [vmem:[#allocation4 + $0x20] sm:$0xc]
    %v3439 = vld [vmem:[#allocation4 + $0x28] sm:$0xc]
    %v3440 = vld [vmem:[#allocation4 + $0x30] sm:$0xc]
    %v3441 = vld [vmem:[#allocation4 + $0x38] sm:$0xc]
    %v3442 = vpack.c.bf16 %v3369, %v3369
    %v3443 = vld [vmem:[#allocation6] sm:$0xff]
    %v3444 = vld [vmem:[#allocation6 + $0x8] sm:$0xff]
    %v3445 = vld [vmem:[#allocation6 + $0x10] sm:$0xff]
    %v3446 = vld [vmem:[#allocation6 + $0x18] sm:$0xff]
    %v3447 = vld [vmem:[#allocation6 + $0x20] sm:$0xff]
    %v3448 = vld [vmem:[#allocation6 + $0x28] sm:$0xff]
    %v3449 = vld [vmem:[#allocation6 + $0x30] sm:$0xff]
    %v3450 = vld [vmem:[#allocation6 + $0x38] sm:$0xff]
    %v3451 = vld [vmem:[#allocation6 + $0x40] sm:$0xff]
    %v3452 = vld [vmem:[#allocation6 + $0x48] sm:$0xff]
    %v3453 = vld [vmem:[#allocation6 + $0x50] sm:$0xff]
    %v3454 = vld [vmem:[#allocation6 + $0x58] sm:$0xff]
    %v3455 = vld [vmem:[#allocation6 + $0x60] sm:$0xff]
    %v3456 = vld [vmem:[#allocation6 + $0x68] sm:$0xff]
    %v3457 = vld [vmem:[#allocation6 + $0x70] sm:$0xff]
    %v3458 = vld [vmem:[#allocation6 + $0x78] sm:$0xff]
    %v3459 = vld [vmem:[#allocation6 + $0x80] sm:$0xff]
    %v3460 = vld [vmem:[#allocation6 + $0x88] sm:$0xff]
    %v3461 = vld [vmem:[#allocation6 + $0x90] sm:$0xff]
    %v3462 = vld [vmem:[#allocation6 + $0x98] sm:$0xff]
    %v3463 = vld [vmem:[#allocation6 + $0xa0] sm:$0xff]
    %v3464 = vld [vmem:[#allocation6 + $0xa8] sm:$0xff]
    %v3465 = vld [vmem:[#allocation6 + $0xb0] sm:$0xff]
    %v3466 = vld [vmem:[#allocation6 + $0xb8] sm:$0xff]
    %v3467 = vld [vmem:[#allocation6 + $0xc0] sm:$0xff]
    %v3468 = vld [vmem:[#allocation6 + $0xc8] sm:$0xff]
    %v3469 = vld [vmem:[#allocation6 + $0xd0] sm:$0xff]
    %v3470 = vld [vmem:[#allocation6 + $0xd8] sm:$0xff]
    %v3471 = vld [vmem:[#allocation6 + $0xe0] sm:$0xff]
    %v3472 = vld [vmem:[#allocation6 + $0xe8] sm:$0xff]
    %v3473 = vld [vmem:[#allocation6 + $0xf0] sm:$0xff]
    %v3474 = vld [vmem:[#allocation6 + $0xf8] sm:$0xff]
    %v3507 = vunpack.c.l.b16 %v3443
    %v3508 = vunpack.c.h.b16 %v3443
    %v3509 = vunpack.c.l.b16 %v3444
    %v3510 = vunpack.c.h.b16 %v3444
    %v3511 = vunpack.c.l.b16 %v3445
    %v3512 = vunpack.c.h.b16 %v3445
    %v3513 = vunpack.c.l.b16 %v3446
    %v3514 = vunpack.c.h.b16 %v3446
    %v3515 = vunpack.c.l.b16 %v3447
    %v3516 = vunpack.c.h.b16 %v3447
    %v3517 = vunpack.c.l.b16 %v3448
    %v3518 = vunpack.c.h.b16 %v3448
    %v3519 = vunpack.c.l.b16 %v3449
    %v3520 = vunpack.c.h.b16 %v3449
    %v3521 = vunpack.c.l.b16 %v3450
    %v3522 = vunpack.c.h.b16 %v3450
    %v3523 = vunpack.c.l.b16 %v3451
    %v3524 = vunpack.c.h.b16 %v3451
    %v3525 = vunpack.c.l.b16 %v3452
    %v3526 = vunpack.c.h.b16 %v3452
    %v3527 = vunpack.c.l.b16 %v3453
    %v3528 = vunpack.c.h.b16 %v3453
    %v3529 = vunpack.c.l.b16 %v3454
    %v3530 = vunpack.c.h.b16 %v3454
    %v3531 = vunpack.c.l.b16 %v3455
    %v3532 = vunpack.c.h.b16 %v3455
    %v3533 = vunpack.c.l.b16 %v3456
    %v3534 = vunpack.c.h.b16 %v3456
    %v3535 = vunpack.c.l.b16 %v3457
    %v3536 = vunpack.c.h.b16 %v3457
    %v3537 = vunpack.c.l.b16 %v3458
    %v3538 = vunpack.c.h.b16 %v3458
    %v3539 = vunpack.c.l.b16 %v3459
    %v3540 = vunpack.c.h.b16 %v3459
    %v3541 = vunpack.c.l.b16 %v3460
    %v3542 = vunpack.c.h.b16 %v3460
    %v3543 = vunpack.c.l.b16 %v3461
    %v3544 = vunpack.c.h.b16 %v3461
    %v3545 = vunpack.c.l.b16 %v3462
    %v3546 = vunpack.c.h.b16 %v3462
    %v3547 = vunpack.c.l.b16 %v3463
    %v3548 = vunpack.c.h.b16 %v3463
    %v3549 = vunpack.c.l.b16 %v3464
    %v3550 = vunpack.c.h.b16 %v3464
    %v3551 = vunpack.c.l.b16 %v3465
    %v3552 = vunpack.c.h.b16 %v3465
    %v3553 = vunpack.c.l.b16 %v3466
    %v3554 = vunpack.c.h.b16 %v3466
    %v3555 = vunpack.c.l.b16 %v3467
    %v3556 = vunpack.c.h.b16 %v3467
    %v3557 = vunpack.c.l.b16 %v3468
    %v3558 = vunpack.c.h.b16 %v3468
    %v3559 = vunpack.c.l.b16 %v3469
    %v3560 = vunpack.c.h.b16 %v3469
    %v3561 = vunpack.c.l.b16 %v3470
    %v3562 = vunpack.c.h.b16 %v3470
    %v3563 = vunpack.c.l.b16 %v3471
    %v3564 = vunpack.c.h.b16 %v3471
    %v3565 = vunpack.c.l.b16 %v3472
    %v3566 = vunpack.c.h.b16 %v3472
    %v3567 = vunpack.c.l.b16 %v3473
    %v3568 = vunpack.c.h.b16 %v3473
    %v3569 = vunpack.c.l.b16 %v3474
    %v3570 = vunpack.c.h.b16 %v3474
    %v3571 = vpack.c.b16 %v3511, %v3507
    %v3572 = vpack.c.b16 %v3512, %v3508
    %v3573 = vpack.c.b16 %v3513, %v3509
    %v3574 = vpack.c.b16 %v3514, %v3510
    %v3575 = vpack.c.b16 %v3519, %v3515
    %v3576 = vpack.c.b16 %v3520, %v3516
    %v3577 = vpack.c.b16 %v3521, %v3517
    %v3578 = vpack.c.b16 %v3522, %v3518
    %v3579 = vpack.c.b16 %v3527, %v3523
    %v3580 = vpack.c.b16 %v3528, %v3524
    %v3581 = vpack.c.b16 %v3529, %v3525
    %v3582 = vpack.c.b16 %v3530, %v3526
    %v3583 = vpack.c.b16 %v3535, %v3531
    %v3584 = vpack.c.b16 %v3536, %v3532
    %v3585 = vpack.c.b16 %v3537, %v3533
    %v3586 = vpack.c.b16 %v3538, %v3534
    %v3587 = vpack.c.b16 %v3543, %v3539
    %v3588 = vpack.c.b16 %v3544, %v3540
    %v3589 = vpack.c.b16 %v3545, %v3541
    %v3590 = vpack.c.b16 %v3546, %v3542
    %v3591 = vpack.c.b16 %v3551, %v3547
    %v3592 = vpack.c.b16 %v3552, %v3548
    %v3593 = vpack.c.b16 %v3553, %v3549
    %v3594 = vpack.c.b16 %v3554, %v3550
    %v3595 = vpack.c.b16 %v3559, %v3555
    %v3596 = vpack.c.b16 %v3560, %v3556
    %v3597 = vpack.c.b16 %v3561, %v3557
    %v3598 = vpack.c.b16 %v3562, %v3558
    %v3599 = vpack.c.b16 %v3567, %v3563
    %v3600 = vpack.c.b16 %v3568, %v3564
    %v3601 = vpack.c.b16 %v3569, %v3565
    %v3602 = vpack.c.b16 %v3570, %v3566
    %3635 = vmatpush.bf16.msra.mxu0 %v3599
    %3636 = vmatpush.bf16.msra.mxu0 %v3595
    %3637 = vmatpush.bf16.msra.mxu0 %v3591
    %3638 = vmatpush.bf16.msra.mxu0 %v3587
    %3639 = vmatpush.bf16.msra.mxu0 %v3583
    %3640 = vmatpush.bf16.msra.mxu0 %v3579
    %3641 = vmatpush.bf16.msra.mxu0 %v3575
    %3642 = vmatpush.bf16.msra.mxu0 %v3571
    %3643 = vmatmul.bf16.gmra.mxu0 %v3442
    %v3644 = vpop.f32.mrf.mxu0
    %v3645 = vadd.f32 0.0, %v3644
    %v3646 = vpop.f32.mrf.mxu0
    %3647 = vdwg.mxu0
    %3648 = vmatpush.bf16.msra.mxu0 %v3600
    %3649 = vmatpush.bf16.msra.mxu0 %v3596
    %3650 = vmatpush.bf16.msra.mxu0 %v3592
    %3651 = vmatpush.bf16.msra.mxu0 %v3588
    %3652 = vmatpush.bf16.msra.mxu0 %v3584
    %3653 = vmatpush.bf16.msra.mxu0 %v3580
    %3654 = vmatpush.bf16.msra.mxu0 %v3576
    %3655 = vmatpush.bf16.msra.mxu0 %v3572
    %3656 = vmatmul.bf16.gmra.mxu0 %v3442
    %v3657 = vpop.f32.mrf.mxu0
    %v3658 = vadd.f32 0.0, %v3657
    %v3659 = vpop.f32.mrf.mxu0
    %3660 = vdwg.mxu0
    %3661 = vmatpush.bf16.msra.mxu0 %v3601
    %3662 = vmatpush.bf16.msra.mxu0 %v3597
    %3663 = vmatpush.bf16.msra.mxu0 %v3593
    %3664 = vmatpush.bf16.msra.mxu0 %v3589
    %3665 = vmatpush.bf16.msra.mxu0 %v3585
    %3666 = vmatpush.bf16.msra.mxu0 %v3581
    %3667 = vmatpush.bf16.msra.mxu0 %v3577
    %3668 = vmatpush.bf16.msra.mxu0 %v3573
    %3669 = vmatmul.bf16.gmra.mxu0 %v3442
    %v3670 = vpop.f32.mrf.mxu0
    %v3671 = vadd.f32 0.0, %v3670
    %v3672 = vpop.f32.mrf.mxu0
    %3673 = vdwg.mxu0
    %3674 = vmatpush.bf16.msra.mxu0 %v3602
    %3675 = vmatpush.bf16.msra.mxu0 %v3598
    %3676 = vmatpush.bf16.msra.mxu0 %v3594
    %3677 = vmatpush.bf16.msra.mxu0 %v3590
    %3678 = vmatpush.bf16.msra.mxu0 %v3586
    %3679 = vmatpush.bf16.msra.mxu0 %v3582
    %3680 = vmatpush.bf16.msra.mxu0 %v3578
    %3681 = vmatpush.bf16.msra.mxu0 %v3574
    %3682 = vmatmul.bf16.gmra.mxu0 %v3442
    %v3683 = vpop.f32.mrf.mxu0
    %v3684 = vadd.f32 0.0, %v3683
    %v3685 = vpop.f32.mrf.mxu0
    %3686 = vdwg.mxu0
    %v3691 = vrot.slane %v3645, 6
    %v3692 = vrot.slane %v3658, 6
    %v3693 = vrot.slane %v3671, 6
    %v3694 = vrot.slane %v3684, 6
    %v3699 = vadd.f32 %v3438, %v3691
    %v3700 = vadd.f32 %v3439, %v3692
    %v3701 = vadd.f32 %v3440, %v3693
    %v3702 = vadd.f32 %v3441, %v3694
    %v3703 = vld [vmem:[#allocation5] sm:$0x30]
    %v3704 = vld [vmem:[#allocation5 + $0x8] sm:$0x30]
    %v3705 = vld [vmem:[#allocation5 + $0x10] sm:$0x30]
    %v3706 = vld [vmem:[#allocation5 + $0x18] sm:$0x30]
    %v3707 = vpack.c.bf16 %v3435, %v3435
    %v3708 = vld [vmem:[#allocation6 + $0x100] sm:$0xff]
    %v3709 = vld [vmem:[#allocation6 + $0x108] sm:$0xff]
    %v3710 = vld [vmem:[#allocation6 + $0x110] sm:$0xff]
    %v3711 = vld [vmem:[#allocation6 + $0x118] sm:$0xff]
    %v3712 = vld [vmem:[#allocation6 + $0x120] sm:$0xff]
    %v3713 = vld [vmem:[#allocation6 + $0x128] sm:$0xff]
    %v3714 = vld [vmem:[#allocation6 + $0x130] sm:$0xff]
    %v3715 = vld [vmem:[#allocation6 + $0x138] sm:$0xff]
    %v3716 = vld [vmem:[#allocation6 + $0x140] sm:$0xff]
    %v3717 = vld [vmem:[#allocation6 + $0x148] sm:$0xff]
    %v3718 = vld [vmem:[#allocation6 + $0x150] sm:$0xff]
    %v3719 = vld [vmem:[#allocation6 + $0x158] sm:$0xff]
    %v3720 = vld [vmem:[#allocation6 + $0x160] sm:$0xff]
    %v3721 = vld [vmem:[#allocation6 + $0x168] sm:$0xff]
    %v3722 = vld [vmem:[#allocation6 + $0x170] sm:$0xff]
    %v3723 = vld [vmem:[#allocation6 + $0x178] sm:$0xff]
    %v3724 = vld [vmem:[#allocation6 + $0x180] sm:$0xff]
    %v3725 = vld [vmem:[#allocation6 + $0x188] sm:$0xff]
    %v3726 = vld [vmem:[#allocation6 + $0x190] sm:$0xff]
    %v3727 = vld [vmem:[#allocation6 + $0x198] sm:$0xff]
    %v3728 = vld [vmem:[#allocation6 + $0x1a0] sm:$0xff]
    %v3729 = vld [vmem:[#allocation6 + $0x1a8] sm:$0xff]
    %v3730 = vld [vmem:[#allocation6 + $0x1b0] sm:$0xff]
    %v3731 = vld [vmem:[#allocation6 + $0x1b8] sm:$0xff]
    %v3732 = vld [vmem:[#allocation6 + $0x1c0] sm:$0xff]
    %v3733 = vld [vmem:[#allocation6 + $0x1c8] sm:$0xff]
    %v3734 = vld [vmem:[#allocation6 + $0x1d0] sm:$0xff]
    %v3735 = vld [vmem:[#allocation6 + $0x1d8] sm:$0xff]
    %v3736 = vld [vmem:[#allocation6 + $0x1e0] sm:$0xff]
    %v3737 = vld [vmem:[#allocation6 + $0x1e8] sm:$0xff]
    %v3738 = vld [vmem:[#allocation6 + $0x1f0] sm:$0xff]
    %v3739 = vld [vmem:[#allocation6 + $0x1f8] sm:$0xff]
    %v3741 = vrot.slane %v3707, 3
    %v3775 = vunpack.c.l.b16 %v3708
    %v3776 = vunpack.c.h.b16 %v3708
    %v3777 = vunpack.c.l.b16 %v3709
    %v3778 = vunpack.c.h.b16 %v3709
    %v3779 = vunpack.c.l.b16 %v3710
    %v3780 = vunpack.c.h.b16 %v3710
    %v3781 = vunpack.c.l.b16 %v3711
    %v3782 = vunpack.c.h.b16 %v3711
    %v3783 = vunpack.c.l.b16 %v3712
    %v3784 = vunpack.c.h.b16 %v3712
    %v3785 = vunpack.c.l.b16 %v3713
    %v3786 = vunpack.c.h.b16 %v3713
    %v3787 = vunpack.c.l.b16 %v3714
    %v3788 = vunpack.c.h.b16 %v3714
    %v3789 = vunpack.c.l.b16 %v3715
    %v3790 = vunpack.c.h.b16 %v3715
    %v3791 = vunpack.c.l.b16 %v3716
    %v3792 = vunpack.c.h.b16 %v3716
    %v3793 = vunpack.c.l.b16 %v3717
    %v3794 = vunpack.c.h.b16 %v3717
    %v3795 = vunpack.c.l.b16 %v3718
    %v3796 = vunpack.c.h.b16 %v3718
    %v3797 = vunpack.c.l.b16 %v3719
    %v3798 = vunpack.c.h.b16 %v3719
    %v3799 = vunpack.c.l.b16 %v3720
    %v3800 = vunpack.c.h.b16 %v3720
    %v3801 = vunpack.c.l.b16 %v3721
    %v3802 = vunpack.c.h.b16 %v3721
    %v3803 = vunpack.c.l.b16 %v3722
    %v3804 = vunpack.c.h.b16 %v3722
    %v3805 = vunpack.c.l.b16 %v3723
    %v3806 = vunpack.c.h.b16 %v3723
    %v3807 = vunpack.c.l.b16 %v3724
    %v3808 = vunpack.c.h.b16 %v3724
    %v3809 = vunpack.c.l.b16 %v3725
    %v3810 = vunpack.c.h.b16 %v3725
    %v3811 = vunpack.c.l.b16 %v3726
    %v3812 = vunpack.c.h.b16 %v3726
    %v3813 = vunpack.c.l.b16 %v3727
    %v3814 = vunpack.c.h.b16 %v3727
    %v3815 = vunpack.c.l.b16 %v3728
    %v3816 = vunpack.c.h.b16 %v3728
    %v3817 = vunpack.c.l.b16 %v3729
    %v3818 = vunpack.c.h.b16 %v3729
    %v3819 = vunpack.c.l.b16 %v3730
    %v3820 = vunpack.c.h.b16 %v3730
    %v3821 = vunpack.c.l.b16 %v3731
    %v3822 = vunpack.c.h.b16 %v3731
    %v3823 = vunpack.c.l.b16 %v3732
    %v3824 = vunpack.c.h.b16 %v3732
    %v3825 = vunpack.c.l.b16 %v3733
    %v3826 = vunpack.c.h.b16 %v3733
    %v3827 = vunpack.c.l.b16 %v3734
    %v3828 = vunpack.c.h.b16 %v3734
    %v3829 = vunpack.c.l.b16 %v3735
    %v3830 = vunpack.c.h.b16 %v3735
    %v3831 = vunpack.c.l.b16 %v3736
    %v3832 = vunpack.c.h.b16 %v3736
    %v3833 = vunpack.c.l.b16 %v3737
    %v3834 = vunpack.c.h.b16 %v3737
    %v3835 = vunpack.c.l.b16 %v3738
    %v3836 = vunpack.c.h.b16 %v3738
    %v3837 = vunpack.c.l.b16 %v3739
    %v3838 = vunpack.c.h.b16 %v3739
    %v3839 = vpack.c.b16 %v3779, %v3775
    %v3840 = vpack.c.b16 %v3780, %v3776
    %v3841 = vpack.c.b16 %v3781, %v3777
    %v3842 = vpack.c.b16 %v3782, %v3778
    %v3843 = vpack.c.b16 %v3787, %v3783
    %v3844 = vpack.c.b16 %v3788, %v3784
    %v3845 = vpack.c.b16 %v3789, %v3785
    %v3846 = vpack.c.b16 %v3790, %v3786
    %v3847 = vpack.c.b16 %v3795, %v3791
    %v3848 = vpack.c.b16 %v3796, %v3792
    %v3849 = vpack.c.b16 %v3797, %v3793
    %v3850 = vpack.c.b16 %v3798, %v3794
    %v3851 = vpack.c.b16 %v3803, %v3799
    %v3852 = vpack.c.b16 %v3804, %v3800
    %v3853 = vpack.c.b16 %v3805, %v3801
    %v3854 = vpack.c.b16 %v3806, %v3802
    %v3855 = vpack.c.b16 %v3811, %v3807
    %v3856 = vpack.c.b16 %v3812, %v3808
    %v3857 = vpack.c.b16 %v3813, %v3809
    %v3858 = vpack.c.b16 %v3814, %v3810
    %v3859 = vpack.c.b16 %v3819, %v3815
    %v3860 = vpack.c.b16 %v3820, %v3816
    %v3861 = vpack.c.b16 %v3821, %v3817
    %v3862 = vpack.c.b16 %v3822, %v3818
    %v3863 = vpack.c.b16 %v3827, %v3823
    %v3864 = vpack.c.b16 %v3828, %v3824
    %v3865 = vpack.c.b16 %v3829, %v3825
    %v3866 = vpack.c.b16 %v3830, %v3826
    %v3867 = vpack.c.b16 %v3835, %v3831
    %v3868 = vpack.c.b16 %v3836, %v3832
    %v3869 = vpack.c.b16 %v3837, %v3833
    %v3870 = vpack.c.b16 %v3838, %v3834
    %3903 = vmatpush.bf16.msra.mxu0 %v3867
    %3904 = vmatpush.bf16.msra.mxu0 %v3863
    %3905 = vmatpush.bf16.msra.mxu0 %v3859
    %3906 = vmatpush.bf16.msra.mxu0 %v3855
    %3907 = vmatpush.bf16.msra.mxu0 %v3851
    %3908 = vmatpush.bf16.msra.mxu0 %v3847
    %3909 = vmatpush.bf16.msra.mxu0 %v3843
    %3910 = vmatpush.bf16.msra.mxu0 %v3839
    %3911 = vmatmul.bf16.gmra.mxu0 %v3741
    %v3912 = vpop.f32.mrf.mxu0
    %v3913 = vadd.f32 0.0, %v3912
    %v3914 = vpop.f32.mrf.mxu0
    %3915 = vdwg.mxu0
    %3916 = vmatpush.bf16.msra.mxu0 %v3868
    %3917 = vmatpush.bf16.msra.mxu0 %v3864
    %3918 = vmatpush.bf16.msra.mxu0 %v3860
    %3919 = vmatpush.bf16.msra.mxu0 %v3856
    %3920 = vmatpush.bf16.msra.mxu0 %v3852
    %3921 = vmatpush.bf16.msra.mxu0 %v3848
    %3922 = vmatpush.bf16.msra.mxu0 %v3844
    %3923 = vmatpush.bf16.msra.mxu0 %v3840
    %3924 = vmatmul.bf16.gmra.mxu0 %v3741
    %v3925 = vpop.f32.mrf.mxu0
    %v3926 = vadd.f32 0.0, %v3925
    %v3927 = vpop.f32.mrf.mxu0
    %3928 = vdwg.mxu0
    %3929 = vmatpush.bf16.msra.mxu0 %v3869
    %3930 = vmatpush.bf16.msra.mxu0 %v3865
    %3931 = vmatpush.bf16.msra.mxu0 %v3861
    %3932 = vmatpush.bf16.msra.mxu0 %v3857
    %3933 = vmatpush.bf16.msra.mxu0 %v3853
    %3934 = vmatpush.bf16.msra.mxu0 %v3849
    %3935 = vmatpush.bf16.msra.mxu0 %v3845
    %3936 = vmatpush.bf16.msra.mxu0 %v3841
    %3937 = vmatmul.bf16.gmra.mxu0 %v3741
    %v3938 = vpop.f32.mrf.mxu0
    %v3939 = vadd.f32 0.0, %v3938
    %v3940 = vpop.f32.mrf.mxu0
    %3941 = vdwg.mxu0
    %3942 = vmatpush.bf16.msra.mxu0 %v3870
    %3943 = vmatpush.bf16.msra.mxu0 %v3866
    %3944 = vmatpush.bf16.msra.mxu0 %v3862
    %3945 = vmatpush.bf16.msra.mxu0 %v3858
    %3946 = vmatpush.bf16.msra.mxu0 %v3854
    %3947 = vmatpush.bf16.msra.mxu0 %v3850
    %3948 = vmatpush.bf16.msra.mxu0 %v3846
    %3949 = vmatpush.bf16.msra.mxu0 %v3842
    %3950 = vmatmul.bf16.gmra.mxu0 %v3741
    %v3951 = vpop.f32.mrf.mxu0
    %v3952 = vadd.f32 0.0, %v3951
    %v3953 = vpop.f32.mrf.mxu0
    %3954 = vdwg.mxu0
    %v3959 = vrot.slane %v3913, 4
    %v3960 = vrot.slane %v3926, 4
    %v3961 = vrot.slane %v3939, 4
    %v3962 = vrot.slane %v3952, 4
    %v3967 = vadd.f32 %v3703, %v3959
    %v3968 = vadd.f32 %v3704, %v3960
    %v3969 = vadd.f32 %v3705, %v3961
    %v3970 = vadd.f32 %v3706, %v3962
    %v3971 = vxor.u32 %v3699, 2147483648
    %v3972 = vxor.u32 %v3700, 2147483648
    %v3973 = vxor.u32 %v3701, 2147483648
    %v3974 = vmul.f32 %v3971, 1.442695
    %v3975 = vpow.pop %v3974
    %v3976 = vmul.f32 %v3972, 1.442695
    %v3977 = vpow.pop %v3976
    %v3978 = vmul.f32 %v3973, 1.442695
    %v3979 = vpow.pop %v3978
    %v3980 = vadd.f32 %v3975, 1.0
    %v3981 = vadd.f32 %v3977, 1.0
    %v3982 = vadd.f32 %v3979, 1.0
    %v3983 = vrcp.pop %v3980
    %v3984 = vmul.f32 %v3980, %v3983
    %v3985 = vsub.f32 1.0, %v3984
    %v3986 = vmul.f32 %v3983, %v3985
    %v3987 = vadd.f32 %v3983, %v3986
    %vm3988 = vweird.f32 %v3980
    %vm3989 = vweird.f32 %v3983
    %vm3990 = vmor %vm3988, %vm3989
    %v3991 = vsel %vm3990, %v3983, %v3987
    %v3992 = vand.u32 2147483647, %v3980
    %vm3993 = vcmp.eq.f32.partialorder %v3992, 8.507059e+37
    %v3994 = vand.u32 %v3980, 2147483648
    %v3995 = vor.u32 1.1754944e-38, %v3994
    %v3996 = vsel %vm3993, %v3995, %v3991
    %v3997 = vmul.f32 1.0, %v3996
    %v3998 = vrcp.pop %v3981
    %v3999 = vmul.f32 %v3981, %v3998
    %v4000 = vsub.f32 1.0, %v3999
    %v4001 = vmul.f32 %v3998, %v4000
    %v4002 = vadd.f32 %v3998, %v4001
    %vm4003 = vweird.f32 %v3981
    %vm4004 = vweird.f32 %v3998
    %vm4005 = vmor %vm4003, %vm4004
    %v4006 = vsel %vm4005, %v3998, %v4002
    %v4007 = vand.u32 2147483647, %v3981
    %vm4008 = vcmp.eq.f32.partialorder %v4007, 8.507059e+37
    %v4009 = vand.u32 %v3981, 2147483648
    %v4010 = vor.u32 1.1754944e-38, %v4009
    %v4011 = vsel %vm4008, %v4010, %v4006
    %v4012 = vmul.f32 1.0, %v4011
    %v4013 = vrcp.pop %v3982
    %v4014 = vmul.f32 %v3982, %v4013
    %v4015 = vsub.f32 1.0, %v4014
    %v4016 = vmul.f32 %v4013, %v4015
    %v4017 = vadd.f32 %v4013, %v4016
    %vm4018 = vweird.f32 %v3982
    %vm4019 = vweird.f32 %v4013
    %vm4020 = vmor %vm4018, %vm4019
    %v4021 = vsel %vm4020, %v4013, %v4017
    %v4022 = vand.u32 2147483647, %v3982
    %vm4023 = vcmp.eq.f32.partialorder %v4022, 8.507059e+37
    %v4024 = vand.u32 %v3982, 2147483648
    %v4025 = vor.u32 1.1754944e-38, %v4024
    %v4026 = vsel %vm4023, %v4025, %v4021
    %v4027 = vmul.f32 1.0, %v4026
    %v4028 = vtanh.pop %v3702
    %v4030 = vrot.slane %v3367, 6
    %v4032 = vmul.f32 %v4012, %v4030
    %v4033 = vmul.f32 %v3997, %v4028
    %v4034 = vadd.f32 %v4032, %v4033
    %v4035 = vtanh.pop %v4034
    %v4036 = vmul.f32 %v4027, %v4035
    %v4037 = vxor.u32 %v3967, 2147483648
    %v4038 = vxor.u32 %v3968, 2147483648
    %v4039 = vxor.u32 %v3969, 2147483648
    %v4040 = vmul.f32 %v4037, 1.442695
    %v4041 = vpow.pop %v4040
    %v4042 = vmul.f32 %v4038, 1.442695
    %v4043 = vpow.pop %v4042
    %v4044 = vmul.f32 %v4039, 1.442695
    %v4045 = vpow.pop %v4044
    %v4046 = vadd.f32 %v4041, 1.0
    %v4047 = vadd.f32 %v4043, 1.0
    %v4048 = vadd.f32 %v4045, 1.0
    %v4049 = vrcp.pop %v4046
    %v4050 = vmul.f32 %v4046, %v4049
    %v4051 = vsub.f32 1.0, %v4050
    %v4052 = vmul.f32 %v4049, %v4051
    %v4053 = vadd.f32 %v4049, %v4052
    %vm4054 = vweird.f32 %v4046
    %vm4055 = vweird.f32 %v4049
    %vm4056 = vmor %vm4054, %vm4055
    %v4057 = vsel %vm4056, %v4049, %v4053
    %v4058 = vand.u32 2147483647, %v4046
    %vm4059 = vcmp.eq.f32.partialorder %v4058, 8.507059e+37
    %v4060 = vand.u32 %v4046, 2147483648
    %v4061 = vor.u32 1.1754944e-38, %v4060
    %v4062 = vsel %vm4059, %v4061, %v4057
    %v4063 = vmul.f32 1.0, %v4062
    %v4064 = vrcp.pop %v4047
    %v4065 = vmul.f32 %v4047, %v4064
    %v4066 = vsub.f32 1.0, %v4065
    %v4067 = vmul.f32 %v4064, %v4066
    %v4068 = vadd.f32 %v4064, %v4067
    %vm4069 = vweird.f32 %v4047
    %vm4070 = vweird.f32 %v4064
    %vm4071 = vmor %vm4069, %vm4070
    %v4072 = vsel %vm4071, %v4064, %v4068
    %v4073 = vand.u32 2147483647, %v4047
    %vm4074 = vcmp.eq.f32.partialorder %v4073, 8.507059e+37
    %v4075 = vand.u32 %v4047, 2147483648
    %v4076 = vor.u32 1.1754944e-38, %v4075
    %v4077 = vsel %vm4074, %v4076, %v4072
    %v4078 = vmul.f32 1.0, %v4077
    %v4079 = vrcp.pop %v4048
    %v4080 = vmul.f32 %v4048, %v4079
    %v4081 = vsub.f32 1.0, %v4080
    %v4082 = vmul.f32 %v4079, %v4081
    %v4083 = vadd.f32 %v4079, %v4082
    %vm4084 = vweird.f32 %v4048
    %vm4085 = vweird.f32 %v4079
    %vm4086 = vmor %vm4084, %vm4085
    %v4087 = vsel %vm4086, %v4079, %v4083
    %v4088 = vand.u32 2147483647, %v4048
    %vm4089 = vcmp.eq.f32.partialorder %v4088, 8.507059e+37
    %v4090 = vand.u32 %v4048, 2147483648
    %v4091 = vor.u32 1.1754944e-38, %v4090
    %v4092 = vsel %vm4089, %v4091, %v4087
    %v4093 = vmul.f32 1.0, %v4092
    %v4094 = vtanh.pop %v3970
    %v4096 = vrot.slane %v3433, 2
    %v4098 = vmul.f32 %v4078, %v4096
    %v4099 = vmul.f32 %v4063, %v4094
    %v4100 = vadd.f32 %v4098, %v4099
    %v4101 = vtanh.pop %v4100
    %v4102 = vmul.f32 %v4093, %v4101
    %4103 = vst [vmem:[%s5 + $0x8] sm:$0xc] %v4036
    %4104 = vst [vmem:[%s124] sm:$0x30] %v4102
    %v4105 = vld [vmem:[#allocation4 + $0x20] sm:$0x30]
    %v4106 = vld [vmem:[#allocation4 + $0x28] sm:$0x30]
    %v4107 = vld [vmem:[#allocation4 + $0x30] sm:$0x30]
    %v4108 = vld [vmem:[#allocation4 + $0x38] sm:$0x30]
    %v4109 = vpack.c.bf16 %v4036, %v4036
    %v4110 = vld [vmem:[#allocation6] sm:$0xff]
    %v4111 = vld [vmem:[#allocation6 + $0x8] sm:$0xff]
    %v4112 = vld [vmem:[#allocation6 + $0x10] sm:$0xff]
    %v4113 = vld [vmem:[#allocation6 + $0x18] sm:$0xff]
    %v4114 = vld [vmem:[#allocation6 + $0x20] sm:$0xff]
    %v4115 = vld [vmem:[#allocation6 + $0x28] sm:$0xff]
    %v4116 = vld [vmem:[#allocation6 + $0x30] sm:$0xff]
    %v4117 = vld [vmem:[#allocation6 + $0x38] sm:$0xff]
    %v4118 = vld [vmem:[#allocation6 + $0x40] sm:$0xff]
    %v4119 = vld [vmem:[#allocation6 + $0x48] sm:$0xff]
    %v4120 = vld [vmem:[#allocation6 + $0x50] sm:$0xff]
    %v4121 = vld [vmem:[#allocation6 + $0x58] sm:$0xff]
    %v4122 = vld [vmem:[#allocation6 + $0x60] sm:$0xff]
    %v4123 = vld [vmem:[#allocation6 + $0x68] sm:$0xff]
    %v4124 = vld [vmem:[#allocation6 + $0x70] sm:$0xff]
    %v4125 = vld [vmem:[#allocation6 + $0x78] sm:$0xff]
    %v4126 = vld [vmem:[#allocation6 + $0x80] sm:$0xff]
    %v4127 = vld [vmem:[#allocation6 + $0x88] sm:$0xff]
    %v4128 = vld [vmem:[#allocation6 + $0x90] sm:$0xff]
    %v4129 = vld [vmem:[#allocation6 + $0x98] sm:$0xff]
    %v4130 = vld [vmem:[#allocation6 + $0xa0] sm:$0xff]
    %v4131 = vld [vmem:[#allocation6 + $0xa8] sm:$0xff]
    %v4132 = vld [vmem:[#allocation6 + $0xb0] sm:$0xff]
    %v4133 = vld [vmem:[#allocation6 + $0xb8] sm:$0xff]
    %v4134 = vld [vmem:[#allocation6 + $0xc0] sm:$0xff]
    %v4135 = vld [vmem:[#allocation6 + $0xc8] sm:$0xff]
    %v4136 = vld [vmem:[#allocation6 + $0xd0] sm:$0xff]
    %v4137 = vld [vmem:[#allocation6 + $0xd8] sm:$0xff]
    %v4138 = vld [vmem:[#allocation6 + $0xe0] sm:$0xff]
    %v4139 = vld [vmem:[#allocation6 + $0xe8] sm:$0xff]
    %v4140 = vld [vmem:[#allocation6 + $0xf0] sm:$0xff]
    %v4141 = vld [vmem:[#allocation6 + $0xf8] sm:$0xff]
    %v4143 = vrot.slane %v4109, 1
    %v4177 = vunpack.c.l.b16 %v4110
    %v4178 = vunpack.c.h.b16 %v4110
    %v4179 = vunpack.c.l.b16 %v4111
    %v4180 = vunpack.c.h.b16 %v4111
    %v4181 = vunpack.c.l.b16 %v4112
    %v4182 = vunpack.c.h.b16 %v4112
    %v4183 = vunpack.c.l.b16 %v4113
    %v4184 = vunpack.c.h.b16 %v4113
    %v4185 = vunpack.c.l.b16 %v4114
    %v4186 = vunpack.c.h.b16 %v4114
    %v4187 = vunpack.c.l.b16 %v4115
    %v4188 = vunpack.c.h.b16 %v4115
    %v4189 = vunpack.c.l.b16 %v4116
    %v4190 = vunpack.c.h.b16 %v4116
    %v4191 = vunpack.c.l.b16 %v4117
    %v4192 = vunpack.c.h.b16 %v4117
    %v4193 = vunpack.c.l.b16 %v4118
    %v4194 = vunpack.c.h.b16 %v4118
    %v4195 = vunpack.c.l.b16 %v4119
    %v4196 = vunpack.c.h.b16 %v4119
    %v4197 = vunpack.c.l.b16 %v4120
    %v4198 = vunpack.c.h.b16 %v4120
    %v4199 = vunpack.c.l.b16 %v4121
    %v4200 = vunpack.c.h.b16 %v4121
    %v4201 = vunpack.c.l.b16 %v4122
    %v4202 = vunpack.c.h.b16 %v4122
    %v4203 = vunpack.c.l.b16 %v4123
    %v4204 = vunpack.c.h.b16 %v4123
    %v4205 = vunpack.c.l.b16 %v4124
    %v4206 = vunpack.c.h.b16 %v4124
    %v4207 = vunpack.c.l.b16 %v4125
    %v4208 = vunpack.c.h.b16 %v4125
    %v4209 = vunpack.c.l.b16 %v4126
    %v4210 = vunpack.c.h.b16 %v4126
    %v4211 = vunpack.c.l.b16 %v4127
    %v4212 = vunpack.c.h.b16 %v4127
    %v4213 = vunpack.c.l.b16 %v4128
    %v4214 = vunpack.c.h.b16 %v4128
    %v4215 = vunpack.c.l.b16 %v4129
    %v4216 = vunpack.c.h.b16 %v4129
    %v4217 = vunpack.c.l.b16 %v4130
    %v4218 = vunpack.c.h.b16 %v4130
    %v4219 = vunpack.c.l.b16 %v4131
    %v4220 = vunpack.c.h.b16 %v4131
    %v4221 = vunpack.c.l.b16 %v4132
    %v4222 = vunpack.c.h.b16 %v4132
    %v4223 = vunpack.c.l.b16 %v4133
    %v4224 = vunpack.c.h.b16 %v4133
    %v4225 = vunpack.c.l.b16 %v4134
    %v4226 = vunpack.c.h.b16 %v4134
    %v4227 = vunpack.c.l.b16 %v4135
    %v4228 = vunpack.c.h.b16 %v4135
    %v4229 = vunpack.c.l.b16 %v4136
    %v4230 = vunpack.c.h.b16 %v4136
    %v4231 = vunpack.c.l.b16 %v4137
    %v4232 = vunpack.c.h.b16 %v4137
    %v4233 = vunpack.c.l.b16 %v4138
    %v4234 = vunpack.c.h.b16 %v4138
    %v4235 = vunpack.c.l.b16 %v4139
    %v4236 = vunpack.c.h.b16 %v4139
    %v4237 = vunpack.c.l.b16 %v4140
    %v4238 = vunpack.c.h.b16 %v4140
    %v4239 = vunpack.c.l.b16 %v4141
    %v4240 = vunpack.c.h.b16 %v4141
    %v4241 = vpack.c.b16 %v4181, %v4177
    %v4242 = vpack.c.b16 %v4182, %v4178
    %v4243 = vpack.c.b16 %v4183, %v4179
    %v4244 = vpack.c.b16 %v4184, %v4180
    %v4245 = vpack.c.b16 %v4189, %v4185
    %v4246 = vpack.c.b16 %v4190, %v4186
    %v4247 = vpack.c.b16 %v4191, %v4187
    %v4248 = vpack.c.b16 %v4192, %v4188
    %v4249 = vpack.c.b16 %v4197, %v4193
    %v4250 = vpack.c.b16 %v4198, %v4194
    %v4251 = vpack.c.b16 %v4199, %v4195
    %v4252 = vpack.c.b16 %v4200, %v4196
    %v4253 = vpack.c.b16 %v4205, %v4201
    %v4254 = vpack.c.b16 %v4206, %v4202
    %v4255 = vpack.c.b16 %v4207, %v4203
    %v4256 = vpack.c.b16 %v4208, %v4204
    %v4257 = vpack.c.b16 %v4213, %v4209
    %v4258 = vpack.c.b16 %v4214, %v4210
    %v4259 = vpack.c.b16 %v4215, %v4211
    %v4260 = vpack.c.b16 %v4216, %v4212
    %v4261 = vpack.c.b16 %v4221, %v4217
    %v4262 = vpack.c.b16 %v4222, %v4218
    %v4263 = vpack.c.b16 %v4223, %v4219
    %v4264 = vpack.c.b16 %v4224, %v4220
    %v4265 = vpack.c.b16 %v4229, %v4225
    %v4266 = vpack.c.b16 %v4230, %v4226
    %v4267 = vpack.c.b16 %v4231, %v4227
    %v4268 = vpack.c.b16 %v4232, %v4228
    %v4269 = vpack.c.b16 %v4237, %v4233
    %v4270 = vpack.c.b16 %v4238, %v4234
    %v4271 = vpack.c.b16 %v4239, %v4235
    %v4272 = vpack.c.b16 %v4240, %v4236
    %4305 = vmatpush.bf16.msra.mxu0 %v4269
    %4306 = vmatpush.bf16.msra.mxu0 %v4265
    %4307 = vmatpush.bf16.msra.mxu0 %v4261
    %4308 = vmatpush.bf16.msra.mxu0 %v4257
    %4309 = vmatpush.bf16.msra.mxu0 %v4253
    %4310 = vmatpush.bf16.msra.mxu0 %v4249
    %4311 = vmatpush.bf16.msra.mxu0 %v4245
    %4312 = vmatpush.bf16.msra.mxu0 %v4241
    %4313 = vmatmul.bf16.gmra.mxu0 %v4143
    %v4314 = vpop.f32.mrf.mxu0
    %v4315 = vadd.f32 0.0, %v4314
    %v4316 = vpop.f32.mrf.mxu0
    %4317 = vdwg.mxu0
    %4318 = vmatpush.bf16.msra.mxu0 %v4270
    %4319 = vmatpush.bf16.msra.mxu0 %v4266
    %4320 = vmatpush.bf16.msra.mxu0 %v4262
    %4321 = vmatpush.bf16.msra.mxu0 %v4258
    %4322 = vmatpush.bf16.msra.mxu0 %v4254
    %4323 = vmatpush.bf16.msra.mxu0 %v4250
    %4324 = vmatpush.bf16.msra.mxu0 %v4246
    %4325 = vmatpush.bf16.msra.mxu0 %v4242
    %4326 = vmatmul.bf16.gmra.mxu0 %v4143
    %v4327 = vpop.f32.mrf.mxu0
    %v4328 = vadd.f32 0.0, %v4327
    %v4329 = vpop.f32.mrf.mxu0
    %4330 = vdwg.mxu0
    %4331 = vmatpush.bf16.msra.mxu0 %v4271
    %4332 = vmatpush.bf16.msra.mxu0 %v4267
    %4333 = vmatpush.bf16.msra.mxu0 %v4263
    %4334 = vmatpush.bf16.msra.mxu0 %v4259
    %4335 = vmatpush.bf16.msra.mxu0 %v4255
    %4336 = vmatpush.bf16.msra.mxu0 %v4251
    %4337 = vmatpush.bf16.msra.mxu0 %v4247
    %4338 = vmatpush.bf16.msra.mxu0 %v4243
    %4339 = vmatmul.bf16.gmra.mxu0 %v4143
    %v4340 = vpop.f32.mrf.mxu0
    %v4341 = vadd.f32 0.0, %v4340
    %v4342 = vpop.f32.mrf.mxu0
    %4343 = vdwg.mxu0
    %4344 = vmatpush.bf16.msra.mxu0 %v4272
    %4345 = vmatpush.bf16.msra.mxu0 %v4268
    %4346 = vmatpush.bf16.msra.mxu0 %v4264
    %4347 = vmatpush.bf16.msra.mxu0 %v4260
    %4348 = vmatpush.bf16.msra.mxu0 %v4256
    %4349 = vmatpush.bf16.msra.mxu0 %v4252
    %4350 = vmatpush.bf16.msra.mxu0 %v4248
    %4351 = vmatpush.bf16.msra.mxu0 %v4244
    %4352 = vmatmul.bf16.gmra.mxu0 %v4143
    %v4353 = vpop.f32.mrf.mxu0
    %v4354 = vadd.f32 0.0, %v4353
    %v4355 = vpop.f32.mrf.mxu0
    %4356 = vdwg.mxu0
    %v4361 = vrot.slane %v4315, 4
    %v4362 = vrot.slane %v4328, 4
    %v4363 = vrot.slane %v4341, 4
    %v4364 = vrot.slane %v4354, 4
    %v4369 = vadd.f32 %v4105, %v4361
    %v4370 = vadd.f32 %v4106, %v4362
    %v4371 = vadd.f32 %v4107, %v4363
    %v4372 = vadd.f32 %v4108, %v4364
    %v4373 = vld [vmem:[#allocation5] sm:$0xc]
    %v4374 = vld [vmem:[#allocation5 + $0x8] sm:$0xc]
    %v4375 = vld [vmem:[#allocation5 + $0x10] sm:$0xc]
    %v4376 = vld [vmem:[#allocation5 + $0x18] sm:$0xc]
    %v4377 = vpack.c.bf16 %v4102, %v4102
    %v4378 = vld [vmem:[#allocation6 + $0x100] sm:$0xff]
    %v4379 = vld [vmem:[#allocation6 + $0x108] sm:$0xff]
    %v4380 = vld [vmem:[#allocation6 + $0x110] sm:$0xff]
    %v4381 = vld [vmem:[#allocation6 + $0x118] sm:$0xff]
    %v4382 = vld [vmem:[#allocation6 + $0x120] sm:$0xff]
    %v4383 = vld [vmem:[#allocation6 + $0x128] sm:$0xff]
    %v4384 = vld [vmem:[#allocation6 + $0x130] sm:$0xff]
    %v4385 = vld [vmem:[#allocation6 + $0x138] sm:$0xff]
    %v4386 = vld [vmem:[#allocation6 + $0x140] sm:$0xff]
    %v4387 = vld [vmem:[#allocation6 + $0x148] sm:$0xff]
    %v4388 = vld [vmem:[#allocation6 + $0x150] sm:$0xff]
    %v4389 = vld [vmem:[#allocation6 + $0x158] sm:$0xff]
    %v4390 = vld [vmem:[#allocation6 + $0x160] sm:$0xff]
    %v4391 = vld [vmem:[#allocation6 + $0x168] sm:$0xff]
    %v4392 = vld [vmem:[#allocation6 + $0x170] sm:$0xff]
    %v4393 = vld [vmem:[#allocation6 + $0x178] sm:$0xff]
    %v4394 = vld [vmem:[#allocation6 + $0x180] sm:$0xff]
    %v4395 = vld [vmem:[#allocation6 + $0x188] sm:$0xff]
    %v4396 = vld [vmem:[#allocation6 + $0x190] sm:$0xff]
    %v4397 = vld [vmem:[#allocation6 + $0x198] sm:$0xff]
    %v4398 = vld [vmem:[#allocation6 + $0x1a0] sm:$0xff]
    %v4399 = vld [vmem:[#allocation6 + $0x1a8] sm:$0xff]
    %v4400 = vld [vmem:[#allocation6 + $0x1b0] sm:$0xff]
    %v4401 = vld [vmem:[#allocation6 + $0x1b8] sm:$0xff]
    %v4402 = vld [vmem:[#allocation6 + $0x1c0] sm:$0xff]
    %v4403 = vld [vmem:[#allocation6 + $0x1c8] sm:$0xff]
    %v4404 = vld [vmem:[#allocation6 + $0x1d0] sm:$0xff]
    %v4405 = vld [vmem:[#allocation6 + $0x1d8] sm:$0xff]
    %v4406 = vld [vmem:[#allocation6 + $0x1e0] sm:$0xff]
    %v4407 = vld [vmem:[#allocation6 + $0x1e8] sm:$0xff]
    %v4408 = vld [vmem:[#allocation6 + $0x1f0] sm:$0xff]
    %v4409 = vld [vmem:[#allocation6 + $0x1f8] sm:$0xff]
    %v4411 = vrot.slane %v4377, 2
    %v4445 = vunpack.c.l.b16 %v4378
    %v4446 = vunpack.c.h.b16 %v4378
    %v4447 = vunpack.c.l.b16 %v4379
    %v4448 = vunpack.c.h.b16 %v4379
    %v4449 = vunpack.c.l.b16 %v4380
    %v4450 = vunpack.c.h.b16 %v4380
    %v4451 = vunpack.c.l.b16 %v4381
    %v4452 = vunpack.c.h.b16 %v4381
    %v4453 = vunpack.c.l.b16 %v4382
    %v4454 = vunpack.c.h.b16 %v4382
    %v4455 = vunpack.c.l.b16 %v4383
    %v4456 = vunpack.c.h.b16 %v4383
    %v4457 = vunpack.c.l.b16 %v4384
    %v4458 = vunpack.c.h.b16 %v4384
    %v4459 = vunpack.c.l.b16 %v4385
    %v4460 = vunpack.c.h.b16 %v4385
    %v4461 = vunpack.c.l.b16 %v4386
    %v4462 = vunpack.c.h.b16 %v4386
    %v4463 = vunpack.c.l.b16 %v4387
    %v4464 = vunpack.c.h.b16 %v4387
    %v4465 = vunpack.c.l.b16 %v4388
    %v4466 = vunpack.c.h.b16 %v4388
    %v4467 = vunpack.c.l.b16 %v4389
    %v4468 = vunpack.c.h.b16 %v4389
    %v4469 = vunpack.c.l.b16 %v4390
    %v4470 = vunpack.c.h.b16 %v4390
    %v4471 = vunpack.c.l.b16 %v4391
    %v4472 = vunpack.c.h.b16 %v4391
    %v4473 = vunpack.c.l.b16 %v4392
    %v4474 = vunpack.c.h.b16 %v4392
    %v4475 = vunpack.c.l.b16 %v4393
    %v4476 = vunpack.c.h.b16 %v4393
    %v4477 = vunpack.c.l.b16 %v4394
    %v4478 = vunpack.c.h.b16 %v4394
    %v4479 = vunpack.c.l.b16 %v4395
    %v4480 = vunpack.c.h.b16 %v4395
    %v4481 = vunpack.c.l.b16 %v4396
    %v4482 = vunpack.c.h.b16 %v4396
    %v4483 = vunpack.c.l.b16 %v4397
    %v4484 = vunpack.c.h.b16 %v4397
    %v4485 = vunpack.c.l.b16 %v4398
    %v4486 = vunpack.c.h.b16 %v4398
    %v4487 = vunpack.c.l.b16 %v4399
    %v4488 = vunpack.c.h.b16 %v4399
    %v4489 = vunpack.c.l.b16 %v4400
    %v4490 = vunpack.c.h.b16 %v4400
    %v4491 = vunpack.c.l.b16 %v4401
    %v4492 = vunpack.c.h.b16 %v4401
    %v4493 = vunpack.c.l.b16 %v4402
    %v4494 = vunpack.c.h.b16 %v4402
    %v4495 = vunpack.c.l.b16 %v4403
    %v4496 = vunpack.c.h.b16 %v4403
    %v4497 = vunpack.c.l.b16 %v4404
    %v4498 = vunpack.c.h.b16 %v4404
    %v4499 = vunpack.c.l.b16 %v4405
    %v4500 = vunpack.c.h.b16 %v4405
    %v4501 = vunpack.c.l.b16 %v4406
    %v4502 = vunpack.c.h.b16 %v4406
    %v4503 = vunpack.c.l.b16 %v4407
    %v4504 = vunpack.c.h.b16 %v4407
    %v4505 = vunpack.c.l.b16 %v4408
    %v4506 = vunpack.c.h.b16 %v4408
    %v4507 = vunpack.c.l.b16 %v4409
    %v4508 = vunpack.c.h.b16 %v4409
    %v4509 = vpack.c.b16 %v4449, %v4445
    %v4510 = vpack.c.b16 %v4450, %v4446
    %v4511 = vpack.c.b16 %v4451, %v4447
    %v4512 = vpack.c.b16 %v4452, %v4448
    %v4513 = vpack.c.b16 %v4457, %v4453
    %v4514 = vpack.c.b16 %v4458, %v4454
    %v4515 = vpack.c.b16 %v4459, %v4455
    %v4516 = vpack.c.b16 %v4460, %v4456
    %v4517 = vpack.c.b16 %v4465, %v4461
    %v4518 = vpack.c.b16 %v4466, %v4462
    %v4519 = vpack.c.b16 %v4467, %v4463
    %v4520 = vpack.c.b16 %v4468, %v4464
    %v4521 = vpack.c.b16 %v4473, %v4469
    %v4522 = vpack.c.b16 %v4474, %v4470
    %v4523 = vpack.c.b16 %v4475, %v4471
    %v4524 = vpack.c.b16 %v4476, %v4472
    %v4525 = vpack.c.b16 %v4481, %v4477
    %v4526 = vpack.c.b16 %v4482, %v4478
    %v4527 = vpack.c.b16 %v4483, %v4479
    %v4528 = vpack.c.b16 %v4484, %v4480
    %v4529 = vpack.c.b16 %v4489, %v4485
    %v4530 = vpack.c.b16 %v4490, %v4486
    %v4531 = vpack.c.b16 %v4491, %v4487
    %v4532 = vpack.c.b16 %v4492, %v4488
    %v4533 = vpack.c.b16 %v4497, %v4493
    %v4534 = vpack.c.b16 %v4498, %v4494
    %v4535 = vpack.c.b16 %v4499, %v4495
    %v4536 = vpack.c.b16 %v4500, %v4496
    %v4537 = vpack.c.b16 %v4505, %v4501
    %v4538 = vpack.c.b16 %v4506, %v4502
    %v4539 = vpack.c.b16 %v4507, %v4503
    %v4540 = vpack.c.b16 %v4508, %v4504
    %4573 = vmatpush.bf16.msra.mxu0 %v4537
    %4574 = vmatpush.bf16.msra.mxu0 %v4533
    %4575 = vmatpush.bf16.msra.mxu0 %v4529
    %4576 = vmatpush.bf16.msra.mxu0 %v4525
    %4577 = vmatpush.bf16.msra.mxu0 %v4521
    %4578 = vmatpush.bf16.msra.mxu0 %v4517
    %4579 = vmatpush.bf16.msra.mxu0 %v4513
    %4580 = vmatpush.bf16.msra.mxu0 %v4509
    %4581 = vmatmul.bf16.gmra.mxu0 %v4411
    %v4582 = vpop.f32.mrf.mxu0
    %v4583 = vadd.f32 0.0, %v4582
    %v4584 = vpop.f32.mrf.mxu0
    %4585 = vdwg.mxu0
    %4586 = vmatpush.bf16.msra.mxu0 %v4538
    %4587 = vmatpush.bf16.msra.mxu0 %v4534
    %4588 = vmatpush.bf16.msra.mxu0 %v4530
    %4589 = vmatpush.bf16.msra.mxu0 %v4526
    %4590 = vmatpush.bf16.msra.mxu0 %v4522
    %4591 = vmatpush.bf16.msra.mxu0 %v4518
    %4592 = vmatpush.bf16.msra.mxu0 %v4514
    %4593 = vmatpush.bf16.msra.mxu0 %v4510
    %4594 = vmatmul.bf16.gmra.mxu0 %v4411
    %v4595 = vpop.f32.mrf.mxu0
    %v4596 = vadd.f32 0.0, %v4595
    %v4597 = vpop.f32.mrf.mxu0
    %4598 = vdwg.mxu0
    %4599 = vmatpush.bf16.msra.mxu0 %v4539
    %4600 = vmatpush.bf16.msra.mxu0 %v4535
    %4601 = vmatpush.bf16.msra.mxu0 %v4531
    %4602 = vmatpush.bf16.msra.mxu0 %v4527
    %4603 = vmatpush.bf16.msra.mxu0 %v4523
    %4604 = vmatpush.bf16.msra.mxu0 %v4519
    %4605 = vmatpush.bf16.msra.mxu0 %v4515
    %4606 = vmatpush.bf16.msra.mxu0 %v4511
    %4607 = vmatmul.bf16.gmra.mxu0 %v4411
    %v4608 = vpop.f32.mrf.mxu0
    %v4609 = vadd.f32 0.0, %v4608
    %v4610 = vpop.f32.mrf.mxu0
    %4611 = vdwg.mxu0
    %4612 = vmatpush.bf16.msra.mxu0 %v4540
    %4613 = vmatpush.bf16.msra.mxu0 %v4536
    %4614 = vmatpush.bf16.msra.mxu0 %v4532
    %4615 = vmatpush.bf16.msra.mxu0 %v4528
    %4616 = vmatpush.bf16.msra.mxu0 %v4524
    %4617 = vmatpush.bf16.msra.mxu0 %v4520
    %4618 = vmatpush.bf16.msra.mxu0 %v4516
    %4619 = vmatpush.bf16.msra.mxu0 %v4512
    %4620 = vmatmul.bf16.gmra.mxu0 %v4411
    %v4621 = vpop.f32.mrf.mxu0
    %v4622 = vadd.f32 0.0, %v4621
    %v4623 = vpop.f32.mrf.mxu0
    %4624 = vdwg.mxu0
    %v4629 = vrot.slane %v4583, 6
    %v4630 = vrot.slane %v4596, 6
    %v4631 = vrot.slane %v4609, 6
    %v4632 = vrot.slane %v4622, 6
    %v4637 = vadd.f32 %v4373, %v4629
    %v4638 = vadd.f32 %v4374, %v4630
    %v4639 = vadd.f32 %v4375, %v4631
    %v4640 = vadd.f32 %v4376, %v4632
    %v4641 = vxor.u32 %v4369, 2147483648
    %v4642 = vxor.u32 %v4370, 2147483648
    %v4643 = vxor.u32 %v4371, 2147483648
    %v4644 = vmul.f32 %v4641, 1.442695
    %v4645 = vpow.pop %v4644
    %v4646 = vmul.f32 %v4642, 1.442695
    %v4647 = vpow.pop %v4646
    %v4648 = vmul.f32 %v4643, 1.442695
    %v4649 = vpow.pop %v4648
    %v4650 = vadd.f32 %v4645, 1.0
    %v4651 = vadd.f32 %v4647, 1.0
    %v4652 = vadd.f32 %v4649, 1.0
    %v4653 = vrcp.pop %v4650
    %v4654 = vmul.f32 %v4650, %v4653
    %v4655 = vsub.f32 1.0, %v4654
    %v4656 = vmul.f32 %v4653, %v4655
    %v4657 = vadd.f32 %v4653, %v4656
    %vm4658 = vweird.f32 %v4650
    %vm4659 = vweird.f32 %v4653
    %vm4660 = vmor %vm4658, %vm4659
    %v4661 = vsel %vm4660, %v4653, %v4657
    %v4662 = vand.u32 2147483647, %v4650
    %vm4663 = vcmp.eq.f32.partialorder %v4662, 8.507059e+37
    %v4664 = vand.u32 %v4650, 2147483648
    %v4665 = vor.u32 1.1754944e-38, %v4664
    %v4666 = vsel %vm4663, %v4665, %v4661
    %v4667 = vmul.f32 1.0, %v4666
    %v4668 = vrcp.pop %v4651
    %v4669 = vmul.f32 %v4651, %v4668
    %v4670 = vsub.f32 1.0, %v4669
    %v4671 = vmul.f32 %v4668, %v4670
    %v4672 = vadd.f32 %v4668, %v4671
    %vm4673 = vweird.f32 %v4651
    %vm4674 = vweird.f32 %v4668
    %vm4675 = vmor %vm4673, %vm4674
    %v4676 = vsel %vm4675, %v4668, %v4672
    %v4677 = vand.u32 2147483647, %v4651
    %vm4678 = vcmp.eq.f32.partialorder %v4677, 8.507059e+37
    %v4679 = vand.u32 %v4651, 2147483648
    %v4680 = vor.u32 1.1754944e-38, %v4679
    %v4681 = vsel %vm4678, %v4680, %v4676
    %v4682 = vmul.f32 1.0, %v4681
    %v4683 = vrcp.pop %v4652
    %v4684 = vmul.f32 %v4652, %v4683
    %v4685 = vsub.f32 1.0, %v4684
    %v4686 = vmul.f32 %v4683, %v4685
    %v4687 = vadd.f32 %v4683, %v4686
    %vm4688 = vweird.f32 %v4652
    %vm4689 = vweird.f32 %v4683
    %vm4690 = vmor %vm4688, %vm4689
    %v4691 = vsel %vm4690, %v4683, %v4687
    %v4692 = vand.u32 2147483647, %v4652
    %vm4693 = vcmp.eq.f32.partialorder %v4692, 8.507059e+37
    %v4694 = vand.u32 %v4652, 2147483648
    %v4695 = vor.u32 1.1754944e-38, %v4694
    %v4696 = vsel %vm4693, %v4695, %v4691
    %v4697 = vmul.f32 1.0, %v4696
    %v4698 = vtanh.pop %v4372
    %v4700 = vrot.slane %v4034, 6
    %v4702 = vmul.f32 %v4682, %v4700
    %v4703 = vmul.f32 %v4667, %v4698
    %v4704 = vadd.f32 %v4702, %v4703
    %v4705 = vtanh.pop %v4704
    %v4706 = vmul.f32 %v4697, %v4705
    %v4707 = vxor.u32 %v4637, 2147483648
    %v4708 = vxor.u32 %v4638, 2147483648
    %v4709 = vxor.u32 %v4639, 2147483648
    %v4710 = vmul.f32 %v4707, 1.442695
    %v4711 = vpow.pop %v4710
    %v4712 = vmul.f32 %v4708, 1.442695
    %v4713 = vpow.pop %v4712
    %v4714 = vmul.f32 %v4709, 1.442695
    %v4715 = vpow.pop %v4714
    %v4716 = vadd.f32 %v4711, 1.0
    %v4717 = vadd.f32 %v4713, 1.0
    %v4718 = vadd.f32 %v4715, 1.0
    %v4719 = vrcp.pop %v4716
    %v4720 = vmul.f32 %v4716, %v4719
    %v4721 = vsub.f32 1.0, %v4720
    %v4722 = vmul.f32 %v4719, %v4721
    %v4723 = vadd.f32 %v4719, %v4722
    %vm4724 = vweird.f32 %v4716
    %vm4725 = vweird.f32 %v4719
    %vm4726 = vmor %vm4724, %vm4725
    %v4727 = vsel %vm4726, %v4719, %v4723
    %v4728 = vand.u32 2147483647, %v4716
    %vm4729 = vcmp.eq.f32.partialorder %v4728, 8.507059e+37
    %v4730 = vand.u32 %v4716, 2147483648
    %v4731 = vor.u32 1.1754944e-38, %v4730
    %v4732 = vsel %vm4729, %v4731, %v4727
    %v4733 = vmul.f32 1.0, %v4732
    %v4734 = vrcp.pop %v4717
    %v4735 = vmul.f32 %v4717, %v4734
    %v4736 = vsub.f32 1.0, %v4735
    %v4737 = vmul.f32 %v4734, %v4736
    %v4738 = vadd.f32 %v4734, %v4737
    %vm4739 = vweird.f32 %v4717
    %vm4740 = vweird.f32 %v4734
    %vm4741 = vmor %vm4739, %vm4740
    %v4742 = vsel %vm4741, %v4734, %v4738
    %v4743 = vand.u32 2147483647, %v4717
    %vm4744 = vcmp.eq.f32.partialorder %v4743, 8.507059e+37
    %v4745 = vand.u32 %v4717, 2147483648
    %v4746 = vor.u32 1.1754944e-38, %v4745
    %v4747 = vsel %vm4744, %v4746, %v4742
    %v4748 = vmul.f32 1.0, %v4747
    %v4749 = vrcp.pop %v4718
    %v4750 = vmul.f32 %v4718, %v4749
    %v4751 = vsub.f32 1.0, %v4750
    %v4752 = vmul.f32 %v4749, %v4751
    %v4753 = vadd.f32 %v4749, %v4752
    %vm4754 = vweird.f32 %v4718
    %vm4755 = vweird.f32 %v4749
    %vm4756 = vmor %vm4754, %vm4755
    %v4757 = vsel %vm4756, %v4749, %v4753
    %v4758 = vand.u32 2147483647, %v4718
    %vm4759 = vcmp.eq.f32.partialorder %v4758, 8.507059e+37
    %v4760 = vand.u32 %v4718, 2147483648
    %v4761 = vor.u32 1.1754944e-38, %v4760
    %v4762 = vsel %vm4759, %v4761, %v4757
    %v4763 = vmul.f32 1.0, %v4762
    %v4764 = vtanh.pop %v4640
    %v4766 = vrot.slane %v4100, 2
    %v4768 = vmul.f32 %v4748, %v4766
    %v4769 = vmul.f32 %v4733, %v4764
    %v4770 = vadd.f32 %v4768, %v4769
    %v4771 = vtanh.pop %v4770
    %v4772 = vmul.f32 %v4763, %v4771
    %4773 = vst [vmem:[%s5 + $0x8] sm:$0x30] %v4706
    %4774 = vst [vmem:[%s124] sm:$0xc] %v4772
    %v4775 = vld [vmem:[#allocation4 + $0x20] sm:$0xc0]
    %v4776 = vld [vmem:[#allocation4 + $0x28] sm:$0xc0]
    %v4777 = vld [vmem:[#allocation4 + $0x30] sm:$0xc0]
    %v4778 = vld [vmem:[#allocation4 + $0x38] sm:$0xc0]
    %v4779 = vpack.c.bf16 %v4706, %v4706
    %v4780 = vld [vmem:[#allocation6] sm:$0xff]
    %v4781 = vld [vmem:[#allocation6 + $0x8] sm:$0xff]
    %v4782 = vld [vmem:[#allocation6 + $0x10] sm:$0xff]
    %v4783 = vld [vmem:[#allocation6 + $0x18] sm:$0xff]
    %v4784 = vld [vmem:[#allocation6 + $0x20] sm:$0xff]
    %v4785 = vld [vmem:[#allocation6 + $0x28] sm:$0xff]
    %v4786 = vld [vmem:[#allocation6 + $0x30] sm:$0xff]
    %v4787 = vld [vmem:[#allocation6 + $0x38] sm:$0xff]
    %v4788 = vld [vmem:[#allocation6 + $0x40] sm:$0xff]
    %v4789 = vld [vmem:[#allocation6 + $0x48] sm:$0xff]
    %v4790 = vld [vmem:[#allocation6 + $0x50] sm:$0xff]
    %v4791 = vld [vmem:[#allocation6 + $0x58] sm:$0xff]
    %v4792 = vld [vmem:[#allocation6 + $0x60] sm:$0xff]
    %v4793 = vld [vmem:[#allocation6 + $0x68] sm:$0xff]
    %v4794 = vld [vmem:[#allocation6 + $0x70] sm:$0xff]
    %v4795 = vld [vmem:[#allocation6 + $0x78] sm:$0xff]
    %v4796 = vld [vmem:[#allocation6 + $0x80] sm:$0xff]
    %v4797 = vld [vmem:[#allocation6 + $0x88] sm:$0xff]
    %v4798 = vld [vmem:[#allocation6 + $0x90] sm:$0xff]
    %v4799 = vld [vmem:[#allocation6 + $0x98] sm:$0xff]
    %v4800 = vld [vmem:[#allocation6 + $0xa0] sm:$0xff]
    %v4801 = vld [vmem:[#allocation6 + $0xa8] sm:$0xff]
    %v4802 = vld [vmem:[#allocation6 + $0xb0] sm:$0xff]
    %v4803 = vld [vmem:[#allocation6 + $0xb8] sm:$0xff]
    %v4804 = vld [vmem:[#allocation6 + $0xc0] sm:$0xff]
    %v4805 = vld [vmem:[#allocation6 + $0xc8] sm:$0xff]
    %v4806 = vld [vmem:[#allocation6 + $0xd0] sm:$0xff]
    %v4807 = vld [vmem:[#allocation6 + $0xd8] sm:$0xff]
    %v4808 = vld [vmem:[#allocation6 + $0xe0] sm:$0xff]
    %v4809 = vld [vmem:[#allocation6 + $0xe8] sm:$0xff]
    %v4810 = vld [vmem:[#allocation6 + $0xf0] sm:$0xff]
    %v4811 = vld [vmem:[#allocation6 + $0xf8] sm:$0xff]
    %v4813 = vrot.slane %v4779, 2
    %v4847 = vunpack.c.l.b16 %v4780
    %v4848 = vunpack.c.h.b16 %v4780
    %v4849 = vunpack.c.l.b16 %v4781
    %v4850 = vunpack.c.h.b16 %v4781
    %v4851 = vunpack.c.l.b16 %v4782
    %v4852 = vunpack.c.h.b16 %v4782
    %v4853 = vunpack.c.l.b16 %v4783
    %v4854 = vunpack.c.h.b16 %v4783
    %v4855 = vunpack.c.l.b16 %v4784
    %v4856 = vunpack.c.h.b16 %v4784
    %v4857 = vunpack.c.l.b16 %v4785
    %v4858 = vunpack.c.h.b16 %v4785
    %v4859 = vunpack.c.l.b16 %v4786
    %v4860 = vunpack.c.h.b16 %v4786
    %v4861 = vunpack.c.l.b16 %v4787
    %v4862 = vunpack.c.h.b16 %v4787
    %v4863 = vunpack.c.l.b16 %v4788
    %v4864 = vunpack.c.h.b16 %v4788
    %v4865 = vunpack.c.l.b16 %v4789
    %v4866 = vunpack.c.h.b16 %v4789
    %v4867 = vunpack.c.l.b16 %v4790
    %v4868 = vunpack.c.h.b16 %v4790
    %v4869 = vunpack.c.l.b16 %v4791
    %v4870 = vunpack.c.h.b16 %v4791
    %v4871 = vunpack.c.l.b16 %v4792
    %v4872 = vunpack.c.h.b16 %v4792
    %v4873 = vunpack.c.l.b16 %v4793
    %v4874 = vunpack.c.h.b16 %v4793
    %v4875 = vunpack.c.l.b16 %v4794
    %v4876 = vunpack.c.h.b16 %v4794
    %v4877 = vunpack.c.l.b16 %v4795
    %v4878 = vunpack.c.h.b16 %v4795
    %v4879 = vunpack.c.l.b16 %v4796
    %v4880 = vunpack.c.h.b16 %v4796
    %v4881 = vunpack.c.l.b16 %v4797
    %v4882 = vunpack.c.h.b16 %v4797
    %v4883 = vunpack.c.l.b16 %v4798
    %v4884 = vunpack.c.h.b16 %v4798
    %v4885 = vunpack.c.l.b16 %v4799
    %v4886 = vunpack.c.h.b16 %v4799
    %v4887 = vunpack.c.l.b16 %v4800
    %v4888 = vunpack.c.h.b16 %v4800
    %v4889 = vunpack.c.l.b16 %v4801
    %v4890 = vunpack.c.h.b16 %v4801
    %v4891 = vunpack.c.l.b16 %v4802
    %v4892 = vunpack.c.h.b16 %v4802
    %v4893 = vunpack.c.l.b16 %v4803
    %v4894 = vunpack.c.h.b16 %v4803
    %v4895 = vunpack.c.l.b16 %v4804
    %v4896 = vunpack.c.h.b16 %v4804
    %v4897 = vunpack.c.l.b16 %v4805
    %v4898 = vunpack.c.h.b16 %v4805
    %v4899 = vunpack.c.l.b16 %v4806
    %v4900 = vunpack.c.h.b16 %v4806
    %v4901 = vunpack.c.l.b16 %v4807
    %v4902 = vunpack.c.h.b16 %v4807
    %v4903 = vunpack.c.l.b16 %v4808
    %v4904 = vunpack.c.h.b16 %v4808
    %v4905 = vunpack.c.l.b16 %v4809
    %v4906 = vunpack.c.h.b16 %v4809
    %v4907 = vunpack.c.l.b16 %v4810
    %v4908 = vunpack.c.h.b16 %v4810
    %v4909 = vunpack.c.l.b16 %v4811
    %v4910 = vunpack.c.h.b16 %v4811
    %v4911 = vpack.c.b16 %v4851, %v4847
    %v4912 = vpack.c.b16 %v4852, %v4848
    %v4913 = vpack.c.b16 %v4853, %v4849
    %v4914 = vpack.c.b16 %v4854, %v4850
    %v4915 = vpack.c.b16 %v4859, %v4855
    %v4916 = vpack.c.b16 %v4860, %v4856
    %v4917 = vpack.c.b16 %v4861, %v4857
    %v4918 = vpack.c.b16 %v4862, %v4858
    %v4919 = vpack.c.b16 %v4867, %v4863
    %v4920 = vpack.c.b16 %v4868, %v4864
    %v4921 = vpack.c.b16 %v4869, %v4865
    %v4922 = vpack.c.b16 %v4870, %v4866
    %v4923 = vpack.c.b16 %v4875, %v4871
    %v4924 = vpack.c.b16 %v4876, %v4872
    %v4925 = vpack.c.b16 %v4877, %v4873
    %v4926 = vpack.c.b16 %v4878, %v4874
    %v4927 = vpack.c.b16 %v4883, %v4879
    %v4928 = vpack.c.b16 %v4884, %v4880
    %v4929 = vpack.c.b16 %v4885, %v4881
    %v4930 = vpack.c.b16 %v4886, %v4882
    %v4931 = vpack.c.b16 %v4891, %v4887
    %v4932 = vpack.c.b16 %v4892, %v4888
    %v4933 = vpack.c.b16 %v4893, %v4889
    %v4934 = vpack.c.b16 %v4894, %v4890
    %v4935 = vpack.c.b16 %v4899, %v4895
    %v4936 = vpack.c.b16 %v4900, %v4896
    %v4937 = vpack.c.b16 %v4901, %v4897
    %v4938 = vpack.c.b16 %v4902, %v4898
    %v4939 = vpack.c.b16 %v4907, %v4903
    %v4940 = vpack.c.b16 %v4908, %v4904
    %v4941 = vpack.c.b16 %v4909, %v4905
    %v4942 = vpack.c.b16 %v4910, %v4906
    %4975 = vmatpush.bf16.msra.mxu0 %v4939
    %4976 = vmatpush.bf16.msra.mxu0 %v4935
    %4977 = vmatpush.bf16.msra.mxu0 %v4931
    %4978 = vmatpush.bf16.msra.mxu0 %v4927
    %4979 = vmatpush.bf16.msra.mxu0 %v4923
    %4980 = vmatpush.bf16.msra.mxu0 %v4919
    %4981 = vmatpush.bf16.msra.mxu0 %v4915
    %4982 = vmatpush.bf16.msra.mxu0 %v4911
    %4983 = vmatmul.bf16.gmra.mxu0 %v4813
    %v4984 = vpop.f32.mrf.mxu0
    %v4985 = vadd.f32 0.0, %v4984
    %v4986 = vpop.f32.mrf.mxu0
    %4987 = vdwg.mxu0
    %4988 = vmatpush.bf16.msra.mxu0 %v4940
    %4989 = vmatpush.bf16.msra.mxu0 %v4936
    %4990 = vmatpush.bf16.msra.mxu0 %v4932
    %4991 = vmatpush.bf16.msra.mxu0 %v4928
    %4992 = vmatpush.bf16.msra.mxu0 %v4924
    %4993 = vmatpush.bf16.msra.mxu0 %v4920
    %4994 = vmatpush.bf16.msra.mxu0 %v4916
    %4995 = vmatpush.bf16.msra.mxu0 %v4912
    %4996 = vmatmul.bf16.gmra.mxu0 %v4813
    %v4997 = vpop.f32.mrf.mxu0
    %v4998 = vadd.f32 0.0, %v4997
    %v4999 = vpop.f32.mrf.mxu0
    %5000 = vdwg.mxu0
    %5001 = vmatpush.bf16.msra.mxu0 %v4941
    %5002 = vmatpush.bf16.msra.mxu0 %v4937
    %5003 = vmatpush.bf16.msra.mxu0 %v4933
    %5004 = vmatpush.bf16.msra.mxu0 %v4929
    %5005 = vmatpush.bf16.msra.mxu0 %v4925
    %5006 = vmatpush.bf16.msra.mxu0 %v4921
    %5007 = vmatpush.bf16.msra.mxu0 %v4917
    %5008 = vmatpush.bf16.msra.mxu0 %v4913
    %5009 = vmatmul.bf16.gmra.mxu0 %v4813
    %v5010 = vpop.f32.mrf.mxu0
    %v5011 = vadd.f32 0.0, %v5010
    %v5012 = vpop.f32.mrf.mxu0
    %5013 = vdwg.mxu0
    %5014 = vmatpush.bf16.msra.mxu0 %v4942
    %5015 = vmatpush.bf16.msra.mxu0 %v4938
    %5016 = vmatpush.bf16.msra.mxu0 %v4934
    %5017 = vmatpush.bf16.msra.mxu0 %v4930
    %5018 = vmatpush.bf16.msra.mxu0 %v4926
    %5019 = vmatpush.bf16.msra.mxu0 %v4922
    %5020 = vmatpush.bf16.msra.mxu0 %v4918
    %5021 = vmatpush.bf16.msra.mxu0 %v4914
    %5022 = vmatmul.bf16.gmra.mxu0 %v4813
    %v5023 = vpop.f32.mrf.mxu0
    %v5024 = vadd.f32 0.0, %v5023
    %v5025 = vpop.f32.mrf.mxu0
    %5026 = vdwg.mxu0
    %v5031 = vrot.slane %v4985, 2
    %v5032 = vrot.slane %v4998, 2
    %v5033 = vrot.slane %v5011, 2
    %v5034 = vrot.slane %v5024, 2
    %v5039 = vadd.f32 %v4775, %v5031
    %v5040 = vadd.f32 %v4776, %v5032
    %v5041 = vadd.f32 %v4777, %v5033
    %v5042 = vadd.f32 %v4778, %v5034
    %v5043 = vld [vmem:[#allocation5] sm:$0x3]
    %v5044 = vld [vmem:[#allocation5 + $0x8] sm:$0x3]
    %v5045 = vld [vmem:[#allocation5 + $0x10] sm:$0x3]
    %v5046 = vld [vmem:[#allocation5 + $0x18] sm:$0x3]
    %v5047 = vpack.c.bf16 %v4772, %v4772
    %v5048 = vld [vmem:[#allocation6 + $0x100] sm:$0xff]
    %v5049 = vld [vmem:[#allocation6 + $0x108] sm:$0xff]
    %v5050 = vld [vmem:[#allocation6 + $0x110] sm:$0xff]
    %v5051 = vld [vmem:[#allocation6 + $0x118] sm:$0xff]
    %v5052 = vld [vmem:[#allocation6 + $0x120] sm:$0xff]
    %v5053 = vld [vmem:[#allocation6 + $0x128] sm:$0xff]
    %v5054 = vld [vmem:[#allocation6 + $0x130] sm:$0xff]
    %v5055 = vld [vmem:[#allocation6 + $0x138] sm:$0xff]
    %v5056 = vld [vmem:[#allocation6 + $0x140] sm:$0xff]
    %v5057 = vld [vmem:[#allocation6 + $0x148] sm:$0xff]
    %v5058 = vld [vmem:[#allocation6 + $0x150] sm:$0xff]
    %v5059 = vld [vmem:[#allocation6 + $0x158] sm:$0xff]
    %v5060 = vld [vmem:[#allocation6 + $0x160] sm:$0xff]
    %v5061 = vld [vmem:[#allocation6 + $0x168] sm:$0xff]
    %v5062 = vld [vmem:[#allocation6 + $0x170] sm:$0xff]
    %v5063 = vld [vmem:[#allocation6 + $0x178] sm:$0xff]
    %v5064 = vld [vmem:[#allocation6 + $0x180] sm:$0xff]
    %v5065 = vld [vmem:[#allocation6 + $0x188] sm:$0xff]
    %v5066 = vld [vmem:[#allocation6 + $0x190] sm:$0xff]
    %v5067 = vld [vmem:[#allocation6 + $0x198] sm:$0xff]
    %v5068 = vld [vmem:[#allocation6 + $0x1a0] sm:$0xff]
    %v5069 = vld [vmem:[#allocation6 + $0x1a8] sm:$0xff]
    %v5070 = vld [vmem:[#allocation6 + $0x1b0] sm:$0xff]
    %v5071 = vld [vmem:[#allocation6 + $0x1b8] sm:$0xff]
    %v5072 = vld [vmem:[#allocation6 + $0x1c0] sm:$0xff]
    %v5073 = vld [vmem:[#allocation6 + $0x1c8] sm:$0xff]
    %v5074 = vld [vmem:[#allocation6 + $0x1d0] sm:$0xff]
    %v5075 = vld [vmem:[#allocation6 + $0x1d8] sm:$0xff]
    %v5076 = vld [vmem:[#allocation6 + $0x1e0] sm:$0xff]
    %v5077 = vld [vmem:[#allocation6 + $0x1e8] sm:$0xff]
    %v5078 = vld [vmem:[#allocation6 + $0x1f0] sm:$0xff]
    %v5079 = vld [vmem:[#allocation6 + $0x1f8] sm:$0xff]
    %v5081 = vrot.slane %v5047, 1
    %v5115 = vunpack.c.l.b16 %v5048
    %v5116 = vunpack.c.h.b16 %v5048
    %v5117 = vunpack.c.l.b16 %v5049
    %v5118 = vunpack.c.h.b16 %v5049
    %v5119 = vunpack.c.l.b16 %v5050
    %v5120 = vunpack.c.h.b16 %v5050
    %v5121 = vunpack.c.l.b16 %v5051
    %v5122 = vunpack.c.h.b16 %v5051
    %v5123 = vunpack.c.l.b16 %v5052
    %v5124 = vunpack.c.h.b16 %v5052
    %v5125 = vunpack.c.l.b16 %v5053
    %v5126 = vunpack.c.h.b16 %v5053
    %v5127 = vunpack.c.l.b16 %v5054
    %v5128 = vunpack.c.h.b16 %v5054
    %v5129 = vunpack.c.l.b16 %v5055
    %v5130 = vunpack.c.h.b16 %v5055
    %v5131 = vunpack.c.l.b16 %v5056
    %v5132 = vunpack.c.h.b16 %v5056
    %v5133 = vunpack.c.l.b16 %v5057
    %v5134 = vunpack.c.h.b16 %v5057
    %v5135 = vunpack.c.l.b16 %v5058
    %v5136 = vunpack.c.h.b16 %v5058
    %v5137 = vunpack.c.l.b16 %v5059
    %v5138 = vunpack.c.h.b16 %v5059
    %v5139 = vunpack.c.l.b16 %v5060
    %v5140 = vunpack.c.h.b16 %v5060
    %v5141 = vunpack.c.l.b16 %v5061
    %v5142 = vunpack.c.h.b16 %v5061
    %v5143 = vunpack.c.l.b16 %v5062
    %v5144 = vunpack.c.h.b16 %v5062
    %v5145 = vunpack.c.l.b16 %v5063
    %v5146 = vunpack.c.h.b16 %v5063
    %v5147 = vunpack.c.l.b16 %v5064
    %v5148 = vunpack.c.h.b16 %v5064
    %v5149 = vunpack.c.l.b16 %v5065
    %v5150 = vunpack.c.h.b16 %v5065
    %v5151 = vunpack.c.l.b16 %v5066
    %v5152 = vunpack.c.h.b16 %v5066
    %v5153 = vunpack.c.l.b16 %v5067
    %v5154 = vunpack.c.h.b16 %v5067
    %v5155 = vunpack.c.l.b16 %v5068
    %v5156 = vunpack.c.h.b16 %v5068
    %v5157 = vunpack.c.l.b16 %v5069
    %v5158 = vunpack.c.h.b16 %v5069
    %v5159 = vunpack.c.l.b16 %v5070
    %v5160 = vunpack.c.h.b16 %v5070
    %v5161 = vunpack.c.l.b16 %v5071
    %v5162 = vunpack.c.h.b16 %v5071
    %v5163 = vunpack.c.l.b16 %v5072
    %v5164 = vunpack.c.h.b16 %v5072
    %v5165 = vunpack.c.l.b16 %v5073
    %v5166 = vunpack.c.h.b16 %v5073
    %v5167 = vunpack.c.l.b16 %v5074
    %v5168 = vunpack.c.h.b16 %v5074
    %v5169 = vunpack.c.l.b16 %v5075
    %v5170 = vunpack.c.h.b16 %v5075
    %v5171 = vunpack.c.l.b16 %v5076
    %v5172 = vunpack.c.h.b16 %v5076
    %v5173 = vunpack.c.l.b16 %v5077
    %v5174 = vunpack.c.h.b16 %v5077
    %v5175 = vunpack.c.l.b16 %v5078
    %v5176 = vunpack.c.h.b16 %v5078
    %v5177 = vunpack.c.l.b16 %v5079
    %v5178 = vunpack.c.h.b16 %v5079
    %v5179 = vpack.c.b16 %v5119, %v5115
    %v5180 = vpack.c.b16 %v5120, %v5116
    %v5181 = vpack.c.b16 %v5121, %v5117
    %v5182 = vpack.c.b16 %v5122, %v5118
    %v5183 = vpack.c.b16 %v5127, %v5123
    %v5184 = vpack.c.b16 %v5128, %v5124
    %v5185 = vpack.c.b16 %v5129, %v5125
    %v5186 = vpack.c.b16 %v5130, %v5126
    %v5187 = vpack.c.b16 %v5135, %v5131
    %v5188 = vpack.c.b16 %v5136, %v5132
    %v5189 = vpack.c.b16 %v5137, %v5133
    %v5190 = vpack.c.b16 %v5138, %v5134
    %v5191 = vpack.c.b16 %v5143, %v5139
    %v5192 = vpack.c.b16 %v5144, %v5140
    %v5193 = vpack.c.b16 %v5145, %v5141
    %v5194 = vpack.c.b16 %v5146, %v5142
    %v5195 = vpack.c.b16 %v5151, %v5147
    %v5196 = vpack.c.b16 %v5152, %v5148
    %v5197 = vpack.c.b16 %v5153, %v5149
    %v5198 = vpack.c.b16 %v5154, %v5150
    %v5199 = vpack.c.b16 %v5159, %v5155
    %v5200 = vpack.c.b16 %v5160, %v5156
    %v5201 = vpack.c.b16 %v5161, %v5157
    %v5202 = vpack.c.b16 %v5162, %v5158
    %v5203 = vpack.c.b16 %v5167, %v5163
    %v5204 = vpack.c.b16 %v5168, %v5164
    %v5205 = vpack.c.b16 %v5169, %v5165
    %v5206 = vpack.c.b16 %v5170, %v5166
    %v5207 = vpack.c.b16 %v5175, %v5171
    %v5208 = vpack.c.b16 %v5176, %v5172
    %v5209 = vpack.c.b16 %v5177, %v5173
    %v5210 = vpack.c.b16 %v5178, %v5174
    %5243 = vmatpush.bf16.msra.mxu0 %v5207
    %5244 = vmatpush.bf16.msra.mxu0 %v5203
    %5245 = vmatpush.bf16.msra.mxu0 %v5199
    %5246 = vmatpush.bf16.msra.mxu0 %v5195
    %5247 = vmatpush.bf16.msra.mxu0 %v5191
    %5248 = vmatpush.bf16.msra.mxu0 %v5187
    %5249 = vmatpush.bf16.msra.mxu0 %v5183
    %5250 = vmatpush.bf16.msra.mxu0 %v5179
    %5251 = vmatmul.bf16.gmra.mxu0 %v5081
    %v5252 = vpop.f32.mrf.mxu0
    %v5253 = vadd.f32 0.0, %v5252
    %v5254 = vpop.f32.mrf.mxu0
    %5255 = vdwg.mxu0
    %5256 = vmatpush.bf16.msra.mxu0 %v5208
    %5257 = vmatpush.bf16.msra.mxu0 %v5204
    %5258 = vmatpush.bf16.msra.mxu0 %v5200
    %5259 = vmatpush.bf16.msra.mxu0 %v5196
    %5260 = vmatpush.bf16.msra.mxu0 %v5192
    %5261 = vmatpush.bf16.msra.mxu0 %v5188
    %5262 = vmatpush.bf16.msra.mxu0 %v5184
    %5263 = vmatpush.bf16.msra.mxu0 %v5180
    %5264 = vmatmul.bf16.gmra.mxu0 %v5081
    %v5265 = vpop.f32.mrf.mxu0
    %v5266 = vadd.f32 0.0, %v5265
    %v5267 = vpop.f32.mrf.mxu0
    %5268 = vdwg.mxu0
    %5269 = vmatpush.bf16.msra.mxu0 %v5209
    %5270 = vmatpush.bf16.msra.mxu0 %v5205
    %5271 = vmatpush.bf16.msra.mxu0 %v5201
    %5272 = vmatpush.bf16.msra.mxu0 %v5197
    %5273 = vmatpush.bf16.msra.mxu0 %v5193
    %5274 = vmatpush.bf16.msra.mxu0 %v5189
    %5275 = vmatpush.bf16.msra.mxu0 %v5185
    %5276 = vmatpush.bf16.msra.mxu0 %v5181
    %5277 = vmatmul.bf16.gmra.mxu0 %v5081
    %v5278 = vpop.f32.mrf.mxu0
    %v5279 = vadd.f32 0.0, %v5278
    %v5280 = vpop.f32.mrf.mxu0
    %5281 = vdwg.mxu0
    %5282 = vmatpush.bf16.msra.mxu0 %v5210
    %5283 = vmatpush.bf16.msra.mxu0 %v5206
    %5284 = vmatpush.bf16.msra.mxu0 %v5202
    %5285 = vmatpush.bf16.msra.mxu0 %v5198
    %5286 = vmatpush.bf16.msra.mxu0 %v5194
    %5287 = vmatpush.bf16.msra.mxu0 %v5190
    %5288 = vmatpush.bf16.msra.mxu0 %v5186
    %5289 = vmatpush.bf16.msra.mxu0 %v5182
    %5290 = vmatmul.bf16.gmra.mxu0 %v5081
    %v5291 = vpop.f32.mrf.mxu0
    %v5292 = vadd.f32 0.0, %v5291
    %v5293 = vpop.f32.mrf.mxu0
    %5294 = vdwg.mxu0
    %v5295 = vadd.f32 %v5043, %v5253
    %v5296 = vadd.f32 %v5044, %v5266
    %v5297 = vadd.f32 %v5045, %v5279
    %v5298 = vadd.f32 %v5046, %v5292
    %v5299 = vxor.u32 %v5039, 2147483648
    %v5300 = vxor.u32 %v5040, 2147483648
    %v5301 = vxor.u32 %v5041, 2147483648
    %v5302 = vmul.f32 %v5299, 1.442695
    %v5303 = vpow.pop %v5302
    %v5304 = vmul.f32 %v5300, 1.442695
    %v5305 = vpow.pop %v5304
    %v5306 = vmul.f32 %v5301, 1.442695
    %v5307 = vpow.pop %v5306
    %v5308 = vadd.f32 %v5303, 1.0
    %v5309 = vadd.f32 %v5305, 1.0
    %v5310 = vadd.f32 %v5307, 1.0
    %v5311 = vrcp.pop %v5308
    %v5312 = vmul.f32 %v5308, %v5311
    %v5313 = vsub.f32 1.0, %v5312
    %v5314 = vmul.f32 %v5311, %v5313
    %v5315 = vadd.f32 %v5311, %v5314
    %vm5316 = vweird.f32 %v5308
    %vm5317 = vweird.f32 %v5311
    %vm5318 = vmor %vm5316, %vm5317
    %v5319 = vsel %vm5318, %v5311, %v5315
    %v5320 = vand.u32 2147483647, %v5308
    %vm5321 = vcmp.eq.f32.partialorder %v5320, 8.507059e+37
    %v5322 = vand.u32 %v5308, 2147483648
    %v5323 = vor.u32 1.1754944e-38, %v5322
    %v5324 = vsel %vm5321, %v5323, %v5319
    %v5325 = vmul.f32 1.0, %v5324
    %v5326 = vrcp.pop %v5309
    %v5327 = vmul.f32 %v5309, %v5326
    %v5328 = vsub.f32 1.0, %v5327
    %v5329 = vmul.f32 %v5326, %v5328
    %v5330 = vadd.f32 %v5326, %v5329
    %vm5331 = vweird.f32 %v5309
    %vm5332 = vweird.f32 %v5326
    %vm5333 = vmor %vm5331, %vm5332
    %v5334 = vsel %vm5333, %v5326, %v5330
    %v5335 = vand.u32 2147483647, %v5309
    %vm5336 = vcmp.eq.f32.partialorder %v5335, 8.507059e+37
    %v5337 = vand.u32 %v5309, 2147483648
    %v5338 = vor.u32 1.1754944e-38, %v5337
    %v5339 = vsel %vm5336, %v5338, %v5334
    %v5340 = vmul.f32 1.0, %v5339
    %v5341 = vrcp.pop %v5310
    %v5342 = vmul.f32 %v5310, %v5341
    %v5343 = vsub.f32 1.0, %v5342
    %v5344 = vmul.f32 %v5341, %v5343
    %v5345 = vadd.f32 %v5341, %v5344
    %vm5346 = vweird.f32 %v5310
    %vm5347 = vweird.f32 %v5341
    %vm5348 = vmor %vm5346, %vm5347
    %v5349 = vsel %vm5348, %v5341, %v5345
    %v5350 = vand.u32 2147483647, %v5310
    %vm5351 = vcmp.eq.f32.partialorder %v5350, 8.507059e+37
    %v5352 = vand.u32 %v5310, 2147483648
    %v5353 = vor.u32 1.1754944e-38, %v5352
    %v5354 = vsel %vm5351, %v5353, %v5349
    %v5355 = vmul.f32 1.0, %v5354
    %v5356 = vtanh.pop %v5042
    %v5358 = vrot.slane %v4704, 6
    %v5360 = vmul.f32 %v5340, %v5358
    %v5361 = vmul.f32 %v5325, %v5356
    %v5362 = vadd.f32 %v5360, %v5361
    %v5363 = vtanh.pop %v5362
    %v5364 = vmul.f32 %v5355, %v5363
    %v5365 = vxor.u32 %v5295, 2147483648
    %v5366 = vxor.u32 %v5296, 2147483648
    %v5367 = vxor.u32 %v5297, 2147483648
    %v5368 = vmul.f32 %v5365, 1.442695
    %v5369 = vpow.pop %v5368
    %v5370 = vmul.f32 %v5366, 1.442695
    %v5371 = vpow.pop %v5370
    %v5372 = vmul.f32 %v5367, 1.442695
    %v5373 = vpow.pop %v5372
    %v5374 = vadd.f32 %v5369, 1.0
    %v5375 = vadd.f32 %v5371, 1.0
    %v5376 = vadd.f32 %v5373, 1.0
    %v5377 = vrcp.pop %v5374
    %v5378 = vmul.f32 %v5374, %v5377
    %v5379 = vsub.f32 1.0, %v5378
    %v5380 = vmul.f32 %v5377, %v5379
    %v5381 = vadd.f32 %v5377, %v5380
    %vm5382 = vweird.f32 %v5374
    %vm5383 = vweird.f32 %v5377
    %vm5384 = vmor %vm5382, %vm5383
    %v5385 = vsel %vm5384, %v5377, %v5381
    %v5386 = vand.u32 2147483647, %v5374
    %vm5387 = vcmp.eq.f32.partialorder %v5386, 8.507059e+37
    %v5388 = vand.u32 %v5374, 2147483648
    %v5389 = vor.u32 1.1754944e-38, %v5388
    %v5390 = vsel %vm5387, %v5389, %v5385
    %v5391 = vmul.f32 1.0, %v5390
    %v5392 = vrcp.pop %v5375
    %v5393 = vmul.f32 %v5375, %v5392
    %v5394 = vsub.f32 1.0, %v5393
    %v5395 = vmul.f32 %v5392, %v5394
    %v5396 = vadd.f32 %v5392, %v5395
    %vm5397 = vweird.f32 %v5375
    %vm5398 = vweird.f32 %v5392
    %vm5399 = vmor %vm5397, %vm5398
    %v5400 = vsel %vm5399, %v5392, %v5396
    %v5401 = vand.u32 2147483647, %v5375
    %vm5402 = vcmp.eq.f32.partialorder %v5401, 8.507059e+37
    %v5403 = vand.u32 %v5375, 2147483648
    %v5404 = vor.u32 1.1754944e-38, %v5403
    %v5405 = vsel %vm5402, %v5404, %v5400
    %v5406 = vmul.f32 1.0, %v5405
    %v5407 = vrcp.pop %v5376
    %v5408 = vmul.f32 %v5376, %v5407
    %v5409 = vsub.f32 1.0, %v5408
    %v5410 = vmul.f32 %v5407, %v5409
    %v5411 = vadd.f32 %v5407, %v5410
    %vm5412 = vweird.f32 %v5376
    %vm5413 = vweird.f32 %v5407
    %vm5414 = vmor %vm5412, %vm5413
    %v5415 = vsel %vm5414, %v5407, %v5411
    %v5416 = vand.u32 2147483647, %v5376
    %vm5417 = vcmp.eq.f32.partialorder %v5416, 8.507059e+37
    %v5418 = vand.u32 %v5376, 2147483648
    %v5419 = vor.u32 1.1754944e-38, %v5418
    %v5420 = vsel %vm5417, %v5419, %v5415
    %v5421 = vmul.f32 1.0, %v5420
    %v5422 = vtanh.pop %v5298
    %v5424 = vrot.slane %v4770, 2
    %v5426 = vmul.f32 %v5406, %v5424
    %v5427 = vmul.f32 %v5391, %v5422
    %v5428 = vadd.f32 %v5426, %v5427
    %v5429 = vtanh.pop %v5428
    %v5430 = vmul.f32 %v5421, %v5429
    %5431 = vst [vmem:[%s5 + $0x8] sm:$0xc0] %v5364
    %5432 = vst [vmem:[%s124] sm:$0x3] %v5430
    %5433 = vst [vmem:[#allocation2 - $0x6] sm:$0xc0] %v5364
    %5434 = vst [vmem:[#allocation2 + $0x2] sm:$0x3] %v5430
    %5435 = vst [vmem:[#allocation3 - $0x6] sm:$0xc0] %v5362
    %5436 = vst [vmem:[#allocation3 + $0x2] sm:$0x3] %v5428
    %5437 = vst [vmem:[%s7 - $0x6] sm:$0xc0] %v5362
    %5438 = vst [vmem:[%s7 + $0x2] sm:$0x3] %v5428
    %s5439 = ssub.s32 0, 0
    %s5440 = smul.u32 2, %s5439
    %p5441 = scmp.lt.s32.totalorder %s5440, 1
    %s5442 = scalar_select %p5441, %s5440, 1
    %s5443 = smul.addr %s5442, 8
    %s5444 = scalar_lea.vmem %s6, %s5443
    // Predicated region
    $region76: #{awareness_lstm_forward.6} parent=1 // pred_check
      _
    $region77: #{awareness_lstm_forward.6} parent=1 // pred_check_branch
      %5446 = sbr.rel (0) target = $region79
    $region78: #{awareness_lstm_forward.6} parent=1 // pred_region
      _
    $region79: #{awareness_lstm_forward.6} parent=1 // pred_fallthru
      _
    // Predicated region
    $region80: #{awareness_lstm_forward.6} parent=1 // pred_check
      _
    $region81: #{awareness_lstm_forward.6} parent=1 // pred_check_branch
      %5448 = sbr.rel (0) target = $region83
    $region82: #{awareness_lstm_forward.6} parent=1 // pred_region
      %s5449 = ssub.s32 0, 0
      %s5450 = smul.u32 2, %s5449
    $region83: #{awareness_lstm_forward.6} parent=1 // pred_fallthru
      _
    // Predicated region
    $region84: #{awareness_lstm_forward.6} parent=1 // pred_check
      _
    $region85: #{awareness_lstm_forward.6} parent=1 // pred_check_branch
      %5452 = sbr.rel (0) target = $region87
    $region86: #{awareness_lstm_forward.6} parent=1 // pred_region
      _
    $region87: #{awareness_lstm_forward.6} parent=1 // pred_fallthru
      _
    // Predicated region
    $region88: #{awareness_lstm_forward.6} parent=1 // pred_check
      _
    $region89: #{awareness_lstm_forward.6} parent=1 // pred_check_branch
      %5454 = sbr.rel (0) target = $region91
    $region90: #{awareness_lstm_forward.6} parent=1 // pred_region
      _
    $region91: #{awareness_lstm_forward.6} parent=1 // pred_fallthru
      _
    // Predicated region
    $region92: #{awareness_lstm_forward.6} parent=1 // pred_check
      _
    $region93: #{awareness_lstm_forward.6} parent=1 // pred_check_branch
      %5456 = sbr.rel (0) target = $region95
    $region94: #{awareness_lstm_forward.6} parent=1 // pred_region
      %s5457 = ssub.s32 0, 0
      %s5458 = smul.u32 2, %s5457
      %p5459 = scmp.lt.s32.totalorder %s5458, 1
      %s5460 = scalar_select %p5459, %s5458, 1
      %s5461 = smul.addr %s5460, 8
      %s5462 = scalar_lea.vmem %s6, %s5461
    $region95: #{awareness_lstm_forward.6} parent=1 // pred_fallthru
      _
    // Predicated region
    $region96: #{awareness_lstm_forward.6} parent=1 // pred_check
      _
    $region97: #{awareness_lstm_forward.6} parent=1 // pred_check_branch
      %5464 = sbr.rel (0) target = $region99
    $region98: #{awareness_lstm_forward.6} parent=1 // pred_region
      _
    $region99: #{awareness_lstm_forward.6} parent=1 // pred_fallthru
      _
    %5465 = vsyncpa [#allocation7], 1

</llo_original>
